<compile_context>
chip_gen: v6e
topology: v6e:2x2x1
jax: 0.10.0
libtpu: 0.0.40
codegen_flags: <defaults>
</compile_context>

<pallas_src>
import jax
import jax.numpy as jnp
from jax import lax
from jax.experimental import pallas as pl
from jax.experimental.pallas import tpu as pltpu

BN_EPS = 1e-5

# Dilated 5x5 depthwise conv geometry (the surviving 'dil_conv_5x5' op).
DW_K = 5
DW_DIL = 2
DW_PAD = DW_DIL * (DW_K - 1) // 2          # = 4

# MXU-native operand dtype; accumulation stays f32.
MATMUL_DTYPE = jnp.bfloat16

# Standard DARTS primitive list (only used for the alpha-vector length; only
# the op for the last primitive survives in MixedOp._ops, see note above).
PRIMITIVES = [
    "none", "max_pool_3x3", "avg_pool_3x3", "skip_connect",
    "sep_conv_3x3", "sep_conv_5x5", "dil_conv_3x3", "dil_conv_5x5",
]


def _vmem_limit_bytes():
    # v5e/v6e: 128 MiB physical -> 96 MiB scoped; v7x: 64 MiB -> 48 MiB.
    try:
        cap = int(pltpu.get_tpu_info().vmem_capacity_bytes)
        return min((cap * 3) // 4, 100 * 1024 * 1024)
    except Exception:
        return 32 * 1024 * 1024


VMEM_LIMIT = _vmem_limit_bytes()


def _pick_tile_rows(m, target=1024):
    """Largest multiple of 8 <= target that divides m (fallback: m itself)."""
    t = min(m, target)
    t -= t % 8
    while t >= 8:
        if m % t == 0:
            return t
        t -= 8
    return m


# --------------------------------------------------------------------------
# Kernel 1: stem ReLU -> 1x1 conv (channel matmul) + per-tile BN partials.
#   grid (stems, M tiles), both "parallel".  Two-phase BN: the tiny
#   per-channel reduction happens on (S, 2, C) vectors in the wrapper.
# --------------------------------------------------------------------------
def _stem_kernel(x_ref, w_ref, y_ref, st_ref):
    h = jnp.maximum(x_ref[0], 0.0).astype(MATMUL_DTYPE)
    y = jnp.dot(h, w_ref[0], preferred_element_type=jnp.float32)
    st_ref[0, 0] = jnp.concatenate(
        [jnp.sum(y, axis=0, keepdims=True),
         jnp.sum(y * y, axis=0, keepdims=True)], axis=0)
    y_ref[0] = y.astype(y_ref.dtype)


def stem_relu_conv_stats(x_stack, w_stack):
    """x_stack: (S, M, Cin) f32, w_stack: (S, Cin, C) bf16.
    Returns y (S, M, C) bf16 (un-normalized), mean (S, C), inv_std (S, C)."""
    S, M, Cin = x_stack.shape
    Cout = w_stack.shape[-1]
    tm = _pick_tile_rows(M, 1024)
    nt = M // tm
    y, stats = pl.pallas_call(
        _stem_kernel,
        out_shape=(jax.ShapeDtypeStruct((S, M, Cout), MATMUL_DTYPE),
                   jax.ShapeDtypeStruct((S, nt, 2, Cout), jnp.float32)),
        grid=(S, nt),
        in_specs=[pl.BlockSpec((1, tm, Cin), lambda s, i: (s, i, 0)),
                  pl.BlockSpec((1, Cin, Cout), lambda s, i: (s, 0, 0))],
        out_specs=(pl.BlockSpec((1, tm, Cout), lambda s, i: (s, i, 0)),
                   pl.BlockSpec((1, 1, 2, Cout), lambda s, i: (s, i, 0, 0))),
        compiler_params=pltpu.CompilerParams(
            dimension_semantics=("parallel", "parallel"),
            vmem_limit_bytes=VMEM_LIMIT),
        cost_estimate=pl.CostEstimate(
            flops=2 * S * M * Cin * Cout, transcendentals=0,
            bytes_accessed=4 * S * M * Cin + 2 * S * Cin * Cout
                           + 2 * S * M * Cout + 4 * S * nt * 2 * Cout),
    )(x_stack, w_stack)
    s = jnp.sum(stats, axis=1)                        # (S, 2, Cout)
    mean = s[:, 0] / M
    var = jnp.maximum(s[:, 1] / M - mean * mean, 0.0)  # biased var (PyTorch BN)
    inv = lax.rsqrt(var + BN_EPS)
    return y, mean, inv


# --------------------------------------------------------------------------
# Kernel 2: fused DilConv (ReLU -> 5x5 dil-2 depthwise -> 1x1 pointwise) for
#   ALL edges leaving a batch of source states, plus per-image BN partials.
#   The depthwise*pointwise product is pre-composed in the wrapper, so the
#   whole op is 5 row-tap MXU matmuls (HW, 5C) x (5C, E*C) in f32 accum.
#   An optional per-channel input affine (producer's folded BN) is applied
#   before the ReLU, so states never round-trip HBM in padded/normalized form.
# --------------------------------------------------------------------------
def _make_dilconv_kernel(H, W, C, E):
    HW = H * W
    EC = E * C

    def kernel(x_ref, aff_ref, w_ref, y_ref, st_ref, xpad_ref):
        # x_ref:   (1, 1, H, W, C)   plain (unpadded) source state
        # aff_ref: (1, 2, C)         input scale/bias (folded BN of producer)
        # w_ref:   (1, 5, 5C, E*C)   composed dw*pw weights, row-tap major
        # y_ref:   (1, 1, E, HW, C)  un-normalized per-edge outputs (bf16)
        # st_ref:  (1, 1, 2, E*C)    per-image partial (sum, sumsq)
        # xpad_ref: VMEM (H+8, W+8, C) zero-padded ReLU'd input (scratch)
        a = aff_ref[0]
        sc = a[0:1, :].reshape(1, 1, C)
        bs = a[1:2, :].reshape(1, 1, C)
        x = x_ref[0, 0].astype(jnp.float32)
        h = jnp.maximum(x * sc + bs, 0.0).astype(MATMUL_DTYPE)

        # Zero-fill + interior slice store (no concat-with-zeros temporaries;
        # done every step so it stays correct when the grid is megacore-split).
        xpad_ref[...] = jnp.zeros_like(xpad_ref)
        xpad_ref[DW_PAD:DW_PAD + H, DW_PAD:DW_PAD + W, :] = h

        acc = jnp.zeros((HW, EC), jnp.float32)
        for ki in range(DW_K):                        # 5 row-tap matmuls
            r = DW_DIL * ki
            cols = [xpad_ref[r:r + H, DW_DIL * kj:DW_DIL * kj + W, :]
                    for kj in range(DW_K)]
            op = jnp.concatenate(cols, axis=-1).reshape(HW, DW_K * C)
            acc = acc + jnp.dot(op, w_ref[0, ki],
                                preferred_element_type=jnp.float32)

        st_ref[0, 0] = jnp.concatenate(
            [jnp.sum(acc, axis=0, keepdims=True),
             jnp.sum(acc * acc, axis=0, keepdims=True)], axis=0)
        yb = acc.astype(y_ref.dtype)
        for e in range(E):                            # per-edge column groups
            y_ref[0, 0, e] = yb[:, e * C:(e + 1) * C]
    return kernel


def dilconv_sources(x, in_affine, w_taps):
    """x: (S, N, H, W, C) source states; in_affine: (S, 2, C) scale/bias applied
    before the ReLU; w_taps: (S, 5, 5C, E*C) bf16 composed weights.
    Returns y (S, N, E, HW, C) bf16, mean (S, E, C), inv_std (S, E, C)."""
    S, N, H, W, C = x.shape
    EC = w_taps.shape[-1]
    E = EC // C
    HW = H * W
    Hp, Wp = H + 2 * DW_PAD, W + 2 * DW_PAD
    y, stats = pl.pallas_call(
        _make_dilconv_kernel(H, W, C, E),
        out_shape=(jax.ShapeDtypeStruct((S, N, E, HW, C), MATMUL_DTYPE),
                   jax.ShapeDtypeStruct((S, N, 2, EC), jnp.float32)),
        grid=(S, N),
        in_specs=[pl.BlockSpec((1, 1, H, W, C), lambda s, n: (s, n, 0, 0, 0)),
                  pl.BlockSpec((1, 2, C), lambda s, n: (s, 0, 0)),
                  pl.BlockSpec((1, DW_K, DW_K * C, EC),
                               lambda s, n: (s, 0, 0, 0))],
        out_specs=(pl.BlockSpec((1, 1, E, HW, C),
                                lambda s, n: (s, n, 0, 0, 0)),
                   pl.BlockSpec((1, 1, 2, EC), lambda s, n: (s, n, 0, 0))),
        scratch_shapes=[pltpu.VMEM((Hp, Wp, C), MATMUL_DTYPE)],
        compiler_params=pltpu.CompilerParams(
            dimension_semantics=("parallel", "parallel"),
            vmem_limit_bytes=VMEM_LIMIT),
        cost_estimate=pl.CostEstimate(
            flops=2 * S * N * HW * (DW_K * DW_K * C) * EC, transcendentals=0,
            bytes_accessed=int(x.size * x.dtype.itemsize) + 4 * S * 2 * C
                           + 2 * S * DW_K * DW_K * C * EC
                           + 2 * S * N * E * HW * C + 4 * S * N * 2 * EC),
    )(x, in_affine, w_taps)
    M = N * HW
    s = jnp.sum(stats, axis=1)                        # (S, 2, EC)
    mean = s[:, 0] / M
    var = jnp.maximum(s[:, 1] / M - mean * mean, 0.0)
    inv = lax.rsqrt(var + BN_EPS)
    return y, mean.reshape(S, E, C), inv.reshape(S, E, C)


# --------------------------------------------------------------------------
# Kernel 3: per-node fused "folded BN*alpha affine + edge sum" producing the
#   plain node state directly (no padded copy, no per-edge HBM round trips).
# --------------------------------------------------------------------------
def _make_node_sum_kernel(m):
    def kernel(aff_ref, *refs):
        y_refs = refs[:m]
        out_ref = refs[m]
        acc = None
        for j in range(m):
            y = y_refs[j][0, 0, 0].astype(jnp.float32)        # (thw, C)
            z = y * aff_ref[j, 0:1, :] + aff_ref[j, 1:2, :]
            acc = z if acc is None else acc + z
        out_ref[0] = acc
    return kernel


def node_sum(aff, y_arrays, selectors, N, HW, C):
    """aff: (m, 2, C) folded (alpha*inv_std, -alpha*mean*inv_std) per edge.
    y_arrays[j]: (S_j, N, E_j, HW, C) bf16; selectors[j] = (src_idx, edge_slot).
    Returns the node state (N, HW, C) f32."""
    m = len(y_arrays)
    thw = _pick_tile_rows(HW, 2048)
    nt = HW // thw
    in_specs = [pl.BlockSpec(aff.shape, lambda n, t: (0, 0, 0))]
    for (s_idx, slot) in selectors:
        in_specs.append(pl.BlockSpec(
            (1, 1, 1, thw, C),
            lambda n, t, s=s_idx, e=slot: (s, n, e, t, 0)))
    return pl.pallas_call(
        _make_node_sum_kernel(m),
        out_shape=jax.ShapeDtypeStruct((N, HW, C), jnp.float32),
        grid=(N, nt),
        in_specs=in_specs,
        out_specs=pl.BlockSpec((1, thw, C), lambda n, t: (n, t, 0)),
        compiler_params=pltpu.CompilerParams(
            dimension_semantics=("parallel", "parallel"),
            vmem_limit_bytes=VMEM_LIMIT),
        cost_estimate=pl.CostEstimate(
            flops=2 * m * N * HW * C, transcendentals=0,
            bytes_accessed=2 * m * N * HW * C + 4 * N * HW * C + 4 * aff.size),
    )(aff, *y_arrays)


# --------------------------------------------------------------------------
# Weight composition and parameter setup
# --------------------------------------------------------------------------
def _compose_w_taps(wdw_list, wpw_list):
    """Exact fusion of depthwise(5x5,dil2)->pointwise(1x1) for a list of edges.
    Returns (5, 5*C, E*Co) with
    w[ki, kj*C + c, e*Co + o] = wdw_e[ki*5 + kj, c] * wpw_e[c, o]."""
    per_edge = []
    for wdw, wpw in zip(wdw_list, wpw_list):
        C = wdw.shape[1]
        per_edge.append(wdw.reshape(DW_K, DW_K, C, 1)
                        * wpw.reshape(1, 1, C, -1))            # (5, 5, C, Co)
    stacked = jnp.stack(per_edge, axis=0)                      # (E, 5, 5, C, Co)
    E, _, _, C, Co = stacked.shape
    return jnp.transpose(stacked, (1, 2, 3, 0, 4)).reshape(DW_K, DW_K * C, E * Co)


def init_cell_params(key, num_nodes, C_pp, C_p, C):
    n_edges = sum(2 + i for i in range(num_nodes))
    keys = jax.random.split(key, 2 + 2 * n_edges)
    return {
        "w0": 0.1 * jax.random.normal(keys[0], (C_pp, C), jnp.float32),
        "w1": 0.1 * jax.random.normal(keys[1], (C_p, C), jnp.float32),
        "wdw": [0.1 * jax.random.normal(keys[2 + 2 * e], (25, C), jnp.float32)
                for e in range(n_edges)],          # per-edge depthwise 5x5 taps
        "wpw": [0.1 * jax.random.normal(keys[3 + 2 * e], (C, C), jnp.float32)
                for e in range(n_edges)],          # per-edge pointwise 1x1
    }


# --------------------------------------------------------------------------
# Cell forward (wrapper glue)
# --------------------------------------------------------------------------
def cell_forward(params, num_nodes, s0_nchw, s1_nchw, weights_alpha):
    # Non-reduction configuration (reduction=False, reduction_prev=False).
    s0 = jnp.transpose(s0_nchw, (0, 2, 3, 1)).astype(jnp.float32)   # NCHW->NHWC
    s1 = jnp.transpose(s1_nchw, (0, 2, 3, 1)).astype(jnp.float32)
    N, H, W, C_pp = s0.shape
    C_p = s1.shape[-1]
    C = params["w0"].shape[1]
    HW = H * W

    # DAG bookkeeping: edge indices per destination node / per source state.
    outgoing = {s: [] for s in range(num_nodes + 2)}
    node_in_edges = []
    offset = 0
    for i in range(num_nodes):
        edges_i = []
        for j in range(2 + i):
            outgoing[j].append(offset + j)
            edges_i.append(offset + j)
        node_in_edges.append(edges_i)
        offset += 2 + i

    # ---- stems: ReLU -> 1x1 conv (+ two-phase BN stats), one batched call.
    w0 = params["w0"].astype(MATMUL_DTYPE)
    w1 = params["w1"].astype(MATMUL_DTYPE)
    if C_pp == C_p:
        y_stem, stem_mean, stem_inv = stem_relu_conv_stats(
            jnp.stack([s0.reshape(N * HW, C_pp), s1.reshape(N * HW, C_p)], 0),
            jnp.stack([w0, w1], 0))
    else:
        p0 = stem_relu_conv_stats(s0.reshape(1, N * HW, C_pp), w0[None])
        p1 = stem_relu_conv_stats(s1.reshape(1, N * HW, C_p), w1[None])
        y_stem = jnp.concatenate([p0[0], p1[0]], axis=0)
        stem_mean = jnp.concatenate([p0[1], p1[1]], axis=0)
        stem_inv = jnp.concatenate([p0[2], p1[2]], axis=0)

    # ---- dil_conv_5x5 for both stem sources, batched into one call.  The
    # stem BN is folded into the kernel's per-channel input affine.
    w_taps01 = jnp.stack(
        [_compose_w_taps([params["wdw"][e] for e in outgoing[s]],
                         [params["wpw"][e] for e in outgoing[s]])
         for s in (0, 1)], axis=0).astype(MATMUL_DTYPE)
    aff01 = jnp.stack([stem_inv, -stem_mean * stem_inv], axis=1)    # (2, 2, C)
    y01, mean01, inv01 = dilconv_sources(
        y_stem.reshape(2, N, H, W, C), aff01, w_taps01)

    # edge -> (y array, src index within that array, edge slot, mean, inv_std)
    edge_data = {}
    for s in (0, 1):
        for k, e in enumerate(outgoing[s]):
            edge_data[e] = (y01, s, k, mean01[s, k], inv01[s, k])

    # Identity input affine for already-normalized node states.
    aff_id = jnp.stack([jnp.ones((1, C), jnp.float32),
                        jnp.zeros((1, C), jnp.float32)], axis=1)    # (1, 2, C)

    node_states = []
    for i in range(num_nodes):
        y_arrays, sel, scales, biases = [], [], [], []
        for e in node_in_edges[i]:
            ya, s_idx, slot, mean_c, inv_c = edge_data[e]
            # MixedOp: only weights_alpha[e, 0] participates (single op in _ops).
            alpha = weights_alpha[e, 0].astype(jnp.float32)
            scales.append(alpha * inv_c)                # fold alpha into BN scale
            biases.append(-alpha * mean_c * inv_c)
            y_arrays.append(ya)
            sel.append((s_idx, slot))
        aff = jnp.stack([jnp.stack(scales, 0), jnp.stack(biases, 0)], axis=1)
        state = node_sum(aff, y_arrays, sel, N, HW, C)  # (N, HW, C) f32
        node_states.append(state)

        src = i + 2
        if outgoing[src]:                               # node feeds later edges
            w_taps_s = _compose_w_taps(
                [params["wdw"][e] for e in outgoing[src]],
                [params["wpw"][e] for e in outgoing[src]]
            )[None].astype(MATMUL_DTYPE)
            y_s, mean_s, inv_s = dilconv_sources(
                state.reshape(1, N, H, W, C), aff_id, w_taps_s)
            for k, e in enumerate(outgoing[src]):
                edge_data[e] = (y_s, 0, k, mean_s[0, k], inv_s[0, k])

    out = jnp.concatenate([st.reshape(N, H, W, C) for st in node_states],
                          axis=-1)                      # states[-num_nodes:]
    return jnp.transpose(out, (0, 3, 1, 2))             # NHWC -> NCHW


# --------------------------------------------------------------------------
# Pure-JAX reference (mirrors the PyTorch module math, unfused) for self-check
# --------------------------------------------------------------------------
def _ref_bn(y):
    mean = y.mean(axis=(0, 1, 2), keepdims=True)
    var = ((y - mean) ** 2).mean(axis=(0, 1, 2), keepdims=True)
    return (y - mean) * lax.rsqrt(var + BN_EPS)


def _ref_relu_conv_bn(x, w):
    h = jnp.maximum(x, 0.0)
    y = jnp.einsum("nhwc,cd->nhwd", h, w)
    return _ref_bn(y)


def _ref_dilconv(x, wdw, wpw):
    N, H, W, C = x.shape
    h = jnp.maximum(x, 0.0)
    hp = jnp.pad(h, ((0, 0), (DW_PAD, DW_PAD), (DW_PAD, DW_PAD), (0, 0)))
    acc = jnp.zeros_like(x)
    for ki in range(DW_K):
        for kj in range(DW_K):
            acc = acc + hp[:, DW_DIL * ki:DW_DIL * ki + H,
                           DW_DIL * kj:DW_DIL * kj + W, :] \
                      * wdw[ki * DW_K + kj].reshape(1, 1, 1, C)
    y = jnp.einsum("nhwc,cd->nhwd", acc, wpw)
    return _ref_bn(y)


def cell_forward_ref(params, num_nodes, s0_nchw, s1_nchw, weights_alpha):
    s0 = jnp.transpose(s0_nchw, (0, 2, 3, 1)).astype(jnp.float32)
    s1 = jnp.transpose(s1_nchw, (0, 2, 3, 1)).astype(jnp.float32)
    s0 = _ref_relu_conv_bn(s0, params["w0"])
    s1 = _ref_relu_conv_bn(s1, params["w1"])
    states = [s0, s1]
    offset = 0
    for i in range(num_nodes):
        node = None
        for j, h in enumerate(states):
            e = offset + j
            y = weights_alpha[e, 0] * _ref_dilconv(h, params["wdw"][e],
                                                   params["wpw"][e])
            node = y if node is None else node + y
        offset += len(states)
        states.append(node)
    out = jnp.concatenate(states[-num_nodes:], axis=-1)
    return jnp.transpose(out, (0, 3, 1, 2))


if __name__ == "__main__":
    num_nodes, C_pp, C_p, C = 2, 8, 8, 8
    N, H, W = 2, 8, 8
    key = jax.random.PRNGKey(0)
    kp, ks0, ks1, ka = jax.random.split(key, 4)

    params = init_cell_params(kp, num_nodes, C_pp, C_p, C)
    s0 = jax.random.normal(ks0, (N, C_pp, H, W), jnp.float32)   # NCHW like PyTorch
    s1 = jax.random.normal(ks1, (N, C_p, H, W), jnp.float32)
    n_edges = sum(2 + i for i in range(num_nodes))
    weights_alpha = jax.nn.softmax(
        jax.random.normal(ka, (n_edges, len(PRIMITIVES)), jnp.float32), axis=-1)

    fwd = jax.jit(lambda p, a, b, w: cell_forward(p, num_nodes, a, b, w))
    out = jax.block_until_ready(fwd(params, s0, s1, weights_alpha))

    assert out.shape == (N, num_nodes * C, H, W), out.shape
    assert bool(jnp.all(jnp.isfinite(out)))

    # Self-check against a pure-JAX f32 reference of the original (unfused)
    # math; tolerance covers the bf16 MXU operands / bf16 y intermediate.
    ref = cell_forward_ref(params, num_nodes, s0, s1, weights_alpha)
    max_err = float(jnp.max(jnp.abs(out - ref)))
    assert max_err < 3e-2, max_err

    print("KERNEL_OK")
</pallas_src>

<mosaic_0001>
module attributes {stable_mosaic.version = 11 : i64} {
  func.func @_stem_kernel(%arg0: i32, %arg1: i32, %arg2: memref<1x128x8xf32, #tpu.memory_space<vmem>>, %arg3: memref<1x8x8xbf16, #tpu.memory_space<vmem>>, %arg4: memref<1x128x8xbf16, #tpu.memory_space<vmem>>, %arg5: memref<1x1x2x8xf32, #tpu.memory_space<vmem>>) attributes {dimension_semantics = [#tpu.dimension_semantics<parallel>, #tpu.dimension_semantics<parallel>], iteration_bounds = array<i64: 2, 1>, scalar_prefetch = 0 : i64, scratch_operands = 0 : i64, tpu.core_type = #tpu.core_type<tc>, window_params = [{transform_indices = @transform_0, window_bounds = array<i64: 1, 128, 8>}, {transform_indices = @transform_1, window_bounds = array<i64: 1, 8, 8>}, {transform_indices = @transform_2, window_bounds = array<i64: 1, 128, 8>}, {transform_indices = @transform_3, window_bounds = array<i64: 1, 1, 2, 8>}]} {
    %c0 = arith.constant 0 : index
    %c0_0 = arith.constant 0 : index
    %c0_1 = arith.constant 0 : index
    %0 = vector.load %arg2[%c0, %c0_0, %c0_1] : memref<1x128x8xf32, #tpu.memory_space<vmem>>, vector<1x128x8xf32>
    %1 = vector.shape_cast %0 : vector<1x128x8xf32> to vector<128x8xf32>
    %cst = arith.constant 0.000000e+00 : f32
    %2 = vector.broadcast %cst : f32 to vector<128x8xf32>
    %3 = arith.maximumf %1, %2 : vector<128x8xf32>
    %4 = arith.truncf %3 : vector<128x8xf32> to vector<128x8xbf16>
    %c0_2 = arith.constant 0 : index
    %c0_3 = arith.constant 0 : index
    %c0_4 = arith.constant 0 : index
    %5 = vector.load %arg3[%c0_2, %c0_3, %c0_4] : memref<1x8x8xbf16, #tpu.memory_space<vmem>>, vector<1x8x8xbf16>
    %6 = vector.shape_cast %5 : vector<1x8x8xbf16> to vector<8x8xbf16>
    %cst_5 = arith.constant dense<0.000000e+00> : vector<128x8xf32>
    %7 = tpu.matmul %4, %6, %cst_5 {dimension_numbers = #tpu.dot_dimension_numbers<[1], [0], [0], [1], [0, 0, 1, 1], [], []>} : vector<128x8xbf16>, vector<8x8xbf16>, vector<128x8xf32> -> vector<128x8xf32>
    %cst_6 = arith.constant dense<0.000000e+00> : vector<8xf32>
    %8 = vector.multi_reduction <add>, %7, %cst_6 [0] : vector<128x8xf32> to vector<8xf32>
    %9 = vector.shape_cast %8 : vector<8xf32> to vector<1x8xf32>
    %10 = arith.mulf %7, %7 : vector<128x8xf32>
    %cst_7 = arith.constant dense<0.000000e+00> : vector<8xf32>
    %11 = vector.multi_reduction <add>, %10, %cst_7 [0] : vector<128x8xf32> to vector<8xf32>
    %12 = vector.shape_cast %11 : vector<8xf32> to vector<1x8xf32>
    %13 = tpu.concatenate %9, %12 in 0 : vector<1x8xf32>, vector<1x8xf32> -> vector<2x8xf32>
    %c0_8 = arith.constant 0 : index
    %c0_9 = arith.constant 0 : index
    %c0_10 = arith.constant 0 : index
    %c0_11 = arith.constant 0 : index
    %14 = vector.load %arg5[%c0_8, %c0_9, %c0_10, %c0_11] : memref<1x1x2x8xf32, #tpu.memory_space<vmem>>, vector<1x1x2x8xf32>
    %15 = vector.shape_cast %14 : vector<1x1x2x8xf32> to vector<2x8xf32>
    %16 = vector.shape_cast %13 : vector<2x8xf32> to vector<1x1x2x8xf32>
    tpu.vector_store %arg5[%c0_8, %c0_9, %c0_10, %c0_11], %16 {strides = array<i32>} : memref<1x1x2x8xf32, #tpu.memory_space<vmem>>, vector<1x1x2x8xf32>,
    %17 = arith.truncf %7 : vector<128x8xf32> to vector<128x8xbf16>
    %c0_12 = arith.constant 0 : index
    %c0_13 = arith.constant 0 : index
    %c0_14 = arith.constant 0 : index
    %18 = vector.load %arg4[%c0_12, %c0_13, %c0_14] : memref<1x128x8xbf16, #tpu.memory_space<vmem>>, vector<1x128x8xbf16>
    %19 = vector.shape_cast %18 : vector<1x128x8xbf16> to vector<128x8xbf16>
    %20 = vector.shape_cast %17 : vector<128x8xbf16> to vector<1x128x8xbf16>
    tpu.vector_store %arg4[%c0_12, %c0_13, %c0_14], %20 {strides = array<i32>} : memref<1x128x8xbf16, #tpu.memory_space<vmem>>, vector<1x128x8xbf16>,
    return
  }
  func.func @transform_0(%arg0: i32, %arg1: i32) -> (i32, i32, i32) {
    %c0_i32 = arith.constant 0 : i32
    %c0_i32_0 = arith.constant 0 : i32
    return %arg0, %arg1, %c0_i32 : i32, i32, i32
  }
  func.func @transform_1(%arg0: i32, %arg1: i32) -> (i32, i32, i32) {
    %c0_i32 = arith.constant 0 : i32
    %c0_i32_0 = arith.constant 0 : i32
    %c0_i32_1 = arith.constant 0 : i32
    return %arg0, %c0_i32, %c0_i32_0 : i32, i32, i32
  }
  func.func @transform_2(%arg0: i32, %arg1: i32) -> (i32, i32, i32) {
    %c0_i32 = arith.constant 0 : i32
    %c0_i32_0 = arith.constant 0 : i32
    return %arg0, %arg1, %c0_i32 : i32, i32, i32
  }
  func.func @transform_3(%arg0: i32, %arg1: i32) -> (i32, i32, i32, i32) {
    %c0_i32 = arith.constant 0 : i32
    %c0_i32_0 = arith.constant 0 : i32
    %c0_i32_1 = arith.constant 0 : i32
    return %arg0, %arg1, %c0_i32, %c0_i32_0 : i32, i32, i32, i32
  }
}

module attributes {stable_mosaic.version = 11 : i64} {
  func.func @kernel(%arg0: i32, %arg1: i32, %arg2: memref<1x1x8x8x8xbf16, #tpu.memory_space<vmem>>, %arg3: memref<1x2x8xf32, #tpu.memory_space<vmem>>, %arg4: memref<1x5x40x16xbf16, #tpu.memory_space<vmem>>, %arg5: memref<1x1x2x64x8xbf16, #tpu.memory_space<vmem>>, %arg6: memref<1x1x2x16xf32, #tpu.memory_space<vmem>>, %arg7: memref<16x16x8xbf16, #tpu.memory_space<vmem>>) attributes {dimension_semantics = [#tpu.dimension_semantics<parallel>, #tpu.dimension_semantics<parallel>], iteration_bounds = array<i64: 2, 2>, scalar_prefetch = 0 : i64, scratch_operands = 1 : i64, tpu.core_type = #tpu.core_type<tc>, window_params = [{transform_indices = @transform_0, window_bounds = array<i64: 1, 1, 8, 8, 8>}, {transform_indices = @transform_1, window_bounds = array<i64: 1, 2, 8>}, {transform_indices = @transform_2, window_bounds = array<i64: 1, 5, 40, 16>}, {transform_indices = @transform_3, window_bounds = array<i64: 1, 1, 2, 64, 8>}, {transform_indices = @transform_4, window_bounds = array<i64: 1, 1, 2, 16>}]} {
    %c0 = arith.constant 0 : index
    %c0_0 = arith.constant 0 : index
    %c0_1 = arith.constant 0 : index
    %0 = vector.load %arg3[%c0, %c0_0, %c0_1] : memref<1x2x8xf32, #tpu.memory_space<vmem>>, vector<1x2x8xf32>
    %1 = vector.shape_cast %0 : vector<1x2x8xf32> to vector<2x8xf32>
    %2 = vector.extract_strided_slice %1 {offsets = [0, 0], sizes = [1, 8], strides = [1, 1]} : vector<2x8xf32> to vector<1x8xf32>
    %3 = vector.shape_cast %2 : vector<1x8xf32> to vector<1x1x8xf32>
    %4 = vector.extract_strided_slice %1 {offsets = [1, 0], sizes = [1, 8], strides = [1, 1]} : vector<2x8xf32> to vector<1x8xf32>
    %5 = vector.shape_cast %4 : vector<1x8xf32> to vector<1x1x8xf32>
    %c0_2 = arith.constant 0 : index
    %c0_3 = arith.constant 0 : index
    %c0_4 = arith.constant 0 : index
    %c0_5 = arith.constant 0 : index
    %c0_6 = arith.constant 0 : index
    %6 = vector.load %arg2[%c0_2, %c0_3, %c0_4, %c0_5, %c0_6] : memref<1x1x8x8x8xbf16, #tpu.memory_space<vmem>>, vector<1x1x8x8x8xbf16>
    %7 = vector.shape_cast %6 : vector<1x1x8x8x8xbf16> to vector<8x8x8xbf16>
    %8 = arith.extf %7 : vector<8x8x8xbf16> to vector<8x8x8xf32>
    %9 = vector.broadcast %3 : vector<1x1x8xf32> to vector<8x8x8xf32>
    %10 = arith.mulf %8, %9 : vector<8x8x8xf32>
    %11 = vector.broadcast %5 : vector<1x1x8xf32> to vector<8x8x8xf32>
    %12 = arith.addf %10, %11 : vector<8x8x8xf32>
    %cst = arith.constant 0.000000e+00 : f32
    %13 = vector.broadcast %cst : f32 to vector<8x8x8xf32>
    %14 = arith.maximumf %12, %13 : vector<8x8x8xf32>
    %15 = arith.truncf %14 : vector<8x8x8xf32> to vector<8x8x8xbf16>
    %cst_7 = arith.constant 0.000000e+00 : bf16
    %16 = vector.broadcast %cst_7 : bf16 to vector<16x16x8xbf16>
    %c0_8 = arith.constant 0 : index
    %c0_9 = arith.constant 0 : index
    %c0_10 = arith.constant 0 : index
    %17 = vector.load %arg7[%c0_8, %c0_9, %c0_10] : memref<16x16x8xbf16, #tpu.memory_space<vmem>>, vector<16x16x8xbf16>
    tpu.vector_store %arg7[%c0_8, %c0_9, %c0_10], %16 {strides = array<i32>} : memref<16x16x8xbf16, #tpu.memory_space<vmem>>, vector<16x16x8xbf16>,
    %c4 = arith.constant 4 : index
    %c4_11 = arith.constant 4 : index
    %c0_12 = arith.constant 0 : index
    %18 = vector.load %arg7[%c4, %c4_11, %c0_12] : memref<16x16x8xbf16, #tpu.memory_space<vmem>>, vector<8x8x8xbf16>
    tpu.vector_store %arg7[%c4, %c4_11, %c0_12], %15 {strides = array<i32>} : memref<16x16x8xbf16, #tpu.memory_space<vmem>>, vector<8x8x8xbf16>,
    %cst_13 = arith.constant 0.000000e+00 : f32
    %19 = vector.broadcast %cst_13 : f32 to vector<64x16xf32>
    %c0_14 = arith.constant 0 : index
    %c0_15 = arith.constant 0 : index
    %c0_16 = arith.constant 0 : index
    %20 = vector.load %arg7[%c0_14, %c0_15, %c0_16] : memref<16x16x8xbf16, #tpu.memory_space<vmem>>, vector<8x8x8xbf16>
    %c0_17 = arith.constant 0 : index
    %c2 = arith.constant 2 : index
    %c0_18 = arith.constant 0 : index
    %21 = vector.load %arg7[%c0_17, %c2, %c0_18] : memref<16x16x8xbf16, #tpu.memory_space<vmem>>, vector<8x8x8xbf16>
    %c0_19 = arith.constant 0 : index
    %c4_20 = arith.constant 4 : index
    %c0_21 = arith.constant 0 : index
    %22 = vector.load %arg7[%c0_19, %c4_20, %c0_21] : memref<16x16x8xbf16, #tpu.memory_space<vmem>>, vector<8x8x8xbf16>
    %c0_22 = arith.constant 0 : index
    %c6 = arith.constant 6 : index
    %c0_23 = arith.constant 0 : index
    %23 = vector.load %arg7[%c0_22, %c6, %c0_23] : memref<16x16x8xbf16, #tpu.memory_space<vmem>>, vector<8x8x8xbf16>
    %c0_24 = arith.constant 0 : index
    %c8 = arith.constant 8 : index
    %c0_25 = arith.constant 0 : index
    %24 = vector.load %arg7[%c0_24, %c8, %c0_25] : memref<16x16x8xbf16, #tpu.memory_space<vmem>>, vector<8x8x8xbf16>
    %25 = tpu.concatenate %20, %21, %22, %23, %24 in 2 : vector<8x8x8xbf16>, vector<8x8x8xbf16>, vector<8x8x8xbf16>, vector<8x8x8xbf16>, vector<8x8x8xbf16> -> vector<8x8x40xbf16>
    %26 = vector.shape_cast %25 : vector<8x8x40xbf16> to vector<64x40xbf16>
    %c0_26 = arith.constant 0 : index
    %c0_27 = arith.constant 0 : index
    %c0_28 = arith.constant 0 : index
    %c0_29 = arith.constant 0 : index
    %27 = vector.load %arg4[%c0_26, %c0_27, %c0_28, %c0_29] : memref<1x5x40x16xbf16, #tpu.memory_space<vmem>>, vector<1x1x40x16xbf16>
    %28 = vector.shape_cast %27 : vector<1x1x40x16xbf16> to vector<40x16xbf16>
    %cst_30 = arith.constant dense<0.000000e+00> : vector<64x16xf32>
    %29 = tpu.matmul %26, %28, %cst_30 {dimension_numbers = #tpu.dot_dimension_numbers<[1], [0], [0], [1], [0, 0, 1, 1], [], []>} : vector<64x40xbf16>, vector<40x16xbf16>, vector<64x16xf32> -> vector<64x16xf32>
    %30 = arith.addf %19, %29 : vector<64x16xf32>
    %c2_31 = arith.constant 2 : index
    %c0_32 = arith.constant 0 : index
    %c0_33 = arith.constant 0 : index
    %31 = vector.load %arg7[%c2_31, %c0_32, %c0_33] : memref<16x16x8xbf16, #tpu.memory_space<vmem>>, vector<8x8x8xbf16>
    %c2_34 = arith.constant 2 : index
    %c2_35 = arith.constant 2 : index
    %c0_36 = arith.constant 0 : index
    %32 = vector.load %arg7[%c2_34, %c2_35, %c0_36] : memref<16x16x8xbf16, #tpu.memory_space<vmem>>, vector<8x8x8xbf16>
    %c2_37 = arith.constant 2 : index
    %c4_38 = arith.constant 4 : index
    %c0_39 = arith.constant 0 : index
    %33 = vector.load %arg7[%c2_37, %c4_38, %c0_39] : memref<16x16x8xbf16, #tpu.memory_space<vmem>>, vector<8x8x8xbf16>
    %c2_40 = arith.constant 2 : index
    %c6_41 = arith.constant 6 : index
    %c0_42 = arith.constant 0 : index
    %34 = vector.load %arg7[%c2_40, %c6_41, %c0_42] : memref<16x16x8xbf16, #tpu.memory_space<vmem>>, vector<8x8x8xbf16>
    %c2_43 = arith.constant 2 : index
    %c8_44 = arith.constant 8 : index
    %c0_45 = arith.constant 0 : index
    %35 = vector.load %arg7[%c2_43, %c8_44, %c0_45] : memref<16x16x8xbf16, #tpu.memory_space<vmem>>, vector<8x8x8xbf16>
    %36 = tpu.concatenate %31, %32, %33, %34, %35 in 2 : vector<8x8x8xbf16>, vector<8x8x8xbf16>, vector<8x8x8xbf16>, vector<8x8x8xbf16>, vector<8x8x8xbf16> -> vector<8x8x40xbf16>
    %37 = vector.shape_cast %36 : vector<8x8x40xbf16> to vector<64x40xbf16>
    %c0_46 = arith.constant 0 : index
    %c1 = arith.constant 1 : index
    %c0_47 = arith.constant 0 : index
    %c0_48 = arith.constant 0 : index
    %38 = vector.load %arg4[%c0_46, %c1, %c0_47, %c0_48] : memref<1x5x40x16xbf16, #tpu.memory_space<vmem>>, vector<1x1x40x16xbf16>
    %39 = vector.shape_cast %38 : vector<1x1x40x16xbf16> to vector<40x16xbf16>
    %cst_49 = arith.constant dense<0.000000e+00> : vector<64x16xf32>
    %40 = tpu.matmul %37, %39, %cst_49 {dimension_numbers = #tpu.dot_dimension_numbers<[1], [0], [0], [1], [0, 0, 1, 1], [], []>} : vector<64x40xbf16>, vector<40x16xbf16>, vector<64x16xf32> -> vector<64x16xf32>
    %41 = arith.addf %30, %40 : vector<64x16xf32>
    %c4_50 = arith.constant 4 : index
    %c0_51 = arith.constant 0 : index
    %c0_52 = arith.constant 0 : index
    %42 = vector.load %arg7[%c4_50, %c0_51, %c0_52] : memref<16x16x8xbf16, #tpu.memory_space<vmem>>, vector<8x8x8xbf16>
    %c4_53 = arith.constant 4 : index
    %c2_54 = arith.constant 2 : index
    %c0_55 = arith.constant 0 : index
    %43 = vector.load %arg7[%c4_53, %c2_54, %c0_55] : memref<16x16x8xbf16, #tpu.memory_space<vmem>>, vector<8x8x8xbf16>
    %c4_56 = arith.constant 4 : index
    %c4_57 = arith.constant 4 : index
    %c0_58 = arith.constant 0 : index
    %44 = vector.load %arg7[%c4_56, %c4_57, %c0_58] : memref<16x16x8xbf16, #tpu.memory_space<vmem>>, vector<8x8x8xbf16>
    %c4_59 = arith.constant 4 : index
    %c6_60 = arith.constant 6 : index
    %c0_61 = arith.constant 0 : index
    %45 = vector.load %arg7[%c4_59, %c6_60, %c0_61] : memref<16x16x8xbf16, #tpu.memory_space<vmem>>, vector<8x8x8xbf16>
    %c4_62 = arith.constant 4 : index
    %c8_63 = arith.constant 8 : index
    %c0_64 = arith.constant 0 : index
    %46 = vector.load %arg7[%c4_62, %c8_63, %c0_64] : memref<16x16x8xbf16, #tpu.memory_space<vmem>>, vector<8x8x8xbf16>
    %47 = tpu.concatenate %42, %43, %44, %45, %46 in 2 : vector<8x8x8xbf16>, vector<8x8x8xbf16>, vector<8x8x8xbf16>, vector<8x8x8xbf16>, vector<8x8x8xbf16> -> vector<8x8x40xbf16>
    %48 = vector.shape_cast %47 : vector<8x8x40xbf16> to vector<64x40xbf16>
    %c0_65 = arith.constant 0 : index
    %c2_66 = arith.constant 2 : index
    %c0_67 = arith.constant 0 : index
    %c0_68 = arith.constant 0 : index
    %49 = vector.load %arg4[%c0_65, %c2_66, %c0_67, %c0_68] : memref<1x5x40x16xbf16, #tpu.memory_space<vmem>>, vector<1x1x40x16xbf16>
    %50 = vector.shape_cast %49 : vector<1x1x40x16xbf16> to vector<40x16xbf16>
    %cst_69 = arith.constant dense<0.000000e+00> : vector<64x16xf32>
    %51 = tpu.matmul %48, %50, %cst_69 {dimension_numbers = #tpu.dot_dimension_numbers<[1], [0], [0], [1], [0, 0, 1, 1], [], []>} : vector<64x40xbf16>, vector<40x16xbf16>, vector<64x16xf32> -> vector<64x16xf32>
    %52 = arith.addf %41, %51 : vector<64x16xf32>
    %c6_70 = arith.constant 6 : index
    %c0_71 = arith.constant 0 : index
    %c0_72 = arith.constant 0 : index
    %53 = vector.load %arg7[%c6_70, %c0_71, %c0_72] : memref<16x16x8xbf16, #tpu.memory_space<vmem>>, vector<8x8x8xbf16>
    %c6_73 = arith.constant 6 : index
    %c2_74 = arith.constant 2 : index
    %c0_75 = arith.constant 0 : index
    %54 = vector.load %arg7[%c6_73, %c2_74, %c0_75] : memref<16x16x8xbf16, #tpu.memory_space<vmem>>, vector<8x8x8xbf16>
    %c6_76 = arith.constant 6 : index
    %c4_77 = arith.constant 4 : index
    %c0_78 = arith.constant 0 : index
    %55 = vector.load %arg7[%c6_76, %c4_77, %c0_78] : memref<16x16x8xbf16, #tpu.memory_space<vmem>>, vector<8x8x8xbf16>
    %c6_79 = arith.constant 6 : index
    %c6_80 = arith.constant 6 : index
    %c0_81 = arith.constant 0 : index
    %56 = vector.load %arg7[%c6_79, %c6_80, %c0_81] : memref<16x16x8xbf16, #tpu.memory_space<vmem>>, vector<8x8x8xbf16>
    %c6_82 = arith.constant 6 : index
    %c8_83 = arith.constant 8 : index
    %c0_84 = arith.constant 0 : index
    %57 = vector.load %arg7[%c6_82, %c8_83, %c0_84] : memref<16x16x8xbf16, #tpu.memory_space<vmem>>, vector<8x8x8xbf16>
    %58 = tpu.concatenate %53, %54, %55, %56, %57 in 2 : vector<8x8x8xbf16>, vector<8x8x8xbf16>, vector<8x8x8xbf16>, vector<8x8x8xbf16>, vector<8x8x8xbf16> -> vector<8x8x40xbf16>
    %59 = vector.shape_cast %58 : vector<8x8x40xbf16> to vector<64x40xbf16>
    %c0_85 = arith.constant 0 : index
    %c3 = arith.constant 3 : index
    %c0_86 = arith.constant 0 : index
    %c0_87 = arith.constant 0 : index
    %60 = vector.load %arg4[%c0_85, %c3, %c0_86, %c0_87] : memref<1x5x40x16xbf16, #tpu.memory_space<vmem>>, vector<1x1x40x16xbf16>
    %61 = vector.shape_cast %60 : vector<1x1x40x16xbf16> to vector<40x16xbf16>
    %cst_88 = arith.constant dense<0.000000e+00> : vector<64x16xf32>
    %62 = tpu.matmul %59, %61, %cst_88 {dimension_numbers = #tpu.dot_dimension_numbers<[1], [0], [0], [1], [0, 0, 1, 1], [], []>} : vector<64x40xbf16>, vector<40x16xbf16>, vector<64x16xf32> -> vector<64x16xf32>
    %63 = arith.addf %52, %62 : vector<64x16xf32>
    %c8_89 = arith.constant 8 : index
    %c0_90 = arith.constant 0 : index
    %c0_91 = arith.constant 0 : index
    %64 = vector.load %arg7[%c8_89, %c0_90, %c0_91] : memref<16x16x8xbf16, #tpu.memory_space<vmem>>, vector<8x8x8xbf16>
    %c8_92 = arith.constant 8 : index
    %c2_93 = arith.constant 2 : index
    %c0_94 = arith.constant 0 : index
    %65 = vector.load %arg7[%c8_92, %c2_93, %c0_94] : memref<16x16x8xbf16, #tpu.memory_space<vmem>>, vector<8x8x8xbf16>
    %c8_95 = arith.constant 8 : index
    %c4_96 = arith.constant 4 : index
    %c0_97 = arith.constant 0 : index
    %66 = vector.load %arg7[%c8_95, %c4_96, %c0_97] : memref<16x16x8xbf16, #tpu.memory_space<vmem>>, vector<8x8x8xbf16>
    %c8_98 = arith.constant 8 : index
    %c6_99 = arith.constant 6 : index
    %c0_100 = arith.constant 0 : index
    %67 = vector.load %arg7[%c8_98, %c6_99, %c0_100] : memref<16x16x8xbf16, #tpu.memory_space<vmem>>, vector<8x8x8xbf16>
    %c8_101 = arith.constant 8 : index
    %c8_102 = arith.constant 8 : index
    %c0_103 = arith.constant 0 : index
    %68 = vector.load %arg7[%c8_101, %c8_102, %c0_103] : memref<16x16x8xbf16, #tpu.memory_space<vmem>>, vector<8x8x8xbf16>
    %69 = tpu.concatenate %64, %65, %66, %67, %68 in 2 : vector<8x8x8xbf16>, vector<8x8x8xbf16>, vector<8x8x8xbf16>, vector<8x8x8xbf16>, vector<8x8x8xbf16> -> vector<8x8x40xbf16>
    %70 = vector.shape_cast %69 : vector<8x8x40xbf16> to vector<64x40xbf16>
    %c0_104 = arith.constant 0 : index
    %c4_105 = arith.constant 4 : index
    %c0_106 = arith.constant 0 : index
    %c0_107 = arith.constant 0 : index
    %71 = vector.load %arg4[%c0_104, %c4_105, %c0_106, %c0_107] : memref<1x5x40x16xbf16, #tpu.memory_space<vmem>>, vector<1x1x40x16xbf16>
    %72 = vector.shape_cast %71 : vector<1x1x40x16xbf16> to vector<40x16xbf16>
    %cst_108 = arith.constant dense<0.000000e+00> : vector<64x16xf32>
    %73 = tpu.matmul %70, %72, %cst_108 {dimension_numbers = #tpu.dot_dimension_numbers<[1], [0], [0], [1], [0, 0, 1, 1], [], []>} : vector<64x40xbf16>, vector<40x16xbf16>, vector<64x16xf32> -> vector<64x16xf32>
    %74 = arith.addf %63, %73 : vector<64x16xf32>
    %cst_109 = arith.constant dense<0.000000e+00> : vector<16xf32>
    %75 = vector.multi_reduction <add>, %74, %cst_109 [0] : vector<64x16xf32> to vector<16xf32>
    %76 = vector.shape_cast %75 : vector<16xf32> to vector<1x16xf32>
    %77 = arith.mulf %74, %74 : vector<64x16xf32>
    %cst_110 = arith.constant dense<0.000000e+00> : vector<16xf32>
    %78 = vector.multi_reduction <add>, %77, %cst_110 [0] : vector<64x16xf32> to vector<16xf32>
    %79 = vector.shape_cast %78 : vector<16xf32> to vector<1x16xf32>
    %80 = tpu.concatenate %76, %79 in 0 : vector<1x16xf32>, vector<1x16xf32> -> vector<2x16xf32>
    %c0_111 = arith.constant 0 : index
    %c0_112 = arith.constant 0 : index
    %c0_113 = arith.constant 0 : index
    %c0_114 = arith.constant 0 : index
    %81 = vector.load %arg6[%c0_111, %c0_112, %c0_113, %c0_114] : memref<1x1x2x16xf32, #tpu.memory_space<vmem>>, vector<1x1x2x16xf32>
    %82 = vector.shape_cast %81 : vector<1x1x2x16xf32> to vector<2x16xf32>
    %83 = vector.shape_cast %80 : vector<2x16xf32> to vector<1x1x2x16xf32>
    tpu.vector_store %arg6[%c0_111, %c0_112, %c0_113, %c0_114], %83 {strides = array<i32>} : memref<1x1x2x16xf32, #tpu.memory_space<vmem>>, vector<1x1x2x16xf32>,
    %84 = arith.truncf %74 : vector<64x16xf32> to vector<64x16xbf16>
    %85 = vector.extract_strided_slice %84 {offsets = [0, 0], sizes = [64, 8], strides = [1, 1]} : vector<64x16xbf16> to vector<64x8xbf16>
    %c0_115 = arith.constant 0 : index
    %c0_116 = arith.constant 0 : index
    %c0_117 = arith.constant 0 : index
    %c0_118 = arith.constant 0 : index
    %c0_119 = arith.constant 0 : index
    %86 = vector.load %arg5[%c0_115, %c0_116, %c0_117, %c0_118, %c0_119] : memref<1x1x2x64x8xbf16, #tpu.memory_space<vmem>>, vector<1x1x1x64x8xbf16>
    %87 = vector.shape_cast %86 : vector<1x1x1x64x8xbf16> to vector<64x8xbf16>
    %88 = vector.shape_cast %85 : vector<64x8xbf16> to vector<1x1x1x64x8xbf16>
    tpu.vector_store %arg5[%c0_115, %c0_116, %c0_117, %c0_118, %c0_119], %88 {strides = array<i32>} : memref<1x1x2x64x8xbf16, #tpu.memory_space<vmem>>, vector<1x1x1x64x8xbf16>,
    %89 = vector.extract_strided_slice %84 {offsets = [0, 8], sizes = [64, 8], strides = [1, 1]} : vector<64x16xbf16> to vector<64x8xbf16>
    %c0_120 = arith.constant 0 : index
    %c0_121 = arith.constant 0 : index
    %c1_122 = arith.constant 1 : index
    %c0_123 = arith.constant 0 : index
    %c0_124 = arith.constant 0 : index
    %90 = vector.load %arg5[%c0_120, %c0_121, %c1_122, %c0_123, %c0_124] : memref<1x1x2x64x8xbf16, #tpu.memory_space<vmem>>, vector<1x1x1x64x8xbf16>
    %91 = vector.shape_cast %90 : vector<1x1x1x64x8xbf16> to vector<64x8xbf16>
    %92 = vector.shape_cast %89 : vector<64x8xbf16> to vector<1x1x1x64x8xbf16>
    tpu.vector_store %arg5[%c0_120, %c0_121, %c1_122, %c0_123, %c0_124], %92 {strides = array<i32>} : memref<1x1x2x64x8xbf16, #tpu.memory_space<vmem>>, vector<1x1x1x64x8xbf16>,
    return
  }
  func.func @transform_0(%arg0: i32, %arg1: i32) -> (i32, i32, i32, i32, i32) {
    %c0_i32 = arith.constant 0 : i32
    %c0_i32_0 = arith.constant 0 : i32
    %c0_i32_1 = arith.constant 0 : i32
    %c0_i32_2 = arith.constant 0 : i32
    return %arg0, %arg1, %c0_i32, %c0_i32_0, %c0_i32_1 : i32, i32, i32, i32, i32
  }
  func.func @transform_1(%arg0: i32, %arg1: i32) -> (i32, i32, i32) {
    %c0_i32 = arith.constant 0 : i32
    %c0_i32_0 = arith.constant 0 : i32
    %c0_i32_1 = arith.constant 0 : i32
    return %arg0, %c0_i32, %c0_i32_0 : i32, i32, i32
  }
  func.func @transform_2(%arg0: i32, %arg1: i32) -> (i32, i32, i32, i32) {
    %c0_i32 = arith.constant 0 : i32
    %c0_i32_0 = arith.constant 0 : i32
    %c0_i32_1 = arith.constant 0 : i32
    %c0_i32_2 = arith.constant 0 : i32
    return %arg0, %c0_i32, %c0_i32_0, %c0_i32_1 : i32, i32, i32, i32
  }
  func.func @transform_3(%arg0: i32, %arg1: i32) -> (i32, i32, i32, i32, i32) {
    %c0_i32 = arith.constant 0 : i32
    %c0_i32_0 = arith.constant 0 : i32
    %c0_i32_1 = arith.constant 0 : i32
    %c0_i32_2 = arith.constant 0 : i32
    return %arg0, %arg1, %c0_i32, %c0_i32_0, %c0_i32_1 : i32, i32, i32, i32, i32
  }
  func.func @transform_4(%arg0: i32, %arg1: i32) -> (i32, i32, i32, i32) {
    %c0_i32 = arith.constant 0 : i32
    %c0_i32_0 = arith.constant 0 : i32
    %c0_i32_1 = arith.constant 0 : i32
    return %arg0, %arg1, %c0_i32, %c0_i32_0 : i32, i32, i32, i32
  }
}

module attributes {stable_mosaic.version = 11 : i64} {
  func.func @kernel(%arg0: i32, %arg1: i32, %arg2: memref<2x2x8xf32, #tpu.memory_space<vmem>>, %arg3: memref<1x1x1x64x8xbf16, #tpu.memory_space<vmem>>, %arg4: memref<1x1x1x64x8xbf16, #tpu.memory_space<vmem>>, %arg5: memref<1x64x8xf32, #tpu.memory_space<vmem>>) attributes {dimension_semantics = [#tpu.dimension_semantics<parallel>, #tpu.dimension_semantics<parallel>], iteration_bounds = array<i64: 2, 1>, scalar_prefetch = 0 : i64, scratch_operands = 0 : i64, tpu.core_type = #tpu.core_type<tc>, window_params = [{pipeline_mode = #tpu.pipeline_mode<synchronous>, transform_indices = @transform_0, window_bounds = array<i64: 2, 2, 8>}, {transform_indices = @transform_1, window_bounds = array<i64: 1, 1, 1, 64, 8>}, {transform_indices = @transform_2, window_bounds = array<i64: 1, 1, 1, 64, 8>}, {transform_indices = @transform_3, window_bounds = array<i64: 1, 64, 8>}]} {
    %c0 = arith.constant 0 : index
    %c0_0 = arith.constant 0 : index
    %c0_1 = arith.constant 0 : index
    %c0_2 = arith.constant 0 : index
    %c0_3 = arith.constant 0 : index
    %0 = vector.load %arg3[%c0, %c0_0, %c0_1, %c0_2, %c0_3] : memref<1x1x1x64x8xbf16, #tpu.memory_space<vmem>>, vector<1x1x1x64x8xbf16>
    %1 = vector.shape_cast %0 : vector<1x1x1x64x8xbf16> to vector<64x8xbf16>
    %2 = arith.extf %1 : vector<64x8xbf16> to vector<64x8xf32>
    %c0_4 = arith.constant 0 : index
    %c0_5 = arith.constant 0 : index
    %c0_6 = arith.constant 0 : index
    %3 = vector.load %arg2[%c0_4, %c0_5, %c0_6] : memref<2x2x8xf32, #tpu.memory_space<vmem>>, vector<1x1x8xf32>
    %4 = vector.shape_cast %3 : vector<1x1x8xf32> to vector<1x8xf32>
    %5 = vector.broadcast %4 : vector<1x8xf32> to vector<64x8xf32>
    %6 = arith.mulf %2, %5 : vector<64x8xf32>
    %c0_7 = arith.constant 0 : index
    %c1 = arith.constant 1 : index
    %c0_8 = arith.constant 0 : index
    %7 = vector.load %arg2[%c0_7, %c1, %c0_8] : memref<2x2x8xf32, #tpu.memory_space<vmem>>, vector<1x1x8xf32>
    %8 = vector.shape_cast %7 : vector<1x1x8xf32> to vector<1x8xf32>
    %9 = vector.broadcast %8 : vector<1x8xf32> to vector<64x8xf32>
    %10 = arith.addf %6, %9 : vector<64x8xf32>
    %c0_9 = arith.constant 0 : index
    %c0_10 = arith.constant 0 : index
    %c0_11 = arith.constant 0 : index
    %c0_12 = arith.constant 0 : index
    %c0_13 = arith.constant 0 : index
    %11 = vector.load %arg4[%c0_9, %c0_10, %c0_11, %c0_12, %c0_13] : memref<1x1x1x64x8xbf16, #tpu.memory_space<vmem>>, vector<1x1x1x64x8xbf16>
    %12 = vector.shape_cast %11 : vector<1x1x1x64x8xbf16> to vector<64x8xbf16>
    %13 = arith.extf %12 : vector<64x8xbf16> to vector<64x8xf32>
    %c1_14 = arith.constant 1 : index
    %c0_15 = arith.constant 0 : index
    %c0_16 = arith.constant 0 : index
    %14 = vector.load %arg2[%c1_14, %c0_15, %c0_16] : memref<2x2x8xf32, #tpu.memory_space<vmem>>, vector<1x1x8xf32>
    %15 = vector.shape_cast %14 : vector<1x1x8xf32> to vector<1x8xf32>
    %16 = vector.broadcast %15 : vector<1x8xf32> to vector<64x8xf32>
    %17 = arith.mulf %13, %16 : vector<64x8xf32>
    %c1_17 = arith.constant 1 : index
    %c1_18 = arith.constant 1 : index
    %c0_19 = arith.constant 0 : index
    %18 = vector.load %arg2[%c1_17, %c1_18, %c0_19] : memref<2x2x8xf32, #tpu.memory_space<vmem>>, vector<1x1x8xf32>
    %19 = vector.shape_cast %18 : vector<1x1x8xf32> to vector<1x8xf32>
    %20 = vector.broadcast %19 : vector<1x8xf32> to vector<64x8xf32>
    %21 = arith.addf %17, %20 : vector<64x8xf32>
    %22 = arith.addf %10, %21 : vector<64x8xf32>
    %c0_20 = arith.constant 0 : index
    %c0_21 = arith.constant 0 : index
    %c0_22 = arith.constant 0 : index
    %23 = vector.load %arg5[%c0_20, %c0_21, %c0_22] : memref<1x64x8xf32, #tpu.memory_space<vmem>>, vector<1x64x8xf32>
    %24 = vector.shape_cast %23 : vector<1x64x8xf32> to vector<64x8xf32>
    %25 = vector.shape_cast %22 : vector<64x8xf32> to vector<1x64x8xf32>
    tpu.vector_store %arg5[%c0_20, %c0_21, %c0_22], %25 {strides = array<i32>} : memref<1x64x8xf32, #tpu.memory_space<vmem>>, vector<1x64x8xf32>,
    return
  }
  func.func @transform_0(%arg0: i32, %arg1: i32) -> (i32, i32, i32) {
    %c0_i32 = arith.constant 0 : i32
    %c0_i32_0 = arith.constant 0 : i32
    %c0_i32_1 = arith.constant 0 : i32
    %c0_i32_2 = arith.constant 0 : i32
    return %c0_i32, %c0_i32_0, %c0_i32_1 : i32, i32, i32
  }
  func.func @transform_1(%arg0: i32, %arg1: i32) -> (i32, i32, i32, i32, i32) {
    %c0_i32 = arith.constant 0 : i32
    %c0_i32_0 = arith.constant 0 : i32
    %c0_i32_1 = arith.constant 0 : i32
    %c0_i32_2 = arith.constant 0 : i32
    return %c0_i32, %arg0, %c0_i32_0, %arg1, %c0_i32_1 : i32, i32, i32, i32, i32
  }
  func.func @transform_2(%arg0: i32, %arg1: i32) -> (i32, i32, i32, i32, i32) {
    %c1_i32 = arith.constant 1 : i32
    %c0_i32 = arith.constant 0 : i32
    %c0_i32_0 = arith.constant 0 : i32
    %c0_i32_1 = arith.constant 0 : i32
    return %c1_i32, %arg0, %c0_i32, %arg1, %c0_i32_0 : i32, i32, i32, i32, i32
  }
  func.func @transform_3(%arg0: i32, %arg1: i32) -> (i32, i32, i32) {
    %c0_i32 = arith.constant 0 : i32
    %c0_i32_0 = arith.constant 0 : i32
    return %arg0, %arg1, %c0_i32 : i32, i32, i32
  }
}

module attributes {stable_mosaic.version = 11 : i64} {
  func.func @kernel(%arg0: i32, %arg1: i32, %arg2: memref<1x1x8x8x8xf32, #tpu.memory_space<vmem>>, %arg3: memref<1x2x8xf32, #tpu.memory_space<vmem>>, %arg4: memref<1x5x40x8xbf16, #tpu.memory_space<vmem>>, %arg5: memref<1x1x1x64x8xbf16, #tpu.memory_space<vmem>>, %arg6: memref<1x1x2x8xf32, #tpu.memory_space<vmem>>, %arg7: memref<16x16x8xbf16, #tpu.memory_space<vmem>>) attributes {dimension_semantics = [#tpu.dimension_semantics<parallel>, #tpu.dimension_semantics<parallel>], iteration_bounds = array<i64: 1, 2>, scalar_prefetch = 0 : i64, scratch_operands = 1 : i64, tpu.core_type = #tpu.core_type<tc>, window_params = [{transform_indices = @transform_0, window_bounds = array<i64: 1, 1, 8, 8, 8>}, {transform_indices = @transform_1, window_bounds = array<i64: 1, 2, 8>}, {transform_indices = @transform_2, window_bounds = array<i64: 1, 5, 40, 8>}, {transform_indices = @transform_3, window_bounds = array<i64: 1, 1, 1, 64, 8>}, {transform_indices = @transform_4, window_bounds = array<i64: 1, 1, 2, 8>}]} {
    %c0 = arith.constant 0 : index
    %c0_0 = arith.constant 0 : index
    %c0_1 = arith.constant 0 : index
    %0 = vector.load %arg3[%c0, %c0_0, %c0_1] : memref<1x2x8xf32, #tpu.memory_space<vmem>>, vector<1x2x8xf32>
    %1 = vector.shape_cast %0 : vector<1x2x8xf32> to vector<2x8xf32>
    %2 = vector.extract_strided_slice %1 {offsets = [0, 0], sizes = [1, 8], strides = [1, 1]} : vector<2x8xf32> to vector<1x8xf32>
    %3 = vector.shape_cast %2 : vector<1x8xf32> to vector<1x1x8xf32>
    %4 = vector.extract_strided_slice %1 {offsets = [1, 0], sizes = [1, 8], strides = [1, 1]} : vector<2x8xf32> to vector<1x8xf32>
    %5 = vector.shape_cast %4 : vector<1x8xf32> to vector<1x1x8xf32>
    %c0_2 = arith.constant 0 : index
    %c0_3 = arith.constant 0 : index
    %c0_4 = arith.constant 0 : index
    %c0_5 = arith.constant 0 : index
    %c0_6 = arith.constant 0 : index
    %6 = vector.load %arg2[%c0_2, %c0_3, %c0_4, %c0_5, %c0_6] : memref<1x1x8x8x8xf32, #tpu.memory_space<vmem>>, vector<1x1x8x8x8xf32>
    %7 = vector.shape_cast %6 : vector<1x1x8x8x8xf32> to vector<8x8x8xf32>
    %8 = vector.broadcast %3 : vector<1x1x8xf32> to vector<8x8x8xf32>
    %9 = arith.mulf %7, %8 : vector<8x8x8xf32>
    %10 = vector.broadcast %5 : vector<1x1x8xf32> to vector<8x8x8xf32>
    %11 = arith.addf %9, %10 : vector<8x8x8xf32>
    %cst = arith.constant 0.000000e+00 : f32
    %12 = vector.broadcast %cst : f32 to vector<8x8x8xf32>
    %13 = arith.maximumf %11, %12 : vector<8x8x8xf32>
    %14 = arith.truncf %13 : vector<8x8x8xf32> to vector<8x8x8xbf16>
    %cst_7 = arith.constant 0.000000e+00 : bf16
    %15 = vector.broadcast %cst_7 : bf16 to vector<16x16x8xbf16>
    %c0_8 = arith.constant 0 : index
    %c0_9 = arith.constant 0 : index
    %c0_10 = arith.constant 0 : index
    %16 = vector.load %arg7[%c0_8, %c0_9, %c0_10] : memref<16x16x8xbf16, #tpu.memory_space<vmem>>, vector<16x16x8xbf16>
    tpu.vector_store %arg7[%c0_8, %c0_9, %c0_10], %15 {strides = array<i32>} : memref<16x16x8xbf16, #tpu.memory_space<vmem>>, vector<16x16x8xbf16>,
    %c4 = arith.constant 4 : index
    %c4_11 = arith.constant 4 : index
    %c0_12 = arith.constant 0 : index
    %17 = vector.load %arg7[%c4, %c4_11, %c0_12] : memref<16x16x8xbf16, #tpu.memory_space<vmem>>, vector<8x8x8xbf16>
    tpu.vector_store %arg7[%c4, %c4_11, %c0_12], %14 {strides = array<i32>} : memref<16x16x8xbf16, #tpu.memory_space<vmem>>, vector<8x8x8xbf16>,
    %cst_13 = arith.constant 0.000000e+00 : f32
    %18 = vector.broadcast %cst_13 : f32 to vector<64x8xf32>
    %c0_14 = arith.constant 0 : index
    %c0_15 = arith.constant 0 : index
    %c0_16 = arith.constant 0 : index
    %19 = vector.load %arg7[%c0_14, %c0_15, %c0_16] : memref<16x16x8xbf16, #tpu.memory_space<vmem>>, vector<8x8x8xbf16>
    %c0_17 = arith.constant 0 : index
    %c2 = arith.constant 2 : index
    %c0_18 = arith.constant 0 : index
    %20 = vector.load %arg7[%c0_17, %c2, %c0_18] : memref<16x16x8xbf16, #tpu.memory_space<vmem>>, vector<8x8x8xbf16>
    %c0_19 = arith.constant 0 : index
    %c4_20 = arith.constant 4 : index
    %c0_21 = arith.constant 0 : index
    %21 = vector.load %arg7[%c0_19, %c4_20, %c0_21] : memref<16x16x8xbf16, #tpu.memory_space<vmem>>, vector<8x8x8xbf16>
    %c0_22 = arith.constant 0 : index
    %c6 = arith.constant 6 : index
    %c0_23 = arith.constant 0 : index
    %22 = vector.load %arg7[%c0_22, %c6, %c0_23] : memref<16x16x8xbf16, #tpu.memory_space<vmem>>, vector<8x8x8xbf16>
    %c0_24 = arith.constant 0 : index
    %c8 = arith.constant 8 : index
    %c0_25 = arith.constant 0 : index
    %23 = vector.load %arg7[%c0_24, %c8, %c0_25] : memref<16x16x8xbf16, #tpu.memory_space<vmem>>, vector<8x8x8xbf16>
    %24 = tpu.concatenate %19, %20, %21, %22, %23 in 2 : vector<8x8x8xbf16>, vector<8x8x8xbf16>, vector<8x8x8xbf16>, vector<8x8x8xbf16>, vector<8x8x8xbf16> -> vector<8x8x40xbf16>
    %25 = vector.shape_cast %24 : vector<8x8x40xbf16> to vector<64x40xbf16>
    %c0_26 = arith.constant 0 : index
    %c0_27 = arith.constant 0 : index
    %c0_28 = arith.constant 0 : index
    %c0_29 = arith.constant 0 : index
    %26 = vector.load %arg4[%c0_26, %c0_27, %c0_28, %c0_29] : memref<1x5x40x8xbf16, #tpu.memory_space<vmem>>, vector<1x1x40x8xbf16>
    %27 = vector.shape_cast %26 : vector<1x1x40x8xbf16> to vector<40x8xbf16>
    %cst_30 = arith.constant dense<0.000000e+00> : vector<64x8xf32>
    %28 = tpu.matmul %25, %27, %cst_30 {dimension_numbers = #tpu.dot_dimension_numbers<[1], [0], [0], [1], [0, 0, 1, 1], [], []>} : vector<64x40xbf16>, vector<40x8xbf16>, vector<64x8xf32> -> vector<64x8xf32>
    %29 = arith.addf %18, %28 : vector<64x8xf32>
    %c2_31 = arith.constant 2 : index
    %c0_32 = arith.constant 0 : index
    %c0_33 = arith.constant 0 : index
    %30 = vector.load %arg7[%c2_31, %c0_32, %c0_33] : memref<16x16x8xbf16, #tpu.memory_space<vmem>>, vector<8x8x8xbf16>
    %c2_34 = arith.constant 2 : index
    %c2_35 = arith.constant 2 : index
    %c0_36 = arith.constant 0 : index
    %31 = vector.load %arg7[%c2_34, %c2_35, %c0_36] : memref<16x16x8xbf16, #tpu.memory_space<vmem>>, vector<8x8x8xbf16>
    %c2_37 = arith.constant 2 : index
    %c4_38 = arith.constant 4 : index
    %c0_39 = arith.constant 0 : index
    %32 = vector.load %arg7[%c2_37, %c4_38, %c0_39] : memref<16x16x8xbf16, #tpu.memory_space<vmem>>, vector<8x8x8xbf16>
    %c2_40 = arith.constant 2 : index
    %c6_41 = arith.constant 6 : index
    %c0_42 = arith.constant 0 : index
    %33 = vector.load %arg7[%c2_40, %c6_41, %c0_42] : memref<16x16x8xbf16, #tpu.memory_space<vmem>>, vector<8x8x8xbf16>
    %c2_43 = arith.constant 2 : index
    %c8_44 = arith.constant 8 : index
    %c0_45 = arith.constant 0 : index
    %34 = vector.load %arg7[%c2_43, %c8_44, %c0_45] : memref<16x16x8xbf16, #tpu.memory_space<vmem>>, vector<8x8x8xbf16>
    %35 = tpu.concatenate %30, %31, %32, %33, %34 in 2 : vector<8x8x8xbf16>, vector<8x8x8xbf16>, vector<8x8x8xbf16>, vector<8x8x8xbf16>, vector<8x8x8xbf16> -> vector<8x8x40xbf16>
    %36 = vector.shape_cast %35 : vector<8x8x40xbf16> to vector<64x40xbf16>
    %c0_46 = arith.constant 0 : index
    %c1 = arith.constant 1 : index
    %c0_47 = arith.constant 0 : index
    %c0_48 = arith.constant 0 : index
    %37 = vector.load %arg4[%c0_46, %c1, %c0_47, %c0_48] : memref<1x5x40x8xbf16, #tpu.memory_space<vmem>>, vector<1x1x40x8xbf16>
    %38 = vector.shape_cast %37 : vector<1x1x40x8xbf16> to vector<40x8xbf16>
    %cst_49 = arith.constant dense<0.000000e+00> : vector<64x8xf32>
    %39 = tpu.matmul %36, %38, %cst_49 {dimension_numbers = #tpu.dot_dimension_numbers<[1], [0], [0], [1], [0, 0, 1, 1], [], []>} : vector<64x40xbf16>, vector<40x8xbf16>, vector<64x8xf32> -> vector<64x8xf32>
    %40 = arith.addf %29, %39 : vector<64x8xf32>
    %c4_50 = arith.constant 4 : index
    %c0_51 = arith.constant 0 : index
    %c0_52 = arith.constant 0 : index
    %41 = vector.load %arg7[%c4_50, %c0_51, %c0_52] : memref<16x16x8xbf16, #tpu.memory_space<vmem>>, vector<8x8x8xbf16>
    %c4_53 = arith.constant 4 : index
    %c2_54 = arith.constant 2 : index
    %c0_55 = arith.constant 0 : index
    %42 = vector.load %arg7[%c4_53, %c2_54, %c0_55] : memref<16x16x8xbf16, #tpu.memory_space<vmem>>, vector<8x8x8xbf16>
    %c4_56 = arith.constant 4 : index
    %c4_57 = arith.constant 4 : index
    %c0_58 = arith.constant 0 : index
    %43 = vector.load %arg7[%c4_56, %c4_57, %c0_58] : memref<16x16x8xbf16, #tpu.memory_space<vmem>>, vector<8x8x8xbf16>
    %c4_59 = arith.constant 4 : index
    %c6_60 = arith.constant 6 : index
    %c0_61 = arith.constant 0 : index
    %44 = vector.load %arg7[%c4_59, %c6_60, %c0_61] : memref<16x16x8xbf16, #tpu.memory_space<vmem>>, vector<8x8x8xbf16>
    %c4_62 = arith.constant 4 : index
    %c8_63 = arith.constant 8 : index
    %c0_64 = arith.constant 0 : index
    %45 = vector.load %arg7[%c4_62, %c8_63, %c0_64] : memref<16x16x8xbf16, #tpu.memory_space<vmem>>, vector<8x8x8xbf16>
    %46 = tpu.concatenate %41, %42, %43, %44, %45 in 2 : vector<8x8x8xbf16>, vector<8x8x8xbf16>, vector<8x8x8xbf16>, vector<8x8x8xbf16>, vector<8x8x8xbf16> -> vector<8x8x40xbf16>
    %47 = vector.shape_cast %46 : vector<8x8x40xbf16> to vector<64x40xbf16>
    %c0_65 = arith.constant 0 : index
    %c2_66 = arith.constant 2 : index
    %c0_67 = arith.constant 0 : index
    %c0_68 = arith.constant 0 : index
    %48 = vector.load %arg4[%c0_65, %c2_66, %c0_67, %c0_68] : memref<1x5x40x8xbf16, #tpu.memory_space<vmem>>, vector<1x1x40x8xbf16>
    %49 = vector.shape_cast %48 : vector<1x1x40x8xbf16> to vector<40x8xbf16>
    %cst_69 = arith.constant dense<0.000000e+00> : vector<64x8xf32>
    %50 = tpu.matmul %47, %49, %cst_69 {dimension_numbers = #tpu.dot_dimension_numbers<[1], [0], [0], [1], [0, 0, 1, 1], [], []>} : vector<64x40xbf16>, vector<40x8xbf16>, vector<64x8xf32> -> vector<64x8xf32>
    %51 = arith.addf %40, %50 : vector<64x8xf32>
    %c6_70 = arith.constant 6 : index
    %c0_71 = arith.constant 0 : index
    %c0_72 = arith.constant 0 : index
    %52 = vector.load %arg7[%c6_70, %c0_71, %c0_72] : memref<16x16x8xbf16, #tpu.memory_space<vmem>>, vector<8x8x8xbf16>
    %c6_73 = arith.constant 6 : index
    %c2_74 = arith.constant 2 : index
    %c0_75 = arith.constant 0 : index
    %53 = vector.load %arg7[%c6_73, %c2_74, %c0_75] : memref<16x16x8xbf16, #tpu.memory_space<vmem>>, vector<8x8x8xbf16>
    %c6_76 = arith.constant 6 : index
    %c4_77 = arith.constant 4 : index
    %c0_78 = arith.constant 0 : index
    %54 = vector.load %arg7[%c6_76, %c4_77, %c0_78] : memref<16x16x8xbf16, #tpu.memory_space<vmem>>, vector<8x8x8xbf16>
    %c6_79 = arith.constant 6 : index
    %c6_80 = arith.constant 6 : index
    %c0_81 = arith.constant 0 : index
    %55 = vector.load %arg7[%c6_79, %c6_80, %c0_81] : memref<16x16x8xbf16, #tpu.memory_space<vmem>>, vector<8x8x8xbf16>
    %c6_82 = arith.constant 6 : index
    %c8_83 = arith.constant 8 : index
    %c0_84 = arith.constant 0 : index
    %56 = vector.load %arg7[%c6_82, %c8_83, %c0_84] : memref<16x16x8xbf16, #tpu.memory_space<vmem>>, vector<8x8x8xbf16>
    %57 = tpu.concatenate %52, %53, %54, %55, %56 in 2 : vector<8x8x8xbf16>, vector<8x8x8xbf16>, vector<8x8x8xbf16>, vector<8x8x8xbf16>, vector<8x8x8xbf16> -> vector<8x8x40xbf16>
    %58 = vector.shape_cast %57 : vector<8x8x40xbf16> to vector<64x40xbf16>
    %c0_85 = arith.constant 0 : index
    %c3 = arith.constant 3 : index
    %c0_86 = arith.constant 0 : index
    %c0_87 = arith.constant 0 : index
    %59 = vector.load %arg4[%c0_85, %c3, %c0_86, %c0_87] : memref<1x5x40x8xbf16, #tpu.memory_space<vmem>>, vector<1x1x40x8xbf16>
    %60 = vector.shape_cast %59 : vector<1x1x40x8xbf16> to vector<40x8xbf16>
    %cst_88 = arith.constant dense<0.000000e+00> : vector<64x8xf32>
    %61 = tpu.matmul %58, %60, %cst_88 {dimension_numbers = #tpu.dot_dimension_numbers<[1], [0], [0], [1], [0, 0, 1, 1], [], []>} : vector<64x40xbf16>, vector<40x8xbf16>, vector<64x8xf32> -> vector<64x8xf32>
    %62 = arith.addf %51, %61 : vector<64x8xf32>
    %c8_89 = arith.constant 8 : index
    %c0_90 = arith.constant 0 : index
    %c0_91 = arith.constant 0 : index
    %63 = vector.load %arg7[%c8_89, %c0_90, %c0_91] : memref<16x16x8xbf16, #tpu.memory_space<vmem>>, vector<8x8x8xbf16>
    %c8_92 = arith.constant 8 : index
    %c2_93 = arith.constant 2 : index
    %c0_94 = arith.constant 0 : index
    %64 = vector.load %arg7[%c8_92, %c2_93, %c0_94] : memref<16x16x8xbf16, #tpu.memory_space<vmem>>, vector<8x8x8xbf16>
    %c8_95 = arith.constant 8 : index
    %c4_96 = arith.constant 4 : index
    %c0_97 = arith.constant 0 : index
    %65 = vector.load %arg7[%c8_95, %c4_96, %c0_97] : memref<16x16x8xbf16, #tpu.memory_space<vmem>>, vector<8x8x8xbf16>
    %c8_98 = arith.constant 8 : index
    %c6_99 = arith.constant 6 : index
    %c0_100 = arith.constant 0 : index
    %66 = vector.load %arg7[%c8_98, %c6_99, %c0_100] : memref<16x16x8xbf16, #tpu.memory_space<vmem>>, vector<8x8x8xbf16>
    %c8_101 = arith.constant 8 : index
    %c8_102 = arith.constant 8 : index
    %c0_103 = arith.constant 0 : index
    %67 = vector.load %arg7[%c8_101, %c8_102, %c0_103] : memref<16x16x8xbf16, #tpu.memory_space<vmem>>, vector<8x8x8xbf16>
    %68 = tpu.concatenate %63, %64, %65, %66, %67 in 2 : vector<8x8x8xbf16>, vector<8x8x8xbf16>, vector<8x8x8xbf16>, vector<8x8x8xbf16>, vector<8x8x8xbf16> -> vector<8x8x40xbf16>
    %69 = vector.shape_cast %68 : vector<8x8x40xbf16> to vector<64x40xbf16>
    %c0_104 = arith.constant 0 : index
    %c4_105 = arith.constant 4 : index
    %c0_106 = arith.constant 0 : index
    %c0_107 = arith.constant 0 : index
    %70 = vector.load %arg4[%c0_104, %c4_105, %c0_106, %c0_107] : memref<1x5x40x8xbf16, #tpu.memory_space<vmem>>, vector<1x1x40x8xbf16>
    %71 = vector.shape_cast %70 : vector<1x1x40x8xbf16> to vector<40x8xbf16>
    %cst_108 = arith.constant dense<0.000000e+00> : vector<64x8xf32>
    %72 = tpu.matmul %69, %71, %cst_108 {dimension_numbers = #tpu.dot_dimension_numbers<[1], [0], [0], [1], [0, 0, 1, 1], [], []>} : vector<64x40xbf16>, vector<40x8xbf16>, vector<64x8xf32> -> vector<64x8xf32>
    %73 = arith.addf %62, %72 : vector<64x8xf32>
    %cst_109 = arith.constant dense<0.000000e+00> : vector<8xf32>
    %74 = vector.multi_reduction <add>, %73, %cst_109 [0] : vector<64x8xf32> to vector<8xf32>
    %75 = vector.shape_cast %74 : vector<8xf32> to vector<1x8xf32>
    %76 = arith.mulf %73, %73 : vector<64x8xf32>
    %cst_110 = arith.constant dense<0.000000e+00> : vector<8xf32>
    %77 = vector.multi_reduction <add>, %76, %cst_110 [0] : vector<64x8xf32> to vector<8xf32>
    %78 = vector.shape_cast %77 : vector<8xf32> to vector<1x8xf32>
    %79 = tpu.concatenate %75, %78 in 0 : vector<1x8xf32>, vector<1x8xf32> -> vector<2x8xf32>
    %c0_111 = arith.constant 0 : index
    %c0_112 = arith.constant 0 : index
    %c0_113 = arith.constant 0 : index
    %c0_114 = arith.constant 0 : index
    %80 = vector.load %arg6[%c0_111, %c0_112, %c0_113, %c0_114] : memref<1x1x2x8xf32, #tpu.memory_space<vmem>>, vector<1x1x2x8xf32>
    %81 = vector.shape_cast %80 : vector<1x1x2x8xf32> to vector<2x8xf32>
    %82 = vector.shape_cast %79 : vector<2x8xf32> to vector<1x1x2x8xf32>
    tpu.vector_store %arg6[%c0_111, %c0_112, %c0_113, %c0_114], %82 {strides = array<i32>} : memref<1x1x2x8xf32, #tpu.memory_space<vmem>>, vector<1x1x2x8xf32>,
    %83 = arith.truncf %73 : vector<64x8xf32> to vector<64x8xbf16>
    %c0_115 = arith.constant 0 : index
    %c0_116 = arith.constant 0 : index
    %c0_117 = arith.constant 0 : index
    %c0_118 = arith.constant 0 : index
    %c0_119 = arith.constant 0 : index
    %84 = vector.load %arg5[%c0_115, %c0_116, %c0_117, %c0_118, %c0_119] : memref<1x1x1x64x8xbf16, #tpu.memory_space<vmem>>, vector<1x1x1x64x8xbf16>
    %85 = vector.shape_cast %84 : vector<1x1x1x64x8xbf16> to vector<64x8xbf16>
    %86 = vector.shape_cast %83 : vector<64x8xbf16> to vector<1x1x1x64x8xbf16>
    tpu.vector_store %arg5[%c0_115, %c0_116, %c0_117, %c0_118, %c0_119], %86 {strides = array<i32>} : memref<1x1x1x64x8xbf16, #tpu.memory_space<vmem>>, vector<1x1x1x64x8xbf16>,
    return
  }
  func.func @transform_0(%arg0: i32, %arg1: i32) -> (i32, i32, i32, i32, i32) {
    %c0_i32 = arith.constant 0 : i32
    %c0_i32_0 = arith.constant 0 : i32
    %c0_i32_1 = arith.constant 0 : i32
    %c0_i32_2 = arith.constant 0 : i32
    return %arg0, %arg1, %c0_i32, %c0_i32_0, %c0_i32_1 : i32, i32, i32, i32, i32
  }
  func.func @transform_1(%arg0: i32, %arg1: i32) -> (i32, i32, i32) {
    %c0_i32 = arith.constant 0 : i32
    %c0_i32_0 = arith.constant 0 : i32
    %c0_i32_1 = arith.constant 0 : i32
    return %arg0, %c0_i32, %c0_i32_0 : i32, i32, i32
  }
  func.func @transform_2(%arg0: i32, %arg1: i32) -> (i32, i32, i32, i32) {
    %c0_i32 = arith.constant 0 : i32
    %c0_i32_0 = arith.constant 0 : i32
    %c0_i32_1 = arith.constant 0 : i32
    %c0_i32_2 = arith.constant 0 : i32
    return %arg0, %c0_i32, %c0_i32_0, %c0_i32_1 : i32, i32, i32, i32
  }
  func.func @transform_3(%arg0: i32, %arg1: i32) -> (i32, i32, i32, i32, i32) {
    %c0_i32 = arith.constant 0 : i32
    %c0_i32_0 = arith.constant 0 : i32
    %c0_i32_1 = arith.constant 0 : i32
    %c0_i32_2 = arith.constant 0 : i32
    return %arg0, %arg1, %c0_i32, %c0_i32_0, %c0_i32_1 : i32, i32, i32, i32, i32
  }
  func.func @transform_4(%arg0: i32, %arg1: i32) -> (i32, i32, i32, i32) {
    %c0_i32 = arith.constant 0 : i32
    %c0_i32_0 = arith.constant 0 : i32
    %c0_i32_1 = arith.constant 0 : i32
    return %arg0, %arg1, %c0_i32, %c0_i32_0 : i32, i32, i32, i32
  }
}

module attributes {stable_mosaic.version = 11 : i64} {
  func.func @kernel(%arg0: i32, %arg1: i32, %arg2: memref<3x2x8xf32, #tpu.memory_space<vmem>>, %arg3: memref<1x1x1x64x8xbf16, #tpu.memory_space<vmem>>, %arg4: memref<1x1x1x64x8xbf16, #tpu.memory_space<vmem>>, %arg5: memref<1x1x1x64x8xbf16, #tpu.memory_space<vmem>>, %arg6: memref<1x64x8xf32, #tpu.memory_space<vmem>>) attributes {dimension_semantics = [#tpu.dimension_semantics<parallel>, #tpu.dimension_semantics<parallel>], iteration_bounds = array<i64: 2, 1>, scalar_prefetch = 0 : i64, scratch_operands = 0 : i64, tpu.core_type = #tpu.core_type<tc>, window_params = [{pipeline_mode = #tpu.pipeline_mode<synchronous>, transform_indices = @transform_0, window_bounds = array<i64: 3, 2, 8>}, {transform_indices = @transform_1, window_bounds = array<i64: 1, 1, 1, 64, 8>}, {transform_indices = @transform_2, window_bounds = array<i64: 1, 1, 1, 64, 8>}, {transform_indices = @transform_3, window_bounds = array<i64: 1, 1, 1, 64, 8>}, {transform_indices = @transform_4, window_bounds = array<i64: 1, 64, 8>}]} {
    %c0 = arith.constant 0 : index
    %c0_0 = arith.constant 0 : index
    %c0_1 = arith.constant 0 : index
    %c0_2 = arith.constant 0 : index
    %c0_3 = arith.constant 0 : index
    %0 = vector.load %arg3[%c0, %c0_0, %c0_1, %c0_2, %c0_3] : memref<1x1x1x64x8xbf16, #tpu.memory_space<vmem>>, vector<1x1x1x64x8xbf16>
    %1 = vector.shape_cast %0 : vector<1x1x1x64x8xbf16> to vector<64x8xbf16>
    %2 = arith.extf %1 : vector<64x8xbf16> to vector<64x8xf32>
    %c0_4 = arith.constant 0 : index
    %c0_5 = arith.constant 0 : index
    %c0_6 = arith.constant 0 : index
    %3 = vector.load %arg2[%c0_4, %c0_5, %c0_6] : memref<3x2x8xf32, #tpu.memory_space<vmem>>, vector<1x1x8xf32>
    %4 = vector.shape_cast %3 : vector<1x1x8xf32> to vector<1x8xf32>
    %5 = vector.broadcast %4 : vector<1x8xf32> to vector<64x8xf32>
    %6 = arith.mulf %2, %5 : vector<64x8xf32>
    %c0_7 = arith.constant 0 : index
    %c1 = arith.constant 1 : index
    %c0_8 = arith.constant 0 : index
    %7 = vector.load %arg2[%c0_7, %c1, %c0_8] : memref<3x2x8xf32, #tpu.memory_space<vmem>>, vector<1x1x8xf32>
    %8 = vector.shape_cast %7 : vector<1x1x8xf32> to vector<1x8xf32>
    %9 = vector.broadcast %8 : vector<1x8xf32> to vector<64x8xf32>
    %10 = arith.addf %6, %9 : vector<64x8xf32>
    %c0_9 = arith.constant 0 : index
    %c0_10 = arith.constant 0 : index
    %c0_11 = arith.constant 0 : index
    %c0_12 = arith.constant 0 : index
    %c0_13 = arith.constant 0 : index
    %11 = vector.load %arg4[%c0_9, %c0_10, %c0_11, %c0_12, %c0_13] : memref<1x1x1x64x8xbf16, #tpu.memory_space<vmem>>, vector<1x1x1x64x8xbf16>
    %12 = vector.shape_cast %11 : vector<1x1x1x64x8xbf16> to vector<64x8xbf16>
    %13 = arith.extf %12 : vector<64x8xbf16> to vector<64x8xf32>
    %c1_14 = arith.constant 1 : index
    %c0_15 = arith.constant 0 : index
    %c0_16 = arith.constant 0 : index
    %14 = vector.load %arg2[%c1_14, %c0_15, %c0_16] : memref<3x2x8xf32, #tpu.memory_space<vmem>>, vector<1x1x8xf32>
    %15 = vector.shape_cast %14 : vector<1x1x8xf32> to vector<1x8xf32>
    %16 = vector.broadcast %15 : vector<1x8xf32> to vector<64x8xf32>
    %17 = arith.mulf %13, %16 : vector<64x8xf32>
    %c1_17 = arith.constant 1 : index
    %c1_18 = arith.constant 1 : index
    %c0_19 = arith.constant 0 : index
    %18 = vector.load %arg2[%c1_17, %c1_18, %c0_19] : memref<3x2x8xf32, #tpu.memory_space<vmem>>, vector<1x1x8xf32>
    %19 = vector.shape_cast %18 : vector<1x1x8xf32> to vector<1x8xf32>
    %20 = vector.broadcast %19 : vector<1x8xf32> to vector<64x8xf32>
    %21 = arith.addf %17, %20 : vector<64x8xf32>
    %22 = arith.addf %10, %21 : vector<64x8xf32>
    %c0_20 = arith.constant 0 : index
    %c0_21 = arith.constant 0 : index
    %c0_22 = arith.constant 0 : index
    %c0_23 = arith.constant 0 : index
    %c0_24 = arith.constant 0 : index
    %23 = vector.load %arg5[%c0_20, %c0_21, %c0_22, %c0_23, %c0_24] : memref<1x1x1x64x8xbf16, #tpu.memory_space<vmem>>, vector<1x1x1x64x8xbf16>
    %24 = vector.shape_cast %23 : vector<1x1x1x64x8xbf16> to vector<64x8xbf16>
    %25 = arith.extf %24 : vector<64x8xbf16> to vector<64x8xf32>
    %c2 = arith.constant 2 : index
    %c0_25 = arith.constant 0 : index
    %c0_26 = arith.constant 0 : index
    %26 = vector.load %arg2[%c2, %c0_25, %c0_26] : memref<3x2x8xf32, #tpu.memory_space<vmem>>, vector<1x1x8xf32>
    %27 = vector.shape_cast %26 : vector<1x1x8xf32> to vector<1x8xf32>
    %28 = vector.broadcast %27 : vector<1x8xf32> to vector<64x8xf32>
    %29 = arith.mulf %25, %28 : vector<64x8xf32>
    %c2_27 = arith.constant 2 : index
    %c1_28 = arith.constant 1 : index
    %c0_29 = arith.constant 0 : index
    %30 = vector.load %arg2[%c2_27, %c1_28, %c0_29] : memref<3x2x8xf32, #tpu.memory_space<vmem>>, vector<1x1x8xf32>
    %31 = vector.shape_cast %30 : vector<1x1x8xf32> to vector<1x8xf32>
    %32 = vector.broadcast %31 : vector<1x8xf32> to vector<64x8xf32>
    %33 = arith.addf %29, %32 : vector<64x8xf32>
    %34 = arith.addf %22, %33 : vector<64x8xf32>
    %c0_30 = arith.constant 0 : index
    %c0_31 = arith.constant 0 : index
    %c0_32 = arith.constant 0 : index
    %35 = vector.load %arg6[%c0_30, %c0_31, %c0_32] : memref<1x64x8xf32, #tpu.memory_space<vmem>>, vector<1x64x8xf32>
    %36 = vector.shape_cast %35 : vector<1x64x8xf32> to vector<64x8xf32>
    %37 = vector.shape_cast %34 : vector<64x8xf32> to vector<1x64x8xf32>
    tpu.vector_store %arg6[%c0_30, %c0_31, %c0_32], %37 {strides = array<i32>} : memref<1x64x8xf32, #tpu.memory_space<vmem>>, vector<1x64x8xf32>,
    return
  }
  func.func @transform_0(%arg0: i32, %arg1: i32) -> (i32, i32, i32) {
    %c0_i32 = arith.constant 0 : i32
    %c0_i32_0 = arith.constant 0 : i32
    %c0_i32_1 = arith.constant 0 : i32
    %c0_i32_2 = arith.constant 0 : i32
    return %c0_i32, %c0_i32_0, %c0_i32_1 : i32, i32, i32
  }
  func.func @transform_1(%arg0: i32, %arg1: i32) -> (i32, i32, i32, i32, i32) {
    %c0_i32 = arith.constant 0 : i32
    %c1_i32 = arith.constant 1 : i32
    %c0_i32_0 = arith.constant 0 : i32
    %c0_i32_1 = arith.constant 0 : i32
    return %c0_i32, %arg0, %c1_i32, %arg1, %c0_i32_0 : i32, i32, i32, i32, i32
  }
  func.func @transform_2(%arg0: i32, %arg1: i32) -> (i32, i32, i32, i32, i32) {
    %c1_i32 = arith.constant 1 : i32
    %c1_i32_0 = arith.constant 1 : i32
    %c0_i32 = arith.constant 0 : i32
    %c0_i32_1 = arith.constant 0 : i32
    return %c1_i32, %arg0, %c1_i32_0, %arg1, %c0_i32 : i32, i32, i32, i32, i32
  }
  func.func @transform_3(%arg0: i32, %arg1: i32) -> (i32, i32, i32, i32, i32) {
    %c0_i32 = arith.constant 0 : i32
    %c0_i32_0 = arith.constant 0 : i32
    %c0_i32_1 = arith.constant 0 : i32
    %c0_i32_2 = arith.constant 0 : i32
    return %c0_i32, %arg0, %c0_i32_0, %arg1, %c0_i32_1 : i32, i32, i32, i32, i32
  }
  func.func @transform_4(%arg0: i32, %arg1: i32) -> (i32, i32, i32) {
    %c0_i32 = arith.constant 0 : i32
    %c0_i32_0 = arith.constant 0 : i32
    return %arg0, %arg1, %c0_i32 : i32, i32, i32
  }
}

</mosaic_0001>

<llo_original>
// kernel: mul.80
$region0: #{mul.80}
  %s0 = inlined_call_operand.vmem [shape: f32[25,8], index: 0, kind: input, shape index: {}]
  %s1 = inlined_call_operand.vmem [shape: f32[5,5,8], index: 1, kind: output, shape index: {}]
  %v2 = vld [vmem:[%s0] sm:$0xff]
  %vm3 = vcmask 64512
  %4 = vst.msk [vmem:[%s1] sm:$0x1f] %vm3, %v2
  %s5 = scalar_lea.vmem %s1, 3
  %6 = vst.msk [vmem:[%s5] sm:$0xe0] %vm3, %v2
  %s7 = scalar_lea.vmem %s0, 8
  %v8 = vld [vmem:[%s7] sm:$0xff]
  %vm9 = vcmask 64512
  %s10 = scalar_lea.vmem %s1, 11
  %11 = vst.msk [vmem:[%s10] sm:$0x3] %vm9, %v8
  %s12 = scalar_lea.vmem %s1, 14
  %13 = vst.msk [vmem:[%s12] sm:$0x7c] %vm9, %v8
  %s14 = scalar_lea.vmem %s1, 17
  %15 = vst.msk [vmem:[%s14] sm:$0x80] %vm9, %v8
  %s16 = scalar_lea.vmem %s0, 16
  %v17 = vld [vmem:[%s16] sm:$0xff]
  %vm18 = vcmask 64512
  %s19 = scalar_lea.vmem %s1, 25
  %20 = vst.msk [vmem:[%s19] sm:$0xf] %vm18, %v17
  %s21 = scalar_lea.vmem %s1, 28
  %22 = vst.msk [vmem:[%s21] sm:$0xf0] %vm18, %v17
  %s23 = scalar_lea.vmem %s0, 24
  %v24 = vld [vmem:[%s23] sm:$0x1]
  %vm25 = vcmask 64512
  %s26 = scalar_lea.vmem %s1, 36
  %27 = vst.msk [vmem:[%s26] sm:$0x1] %vm25, %v24

// kernel: _lambda_.7
$region0: #{_lambda_.7}
  #allocation0 [shape = 'u32[]', space=smem, size = 0x4, offset = 0x4, fixed_abs, tag = 'smem constant byte address 0x4 - core index']
  #allocation1 [shape = 'u32[144,128]{1,0:T(1,128)}', space=vmem, size = 0x12000, scoped, tag = 'internal scratch']
  %s0 = inlined_call_operand.vmem [shape: f32[2,2,8], index: 0, kind: input, shape index: {}]
  %s1 = inlined_call_operand.vmem [shape: bf16[2,2,2,64,8], index: 1, kind: input, shape index: {}, may-alias: {1,2}]
  %s2 = inlined_call_operand.vmem [shape: bf16[2,2,2,64,8], index: 2, kind: input, shape index: {}, may-alias: {1,2}]
  %s3 = inlined_call_operand.vmem [shape: f32[2,64,8], index: 3, kind: output, shape index: {}]
  %s4 = sld [smem:[#allocation0]]
  $region45: #{_lambda_.7} parent=0
    _
  %s6 = ssub.s32 1, %s4
  %s7 = scalar_select 0, %s6, %s4
  loop: start=0, step=1, limit=4
  $region2: #{_lambda_.7} parent=0 // loop_pre_header
    _
  $region3: #{_lambda_.7} parent=0 // loop_header
    %s9 = sphi 0, %s13
    %p10 = scmp.ge.s32.totalorder %s9, 4
    %s16 = sphi 0, %s28
    %s17 = sphi 0, %s24
    %s18 = sphi 0, %s16
    %s19 = sphi 0, %s17
    %s20 = sphi 0, %s18
    %s21 = sphi 0, %s19
    %s29 = sphi 0, %s29
    %s31 = sphi 0, %s29
    %s32 = sphi 0, %s31
    %s46 = sphi 0, %s32
    %s54 = sphi 0, %s56
    %s57 = sphi 0, %s54
    %s58 = sphi 0, %s57
    %s74 = sphi 0, %s58
    %s82 = sphi 0, %s84
    %s85 = sphi 0, %s82
    %s86 = sphi 0, %s85
    %s102 = sphi 0, %s86
    %s110 = sphi 0, %s112
    %s113 = sphi 0, %s110
    %s114 = sphi 0, %s113
    %s130 = sphi 0, %s114
  $region4: #{_lambda_.7} parent=0 // loop_header_branch
    %12 = sbr.rel (%p10) target = $region8
  $region5: #{_lambda_.7} parent=0 // loop_body
    %s14 = ssub.s32 %s9, 1
    %s15 = ssub.s32 %s9, 2
    %s22 = sadd.s32 1, %s17
    %p23 = scmp.ge.s32.totalorder %s22, 1
    %s24 = scalar_select %p23, 0, %s22
    %s25 = sadd.s32 1, %s16
    %s26 = scalar_select %p23, %s25, %s16
    %p27 = scmp.ge.s32.totalorder %s26, 2
    %s28 = scalar_select %p27, 0, %s26
    %s30 = sadd.s32 %s29, 1
    %p33 = scmp.eq.s32.totalorder %s9, 1
    %p34 = scmp.ne.s32.totalorder %s29, %s31
    %p35 = scmp.eq.s32.totalorder %s9, 0
    %p36 = por %p34, %p35
    %p37 = scmp.ne.s32.totalorder %s29, %s31
    %p38 = scmp.eq.s32.totalorder %s14, 1
    %p39 = por %p37, %p38
    %p40 = scmp.ne.s32.totalorder %s31, %s32
    %p41 = scmp.eq.s32.totalorder %s14, 0
    %p42 = por %p40, %p41
    %p43 = scmp.ne.s32.totalorder %s31, %s32
    %p44 = scmp.eq.s32.totalorder %s15, 1
    %p45 = por %p43, %p44
    %p47 = scmp.ne.s32.totalorder %s32, %s46
    %p48 = scmp.eq.s32.totalorder %s15, 0
    %p49 = por %p47, %p48
    %s50 = ssub.s32 %s16, %s28
    %s51 = ssub.s32 %s17, %s24
    %s52 = sor.u32 %s50, %s51
    %p53 = scmp.eq.s32.totalorder %s52, 0
    %s55 = sadd.s32 %s54, 1
    %s56 = scalar_select %p53, %s54, %s55
    %p59 = pneg %p53
    %p60 = scmp.eq.s32.totalorder %s9, 1
    %p61 = por %p59, %p60
    %p62 = scmp.ne.s32.totalorder %s54, %s57
    %p63 = scmp.eq.s32.totalorder %s9, 0
    %p64 = por %p62, %p63
    %p65 = scmp.ne.s32.totalorder %s54, %s57
    %p66 = scmp.eq.s32.totalorder %s14, 1
    %p67 = por %p65, %p66
    %p68 = scmp.ne.s32.totalorder %s57, %s58
    %p69 = scmp.eq.s32.totalorder %s14, 0
    %p70 = por %p68, %p69
    %p71 = scmp.ne.s32.totalorder %s57, %s58
    %p72 = scmp.eq.s32.totalorder %s15, 1
    %p73 = por %p71, %p72
    %p75 = scmp.ne.s32.totalorder %s58, %s74
    %p76 = scmp.eq.s32.totalorder %s15, 0
    %p77 = por %p75, %p76
    %s78 = ssub.s32 %s16, %s28
    %s79 = ssub.s32 %s17, %s24
    %s80 = sor.u32 %s78, %s79
    %p81 = scmp.eq.s32.totalorder %s80, 0
    %s83 = sadd.s32 %s82, 1
    %s84 = scalar_select %p81, %s82, %s83
    %p87 = pneg %p81
    %p88 = scmp.eq.s32.totalorder %s9, 1
    %p89 = por %p87, %p88
    %p90 = scmp.ne.s32.totalorder %s82, %s85
    %p91 = scmp.eq.s32.totalorder %s9, 0
    %p92 = por %p90, %p91
    %p93 = scmp.ne.s32.totalorder %s82, %s85
    %p94 = scmp.eq.s32.totalorder %s14, 1
    %p95 = por %p93, %p94
    %p96 = scmp.ne.s32.totalorder %s85, %s86
    %p97 = scmp.eq.s32.totalorder %s14, 0
    %p98 = por %p96, %p97
    %p99 = scmp.ne.s32.totalorder %s85, %s86
    %p100 = scmp.eq.s32.totalorder %s15, 1
    %p101 = por %p99, %p100
    %p103 = scmp.ne.s32.totalorder %s86, %s102
    %p104 = scmp.eq.s32.totalorder %s15, 0
    %p105 = por %p103, %p104
    %s106 = ssub.s32 %s16, %s28
    %s107 = ssub.s32 %s17, %s24
    %s108 = sor.u32 %s106, %s107
    %p109 = scmp.eq.s32.totalorder %s108, 0
    %s111 = sadd.s32 %s110, 1
    %s112 = scalar_select %p109, %s110, %s111
    %p115 = pneg %p109
    %p116 = scmp.eq.s32.totalorder %s9, 1
    %p117 = por %p115, %p116
    %p118 = scmp.ne.s32.totalorder %s110, %s113
    %p119 = scmp.eq.s32.totalorder %s9, 0
    %p120 = por %p118, %p119
    %p121 = scmp.ne.s32.totalorder %s110, %s113
    %p122 = scmp.eq.s32.totalorder %s14, 1
    %p123 = por %p121, %p122
    %p124 = scmp.ne.s32.totalorder %s113, %s114
    %p125 = scmp.eq.s32.totalorder %s14, 0
    %p126 = por %p124, %p125
    %p127 = scmp.ne.s32.totalorder %s113, %s114
    %p128 = scmp.eq.s32.totalorder %s15, 1
    %p129 = por %p127, %p128
    %p131 = scmp.ne.s32.totalorder %s114, %s130
    %p132 = scmp.eq.s32.totalorder %s15, 0
    %p133 = por %p131, %p132
    %p134 = scmp.le.s32.totalorder 1, %s9
    %p135 = scmp.lt.s32.totalorder %s9, 3
    %p136 = pnand %p134, %p135
    %p137 = pneg %p136
    // Predicated region
    $region9: #{_lambda_.7} parent=5 // pred_check
      _
    $region10: #{_lambda_.7} parent=5 // pred_check_branch
      %139 = sbr.rel (%p136) target = $region12
    $region11: #{_lambda_.7} parent=5 // pred_region
      %s140 = ssub.s32 %s9, 1
      // Predicated region
      $region13: #{_lambda_.7} parent=11 // pred_check
        %p141 = pneg %p42
      $region14: #{_lambda_.7} parent=11 // pred_check_branch
        %143 = sbr.rel (%p141) target = $region16
      $region15: #{_lambda_.7} parent=11 // pred_region
        _
      $region16: #{_lambda_.7} parent=11 // pred_fallthru
        _
    $region12: #{_lambda_.7} parent=5 // pred_fallthru
      _
    %p144 = scmp.lt.s32.totalorder %s9, 2
    // Predicated region
    $region17: #{_lambda_.7} parent=5 // pred_check
      %p145 = pneg %p144
    $region18: #{_lambda_.7} parent=5 // pred_check_branch
      %147 = sbr.rel (%p145) target = $region20
    $region19: #{_lambda_.7} parent=5 // pred_region
      // Predicated region
      $region21: #{_lambda_.7} parent=19 // pred_check
        %p148 = pneg %p64
      $region22: #{_lambda_.7} parent=19 // pred_check_branch
        %150 = sbr.rel (%p148) target = $region24
      $region23: #{_lambda_.7} parent=19 // pred_region
        %s151 = smul.u32 8, %s17
        %p152 = scmp.lt.s32.totalorder %s16, 1
        %s153 = scalar_select %p152, %s16, 1
        %p154 = scmp.lt.s32.totalorder %s151, 7
        %s155 = scalar_select %p154, %s151, 7
        %s156 = smul.addr %s153, 16
        %s157 = sadd.s32 %s155, %s156
        %s158 = smul.addr %s157, 4
        %s159 = scalar_lea.vmem %s1, %s158
        %s160 = smul.u32 8, %s17
      $region24: #{_lambda_.7} parent=19 // pred_fallthru
        _
      // Predicated region
      $region25: #{_lambda_.7} parent=19 // pred_check
        %p161 = pneg %p92
      $region26: #{_lambda_.7} parent=19 // pred_check_branch
        %163 = sbr.rel (%p161) target = $region28
      $region27: #{_lambda_.7} parent=19 // pred_region
        %s164 = smul.u32 8, %s17
        %p165 = scmp.lt.s32.totalorder %s16, 1
        %s166 = scalar_select %p165, %s16, 1
        %p167 = scmp.lt.s32.totalorder %s164, 7
        %s168 = scalar_select %p167, %s164, 7
        %s169 = smul.addr %s166, 16
        %s170 = sadd.s32 %s168, %s169
        %s171 = sadd.s32 %s170, 32
        %s172 = smul.addr %s171, 4
        %s173 = scalar_lea.vmem %s2, %s172
        %s174 = smul.u32 8, %s17
      $region28: #{_lambda_.7} parent=19 // pred_fallthru
        _
    $region20: #{_lambda_.7} parent=5 // pred_fallthru
      _
    %p175 = scmp.le.s32.totalorder 1, %s9
    %p176 = scmp.lt.s32.totalorder %s9, 3
    %p177 = pnand %p175, %p176
    %p178 = pneg %p177
    // Predicated region
    $region29: #{_lambda_.7} parent=5 // pred_check
      _
    $region30: #{_lambda_.7} parent=5 // pred_check_branch
      %180 = sbr.rel (%p177) target = $region32
    $region31: #{_lambda_.7} parent=5 // pred_region
      %s181 = ssub.s32 %s9, 1
      %p182 = pneg %p42
      %p183 = pneg %p39
      %s184 = smul.u32 8, %s19
      %p185 = scmp.lt.s32.totalorder %s18, 1
      %s186 = scalar_select %p185, %s18, 1
      %p187 = scmp.lt.s32.totalorder %s184, 7
      %s188 = scalar_select %p187, %s184, 7
      %s189 = smul.addr %s186, 16
      %s190 = sadd.s32 %s188, %s189
      %s191 = smul.addr %s190, 4
      %s192 = scalar_lea.vmem %s1, %s191
      %p193 = pneg %p70
      %p194 = pneg %p67
      %s195 = smul.u32 8, %s19
      %p196 = scmp.lt.s32.totalorder %s18, 1
      %s197 = scalar_select %p196, %s18, 1
      %p198 = scmp.lt.s32.totalorder %s195, 7
      %s199 = scalar_select %p198, %s195, 7
      %s200 = smul.addr %s197, 16
      %s201 = sadd.s32 %s199, %s200
      %s202 = sadd.s32 %s201, 32
      %s203 = smul.addr %s202, 4
      %s204 = scalar_lea.vmem %s2, %s203
      %p205 = pneg %p98
      %p206 = pneg %p95
      %p207 = pneg %p126
      %p208 = pneg %p123
      %s209 = smul.u32 8, %s19
      %p210 = scmp.lt.s32.totalorder %s18, 1
      %s211 = scalar_select %p210, %s18, 1
      %p212 = scmp.lt.s32.totalorder %s209, 7
      %s213 = scalar_select %p212, %s209, 7
      %s214 = smul.addr %s211, 8
      %s215 = sadd.s32 %s213, %s214
      %s216 = smul.addr %s215, 8
      %s217 = scalar_lea.vmem %s3, %s216
      %s218 = smul.u32 8, %s19
      %p219 = scmp.lt.s32.totalorder %s18, 1
      %s220 = scalar_select %p219, %s18, 1
      %p221 = scmp.lt.s32.totalorder %s218, 7
      %s222 = scalar_select %p221, %s218, 7
      %s223 = smul.addr %s220, 16
      %s224 = sadd.s32 %s222, %s223
      %s225 = smul.addr %s224, 4
      %s226 = scalar_lea.vmem %s1, %s225
      %s227 = smul.u32 8, %s19
      %s228 = smul.u32 8, %s19
      %p229 = scmp.lt.s32.totalorder %s18, 1
      %s230 = scalar_select %p229, %s18, 1
      %p231 = scmp.lt.s32.totalorder %s228, 7
      %s232 = scalar_select %p231, %s228, 7
      %s233 = smul.addr %s230, 16
      %s234 = sadd.s32 %s232, %s233
      %s235 = sadd.s32 %s234, 32
      %s236 = smul.addr %s235, 4
      %s237 = scalar_lea.vmem %s2, %s236
      %s238 = smul.u32 8, %s19
      %s239 = smul.u32 8, %s19
      %p240 = scmp.lt.s32.totalorder %s18, 1
      %s241 = scalar_select %p240, %s18, 1
      %p242 = scmp.lt.s32.totalorder %s239, 7
      %s243 = scalar_select %p242, %s239, 7
      %s244 = smul.addr %s241, 8
      %s245 = sadd.s32 %s243, %s244
      %s246 = smul.addr %s245, 8
      %s247 = scalar_lea.vmem %s3, %s246
      %s248 = smul.u32 8, %s19
      %v249 = vld [vmem:[%s226] sm:$0xf]
      %v250 = vld [vmem:[%s226 + $0x4] sm:$0xf]
      %v251 = vld [vmem:[%s226 + $0x8] sm:$0xf]
      %v252 = vld [vmem:[%s226 + $0xc] sm:$0xf]
      %v253 = vld [vmem:[%s226 + $0x10] sm:$0xf]
      %v254 = vld [vmem:[%s226 + $0x14] sm:$0xf]
      %v255 = vld [vmem:[%s226 + $0x18] sm:$0xf]
      %v256 = vld [vmem:[%s226 + $0x1c] sm:$0xf]
      %v257 = vunpack.c.l.bf16 %v249
      %v258 = vunpack.c.l.bf16 %v250
      %v259 = vunpack.c.l.bf16 %v251
      %v260 = vunpack.c.l.bf16 %v252
      %v261 = vunpack.c.l.bf16 %v253
      %v262 = vunpack.c.l.bf16 %v254
      %v263 = vunpack.c.l.bf16 %v255
      %v264 = vunpack.c.l.bf16 %v256
      %v265 = vld [vmem:[%s0] sm:$0x1]
      %v266 = vlaneseq
      %v267 = vshrl.u32 %v266, 7
      %v268 = vsub.s32 0, %v267
      %v269 = vrot.slane %v265, %v268
      %v270 = vmul.f32 %v257, %v269
      %v271 = vmul.f32 %v258, %v269
      %v272 = vmul.f32 %v259, %v269
      %v273 = vmul.f32 %v260, %v269
      %v274 = vmul.f32 %v261, %v269
      %v275 = vmul.f32 %v262, %v269
      %v276 = vmul.f32 %v263, %v269
      %v277 = vmul.f32 %v264, %v269
      %v278 = vld [vmem:[%s0 + $0x1] sm:$0x1]
      %v279 = vlaneseq
      %v280 = vshrl.u32 %v279, 7
      %v281 = vsub.s32 0, %v280
      %v282 = vrot.slane %v278, %v281
      %v283 = vadd.f32 %v270, %v282
      %v284 = vadd.f32 %v271, %v282
      %v285 = vadd.f32 %v272, %v282
      %v286 = vadd.f32 %v273, %v282
      %v287 = vadd.f32 %v274, %v282
      %v288 = vadd.f32 %v275, %v282
      %v289 = vadd.f32 %v276, %v282
      %v290 = vadd.f32 %v277, %v282
      %v291 = vld [vmem:[%s237] sm:$0xf]
      %v292 = vld [vmem:[%s237 + $0x4] sm:$0xf]
      %v293 = vld [vmem:[%s237 + $0x8] sm:$0xf]
      %v294 = vld [vmem:[%s237 + $0xc] sm:$0xf]
      %v295 = vld [vmem:[%s237 + $0x10] sm:$0xf]
      %v296 = vld [vmem:[%s237 + $0x14] sm:$0xf]
      %v297 = vld [vmem:[%s237 + $0x18] sm:$0xf]
      %v298 = vld [vmem:[%s237 + $0x1c] sm:$0xf]
      %v299 = vunpack.c.l.bf16 %v291
      %v300 = vunpack.c.l.bf16 %v292
      %v301 = vunpack.c.l.bf16 %v293
      %v302 = vunpack.c.l.bf16 %v294
      %v303 = vunpack.c.l.bf16 %v295
      %v304 = vunpack.c.l.bf16 %v296
      %v305 = vunpack.c.l.bf16 %v297
      %v306 = vunpack.c.l.bf16 %v298
      %s307 = scalar_lea.vmem %s0, 2
      %v308 = vld [vmem:[%s307] sm:$0x1]
      %v309 = vlaneseq
      %v310 = vshrl.u32 %v309, 7
      %v311 = vsub.s32 0, %v310
      %v312 = vrot.slane %v308, %v311
      %v313 = vmul.f32 %v299, %v312
      %v314 = vmul.f32 %v300, %v312
      %v315 = vmul.f32 %v301, %v312
      %v316 = vmul.f32 %v302, %v312
      %v317 = vmul.f32 %v303, %v312
      %v318 = vmul.f32 %v304, %v312
      %v319 = vmul.f32 %v305, %v312
      %v320 = vmul.f32 %v306, %v312
      %v321 = vld [vmem:[%s307 + $0x1] sm:$0x1]
      %v322 = vlaneseq
      %v323 = vshrl.u32 %v322, 7
      %v324 = vsub.s32 0, %v323
      %v325 = vrot.slane %v321, %v324
      %v326 = vadd.f32 %v313, %v325
      %v327 = vadd.f32 %v314, %v325
      %v328 = vadd.f32 %v315, %v325
      %v329 = vadd.f32 %v316, %v325
      %v330 = vadd.f32 %v317, %v325
      %v331 = vadd.f32 %v318, %v325
      %v332 = vadd.f32 %v319, %v325
      %v333 = vadd.f32 %v320, %v325
      %v334 = vadd.f32 %v283, %v326
      %v335 = vadd.f32 %v284, %v327
      %v336 = vadd.f32 %v285, %v328
      %v337 = vadd.f32 %v286, %v329
      %v338 = vadd.f32 %v287, %v330
      %v339 = vadd.f32 %v288, %v331
      %v340 = vadd.f32 %v289, %v332
      %v341 = vadd.f32 %v290, %v333
      %vm342 = vcmask 64512
      %343 = vst.msk [vmem:[%s247] sm:$0xff] %vm342, %v334
      %344 = vst.msk [vmem:[%s247 + $0x8] sm:$0xff] %vm342, %v335
      %345 = vst.msk [vmem:[%s247 + $0x10] sm:$0xff] %vm342, %v336
      %346 = vst.msk [vmem:[%s247 + $0x18] sm:$0xff] %vm342, %v337
      %347 = vst.msk [vmem:[%s247 + $0x20] sm:$0xff] %vm342, %v338
      %348 = vst.msk [vmem:[%s247 + $0x28] sm:$0xff] %vm342, %v339
      %349 = vst.msk [vmem:[%s247 + $0x30] sm:$0xff] %vm342, %v340
      %350 = vst.msk [vmem:[%s247 + $0x38] sm:$0xff] %vm342, %v341
      %s351 = smul.u32 8, %s19
      %p352 = scmp.lt.s32.totalorder %s18, 1
      %s353 = scalar_select %p352, %s18, 1
      %p354 = scmp.lt.s32.totalorder %s351, 7
      %s355 = scalar_select %p354, %s351, 7
      %s356 = smul.addr %s353, 8
      %s357 = sadd.s32 %s355, %s356
      %s358 = smul.addr %s357, 8
      %s359 = scalar_lea.vmem %s3, %s358
      // Predicated region
      $region33: #{_lambda_.7} parent=31 // pred_check
        %p360 = pneg %p123
      $region34: #{_lambda_.7} parent=31 // pred_check_branch
        %362 = sbr.rel (%p360) target = $region36
      $region35: #{_lambda_.7} parent=31 // pred_region
        %s363 = smul.u32 8, %s19
      $region36: #{_lambda_.7} parent=31 // pred_fallthru
        _
    $region32: #{_lambda_.7} parent=5 // pred_fallthru
      _
    %p364 = scmp.le.s32.totalorder 2, %s9
    // Predicated region
    $region37: #{_lambda_.7} parent=5 // pred_check
      %p365 = pneg %p364
    $region38: #{_lambda_.7} parent=5 // pred_check_branch
      %367 = sbr.rel (%p365) target = $region40
    $region39: #{_lambda_.7} parent=5 // pred_region
      %s368 = ssub.s32 %s9, 2
      // Predicated region
      $region41: #{_lambda_.7} parent=39 // pred_check
        %p369 = pneg %p129
      $region42: #{_lambda_.7} parent=39 // pred_check_branch
        %371 = sbr.rel (%p369) target = $region44
      $region43: #{_lambda_.7} parent=39 // pred_region
        %s372 = smul.u32 8, %s21
        %p373 = scmp.lt.s32.totalorder %s20, 1
        %s374 = scalar_select %p373, %s20, 1
        %p375 = scmp.lt.s32.totalorder %s372, 7
        %s376 = scalar_select %p375, %s372, 7
        %s377 = smul.addr %s374, 8
        %s378 = sadd.s32 %s376, %s377
        %s379 = smul.addr %s378, 8
        %s380 = scalar_lea.vmem %s3, %s379
      $region44: #{_lambda_.7} parent=39 // pred_fallthru
        _
    $region40: #{_lambda_.7} parent=5 // pred_fallthru
      _
  $region6: #{_lambda_.7} parent=0 // loop_footer
    %s13 = sadd.s32 1, %s9
  $region7: #{_lambda_.7} parent=0 // loop_footer_branch
    %8 = sbr.rel target = $region3
  $region8: #{_lambda_.7} parent=0 // loop_exit
    _

// kernel: _lambda_.5
$region0: #{_lambda_.5}
  #allocation0 [shape = 'u32[]', space=smem, size = 0x4, offset = 0x4, fixed_abs, tag = 'smem constant byte address 0x4 - core index']
  #allocation1 [shape = 'u32[144,128]{1,0:T(1,128)}', space=vmem, size = 0x12000, scoped, tag = 'internal scratch']
  %s0 = inlined_call_operand.vmem [shape: f32[2,128,8], index: 0, kind: input, shape index: {}]
  %s1 = inlined_call_operand.vmem [shape: bf16[2,8,8], index: 1, kind: input, shape index: {}]
  %s2 = inlined_call_operand.vmem [shape: bf16[2,128,8], index: 2, kind: output, shape index: {0}]
  %s3 = inlined_call_operand.vmem [shape: f32[2,1,2,8], index: 3, kind: output, shape index: {1}]
  %4 = xla_tuple %s2, %s3
  %s5 = sld [smem:[#allocation0]]
  $region49: #{_lambda_.5} parent=0
    _
  %s7 = ssub.s32 1, %s5
  %s8 = scalar_select 0, %s7, %s5
  loop: start=0, step=1, limit=4
  $region2: #{_lambda_.5} parent=0 // loop_pre_header
    _
  $region3: #{_lambda_.5} parent=0 // loop_header
    %s10 = sphi 0, %s14
    %p11 = scmp.ge.s32.totalorder %s10, 4
    %s17 = sphi 0, %s29
    %s18 = sphi 0, %s25
    %s19 = sphi 0, %s17
    %s20 = sphi 0, %s18
    %s21 = sphi 0, %s19
    %s22 = sphi 0, %s20
    %s34 = sphi 0, %s36
    %s37 = sphi 0, %s34
    %s38 = sphi 0, %s37
    %s54 = sphi 0, %s38
    %s60 = sphi 0, %s62
    %s63 = sphi 0, %s60
    %s64 = sphi 0, %s63
    %s80 = sphi 0, %s64
    %s88 = sphi 0, %s90
    %s91 = sphi 0, %s88
    %s92 = sphi 0, %s91
    %s108 = sphi 0, %s92
    %s116 = sphi 0, %s118
    %s119 = sphi 0, %s116
    %s120 = sphi 0, %s119
    %s136 = sphi 0, %s120
  $region4: #{_lambda_.5} parent=0 // loop_header_branch
    %13 = sbr.rel (%p11) target = $region8
  $region5: #{_lambda_.5} parent=0 // loop_body
    %s15 = ssub.s32 %s10, 1
    %s16 = ssub.s32 %s10, 2
    %s23 = sadd.s32 1, %s18
    %p24 = scmp.ge.s32.totalorder %s23, 1
    %s25 = scalar_select %p24, 0, %s23
    %s26 = sadd.s32 1, %s17
    %s27 = scalar_select %p24, %s26, %s17
    %p28 = scmp.ge.s32.totalorder %s27, 2
    %s29 = scalar_select %p28, 0, %s27
    %s30 = ssub.s32 %s17, %s29
    %s31 = ssub.s32 %s18, %s25
    %s32 = sor.u32 %s30, %s31
    %p33 = scmp.eq.s32.totalorder %s32, 0
    %s35 = sadd.s32 %s34, 1
    %s36 = scalar_select %p33, %s34, %s35
    %p39 = pneg %p33
    %p40 = scmp.eq.s32.totalorder %s10, 1
    %p41 = por %p39, %p40
    %p42 = scmp.ne.s32.totalorder %s34, %s37
    %p43 = scmp.eq.s32.totalorder %s10, 0
    %p44 = por %p42, %p43
    %p45 = scmp.ne.s32.totalorder %s34, %s37
    %p46 = scmp.eq.s32.totalorder %s15, 1
    %p47 = por %p45, %p46
    %p48 = scmp.ne.s32.totalorder %s37, %s38
    %p49 = scmp.eq.s32.totalorder %s15, 0
    %p50 = por %p48, %p49
    %p51 = scmp.ne.s32.totalorder %s37, %s38
    %p52 = scmp.eq.s32.totalorder %s16, 1
    %p53 = por %p51, %p52
    %p55 = scmp.ne.s32.totalorder %s38, %s54
    %p56 = scmp.eq.s32.totalorder %s16, 0
    %p57 = por %p55, %p56
    %s58 = ssub.s32 %s17, %s29
    %p59 = scmp.eq.s32.totalorder %s58, 0
    %s61 = sadd.s32 %s60, 1
    %s62 = scalar_select %p59, %s60, %s61
    %p65 = pneg %p59
    %p66 = scmp.eq.s32.totalorder %s10, 1
    %p67 = por %p65, %p66
    %p68 = scmp.ne.s32.totalorder %s60, %s63
    %p69 = scmp.eq.s32.totalorder %s10, 0
    %p70 = por %p68, %p69
    %p71 = scmp.ne.s32.totalorder %s60, %s63
    %p72 = scmp.eq.s32.totalorder %s15, 1
    %p73 = por %p71, %p72
    %p74 = scmp.ne.s32.totalorder %s63, %s64
    %p75 = scmp.eq.s32.totalorder %s15, 0
    %p76 = por %p74, %p75
    %p77 = scmp.ne.s32.totalorder %s63, %s64
    %p78 = scmp.eq.s32.totalorder %s16, 1
    %p79 = por %p77, %p78
    %p81 = scmp.ne.s32.totalorder %s64, %s80
    %p82 = scmp.eq.s32.totalorder %s16, 0
    %p83 = por %p81, %p82
    %s84 = ssub.s32 %s17, %s29
    %s85 = ssub.s32 %s18, %s25
    %s86 = sor.u32 %s84, %s85
    %p87 = scmp.eq.s32.totalorder %s86, 0
    %s89 = sadd.s32 %s88, 1
    %s90 = scalar_select %p87, %s88, %s89
    %p93 = pneg %p87
    %p94 = scmp.eq.s32.totalorder %s10, 1
    %p95 = por %p93, %p94
    %p96 = scmp.ne.s32.totalorder %s88, %s91
    %p97 = scmp.eq.s32.totalorder %s10, 0
    %p98 = por %p96, %p97
    %p99 = scmp.ne.s32.totalorder %s88, %s91
    %p100 = scmp.eq.s32.totalorder %s15, 1
    %p101 = por %p99, %p100
    %p102 = scmp.ne.s32.totalorder %s91, %s92
    %p103 = scmp.eq.s32.totalorder %s15, 0
    %p104 = por %p102, %p103
    %p105 = scmp.ne.s32.totalorder %s91, %s92
    %p106 = scmp.eq.s32.totalorder %s16, 1
    %p107 = por %p105, %p106
    %p109 = scmp.ne.s32.totalorder %s92, %s108
    %p110 = scmp.eq.s32.totalorder %s16, 0
    %p111 = por %p109, %p110
    %s112 = ssub.s32 %s17, %s29
    %s113 = ssub.s32 %s18, %s25
    %s114 = sor.u32 %s112, %s113
    %p115 = scmp.eq.s32.totalorder %s114, 0
    %s117 = sadd.s32 %s116, 1
    %s118 = scalar_select %p115, %s116, %s117
    %p121 = pneg %p115
    %p122 = scmp.eq.s32.totalorder %s10, 1
    %p123 = por %p121, %p122
    %p124 = scmp.ne.s32.totalorder %s116, %s119
    %p125 = scmp.eq.s32.totalorder %s10, 0
    %p126 = por %p124, %p125
    %p127 = scmp.ne.s32.totalorder %s116, %s119
    %p128 = scmp.eq.s32.totalorder %s15, 1
    %p129 = por %p127, %p128
    %p130 = scmp.ne.s32.totalorder %s119, %s120
    %p131 = scmp.eq.s32.totalorder %s15, 0
    %p132 = por %p130, %p131
    %p133 = scmp.ne.s32.totalorder %s119, %s120
    %p134 = scmp.eq.s32.totalorder %s16, 1
    %p135 = por %p133, %p134
    %p137 = scmp.ne.s32.totalorder %s120, %s136
    %p138 = scmp.eq.s32.totalorder %s16, 0
    %p139 = por %p137, %p138
    %p140 = scmp.le.s32.totalorder 1, %s10
    %p141 = scmp.lt.s32.totalorder %s10, 3
    %p142 = pnand %p140, %p141
    %p143 = pneg %p142
    // Predicated region
    $region9: #{_lambda_.5} parent=5 // pred_check
      _
    $region10: #{_lambda_.5} parent=5 // pred_check_branch
      %145 = sbr.rel (%p142) target = $region12
    $region11: #{_lambda_.5} parent=5 // pred_region
      %s146 = ssub.s32 %s10, 1
    $region12: #{_lambda_.5} parent=5 // pred_fallthru
      _
    %p147 = scmp.lt.s32.totalorder %s10, 2
    // Predicated region
    $region13: #{_lambda_.5} parent=5 // pred_check
      %p148 = pneg %p147
    $region14: #{_lambda_.5} parent=5 // pred_check_branch
      %150 = sbr.rel (%p148) target = $region16
    $region15: #{_lambda_.5} parent=5 // pred_region
      // Predicated region
      $region17: #{_lambda_.5} parent=15 // pred_check
        %p151 = pneg %p44
      $region18: #{_lambda_.5} parent=15 // pred_check_branch
        %153 = sbr.rel (%p151) target = $region20
      $region19: #{_lambda_.5} parent=15 // pred_region
        %s154 = smul.u32 16, %s18
        %p155 = scmp.lt.s32.totalorder %s17, 1
        %s156 = scalar_select %p155, %s17, 1
        %p157 = scmp.lt.s32.totalorder %s154, 15
        %s158 = scalar_select %p157, %s154, 15
        %s159 = smul.addr %s156, 16
        %s160 = sadd.s32 %s158, %s159
        %s161 = smul.addr %s160, 8
        %s162 = scalar_lea.vmem %s0, %s161
        %s163 = smul.u32 16, %s18
      $region20: #{_lambda_.5} parent=15 // pred_fallthru
        _
      // Predicated region
      $region21: #{_lambda_.5} parent=15 // pred_check
        %p164 = pneg %p70
      $region22: #{_lambda_.5} parent=15 // pred_check_branch
        %166 = sbr.rel (%p164) target = $region24
      $region23: #{_lambda_.5} parent=15 // pred_region
        %p167 = scmp.lt.s32.totalorder %s17, 1
        %s168 = scalar_select %p167, %s17, 1
        %s169 = smul.addr %s168, 4
        %s170 = scalar_lea.vmem %s1, %s169
      $region24: #{_lambda_.5} parent=15 // pred_fallthru
        _
    $region16: #{_lambda_.5} parent=5 // pred_fallthru
      _
    %p171 = scmp.le.s32.totalorder 1, %s10
    %p172 = scmp.lt.s32.totalorder %s10, 3
    %p173 = pnand %p171, %p172
    %p174 = pneg %p173
    // Predicated region
    $region25: #{_lambda_.5} parent=5 // pred_check
      _
    $region26: #{_lambda_.5} parent=5 // pred_check_branch
      %176 = sbr.rel (%p173) target = $region28
    $region27: #{_lambda_.5} parent=5 // pred_region
      %s177 = ssub.s32 %s10, 1
      %s178 = smul.u32 16, %s20
      %p179 = scmp.lt.s32.totalorder %s19, 1
      %s180 = scalar_select %p179, %s19, 1
      %p181 = scmp.lt.s32.totalorder %s178, 15
      %s182 = scalar_select %p181, %s178, 15
      %s183 = smul.addr %s180, 16
      %s184 = sadd.s32 %s182, %s183
      %s185 = smul.addr %s184, 8
      %s186 = scalar_lea.vmem %s0, %s185
      %p187 = pneg %p50
      %p188 = pneg %p47
      %p189 = scmp.lt.s32.totalorder %s19, 1
      %s190 = scalar_select %p189, %s19, 1
      %s191 = smul.addr %s190, 4
      %s192 = scalar_lea.vmem %s1, %s191
      %p193 = pneg %p76
      %p194 = pneg %p73
      %p195 = pneg %p104
      %p196 = pneg %p101
      %s197 = smul.u32 16, %s20
      %p198 = scmp.lt.s32.totalorder %s19, 1
      %s199 = scalar_select %p198, %s19, 1
      %p200 = scmp.lt.s32.totalorder %s197, 15
      %s201 = scalar_select %p200, %s197, 15
      %s202 = smul.addr %s199, 16
      %s203 = sadd.s32 %s201, %s202
      %s204 = smul.addr %s203, 4
      %s205 = scalar_lea.vmem %s2, %s204
      %p206 = pneg %p132
      %p207 = pneg %p129
      %p208 = scmp.lt.s32.totalorder %s19, 1
      %s209 = scalar_select %p208, %s19, 1
      %p210 = scmp.lt.s32.totalorder %s20, 0
      %s211 = scalar_select %p210, %s20, 0
      %s212 = sadd.s32 %s211, %s209
      %s213 = smul.addr %s212, 2
      %s214 = scalar_lea.vmem %s3, %s213
      %s215 = smul.u32 16, %s20
      %p216 = scmp.lt.s32.totalorder %s19, 1
      %s217 = scalar_select %p216, %s19, 1
      %p218 = scmp.lt.s32.totalorder %s215, 15
      %s219 = scalar_select %p218, %s215, 15
      %s220 = smul.addr %s217, 16
      %s221 = sadd.s32 %s219, %s220
      %s222 = smul.addr %s221, 8
      %s223 = scalar_lea.vmem %s0, %s222
      %s224 = smul.u32 16, %s20
      %p225 = scmp.lt.s32.totalorder %s19, 1
      %s226 = scalar_select %p225, %s19, 1
      %s227 = smul.addr %s226, 4
      %s228 = scalar_lea.vmem %s1, %s227
      %s229 = smul.u32 16, %s20
      %p230 = scmp.lt.s32.totalorder %s19, 1
      %s231 = scalar_select %p230, %s19, 1
      %p232 = scmp.lt.s32.totalorder %s229, 15
      %s233 = scalar_select %p232, %s229, 15
      %s234 = smul.addr %s231, 16
      %s235 = sadd.s32 %s233, %s234
      %s236 = smul.addr %s235, 4
      %s237 = scalar_lea.vmem %s2, %s236
      %s238 = smul.u32 16, %s20
      %p239 = scmp.lt.s32.totalorder %s19, 1
      %s240 = scalar_select %p239, %s19, 1
      %p241 = scmp.lt.s32.totalorder %s20, 0
      %s242 = scalar_select %p241, %s20, 0
      %s243 = sadd.s32 %s242, %s240
      %s244 = smul.addr %s243, 2
      %s245 = scalar_lea.vmem %s3, %s244
      %v247 = vld [vmem:[%s223] sm:$0xff]
      %v248 = vld [vmem:[%s223 + $0x8] sm:$0xff]
      %v249 = vld [vmem:[%s223 + $0x10] sm:$0xff]
      %v250 = vld [vmem:[%s223 + $0x18] sm:$0xff]
      %v251 = vld [vmem:[%s223 + $0x20] sm:$0xff]
      %v252 = vld [vmem:[%s223 + $0x28] sm:$0xff]
      %v253 = vld [vmem:[%s223 + $0x30] sm:$0xff]
      %v254 = vld [vmem:[%s223 + $0x38] sm:$0xff]
      %v255 = vld [vmem:[%s223 + $0x40] sm:$0xff]
      %v256 = vld [vmem:[%s223 + $0x48] sm:$0xff]
      %v257 = vld [vmem:[%s223 + $0x50] sm:$0xff]
      %v258 = vld [vmem:[%s223 + $0x58] sm:$0xff]
      %v259 = vld [vmem:[%s223 + $0x60] sm:$0xff]
      %v260 = vld [vmem:[%s223 + $0x68] sm:$0xff]
      %v261 = vld [vmem:[%s223 + $0x70] sm:$0xff]
      %v262 = vld [vmem:[%s223 + $0x78] sm:$0xff]
      %v263 = vmax.f32 %v247, 0.0
      %v264 = vmax.f32 %v248, 0.0
      %v265 = vmax.f32 %v249, 0.0
      %v266 = vmax.f32 %v250, 0.0
      %v267 = vmax.f32 %v251, 0.0
      %v268 = vmax.f32 %v252, 0.0
      %v269 = vmax.f32 %v253, 0.0
      %v270 = vmax.f32 %v254, 0.0
      %v271 = vmax.f32 %v255, 0.0
      %v272 = vmax.f32 %v256, 0.0
      %v273 = vmax.f32 %v257, 0.0
      %v274 = vmax.f32 %v258, 0.0
      %v275 = vmax.f32 %v259, 0.0
      %v276 = vmax.f32 %v260, 0.0
      %v277 = vmax.f32 %v261, 0.0
      %v278 = vmax.f32 %v262, 0.0
      %v279 = vpack.c.bf16 %v264, %v263
      %v280 = vpack.c.bf16 %v266, %v265
      %v281 = vpack.c.bf16 %v268, %v267
      %v282 = vpack.c.bf16 %v270, %v269
      %v283 = vpack.c.bf16 %v272, %v271
      %v284 = vpack.c.bf16 %v274, %v273
      %v285 = vpack.c.bf16 %v276, %v275
      %v286 = vpack.c.bf16 %v278, %v277
      %v287 = vld [vmem:[%s228] sm:$0xf]
      %vm288 = vcmask 64512
      %v290 = vsel %vm288, %v279, 0
      %v293 = vsel %vm288, %v280, 0
      %v296 = vsel %vm288, %v281, 0
      %v299 = vsel %vm288, %v282, 0
      %v302 = vsel %vm288, %v283, 0
      %v305 = vsel %vm288, %v284, 0
      %v308 = vsel %vm288, %v285, 0
      %v311 = vsel %vm288, %v286, 0
      %vm313 = vcmask 1043456
      %v315 = vsel %vm313, %v287, 0
      %317 = vmatprep.subr.bf16.mxu0 0
      %318 = vmatpush1.bf16.msra.mxu0 0
      %319 = vmatprep.subr.bf16.mxu0 0
      %320 = vmatpush1.bf16.msra.mxu0 0
      %321 = vmatprep.subr.bf16.mxu0 0
      %322 = vmatpush1.bf16.msra.mxu0 0
      %323 = vmatprep.subr.bf16.mxu0 0
      %324 = vmatpush1.bf16.msra.mxu0 0
      %325 = vmatprep.subr.bf16.mxu0 0
      %326 = vmatpush1.bf16.msra.mxu0 0
      %327 = vmatprep.subr.bf16.mxu0 0
      %328 = vmatpush1.bf16.msra.mxu0 0
      %329 = vmatprep.subr.bf16.mxu0 0
      %330 = vmatpush1.bf16.msra.mxu0 0
      %331 = vmatprep.subr.bf16.mxu0 0
      %332 = vmatpush1.bf16.msra.mxu0 %v315
      %333 = vmatprep.subr.bf16.mxu0 0
      %334 = vmatpush2.bf16.msra.mxu0 0
      %335 = vmatprep.subr.bf16.mxu0 0
      %336 = vmatpush2.bf16.msra.mxu0 0
      %337 = vmatprep.subr.bf16.mxu0 0
      %338 = vmatpush2.bf16.msra.mxu0 0
      %339 = vmatprep.subr.bf16.mxu0 0
      %340 = vmatpush2.bf16.msra.mxu0 0
      %341 = vmatprep.subr.bf16.mxu0 0
      %342 = vmatpush2.bf16.msra.mxu0 0
      %343 = vmatprep.subr.bf16.mxu0 0
      %344 = vmatpush2.bf16.msra.mxu0 0
      %345 = vmatprep.subr.bf16.mxu0 0
      %346 = vmatpush2.bf16.msra.mxu0 0
      %347 = vmatprep.subr.bf16.mxu0 0
      %348 = vmatpush2.bf16.msra.mxu0 0
      %349 = vmatprep.mubr.bf16.mxu0 0
      %350 = vmatmul.mubr.bf16.gmra.mxu0 %v290
      %v351 = vpop.f32.mrf.mxu0
      %v352 = vadd.f32 0.0, %v351
      %v353 = vpop.f32.mrf.mxu0
      %v354 = vpop.f32.mrf.mxu0
      %v355 = vadd.f32 0.0, %v354
      %v356 = vpop.f32.mrf.mxu0
      %357 = vmatprep.mubr.bf16.mxu0 0
      %358 = vmatmul.mubr.bf16.gmra.mxu0 %v293
      %v359 = vpop.f32.mrf.mxu0
      %v360 = vadd.f32 0.0, %v359
      %v361 = vpop.f32.mrf.mxu0
      %v362 = vpop.f32.mrf.mxu0
      %v363 = vadd.f32 0.0, %v362
      %v364 = vpop.f32.mrf.mxu0
      %365 = vmatprep.mubr.bf16.mxu0 0
      %366 = vmatmul.mubr.bf16.gmra.mxu0 %v296
      %v367 = vpop.f32.mrf.mxu0
      %v368 = vadd.f32 0.0, %v367
      %v369 = vpop.f32.mrf.mxu0
      %v370 = vpop.f32.mrf.mxu0
      %v371 = vadd.f32 0.0, %v370
      %v372 = vpop.f32.mrf.mxu0
      %373 = vmatprep.mubr.bf16.mxu0 0
      %374 = vmatmul.mubr.bf16.gmra.mxu0 %v299
      %v375 = vpop.f32.mrf.mxu0
      %v376 = vadd.f32 0.0, %v375
      %v377 = vpop.f32.mrf.mxu0
      %v378 = vpop.f32.mrf.mxu0
      %v379 = vadd.f32 0.0, %v378
      %v380 = vpop.f32.mrf.mxu0
      %381 = vmatprep.mubr.bf16.mxu0 0
      %382 = vmatmul.mubr.bf16.gmra.mxu0 %v302
      %v383 = vpop.f32.mrf.mxu0
      %v384 = vadd.f32 0.0, %v383
      %v385 = vpop.f32.mrf.mxu0
      %v386 = vpop.f32.mrf.mxu0
      %v387 = vadd.f32 0.0, %v386
      %v388 = vpop.f32.mrf.mxu0
      %389 = vmatprep.mubr.bf16.mxu0 0
      %390 = vmatmul.mubr.bf16.gmra.mxu0 %v305
      %v391 = vpop.f32.mrf.mxu0
      %v392 = vadd.f32 0.0, %v391
      %v393 = vpop.f32.mrf.mxu0
      %v394 = vpop.f32.mrf.mxu0
      %v395 = vadd.f32 0.0, %v394
      %v396 = vpop.f32.mrf.mxu0
      %397 = vmatprep.mubr.bf16.mxu0 0
      %398 = vmatmul.mubr.bf16.gmra.mxu0 %v308
      %v399 = vpop.f32.mrf.mxu0
      %v400 = vadd.f32 0.0, %v399
      %v401 = vpop.f32.mrf.mxu0
      %v402 = vpop.f32.mrf.mxu0
      %v403 = vadd.f32 0.0, %v402
      %v404 = vpop.f32.mrf.mxu0
      %405 = vmatprep.mubr.bf16.mxu0 0
      %406 = vmatmul.mubr.bf16.gmra.mxu0 %v311
      %v407 = vpop.f32.mrf.mxu0
      %v408 = vadd.f32 0.0, %v407
      %v409 = vpop.f32.mrf.mxu0
      %v410 = vpop.f32.mrf.mxu0
      %v411 = vadd.f32 0.0, %v410
      %v412 = vpop.f32.mrf.mxu0
      %413 = vdwg.mxu0
      %v414 = vsel %vm288, %v352, 0.0
      %v415 = vsel %vm288, %v355, 0.0
      %v416 = vadd.f32 %v414, %v415
      %v417 = vsel %vm288, %v360, 0.0
      %v418 = vadd.f32 %v416, %v417
      %v419 = vsel %vm288, %v363, 0.0
      %v420 = vadd.f32 %v418, %v419
      %v421 = vsel %vm288, %v368, 0.0
      %v422 = vadd.f32 %v420, %v421
      %v423 = vsel %vm288, %v371, 0.0
      %v424 = vadd.f32 %v422, %v423
      %v425 = vsel %vm288, %v376, 0.0
      %v426 = vadd.f32 %v424, %v425
      %v427 = vsel %vm288, %v379, 0.0
      %v428 = vadd.f32 %v426, %v427
      %v429 = vsel %vm288, %v384, 0.0
      %v430 = vadd.f32 %v428, %v429
      %v431 = vsel %vm288, %v387, 0.0
      %v432 = vadd.f32 %v430, %v431
      %v433 = vsel %vm288, %v392, 0.0
      %v434 = vadd.f32 %v432, %v433
      %v435 = vsel %vm288, %v395, 0.0
      %v436 = vadd.f32 %v434, %v435
      %v437 = vsel %vm288, %v400, 0.0
      %v438 = vadd.f32 %v436, %v437
      %v439 = vsel %vm288, %v403, 0.0
      %v440 = vadd.f32 %v438, %v439
      %v441 = vsel %vm288, %v408, 0.0
      %v442 = vadd.f32 %v440, %v441
      %v443 = vsel %vm288, %v411, 0.0
      %v444 = vadd.f32 %v442, %v443
      %v445 = vrot.slane %v444, 4
      %v446 = vadd.f32 %v444, %v445
      %v447 = vrot.slane %v446, 2
      %v448 = vadd.f32 %v446, %v447
      %v449 = vrot.slane %v448, 1
      %v450 = vadd.f32 %v448, %v449
      %v451 = vmul.f32 %v352, %v352
      %v452 = vmul.f32 %v355, %v355
      %v453 = vmul.f32 %v360, %v360
      %v454 = vmul.f32 %v363, %v363
      %v455 = vmul.f32 %v368, %v368
      %v456 = vmul.f32 %v371, %v371
      %v457 = vmul.f32 %v376, %v376
      %v458 = vmul.f32 %v379, %v379
      %v459 = vmul.f32 %v384, %v384
      %v460 = vmul.f32 %v387, %v387
      %v461 = vmul.f32 %v392, %v392
      %v462 = vmul.f32 %v395, %v395
      %v463 = vmul.f32 %v400, %v400
      %v464 = vmul.f32 %v403, %v403
      %v465 = vmul.f32 %v408, %v408
      %v466 = vmul.f32 %v411, %v411
      %v467 = vsel %vm288, %v451, 0.0
      %v468 = vsel %vm288, %v452, 0.0
      %v469 = vadd.f32 %v467, %v468
      %v470 = vsel %vm288, %v453, 0.0
      %v471 = vadd.f32 %v469, %v470
      %v472 = vsel %vm288, %v454, 0.0
      %v473 = vadd.f32 %v471, %v472
      %v474 = vsel %vm288, %v455, 0.0
      %v475 = vadd.f32 %v473, %v474
      %v476 = vsel %vm288, %v456, 0.0
      %v477 = vadd.f32 %v475, %v476
      %v478 = vsel %vm288, %v457, 0.0
      %v479 = vadd.f32 %v477, %v478
      %v480 = vsel %vm288, %v458, 0.0
      %v481 = vadd.f32 %v479, %v480
      %v482 = vsel %vm288, %v459, 0.0
      %v483 = vadd.f32 %v481, %v482
      %v484 = vsel %vm288, %v460, 0.0
      %v485 = vadd.f32 %v483, %v484
      %v486 = vsel %vm288, %v461, 0.0
      %v487 = vadd.f32 %v485, %v486
      %v488 = vsel %vm288, %v462, 0.0
      %v489 = vadd.f32 %v487, %v488
      %v490 = vsel %vm288, %v463, 0.0
      %v491 = vadd.f32 %v489, %v490
      %v492 = vsel %vm288, %v464, 0.0
      %v493 = vadd.f32 %v491, %v492
      %v494 = vsel %vm288, %v465, 0.0
      %v495 = vadd.f32 %v493, %v494
      %v496 = vsel %vm288, %v466, 0.0
      %v497 = vadd.f32 %v495, %v496
      %v498 = vrot.slane %v497, 4
      %v499 = vadd.f32 %v497, %v498
      %v500 = vrot.slane %v499, 2
      %v501 = vadd.f32 %v499, %v500
      %v502 = vrot.slane %v501, 1
      %v503 = vadd.f32 %v501, %v502
      %vm504 = vcmask 1040384
      %v505 = vsel %vm504, %v450, %v503
      %vm506 = vcmask 58368
      %507 = vst.msk [vmem:[%s245] sm:$0x3] %vm506, %v505
      %v508 = vpack.c.bf16 %v355, %v352
      %v509 = vpack.c.bf16 %v363, %v360
      %v510 = vpack.c.bf16 %v371, %v368
      %v511 = vpack.c.bf16 %v379, %v376
      %v512 = vpack.c.bf16 %v387, %v384
      %v513 = vpack.c.bf16 %v395, %v392
      %v514 = vpack.c.bf16 %v403, %v400
      %v515 = vpack.c.bf16 %v411, %v408
      %v524 = vunpack.c.l.b16 %v508
      %v525 = vunpack.c.h.b16 %v508
      %v526 = vunpack.c.l.b16 %v509
      %v527 = vunpack.c.h.b16 %v509
      %v528 = vunpack.c.l.b16 %v510
      %v529 = vunpack.c.h.b16 %v510
      %v530 = vunpack.c.l.b16 %v511
      %v531 = vunpack.c.h.b16 %v511
      %v532 = vunpack.c.l.b16 %v512
      %v533 = vunpack.c.h.b16 %v512
      %v534 = vunpack.c.l.b16 %v513
      %v535 = vunpack.c.h.b16 %v513
      %v536 = vunpack.c.l.b16 %v514
      %v537 = vunpack.c.h.b16 %v514
      %v538 = vunpack.c.l.b16 %v515
      %v539 = vunpack.c.h.b16 %v515
      %v540 = vpack.c.b16 %v524, %v524
      %v541 = vpack.c.b16 %v525, %v525
      %v542 = vpack.c.b16 %v526, %v526
      %v543 = vpack.c.b16 %v527, %v527
      %v544 = vpack.c.b16 %v528, %v528
      %v545 = vpack.c.b16 %v529, %v529
      %v546 = vpack.c.b16 %v530, %v530
      %v547 = vpack.c.b16 %v531, %v531
      %v548 = vpack.c.b16 %v532, %v532
      %v549 = vpack.c.b16 %v533, %v533
      %v550 = vpack.c.b16 %v534, %v534
      %v551 = vpack.c.b16 %v535, %v535
      %v552 = vpack.c.b16 %v536, %v536
      %v553 = vpack.c.b16 %v537, %v537
      %v554 = vpack.c.b16 %v538, %v538
      %v555 = vpack.c.b16 %v539, %v539
      %vm572 = vcmask 60416
      %573 = vst.msk [vmem:[%s237] sm:$0xf] %vm572, %v540
      %574 = vst.msk [vmem:[%s237 + $0x4] sm:$0xf] %vm572, %v541
      %575 = vst.msk [vmem:[%s237 + $0x8] sm:$0xf] %vm572, %v542
      %576 = vst.msk [vmem:[%s237 + $0xc] sm:$0xf] %vm572, %v543
      %577 = vst.msk [vmem:[%s237 + $0x10] sm:$0xf] %vm572, %v544
      %578 = vst.msk [vmem:[%s237 + $0x14] sm:$0xf] %vm572, %v545
      %579 = vst.msk [vmem:[%s237 + $0x18] sm:$0xf] %vm572, %v546
      %580 = vst.msk [vmem:[%s237 + $0x1c] sm:$0xf] %vm572, %v547
      %581 = vst.msk [vmem:[%s237 + $0x20] sm:$0xf] %vm572, %v548
      %582 = vst.msk [vmem:[%s237 + $0x24] sm:$0xf] %vm572, %v549
      %583 = vst.msk [vmem:[%s237 + $0x28] sm:$0xf] %vm572, %v550
      %584 = vst.msk [vmem:[%s237 + $0x2c] sm:$0xf] %vm572, %v551
      %585 = vst.msk [vmem:[%s237 + $0x30] sm:$0xf] %vm572, %v552
      %586 = vst.msk [vmem:[%s237 + $0x34] sm:$0xf] %vm572, %v553
      %587 = vst.msk [vmem:[%s237 + $0x38] sm:$0xf] %vm572, %v554
      %588 = vst.msk [vmem:[%s237 + $0x3c] sm:$0xf] %vm572, %v555
      %s589 = smul.u32 16, %s20
      %p590 = scmp.lt.s32.totalorder %s19, 1
      %s591 = scalar_select %p590, %s19, 1
      %p592 = scmp.lt.s32.totalorder %s589, 15
      %s593 = scalar_select %p592, %s589, 15
      %s594 = smul.addr %s591, 16
      %s595 = sadd.s32 %s593, %s594
      %s596 = smul.addr %s595, 4
      %s597 = scalar_lea.vmem %s2, %s596
      %p598 = scmp.lt.s32.totalorder %s19, 1
      %s599 = scalar_select %p598, %s19, 1
      %p600 = scmp.lt.s32.totalorder %s20, 0
      %s601 = scalar_select %p600, %s20, 0
      %s602 = sadd.s32 %s601, %s599
      %s603 = smul.addr %s602, 2
      %s604 = scalar_lea.vmem %s3, %s603
      // Predicated region
      $region29: #{_lambda_.5} parent=27 // pred_check
        %p605 = pneg %p101
      $region30: #{_lambda_.5} parent=27 // pred_check_branch
        %607 = sbr.rel (%p605) target = $region32
      $region31: #{_lambda_.5} parent=27 // pred_region
        %s608 = smul.u32 16, %s20
      $region32: #{_lambda_.5} parent=27 // pred_fallthru
        _
      // Predicated region
      $region33: #{_lambda_.5} parent=27 // pred_check
        %p609 = pneg %p129
      $region34: #{_lambda_.5} parent=27 // pred_check_branch
        %611 = sbr.rel (%p609) target = $region36
      $region35: #{_lambda_.5} parent=27 // pred_region
        _
      $region36: #{_lambda_.5} parent=27 // pred_fallthru
        _
    $region28: #{_lambda_.5} parent=5 // pred_fallthru
      _
    %p612 = scmp.le.s32.totalorder 2, %s10
    // Predicated region
    $region37: #{_lambda_.5} parent=5 // pred_check
      %p613 = pneg %p612
    $region38: #{_lambda_.5} parent=5 // pred_check_branch
      %615 = sbr.rel (%p613) target = $region40
    $region39: #{_lambda_.5} parent=5 // pred_region
      %s616 = ssub.s32 %s10, 2
      // Predicated region
      $region41: #{_lambda_.5} parent=39 // pred_check
        %p617 = pneg %p107
      $region42: #{_lambda_.5} parent=39 // pred_check_branch
        %619 = sbr.rel (%p617) target = $region44
      $region43: #{_lambda_.5} parent=39 // pred_region
        %s620 = smul.u32 16, %s22
        %p621 = scmp.lt.s32.totalorder %s21, 1
        %s622 = scalar_select %p621, %s21, 1
        %p623 = scmp.lt.s32.totalorder %s620, 15
        %s624 = scalar_select %p623, %s620, 15
        %s625 = smul.addr %s622, 16
        %s626 = sadd.s32 %s624, %s625
        %s627 = smul.addr %s626, 4
        %s628 = scalar_lea.vmem %s2, %s627
      $region44: #{_lambda_.5} parent=39 // pred_fallthru
        _
      // Predicated region
      $region45: #{_lambda_.5} parent=39 // pred_check
        %p629 = pneg %p135
      $region46: #{_lambda_.5} parent=39 // pred_check_branch
        %631 = sbr.rel (%p629) target = $region48
      $region47: #{_lambda_.5} parent=39 // pred_region
        %p632 = scmp.lt.s32.totalorder %s21, 1
        %s633 = scalar_select %p632, %s21, 1
        %p634 = scmp.lt.s32.totalorder %s22, 0
        %s635 = scalar_select %p634, %s22, 0
        %s636 = sadd.s32 %s635, %s633
        %s637 = smul.addr %s636, 2
        %s638 = scalar_lea.vmem %s3, %s637
      $region48: #{_lambda_.5} parent=39 // pred_fallthru
        _
    $region40: #{_lambda_.5} parent=5 // pred_fallthru
      _
  $region6: #{_lambda_.5} parent=0 // loop_footer
    %s14 = sadd.s32 1, %s10
  $region7: #{_lambda_.5} parent=0 // loop_footer_branch
    %9 = sbr.rel target = $region3
  $region8: #{_lambda_.5} parent=0 // loop_exit
    _

// kernel: _lambda_.9
$region0: #{_lambda_.9}
  #allocation0 [shape = 'u32[]', space=smem, size = 0x4, offset = 0x4, fixed_abs, tag = 'smem constant byte address 0x4 - core index']
  #allocation1 [shape = 'u32[144,128]{1,0:T(1,128)}', space=vmem, size = 0x12000, scoped, tag = 'internal scratch']
  %s0 = inlined_call_operand.vmem [shape: f32[3,2,8], index: 0, kind: input, shape index: {}]
  %s1 = inlined_call_operand.vmem [shape: bf16[2,2,2,64,8], index: 1, kind: input, shape index: {}, may-alias: {1,2}]
  %s2 = inlined_call_operand.vmem [shape: bf16[2,2,2,64,8], index: 2, kind: input, shape index: {}, may-alias: {1,2}]
  %s3 = inlined_call_operand.vmem [shape: bf16[1,2,1,64,8], index: 3, kind: input, shape index: {}]
  %s4 = inlined_call_operand.vmem [shape: f32[2,64,8], index: 4, kind: output, shape index: {}]
  %s5 = sld [smem:[#allocation0]]
  $region49: #{_lambda_.9} parent=0
    _
  %s7 = ssub.s32 1, %s5
  %s8 = scalar_select 0, %s7, %s5
  loop: start=0, step=1, limit=4
  $region2: #{_lambda_.9} parent=0 // loop_pre_header
    _
  $region3: #{_lambda_.9} parent=0 // loop_header
    %s10 = sphi 0, %s14
    %p11 = scmp.ge.s32.totalorder %s10, 4
    %s17 = sphi 0, %s29
    %s18 = sphi 0, %s25
    %s19 = sphi 0, %s17
    %s20 = sphi 0, %s18
    %s21 = sphi 0, %s19
    %s22 = sphi 0, %s20
    %s30 = sphi 0, %s30
    %s32 = sphi 0, %s30
    %s33 = sphi 0, %s32
    %s47 = sphi 0, %s33
    %s55 = sphi 0, %s57
    %s58 = sphi 0, %s55
    %s59 = sphi 0, %s58
    %s75 = sphi 0, %s59
    %s83 = sphi 0, %s85
    %s86 = sphi 0, %s83
    %s87 = sphi 0, %s86
    %s103 = sphi 0, %s87
    %s111 = sphi 0, %s113
    %s114 = sphi 0, %s111
    %s115 = sphi 0, %s114
    %s131 = sphi 0, %s115
    %s139 = sphi 0, %s141
    %s142 = sphi 0, %s139
    %s143 = sphi 0, %s142
    %s159 = sphi 0, %s143
  $region4: #{_lambda_.9} parent=0 // loop_header_branch
    %13 = sbr.rel (%p11) target = $region8
  $region5: #{_lambda_.9} parent=0 // loop_body
    %s15 = ssub.s32 %s10, 1
    %s16 = ssub.s32 %s10, 2
    %s23 = sadd.s32 1, %s18
    %p24 = scmp.ge.s32.totalorder %s23, 1
    %s25 = scalar_select %p24, 0, %s23
    %s26 = sadd.s32 1, %s17
    %s27 = scalar_select %p24, %s26, %s17
    %p28 = scmp.ge.s32.totalorder %s27, 2
    %s29 = scalar_select %p28, 0, %s27
    %s31 = sadd.s32 %s30, 1
    %p34 = scmp.eq.s32.totalorder %s10, 1
    %p35 = scmp.ne.s32.totalorder %s30, %s32
    %p36 = scmp.eq.s32.totalorder %s10, 0
    %p37 = por %p35, %p36
    %p38 = scmp.ne.s32.totalorder %s30, %s32
    %p39 = scmp.eq.s32.totalorder %s15, 1
    %p40 = por %p38, %p39
    %p41 = scmp.ne.s32.totalorder %s32, %s33
    %p42 = scmp.eq.s32.totalorder %s15, 0
    %p43 = por %p41, %p42
    %p44 = scmp.ne.s32.totalorder %s32, %s33
    %p45 = scmp.eq.s32.totalorder %s16, 1
    %p46 = por %p44, %p45
    %p48 = scmp.ne.s32.totalorder %s33, %s47
    %p49 = scmp.eq.s32.totalorder %s16, 0
    %p50 = por %p48, %p49
    %s51 = ssub.s32 %s17, %s29
    %s52 = ssub.s32 %s18, %s25
    %s53 = sor.u32 %s51, %s52
    %p54 = scmp.eq.s32.totalorder %s53, 0
    %s56 = sadd.s32 %s55, 1
    %s57 = scalar_select %p54, %s55, %s56
    %p60 = pneg %p54
    %p61 = scmp.eq.s32.totalorder %s10, 1
    %p62 = por %p60, %p61
    %p63 = scmp.ne.s32.totalorder %s55, %s58
    %p64 = scmp.eq.s32.totalorder %s10, 0
    %p65 = por %p63, %p64
    %p66 = scmp.ne.s32.totalorder %s55, %s58
    %p67 = scmp.eq.s32.totalorder %s15, 1
    %p68 = por %p66, %p67
    %p69 = scmp.ne.s32.totalorder %s58, %s59
    %p70 = scmp.eq.s32.totalorder %s15, 0
    %p71 = por %p69, %p70
    %p72 = scmp.ne.s32.totalorder %s58, %s59
    %p73 = scmp.eq.s32.totalorder %s16, 1
    %p74 = por %p72, %p73
    %p76 = scmp.ne.s32.totalorder %s59, %s75
    %p77 = scmp.eq.s32.totalorder %s16, 0
    %p78 = por %p76, %p77
    %s79 = ssub.s32 %s17, %s29
    %s80 = ssub.s32 %s18, %s25
    %s81 = sor.u32 %s79, %s80
    %p82 = scmp.eq.s32.totalorder %s81, 0
    %s84 = sadd.s32 %s83, 1
    %s85 = scalar_select %p82, %s83, %s84
    %p88 = pneg %p82
    %p89 = scmp.eq.s32.totalorder %s10, 1
    %p90 = por %p88, %p89
    %p91 = scmp.ne.s32.totalorder %s83, %s86
    %p92 = scmp.eq.s32.totalorder %s10, 0
    %p93 = por %p91, %p92
    %p94 = scmp.ne.s32.totalorder %s83, %s86
    %p95 = scmp.eq.s32.totalorder %s15, 1
    %p96 = por %p94, %p95
    %p97 = scmp.ne.s32.totalorder %s86, %s87
    %p98 = scmp.eq.s32.totalorder %s15, 0
    %p99 = por %p97, %p98
    %p100 = scmp.ne.s32.totalorder %s86, %s87
    %p101 = scmp.eq.s32.totalorder %s16, 1
    %p102 = por %p100, %p101
    %p104 = scmp.ne.s32.totalorder %s87, %s103
    %p105 = scmp.eq.s32.totalorder %s16, 0
    %p106 = por %p104, %p105
    %s107 = ssub.s32 %s17, %s29
    %s108 = ssub.s32 %s18, %s25
    %s109 = sor.u32 %s107, %s108
    %p110 = scmp.eq.s32.totalorder %s109, 0
    %s112 = sadd.s32 %s111, 1
    %s113 = scalar_select %p110, %s111, %s112
    %p116 = pneg %p110
    %p117 = scmp.eq.s32.totalorder %s10, 1
    %p118 = por %p116, %p117
    %p119 = scmp.ne.s32.totalorder %s111, %s114
    %p120 = scmp.eq.s32.totalorder %s10, 0
    %p121 = por %p119, %p120
    %p122 = scmp.ne.s32.totalorder %s111, %s114
    %p123 = scmp.eq.s32.totalorder %s15, 1
    %p124 = por %p122, %p123
    %p125 = scmp.ne.s32.totalorder %s114, %s115
    %p126 = scmp.eq.s32.totalorder %s15, 0
    %p127 = por %p125, %p126
    %p128 = scmp.ne.s32.totalorder %s114, %s115
    %p129 = scmp.eq.s32.totalorder %s16, 1
    %p130 = por %p128, %p129
    %p132 = scmp.ne.s32.totalorder %s115, %s131
    %p133 = scmp.eq.s32.totalorder %s16, 0
    %p134 = por %p132, %p133
    %s135 = ssub.s32 %s17, %s29
    %s136 = ssub.s32 %s18, %s25
    %s137 = sor.u32 %s135, %s136
    %p138 = scmp.eq.s32.totalorder %s137, 0
    %s140 = sadd.s32 %s139, 1
    %s141 = scalar_select %p138, %s139, %s140
    %p144 = pneg %p138
    %p145 = scmp.eq.s32.totalorder %s10, 1
    %p146 = por %p144, %p145
    %p147 = scmp.ne.s32.totalorder %s139, %s142
    %p148 = scmp.eq.s32.totalorder %s10, 0
    %p149 = por %p147, %p148
    %p150 = scmp.ne.s32.totalorder %s139, %s142
    %p151 = scmp.eq.s32.totalorder %s15, 1
    %p152 = por %p150, %p151
    %p153 = scmp.ne.s32.totalorder %s142, %s143
    %p154 = scmp.eq.s32.totalorder %s15, 0
    %p155 = por %p153, %p154
    %p156 = scmp.ne.s32.totalorder %s142, %s143
    %p157 = scmp.eq.s32.totalorder %s16, 1
    %p158 = por %p156, %p157
    %p160 = scmp.ne.s32.totalorder %s143, %s159
    %p161 = scmp.eq.s32.totalorder %s16, 0
    %p162 = por %p160, %p161
    %p163 = scmp.le.s32.totalorder 1, %s10
    %p164 = scmp.lt.s32.totalorder %s10, 3
    %p165 = pnand %p163, %p164
    %p166 = pneg %p165
    // Predicated region
    $region9: #{_lambda_.9} parent=5 // pred_check
      _
    $region10: #{_lambda_.9} parent=5 // pred_check_branch
      %168 = sbr.rel (%p165) target = $region12
    $region11: #{_lambda_.9} parent=5 // pred_region
      %s169 = ssub.s32 %s10, 1
      // Predicated region
      $region13: #{_lambda_.9} parent=11 // pred_check
        %p170 = pneg %p43
      $region14: #{_lambda_.9} parent=11 // pred_check_branch
        %172 = sbr.rel (%p170) target = $region16
      $region15: #{_lambda_.9} parent=11 // pred_region
        _
      $region16: #{_lambda_.9} parent=11 // pred_fallthru
        _
    $region12: #{_lambda_.9} parent=5 // pred_fallthru
      _
    %p173 = scmp.lt.s32.totalorder %s10, 2
    // Predicated region
    $region17: #{_lambda_.9} parent=5 // pred_check
      %p174 = pneg %p173
    $region18: #{_lambda_.9} parent=5 // pred_check_branch
      %176 = sbr.rel (%p174) target = $region20
    $region19: #{_lambda_.9} parent=5 // pred_region
      // Predicated region
      $region21: #{_lambda_.9} parent=19 // pred_check
        %p177 = pneg %p65
      $region22: #{_lambda_.9} parent=19 // pred_check_branch
        %179 = sbr.rel (%p177) target = $region24
      $region23: #{_lambda_.9} parent=19 // pred_region
        %s180 = smul.u32 8, %s18
        %p181 = scmp.lt.s32.totalorder %s17, 1
        %s182 = scalar_select %p181, %s17, 1
        %p183 = scmp.lt.s32.totalorder %s180, 7
        %s184 = scalar_select %p183, %s180, 7
        %s185 = sadd.s32 %s184, 8
        %s186 = smul.addr %s182, 16
        %s187 = sadd.s32 %s185, %s186
        %s188 = smul.addr %s187, 4
        %s189 = scalar_lea.vmem %s1, %s188
        %s190 = smul.u32 8, %s18
      $region24: #{_lambda_.9} parent=19 // pred_fallthru
        _
      // Predicated region
      $region25: #{_lambda_.9} parent=19 // pred_check
        %p191 = pneg %p93
      $region26: #{_lambda_.9} parent=19 // pred_check_branch
        %193 = sbr.rel (%p191) target = $region28
      $region27: #{_lambda_.9} parent=19 // pred_region
        %s194 = smul.u32 8, %s18
        %p195 = scmp.lt.s32.totalorder %s17, 1
        %s196 = scalar_select %p195, %s17, 1
        %p197 = scmp.lt.s32.totalorder %s194, 7
        %s198 = scalar_select %p197, %s194, 7
        %s199 = sadd.s32 %s198, 8
        %s200 = smul.addr %s196, 16
        %s201 = sadd.s32 %s199, %s200
        %s202 = sadd.s32 %s201, 32
        %s203 = smul.addr %s202, 4
        %s204 = scalar_lea.vmem %s2, %s203
        %s205 = smul.u32 8, %s18
      $region28: #{_lambda_.9} parent=19 // pred_fallthru
        _
      // Predicated region
      $region29: #{_lambda_.9} parent=19 // pred_check
        %p206 = pneg %p121
      $region30: #{_lambda_.9} parent=19 // pred_check_branch
        %208 = sbr.rel (%p206) target = $region32
      $region31: #{_lambda_.9} parent=19 // pred_region
        %s209 = smul.u32 8, %s18
        %p210 = scmp.lt.s32.totalorder %s17, 1
        %s211 = scalar_select %p210, %s17, 1
        %p212 = scmp.lt.s32.totalorder %s209, 7
        %s213 = scalar_select %p212, %s209, 7
        %s214 = smul.addr %s211, 8
        %s215 = sadd.s32 %s213, %s214
        %s216 = smul.addr %s215, 4
        %s217 = scalar_lea.vmem %s3, %s216
        %s218 = smul.u32 8, %s18
      $region32: #{_lambda_.9} parent=19 // pred_fallthru
        _
    $region20: #{_lambda_.9} parent=5 // pred_fallthru
      _
    %p219 = scmp.le.s32.totalorder 1, %s10
    %p220 = scmp.lt.s32.totalorder %s10, 3
    %p221 = pnand %p219, %p220
    %p222 = pneg %p221
    // Predicated region
    $region33: #{_lambda_.9} parent=5 // pred_check
      _
    $region34: #{_lambda_.9} parent=5 // pred_check_branch
      %224 = sbr.rel (%p221) target = $region36
    $region35: #{_lambda_.9} parent=5 // pred_region
      %s225 = ssub.s32 %s10, 1
      %p226 = pneg %p43
      %p227 = pneg %p40
      %s228 = smul.u32 8, %s20
      %p229 = scmp.lt.s32.totalorder %s19, 1
      %s230 = scalar_select %p229, %s19, 1
      %p231 = scmp.lt.s32.totalorder %s228, 7
      %s232 = scalar_select %p231, %s228, 7
      %s233 = sadd.s32 %s232, 8
      %s234 = smul.addr %s230, 16
      %s235 = sadd.s32 %s233, %s234
      %s236 = smul.addr %s235, 4
      %s237 = scalar_lea.vmem %s1, %s236
      %p238 = pneg %p71
      %p239 = pneg %p68
      %s240 = smul.u32 8, %s20
      %p241 = scmp.lt.s32.totalorder %s19, 1
      %s242 = scalar_select %p241, %s19, 1
      %p243 = scmp.lt.s32.totalorder %s240, 7
      %s244 = scalar_select %p243, %s240, 7
      %s245 = sadd.s32 %s244, 8
      %s246 = smul.addr %s242, 16
      %s247 = sadd.s32 %s245, %s246
      %s248 = sadd.s32 %s247, 32
      %s249 = smul.addr %s248, 4
      %s250 = scalar_lea.vmem %s2, %s249
      %p251 = pneg %p99
      %p252 = pneg %p96
      %s253 = smul.u32 8, %s20
      %p254 = scmp.lt.s32.totalorder %s19, 1
      %s255 = scalar_select %p254, %s19, 1
      %p256 = scmp.lt.s32.totalorder %s253, 7
      %s257 = scalar_select %p256, %s253, 7
      %s258 = smul.addr %s255, 8
      %s259 = sadd.s32 %s257, %s258
      %s260 = smul.addr %s259, 4
      %s261 = scalar_lea.vmem %s3, %s260
      %p262 = pneg %p127
      %p263 = pneg %p124
      %p264 = pneg %p155
      %p265 = pneg %p152
      %s266 = smul.u32 8, %s20
      %p267 = scmp.lt.s32.totalorder %s19, 1
      %s268 = scalar_select %p267, %s19, 1
      %p269 = scmp.lt.s32.totalorder %s266, 7
      %s270 = scalar_select %p269, %s266, 7
      %s271 = smul.addr %s268, 8
      %s272 = sadd.s32 %s270, %s271
      %s273 = smul.addr %s272, 8
      %s274 = scalar_lea.vmem %s4, %s273
      %s275 = smul.u32 8, %s20
      %p276 = scmp.lt.s32.totalorder %s19, 1
      %s277 = scalar_select %p276, %s19, 1
      %p278 = scmp.lt.s32.totalorder %s275, 7
      %s279 = scalar_select %p278, %s275, 7
      %s280 = sadd.s32 %s279, 8
      %s281 = smul.addr %s277, 16
      %s282 = sadd.s32 %s280, %s281
      %s283 = smul.addr %s282, 4
      %s284 = scalar_lea.vmem %s1, %s283
      %s285 = smul.u32 8, %s20
      %s286 = smul.u32 8, %s20
      %p287 = scmp.lt.s32.totalorder %s19, 1
      %s288 = scalar_select %p287, %s19, 1
      %p289 = scmp.lt.s32.totalorder %s286, 7
      %s290 = scalar_select %p289, %s286, 7
      %s291 = sadd.s32 %s290, 8
      %s292 = smul.addr %s288, 16
      %s293 = sadd.s32 %s291, %s292
      %s294 = sadd.s32 %s293, 32
      %s295 = smul.addr %s294, 4
      %s296 = scalar_lea.vmem %s2, %s295
      %s297 = smul.u32 8, %s20
      %s298 = smul.u32 8, %s20
      %p299 = scmp.lt.s32.totalorder %s19, 1
      %s300 = scalar_select %p299, %s19, 1
      %p301 = scmp.lt.s32.totalorder %s298, 7
      %s302 = scalar_select %p301, %s298, 7
      %s303 = smul.addr %s300, 8
      %s304 = sadd.s32 %s302, %s303
      %s305 = smul.addr %s304, 4
      %s306 = scalar_lea.vmem %s3, %s305
      %s307 = smul.u32 8, %s20
      %s308 = smul.u32 8, %s20
      %p309 = scmp.lt.s32.totalorder %s19, 1
      %s310 = scalar_select %p309, %s19, 1
      %p311 = scmp.lt.s32.totalorder %s308, 7
      %s312 = scalar_select %p311, %s308, 7
      %s313 = smul.addr %s310, 8
      %s314 = sadd.s32 %s312, %s313
      %s315 = smul.addr %s314, 8
      %s316 = scalar_lea.vmem %s4, %s315
      %s317 = smul.u32 8, %s20
      %v318 = vld [vmem:[%s284] sm:$0xf]
      %v319 = vld [vmem:[%s284 + $0x4] sm:$0xf]
      %v320 = vld [vmem:[%s284 + $0x8] sm:$0xf]
      %v321 = vld [vmem:[%s284 + $0xc] sm:$0xf]
      %v322 = vld [vmem:[%s284 + $0x10] sm:$0xf]
      %v323 = vld [vmem:[%s284 + $0x14] sm:$0xf]
      %v324 = vld [vmem:[%s284 + $0x18] sm:$0xf]
      %v325 = vld [vmem:[%s284 + $0x1c] sm:$0xf]
      %v326 = vunpack.c.l.bf16 %v318
      %v327 = vunpack.c.l.bf16 %v319
      %v328 = vunpack.c.l.bf16 %v320
      %v329 = vunpack.c.l.bf16 %v321
      %v330 = vunpack.c.l.bf16 %v322
      %v331 = vunpack.c.l.bf16 %v323
      %v332 = vunpack.c.l.bf16 %v324
      %v333 = vunpack.c.l.bf16 %v325
      %v334 = vld [vmem:[%s0] sm:$0x1]
      %v335 = vlaneseq
      %v336 = vshrl.u32 %v335, 7
      %v337 = vsub.s32 0, %v336
      %v338 = vrot.slane %v334, %v337
      %v339 = vmul.f32 %v326, %v338
      %v340 = vmul.f32 %v327, %v338
      %v341 = vmul.f32 %v328, %v338
      %v342 = vmul.f32 %v329, %v338
      %v343 = vmul.f32 %v330, %v338
      %v344 = vmul.f32 %v331, %v338
      %v345 = vmul.f32 %v332, %v338
      %v346 = vmul.f32 %v333, %v338
      %v347 = vld [vmem:[%s0 + $0x1] sm:$0x1]
      %v348 = vlaneseq
      %v349 = vshrl.u32 %v348, 7
      %v350 = vsub.s32 0, %v349
      %v351 = vrot.slane %v347, %v350
      %v352 = vadd.f32 %v339, %v351
      %v353 = vadd.f32 %v340, %v351
      %v354 = vadd.f32 %v341, %v351
      %v355 = vadd.f32 %v342, %v351
      %v356 = vadd.f32 %v343, %v351
      %v357 = vadd.f32 %v344, %v351
      %v358 = vadd.f32 %v345, %v351
      %v359 = vadd.f32 %v346, %v351
      %v360 = vld [vmem:[%s296] sm:$0xf]
      %v361 = vld [vmem:[%s296 + $0x4] sm:$0xf]
      %v362 = vld [vmem:[%s296 + $0x8] sm:$0xf]
      %v363 = vld [vmem:[%s296 + $0xc] sm:$0xf]
      %v364 = vld [vmem:[%s296 + $0x10] sm:$0xf]
      %v365 = vld [vmem:[%s296 + $0x14] sm:$0xf]
      %v366 = vld [vmem:[%s296 + $0x18] sm:$0xf]
      %v367 = vld [vmem:[%s296 + $0x1c] sm:$0xf]
      %v368 = vunpack.c.l.bf16 %v360
      %v369 = vunpack.c.l.bf16 %v361
      %v370 = vunpack.c.l.bf16 %v362
      %v371 = vunpack.c.l.bf16 %v363
      %v372 = vunpack.c.l.bf16 %v364
      %v373 = vunpack.c.l.bf16 %v365
      %v374 = vunpack.c.l.bf16 %v366
      %v375 = vunpack.c.l.bf16 %v367
      %s376 = scalar_lea.vmem %s0, 2
      %v377 = vld [vmem:[%s376] sm:$0x1]
      %v378 = vlaneseq
      %v379 = vshrl.u32 %v378, 7
      %v380 = vsub.s32 0, %v379
      %v381 = vrot.slane %v377, %v380
      %v382 = vmul.f32 %v368, %v381
      %v383 = vmul.f32 %v369, %v381
      %v384 = vmul.f32 %v370, %v381
      %v385 = vmul.f32 %v371, %v381
      %v386 = vmul.f32 %v372, %v381
      %v387 = vmul.f32 %v373, %v381
      %v388 = vmul.f32 %v374, %v381
      %v389 = vmul.f32 %v375, %v381
      %v390 = vld [vmem:[%s376 + $0x1] sm:$0x1]
      %v391 = vlaneseq
      %v392 = vshrl.u32 %v391, 7
      %v393 = vsub.s32 0, %v392
      %v394 = vrot.slane %v390, %v393
      %v395 = vadd.f32 %v382, %v394
      %v396 = vadd.f32 %v383, %v394
      %v397 = vadd.f32 %v384, %v394
      %v398 = vadd.f32 %v385, %v394
      %v399 = vadd.f32 %v386, %v394
      %v400 = vadd.f32 %v387, %v394
      %v401 = vadd.f32 %v388, %v394
      %v402 = vadd.f32 %v389, %v394
      %v403 = vadd.f32 %v352, %v395
      %v404 = vadd.f32 %v353, %v396
      %v405 = vadd.f32 %v354, %v397
      %v406 = vadd.f32 %v355, %v398
      %v407 = vadd.f32 %v356, %v399
      %v408 = vadd.f32 %v357, %v400
      %v409 = vadd.f32 %v358, %v401
      %v410 = vadd.f32 %v359, %v402
      %v411 = vld [vmem:[%s306] sm:$0xf]
      %v412 = vld [vmem:[%s306 + $0x4] sm:$0xf]
      %v413 = vld [vmem:[%s306 + $0x8] sm:$0xf]
      %v414 = vld [vmem:[%s306 + $0xc] sm:$0xf]
      %v415 = vld [vmem:[%s306 + $0x10] sm:$0xf]
      %v416 = vld [vmem:[%s306 + $0x14] sm:$0xf]
      %v417 = vld [vmem:[%s306 + $0x18] sm:$0xf]
      %v418 = vld [vmem:[%s306 + $0x1c] sm:$0xf]
      %v419 = vunpack.c.l.bf16 %v411
      %v420 = vunpack.c.l.bf16 %v412
      %v421 = vunpack.c.l.bf16 %v413
      %v422 = vunpack.c.l.bf16 %v414
      %v423 = vunpack.c.l.bf16 %v415
      %v424 = vunpack.c.l.bf16 %v416
      %v425 = vunpack.c.l.bf16 %v417
      %v426 = vunpack.c.l.bf16 %v418
      %s427 = scalar_lea.vmem %s0, 4
      %v428 = vld [vmem:[%s427] sm:$0x1]
      %v429 = vlaneseq
      %v430 = vshrl.u32 %v429, 7
      %v431 = vsub.s32 0, %v430
      %v432 = vrot.slane %v428, %v431
      %v433 = vmul.f32 %v419, %v432
      %v434 = vmul.f32 %v420, %v432
      %v435 = vmul.f32 %v421, %v432
      %v436 = vmul.f32 %v422, %v432
      %v437 = vmul.f32 %v423, %v432
      %v438 = vmul.f32 %v424, %v432
      %v439 = vmul.f32 %v425, %v432
      %v440 = vmul.f32 %v426, %v432
      %v441 = vld [vmem:[%s427 + $0x1] sm:$0x1]
      %v442 = vlaneseq
      %v443 = vshrl.u32 %v442, 7
      %v444 = vsub.s32 0, %v443
      %v445 = vrot.slane %v441, %v444
      %v446 = vadd.f32 %v433, %v445
      %v447 = vadd.f32 %v434, %v445
      %v448 = vadd.f32 %v435, %v445
      %v449 = vadd.f32 %v436, %v445
      %v450 = vadd.f32 %v437, %v445
      %v451 = vadd.f32 %v438, %v445
      %v452 = vadd.f32 %v439, %v445
      %v453 = vadd.f32 %v440, %v445
      %v454 = vadd.f32 %v403, %v446
      %v455 = vadd.f32 %v404, %v447
      %v456 = vadd.f32 %v405, %v448
      %v457 = vadd.f32 %v406, %v449
      %v458 = vadd.f32 %v407, %v450
      %v459 = vadd.f32 %v408, %v451
      %v460 = vadd.f32 %v409, %v452
      %v461 = vadd.f32 %v410, %v453
      %vm462 = vcmask 64512
      %463 = vst.msk [vmem:[%s316] sm:$0xff] %vm462, %v454
      %464 = vst.msk [vmem:[%s316 + $0x8] sm:$0xff] %vm462, %v455
      %465 = vst.msk [vmem:[%s316 + $0x10] sm:$0xff] %vm462, %v456
      %466 = vst.msk [vmem:[%s316 + $0x18] sm:$0xff] %vm462, %v457
      %467 = vst.msk [vmem:[%s316 + $0x20] sm:$0xff] %vm462, %v458
      %468 = vst.msk [vmem:[%s316 + $0x28] sm:$0xff] %vm462, %v459
      %469 = vst.msk [vmem:[%s316 + $0x30] sm:$0xff] %vm462, %v460
      %470 = vst.msk [vmem:[%s316 + $0x38] sm:$0xff] %vm462, %v461
      %s471 = smul.u32 8, %s20
      %p472 = scmp.lt.s32.totalorder %s19, 1
      %s473 = scalar_select %p472, %s19, 1
      %p474 = scmp.lt.s32.totalorder %s471, 7
      %s475 = scalar_select %p474, %s471, 7
      %s476 = smul.addr %s473, 8
      %s477 = sadd.s32 %s475, %s476
      %s478 = smul.addr %s477, 8
      %s479 = scalar_lea.vmem %s4, %s478
      // Predicated region
      $region37: #{_lambda_.9} parent=35 // pred_check
        %p480 = pneg %p152
      $region38: #{_lambda_.9} parent=35 // pred_check_branch
        %482 = sbr.rel (%p480) target = $region40
      $region39: #{_lambda_.9} parent=35 // pred_region
        %s483 = smul.u32 8, %s20
      $region40: #{_lambda_.9} parent=35 // pred_fallthru
        _
    $region36: #{_lambda_.9} parent=5 // pred_fallthru
      _
    %p484 = scmp.le.s32.totalorder 2, %s10
    // Predicated region
    $region41: #{_lambda_.9} parent=5 // pred_check
      %p485 = pneg %p484
    $region42: #{_lambda_.9} parent=5 // pred_check_branch
      %487 = sbr.rel (%p485) target = $region44
    $region43: #{_lambda_.9} parent=5 // pred_region
      %s488 = ssub.s32 %s10, 2
      // Predicated region
      $region45: #{_lambda_.9} parent=43 // pred_check
        %p489 = pneg %p158
      $region46: #{_lambda_.9} parent=43 // pred_check_branch
        %491 = sbr.rel (%p489) target = $region48
      $region47: #{_lambda_.9} parent=43 // pred_region
        %s492 = smul.u32 8, %s22
        %p493 = scmp.lt.s32.totalorder %s21, 1
        %s494 = scalar_select %p493, %s21, 1
        %p495 = scmp.lt.s32.totalorder %s492, 7
        %s496 = scalar_select %p495, %s492, 7
        %s497 = smul.addr %s494, 8
        %s498 = sadd.s32 %s496, %s497
        %s499 = smul.addr %s498, 8
        %s500 = scalar_lea.vmem %s4, %s499
      $region48: #{_lambda_.9} parent=43 // pred_fallthru
        _
    $region44: #{_lambda_.9} parent=5 // pred_fallthru
      _
  $region6: #{_lambda_.9} parent=0 // loop_footer
    %s14 = sadd.s32 1, %s10
  $region7: #{_lambda_.9} parent=0 // loop_footer_branch
    %9 = sbr.rel target = $region3
  $region8: #{_lambda_.9} parent=0 // loop_exit
    _

// kernel: _lambda_.8
$region0: #{_lambda_.8}
  #allocation0 [shape = 'u32[]', space=smem, size = 0x4, offset = 0x4, fixed_abs, tag = 'smem constant byte address 0x4 - core index']
  #allocation1 [shape = 'u32[144,128]{1,0:T(1,128)}', space=vmem, size = 0x12000, scoped, tag = 'internal scratch']
  #allocation2 [shape = 'bf16[16,16,8]{2,1,0:T(8,128)(2,1)}', space=vmem, size = 0x10000, scoped, tag = 'scratch operand']
  %s0 = inlined_call_operand.vmem [shape: f32[1,2,8,8,8], index: 0, kind: input, shape index: {}]
  %s1 = inlined_call_operand.vmem [shape: f32[1,2,8], index: 1, kind: input, shape index: {}]
  %s2 = inlined_call_operand.vmem [shape: bf16[1,5,40,8], index: 2, kind: input, shape index: {}]
  %s3 = inlined_call_operand.vmem [shape: bf16[1,2,1,64,8], index: 3, kind: output, shape index: {0}]
  %s4 = inlined_call_operand.vmem [shape: f32[1,2,2,8], index: 4, kind: output, shape index: {1}]
  %5 = xla_tuple %s3, %s4
  %s6 = sld [smem:[#allocation0]]
  $region53: #{_lambda_.8} parent=0
    _
  %s8 = ssub.s32 1, %s6
  %s9 = scalar_select 0, %s8, %s6
  loop: start=0, step=1, limit=4
  $region2: #{_lambda_.8} parent=0 // loop_pre_header
    _
  $region3: #{_lambda_.8} parent=0 // loop_header
    %s11 = sphi 0, %s15
    %p12 = scmp.ge.s32.totalorder %s11, 4
    %s18 = sphi 0, %s30
    %s19 = sphi 0, %s26
    %s20 = sphi 0, %s18
    %s21 = sphi 0, %s19
    %s22 = sphi 0, %s20
    %s23 = sphi 0, %s21
    %s35 = sphi 0, %s37
    %s38 = sphi 0, %s35
    %s39 = sphi 0, %s38
    %s55 = sphi 0, %s39
    %s61 = sphi 0, %s63
    %s64 = sphi 0, %s61
    %s65 = sphi 0, %s64
    %s81 = sphi 0, %s65
    %s87 = sphi 0, %s89
    %s90 = sphi 0, %s87
    %s91 = sphi 0, %s90
    %s107 = sphi 0, %s91
    %s115 = sphi 0, %s117
    %s118 = sphi 0, %s115
    %s119 = sphi 0, %s118
    %s135 = sphi 0, %s119
    %s143 = sphi 0, %s145
    %s146 = sphi 0, %s143
    %s147 = sphi 0, %s146
    %s163 = sphi 0, %s147
  $region4: #{_lambda_.8} parent=0 // loop_header_branch
    %14 = sbr.rel (%p12) target = $region8
  $region5: #{_lambda_.8} parent=0 // loop_body
    %s16 = ssub.s32 %s11, 1
    %s17 = ssub.s32 %s11, 2
    %s24 = sadd.s32 1, %s19
    %p25 = scmp.ge.s32.totalorder %s24, 2
    %s26 = scalar_select %p25, 0, %s24
    %s27 = sadd.s32 1, %s18
    %s28 = scalar_select %p25, %s27, %s18
    %p29 = scmp.ge.s32.totalorder %s28, 1
    %s30 = scalar_select %p29, 0, %s28
    %s31 = ssub.s32 %s18, %s30
    %s32 = ssub.s32 %s19, %s26
    %s33 = sor.u32 %s31, %s32
    %p34 = scmp.eq.s32.totalorder %s33, 0
    %s36 = sadd.s32 %s35, 1
    %s37 = scalar_select %p34, %s35, %s36
    %p40 = pneg %p34
    %p41 = scmp.eq.s32.totalorder %s11, 1
    %p42 = por %p40, %p41
    %p43 = scmp.ne.s32.totalorder %s35, %s38
    %p44 = scmp.eq.s32.totalorder %s11, 0
    %p45 = por %p43, %p44
    %p46 = scmp.ne.s32.totalorder %s35, %s38
    %p47 = scmp.eq.s32.totalorder %s16, 1
    %p48 = por %p46, %p47
    %p49 = scmp.ne.s32.totalorder %s38, %s39
    %p50 = scmp.eq.s32.totalorder %s16, 0
    %p51 = por %p49, %p50
    %p52 = scmp.ne.s32.totalorder %s38, %s39
    %p53 = scmp.eq.s32.totalorder %s17, 1
    %p54 = por %p52, %p53
    %p56 = scmp.ne.s32.totalorder %s39, %s55
    %p57 = scmp.eq.s32.totalorder %s17, 0
    %p58 = por %p56, %p57
    %s59 = ssub.s32 %s18, %s30
    %p60 = scmp.eq.s32.totalorder %s59, 0
    %s62 = sadd.s32 %s61, 1
    %s63 = scalar_select %p60, %s61, %s62
    %p66 = pneg %p60
    %p67 = scmp.eq.s32.totalorder %s11, 1
    %p68 = por %p66, %p67
    %p69 = scmp.ne.s32.totalorder %s61, %s64
    %p70 = scmp.eq.s32.totalorder %s11, 0
    %p71 = por %p69, %p70
    %p72 = scmp.ne.s32.totalorder %s61, %s64
    %p73 = scmp.eq.s32.totalorder %s16, 1
    %p74 = por %p72, %p73
    %p75 = scmp.ne.s32.totalorder %s64, %s65
    %p76 = scmp.eq.s32.totalorder %s16, 0
    %p77 = por %p75, %p76
    %p78 = scmp.ne.s32.totalorder %s64, %s65
    %p79 = scmp.eq.s32.totalorder %s17, 1
    %p80 = por %p78, %p79
    %p82 = scmp.ne.s32.totalorder %s65, %s81
    %p83 = scmp.eq.s32.totalorder %s17, 0
    %p84 = por %p82, %p83
    %s85 = ssub.s32 %s18, %s30
    %p86 = scmp.eq.s32.totalorder %s85, 0
    %s88 = sadd.s32 %s87, 1
    %s89 = scalar_select %p86, %s87, %s88
    %p92 = pneg %p86
    %p93 = scmp.eq.s32.totalorder %s11, 1
    %p94 = por %p92, %p93
    %p95 = scmp.ne.s32.totalorder %s87, %s90
    %p96 = scmp.eq.s32.totalorder %s11, 0
    %p97 = por %p95, %p96
    %p98 = scmp.ne.s32.totalorder %s87, %s90
    %p99 = scmp.eq.s32.totalorder %s16, 1
    %p100 = por %p98, %p99
    %p101 = scmp.ne.s32.totalorder %s90, %s91
    %p102 = scmp.eq.s32.totalorder %s16, 0
    %p103 = por %p101, %p102
    %p104 = scmp.ne.s32.totalorder %s90, %s91
    %p105 = scmp.eq.s32.totalorder %s17, 1
    %p106 = por %p104, %p105
    %p108 = scmp.ne.s32.totalorder %s91, %s107
    %p109 = scmp.eq.s32.totalorder %s17, 0
    %p110 = por %p108, %p109
    %s111 = ssub.s32 %s18, %s30
    %s112 = ssub.s32 %s19, %s26
    %s113 = sor.u32 %s111, %s112
    %p114 = scmp.eq.s32.totalorder %s113, 0
    %s116 = sadd.s32 %s115, 1
    %s117 = scalar_select %p114, %s115, %s116
    %p120 = pneg %p114
    %p121 = scmp.eq.s32.totalorder %s11, 1
    %p122 = por %p120, %p121
    %p123 = scmp.ne.s32.totalorder %s115, %s118
    %p124 = scmp.eq.s32.totalorder %s11, 0
    %p125 = por %p123, %p124
    %p126 = scmp.ne.s32.totalorder %s115, %s118
    %p127 = scmp.eq.s32.totalorder %s16, 1
    %p128 = por %p126, %p127
    %p129 = scmp.ne.s32.totalorder %s118, %s119
    %p130 = scmp.eq.s32.totalorder %s16, 0
    %p131 = por %p129, %p130
    %p132 = scmp.ne.s32.totalorder %s118, %s119
    %p133 = scmp.eq.s32.totalorder %s17, 1
    %p134 = por %p132, %p133
    %p136 = scmp.ne.s32.totalorder %s119, %s135
    %p137 = scmp.eq.s32.totalorder %s17, 0
    %p138 = por %p136, %p137
    %s139 = ssub.s32 %s18, %s30
    %s140 = ssub.s32 %s19, %s26
    %s141 = sor.u32 %s139, %s140
    %p142 = scmp.eq.s32.totalorder %s141, 0
    %s144 = sadd.s32 %s143, 1
    %s145 = scalar_select %p142, %s143, %s144
    %p148 = pneg %p142
    %p149 = scmp.eq.s32.totalorder %s11, 1
    %p150 = por %p148, %p149
    %p151 = scmp.ne.s32.totalorder %s143, %s146
    %p152 = scmp.eq.s32.totalorder %s11, 0
    %p153 = por %p151, %p152
    %p154 = scmp.ne.s32.totalorder %s143, %s146
    %p155 = scmp.eq.s32.totalorder %s16, 1
    %p156 = por %p154, %p155
    %p157 = scmp.ne.s32.totalorder %s146, %s147
    %p158 = scmp.eq.s32.totalorder %s16, 0
    %p159 = por %p157, %p158
    %p160 = scmp.ne.s32.totalorder %s146, %s147
    %p161 = scmp.eq.s32.totalorder %s17, 1
    %p162 = por %p160, %p161
    %p164 = scmp.ne.s32.totalorder %s147, %s163
    %p165 = scmp.eq.s32.totalorder %s17, 0
    %p166 = por %p164, %p165
    %p167 = scmp.le.s32.totalorder 1, %s11
    %p168 = scmp.lt.s32.totalorder %s11, 3
    %p169 = pnand %p167, %p168
    %p170 = pneg %p169
    // Predicated region
    $region9: #{_lambda_.8} parent=5 // pred_check
      _
    $region10: #{_lambda_.8} parent=5 // pred_check_branch
      %172 = sbr.rel (%p169) target = $region12
    $region11: #{_lambda_.8} parent=5 // pred_region
      %s173 = ssub.s32 %s11, 1
      // Predicated region
      $region13: #{_lambda_.8} parent=11 // pred_check
        %p174 = pneg %p77
      $region14: #{_lambda_.8} parent=11 // pred_check_branch
        %176 = sbr.rel (%p174) target = $region16
      $region15: #{_lambda_.8} parent=11 // pred_region
        %p177 = scmp.lt.s32.totalorder %s20, 0
        %s178 = scalar_select %p177, %s20, 0
        %s179 = smul.addr %s178, 2
        %s180 = scalar_lea.vmem %s1, %s179
      $region16: #{_lambda_.8} parent=11 // pred_fallthru
        _
      // Predicated region
      $region17: #{_lambda_.8} parent=11 // pred_check
        %p181 = pneg %p103
      $region18: #{_lambda_.8} parent=11 // pred_check_branch
        %183 = sbr.rel (%p181) target = $region20
      $region19: #{_lambda_.8} parent=11 // pred_region
        %p184 = scmp.lt.s32.totalorder %s20, 0
        %s185 = scalar_select %p184, %s20, 0
        %s186 = smul.addr %s185, 25
        %s187 = smul.addr %s186, 4
        %s188 = scalar_lea.vmem %s2, %s187
      $region20: #{_lambda_.8} parent=11 // pred_fallthru
        _
    $region12: #{_lambda_.8} parent=5 // pred_fallthru
      _
    %p189 = scmp.lt.s32.totalorder %s11, 2
    // Predicated region
    $region21: #{_lambda_.8} parent=5 // pred_check
      %p190 = pneg %p189
    $region22: #{_lambda_.8} parent=5 // pred_check_branch
      %192 = sbr.rel (%p190) target = $region24
    $region23: #{_lambda_.8} parent=5 // pred_region
      // Predicated region
      $region25: #{_lambda_.8} parent=23 // pred_check
        %p193 = pneg %p45
      $region26: #{_lambda_.8} parent=23 // pred_check_branch
        %195 = sbr.rel (%p193) target = $region28
      $region27: #{_lambda_.8} parent=23 // pred_region
        %p196 = scmp.lt.s32.totalorder %s18, 0
        %s197 = scalar_select %p196, %s18, 0
        %p198 = scmp.lt.s32.totalorder %s19, 1
        %s199 = scalar_select %p198, %s19, 1
        %s200 = smul.addr %s199, 8
        %s201 = smul.addr %s197, 16
        %s202 = sadd.s32 %s200, %s201
        %s203 = smul.addr %s202, 8
        %s204 = scalar_lea.vmem %s0, %s203
      $region28: #{_lambda_.8} parent=23 // pred_fallthru
        _
    $region24: #{_lambda_.8} parent=5 // pred_fallthru
      _
    %p205 = scmp.le.s32.totalorder 1, %s11
    %p206 = scmp.lt.s32.totalorder %s11, 3
    %p207 = pnand %p205, %p206
    %p208 = pneg %p207
    // Predicated region
    $region29: #{_lambda_.8} parent=5 // pred_check
      _
    $region30: #{_lambda_.8} parent=5 // pred_check_branch
      %210 = sbr.rel (%p207) target = $region32
    $region31: #{_lambda_.8} parent=5 // pred_region
      %s211 = ssub.s32 %s11, 1
      %p212 = scmp.lt.s32.totalorder %s20, 0
      %s213 = scalar_select %p212, %s20, 0
      %p214 = scmp.lt.s32.totalorder %s21, 1
      %s215 = scalar_select %p214, %s21, 1
      %s216 = smul.addr %s215, 8
      %s217 = smul.addr %s213, 16
      %s218 = sadd.s32 %s216, %s217
      %s219 = smul.addr %s218, 8
      %s220 = scalar_lea.vmem %s0, %s219
      %p221 = pneg %p51
      %p222 = pneg %p48
      %p223 = scmp.lt.s32.totalorder %s20, 0
      %s224 = scalar_select %p223, %s20, 0
      %s225 = smul.addr %s224, 2
      %s226 = scalar_lea.vmem %s1, %s225
      %p227 = pneg %p77
      %p228 = pneg %p74
      %p229 = scmp.lt.s32.totalorder %s20, 0
      %s230 = scalar_select %p229, %s20, 0
      %s231 = smul.addr %s230, 25
      %s232 = smul.addr %s231, 4
      %s233 = scalar_lea.vmem %s2, %s232
      %p234 = pneg %p103
      %p235 = pneg %p100
      %p236 = pneg %p131
      %p237 = pneg %p128
      %p238 = scmp.lt.s32.totalorder %s20, 0
      %s239 = scalar_select %p238, %s20, 0
      %p240 = scmp.lt.s32.totalorder %s21, 1
      %s241 = scalar_select %p240, %s21, 1
      %s242 = smul.addr %s241, 8
      %s243 = smul.addr %s239, 16
      %s244 = sadd.s32 %s242, %s243
      %s245 = smul.addr %s244, 4
      %s246 = scalar_lea.vmem %s3, %s245
      %p247 = pneg %p159
      %p248 = pneg %p156
      %p249 = scmp.lt.s32.totalorder %s20, 0
      %s250 = scalar_select %p249, %s20, 0
      %p251 = scmp.lt.s32.totalorder %s21, 1
      %s252 = scalar_select %p251, %s21, 1
      %s253 = smul.addr %s250, 2
      %s254 = sadd.s32 %s252, %s253
      %s255 = smul.addr %s254, 2
      %s256 = scalar_lea.vmem %s4, %s255
      %p257 = scmp.lt.s32.totalorder %s20, 0
      %s258 = scalar_select %p257, %s20, 0
      %p259 = scmp.lt.s32.totalorder %s21, 1
      %s260 = scalar_select %p259, %s21, 1
      %s261 = smul.addr %s260, 8
      %s262 = smul.addr %s258, 16
      %s263 = sadd.s32 %s261, %s262
      %s264 = smul.addr %s263, 8
      %s265 = scalar_lea.vmem %s0, %s264
      %p266 = scmp.lt.s32.totalorder %s20, 0
      %s267 = scalar_select %p266, %s20, 0
      %s268 = smul.addr %s267, 2
      %s269 = scalar_lea.vmem %s1, %s268
      %p270 = scmp.lt.s32.totalorder %s20, 0
      %s271 = scalar_select %p270, %s20, 0
      %s272 = smul.addr %s271, 25
      %s273 = smul.addr %s272, 4
      %s274 = scalar_lea.vmem %s2, %s273
      %p275 = scmp.lt.s32.totalorder %s20, 0
      %s276 = scalar_select %p275, %s20, 0
      %p277 = scmp.lt.s32.totalorder %s21, 1
      %s278 = scalar_select %p277, %s21, 1
      %s279 = smul.addr %s278, 8
      %s280 = smul.addr %s276, 16
      %s281 = sadd.s32 %s279, %s280
      %s282 = smul.addr %s281, 4
      %s283 = scalar_lea.vmem %s3, %s282
      %p284 = scmp.lt.s32.totalorder %s20, 0
      %s285 = scalar_select %p284, %s20, 0
      %p286 = scmp.lt.s32.totalorder %s21, 1
      %s287 = scalar_select %p286, %s21, 1
      %s288 = smul.addr %s285, 2
      %s289 = sadd.s32 %s287, %s288
      %s290 = smul.addr %s289, 2
      %s291 = scalar_lea.vmem %s4, %s290
      %v293 = vld [vmem:[%s269] sm:$0x3]
      %v294 = vld [vmem:[%s265] sm:$0xff]
      %v295 = vld [vmem:[%s265 + $0x8] sm:$0xff]
      %v296 = vld [vmem:[%s265 + $0x10] sm:$0xff]
      %v297 = vld [vmem:[%s265 + $0x18] sm:$0xff]
      %v298 = vld [vmem:[%s265 + $0x20] sm:$0xff]
      %v299 = vld [vmem:[%s265 + $0x28] sm:$0xff]
      %v300 = vld [vmem:[%s265 + $0x30] sm:$0xff]
      %v301 = vld [vmem:[%s265 + $0x38] sm:$0xff]
      %v302 = vlaneseq
      %v303 = vshrl.u32 %v302, 7
      %v304 = vsub.s32 0, %v303
      %v305 = vrot.slane %v293, %v304
      %v306 = vmul.f32 %v294, %v305
      %v307 = vmul.f32 %v295, %v305
      %v308 = vmul.f32 %v296, %v305
      %v309 = vmul.f32 %v297, %v305
      %v310 = vmul.f32 %v298, %v305
      %v311 = vmul.f32 %v299, %v305
      %v312 = vmul.f32 %v300, %v305
      %v313 = vmul.f32 %v301, %v305
      %v314 = vlaneseq
      %v315 = vshrl.u32 %v314, 7
      %v316 = vsub.s32 1, %v315
      %v317 = vrot.slane %v293, %v316
      %v318 = vadd.f32 %v306, %v317
      %v319 = vadd.f32 %v307, %v317
      %v320 = vadd.f32 %v308, %v317
      %v321 = vadd.f32 %v309, %v317
      %v322 = vadd.f32 %v310, %v317
      %v323 = vadd.f32 %v311, %v317
      %v324 = vadd.f32 %v312, %v317
      %v325 = vadd.f32 %v313, %v317
      %v326 = vmax.f32 %v318, 0.0
      %v327 = vmax.f32 %v319, 0.0
      %v328 = vmax.f32 %v320, 0.0
      %v329 = vmax.f32 %v321, 0.0
      %v330 = vmax.f32 %v322, 0.0
      %v331 = vmax.f32 %v323, 0.0
      %v332 = vmax.f32 %v324, 0.0
      %v333 = vmax.f32 %v325, 0.0
      %v334 = vpack.c.bf16 %v326, %v326
      %v335 = vpack.c.bf16 %v327, %v327
      %v336 = vpack.c.bf16 %v328, %v328
      %v337 = vpack.c.bf16 %v329, %v329
      %v338 = vpack.c.bf16 %v330, %v330
      %v339 = vpack.c.bf16 %v331, %v331
      %v340 = vpack.c.bf16 %v332, %v332
      %v341 = vpack.c.bf16 %v333, %v333
      %vm342 = vcmask 60416
      %343 = vst.msk [vmem:[#allocation2] sm:$0xf] %vm342, 0
      %344 = vst.msk [vmem:[#allocation2 + $0x4] sm:$0xf] %vm342, 0
      %345 = vst.msk [vmem:[#allocation2 + $0x8] sm:$0xf] %vm342, 0
      %346 = vst.msk [vmem:[#allocation2 + $0xc] sm:$0xf] %vm342, 0
      %347 = vst.msk [vmem:[#allocation2 + $0x10] sm:$0xf] %vm342, 0
      %348 = vst.msk [vmem:[#allocation2 + $0x14] sm:$0xf] %vm342, 0
      %349 = vst.msk [vmem:[#allocation2 + $0x18] sm:$0xf] %vm342, 0
      %350 = vst.msk [vmem:[#allocation2 + $0x1c] sm:$0xf] %vm342, 0
      %351 = vst.msk [vmem:[#allocation2 + $0x20] sm:$0xf] %vm342, 0
      %352 = vst.msk [vmem:[#allocation2 + $0x24] sm:$0xf] %vm342, 0
      %353 = vst.msk [vmem:[#allocation2 + $0x28] sm:$0xf] %vm342, 0
      %354 = vst.msk [vmem:[#allocation2 + $0x2c] sm:$0xf] %vm342, 0
      %355 = vst.msk [vmem:[#allocation2 + $0x30] sm:$0xf] %vm342, 0
      %356 = vst.msk [vmem:[#allocation2 + $0x34] sm:$0xf] %vm342, 0
      %357 = vst.msk [vmem:[#allocation2 + $0x38] sm:$0xf] %vm342, 0
      %358 = vst.msk [vmem:[#allocation2 + $0x3c] sm:$0xf] %vm342, 0
      %359 = vst.msk [vmem:[#allocation2 + $0x40] sm:$0xf] %vm342, 0
      %360 = vst.msk [vmem:[#allocation2 + $0x44] sm:$0xf] %vm342, 0
      %361 = vst.msk [vmem:[#allocation2 + $0x48] sm:$0xf] %vm342, 0
      %362 = vst.msk [vmem:[#allocation2 + $0x4c] sm:$0xf] %vm342, 0
      %363 = vst.msk [vmem:[#allocation2 + $0x50] sm:$0xf] %vm342, 0
      %364 = vst.msk [vmem:[#allocation2 + $0x54] sm:$0xf] %vm342, 0
      %365 = vst.msk [vmem:[#allocation2 + $0x58] sm:$0xf] %vm342, 0
      %366 = vst.msk [vmem:[#allocation2 + $0x5c] sm:$0xf] %vm342, 0
      %367 = vst.msk [vmem:[#allocation2 + $0x60] sm:$0xf] %vm342, 0
      %368 = vst.msk [vmem:[#allocation2 + $0x64] sm:$0xf] %vm342, 0
      %369 = vst.msk [vmem:[#allocation2 + $0x68] sm:$0xf] %vm342, 0
      %370 = vst.msk [vmem:[#allocation2 + $0x6c] sm:$0xf] %vm342, 0
      %371 = vst.msk [vmem:[#allocation2 + $0x70] sm:$0xf] %vm342, 0
      %372 = vst.msk [vmem:[#allocation2 + $0x74] sm:$0xf] %vm342, 0
      %373 = vst.msk [vmem:[#allocation2 + $0x78] sm:$0xf] %vm342, 0
      %374 = vst.msk [vmem:[#allocation2 + $0x7c] sm:$0xf] %vm342, 0
      %v383 = vunpack.c.l.b16 %v334
      %v384 = vunpack.c.l.b16 %v335
      %v385 = vunpack.c.l.b16 %v336
      %v386 = vunpack.c.l.b16 %v337
      %v387 = vunpack.c.l.b16 %v338
      %v388 = vunpack.c.l.b16 %v339
      %v389 = vunpack.c.l.b16 %v340
      %v390 = vunpack.c.l.b16 %v341
      %v391 = vpack.c.b16 %v383, %v383
      %v392 = vpack.c.b16 %v384, %v384
      %v393 = vpack.c.b16 %v385, %v385
      %v394 = vpack.c.b16 %v386, %v386
      %v395 = vpack.c.b16 %v387, %v387
      %v396 = vpack.c.b16 %v388, %v388
      %v397 = vpack.c.b16 %v389, %v389
      %v398 = vpack.c.b16 %v390, %v390
      %v399 = vrot.slane %v391, 6
      %v400 = vrot.slane %v399, 4
      %v401 = vrot.slane %v392, 6
      %v402 = vrot.slane %v401, 4
      %v403 = vrot.slane %v393, 6
      %v404 = vrot.slane %v403, 4
      %v405 = vrot.slane %v394, 6
      %v406 = vrot.slane %v405, 4
      %v407 = vrot.slane %v395, 6
      %v408 = vrot.slane %v407, 4
      %v409 = vrot.slane %v396, 6
      %v410 = vrot.slane %v409, 4
      %v411 = vrot.slane %v397, 6
      %v412 = vrot.slane %v411, 4
      %v413 = vrot.slane %v398, 6
      %v414 = vrot.slane %v413, 4
      %s431 = scalar_lea.vmem [#allocation2], 32
      %vm432 = vcmask 60418
      %433 = vst.msk [vmem:[%s431] sm:$0xc] %vm432, %v399
      %vm434 = vcmask 58368
      %435 = vst.msk [vmem:[%s431 + $0x4] sm:$0x3] %vm434, %v400
      %436 = vst.msk [vmem:[%s431 + $0x8] sm:$0xc] %vm432, %v401
      %437 = vst.msk [vmem:[%s431 + $0xc] sm:$0x3] %vm434, %v402
      %438 = vst.msk [vmem:[%s431 + $0x10] sm:$0xc] %vm432, %v403
      %439 = vst.msk [vmem:[%s431 + $0x14] sm:$0x3] %vm434, %v404
      %440 = vst.msk [vmem:[%s431 + $0x18] sm:$0xc] %vm432, %v405
      %441 = vst.msk [vmem:[%s431 + $0x1c] sm:$0x3] %vm434, %v406
      %442 = vst.msk [vmem:[%s431 + $0x20] sm:$0xc] %vm432, %v407
      %443 = vst.msk [vmem:[%s431 + $0x24] sm:$0x3] %vm434, %v408
      %444 = vst.msk [vmem:[%s431 + $0x28] sm:$0xc] %vm432, %v409
      %445 = vst.msk [vmem:[%s431 + $0x2c] sm:$0x3] %vm434, %v410
      %446 = vst.msk [vmem:[%s431 + $0x30] sm:$0xc] %vm432, %v411
      %447 = vst.msk [vmem:[%s431 + $0x34] sm:$0x3] %vm434, %v412
      %448 = vst.msk [vmem:[%s431 + $0x38] sm:$0xc] %vm432, %v413
      %449 = vst.msk [vmem:[%s431 + $0x3c] sm:$0x3] %vm434, %v414
      %v450 = vld [vmem:[#allocation2] sm:$0xf]
      %v451 = vld [vmem:[#allocation2 + $0x8] sm:$0xf]
      %v452 = vld [vmem:[#allocation2 + $0x10] sm:$0xf]
      %v453 = vld [vmem:[#allocation2 + $0x18] sm:$0xf]
      %v454 = vld [vmem:[#allocation2 + $0x20] sm:$0xf]
      %v455 = vld [vmem:[#allocation2 + $0x28] sm:$0xf]
      %v456 = vld [vmem:[#allocation2 + $0x30] sm:$0xf]
      %v457 = vld [vmem:[#allocation2 + $0x38] sm:$0xf]
      %v458 = vld [vmem:[#allocation2] sm:$0xe]
      %v459 = vld [vmem:[#allocation2 + $0x4] sm:$0x1]
      %v460 = vld [vmem:[#allocation2 + $0x8] sm:$0xe]
      %v461 = vld [vmem:[#allocation2 + $0xc] sm:$0x1]
      %v462 = vld [vmem:[#allocation2 + $0x10] sm:$0xe]
      %v463 = vld [vmem:[#allocation2 + $0x14] sm:$0x1]
      %v464 = vld [vmem:[#allocation2 + $0x18] sm:$0xe]
      %v465 = vld [vmem:[#allocation2 + $0x1c] sm:$0x1]
      %v466 = vld [vmem:[#allocation2 + $0x20] sm:$0xe]
      %v467 = vld [vmem:[#allocation2 + $0x24] sm:$0x1]
      %v468 = vld [vmem:[#allocation2 + $0x28] sm:$0xe]
      %v469 = vld [vmem:[#allocation2 + $0x2c] sm:$0x1]
      %v470 = vld [vmem:[#allocation2 + $0x30] sm:$0xe]
      %v471 = vld [vmem:[#allocation2 + $0x34] sm:$0x1]
      %v472 = vld [vmem:[#allocation2 + $0x38] sm:$0xe]
      %v473 = vld [vmem:[#allocation2 + $0x3c] sm:$0x1]
      %v474 = vld [vmem:[#allocation2] sm:$0xc]
      %v475 = vld [vmem:[#allocation2 + $0x4] sm:$0x3]
      %v476 = vld [vmem:[#allocation2 + $0x8] sm:$0xc]
      %v477 = vld [vmem:[#allocation2 + $0xc] sm:$0x3]
      %v478 = vld [vmem:[#allocation2 + $0x10] sm:$0xc]
      %v479 = vld [vmem:[#allocation2 + $0x14] sm:$0x3]
      %v480 = vld [vmem:[#allocation2 + $0x18] sm:$0xc]
      %v481 = vld [vmem:[#allocation2 + $0x1c] sm:$0x3]
      %v482 = vld [vmem:[#allocation2 + $0x20] sm:$0xc]
      %v483 = vld [vmem:[#allocation2 + $0x24] sm:$0x3]
      %v484 = vld [vmem:[#allocation2 + $0x28] sm:$0xc]
      %v485 = vld [vmem:[#allocation2 + $0x2c] sm:$0x3]
      %v486 = vld [vmem:[#allocation2 + $0x30] sm:$0xc]
      %v487 = vld [vmem:[#allocation2 + $0x34] sm:$0x3]
      %v488 = vld [vmem:[#allocation2 + $0x38] sm:$0xc]
      %v489 = vld [vmem:[#allocation2 + $0x3c] sm:$0x3]
      %v490 = vld [vmem:[#allocation2] sm:$0x8]
      %v491 = vld [vmem:[#allocation2 + $0x4] sm:$0x7]
      %v492 = vld [vmem:[#allocation2 + $0x8] sm:$0x8]
      %v493 = vld [vmem:[#allocation2 + $0xc] sm:$0x7]
      %v494 = vld [vmem:[#allocation2 + $0x10] sm:$0x8]
      %v495 = vld [vmem:[#allocation2 + $0x14] sm:$0x7]
      %v496 = vld [vmem:[#allocation2 + $0x18] sm:$0x8]
      %v497 = vld [vmem:[#allocation2 + $0x1c] sm:$0x7]
      %v498 = vld [vmem:[#allocation2 + $0x20] sm:$0x8]
      %v499 = vld [vmem:[#allocation2 + $0x24] sm:$0x7]
      %v500 = vld [vmem:[#allocation2 + $0x28] sm:$0x8]
      %v501 = vld [vmem:[#allocation2 + $0x2c] sm:$0x7]
      %v502 = vld [vmem:[#allocation2 + $0x30] sm:$0x8]
      %v503 = vld [vmem:[#allocation2 + $0x34] sm:$0x7]
      %v504 = vld [vmem:[#allocation2 + $0x38] sm:$0x8]
      %v505 = vld [vmem:[#allocation2 + $0x3c] sm:$0x7]
      %v506 = vld [vmem:[#allocation2 + $0x4] sm:$0xf]
      %v507 = vld [vmem:[#allocation2 + $0xc] sm:$0xf]
      %v508 = vld [vmem:[#allocation2 + $0x14] sm:$0xf]
      %v509 = vld [vmem:[#allocation2 + $0x1c] sm:$0xf]
      %v510 = vld [vmem:[#allocation2 + $0x24] sm:$0xf]
      %v511 = vld [vmem:[#allocation2 + $0x2c] sm:$0xf]
      %v512 = vld [vmem:[#allocation2 + $0x34] sm:$0xf]
      %v513 = vld [vmem:[#allocation2 + $0x3c] sm:$0xf]
      %v530 = vunpack.c.l.b16 %v458
      %v531 = vunpack.c.l.b16 %v459
      %v532 = vunpack.c.l.b16 %v460
      %v533 = vunpack.c.l.b16 %v461
      %v534 = vunpack.c.l.b16 %v462
      %v535 = vunpack.c.l.b16 %v463
      %v536 = vunpack.c.l.b16 %v464
      %v537 = vunpack.c.l.b16 %v465
      %v538 = vunpack.c.l.b16 %v466
      %v539 = vunpack.c.l.b16 %v467
      %v540 = vunpack.c.l.b16 %v468
      %v541 = vunpack.c.l.b16 %v469
      %v542 = vunpack.c.l.b16 %v470
      %v543 = vunpack.c.l.b16 %v471
      %v544 = vunpack.c.l.b16 %v472
      %v545 = vunpack.c.l.b16 %v473
      %v546 = vpack.c.b16 %v531, %v530
      %v547 = vpack.c.b16 %v533, %v532
      %v548 = vpack.c.b16 %v535, %v534
      %v549 = vpack.c.b16 %v537, %v536
      %v550 = vpack.c.b16 %v539, %v538
      %v551 = vpack.c.b16 %v541, %v540
      %v552 = vpack.c.b16 %v543, %v542
      %v553 = vpack.c.b16 %v545, %v544
      %v554 = vrot.slane %v546, 1
      %v555 = vrot.slane %v547, 1
      %v556 = vrot.slane %v548, 1
      %v557 = vrot.slane %v549, 1
      %v558 = vrot.slane %v550, 1
      %v559 = vrot.slane %v551, 1
      %v560 = vrot.slane %v552, 1
      %v561 = vrot.slane %v553, 1
      %562 = vrot.lane.b32.xlu0 %v554, 8
      %v563 = vpop.permute.xlu0 %562
      %564 = vrot.lane.b32.xlu0 %v555, 8
      %v565 = vpop.permute.xlu0 %564
      %566 = vrot.lane.b32.xlu0 %v556, 8
      %v567 = vpop.permute.xlu0 %566
      %568 = vrot.lane.b32.xlu0 %v557, 8
      %v569 = vpop.permute.xlu0 %568
      %570 = vrot.lane.b32.xlu0 %v558, 8
      %v571 = vpop.permute.xlu0 %570
      %572 = vrot.lane.b32.xlu0 %v559, 8
      %v573 = vpop.permute.xlu0 %572
      %574 = vrot.lane.b32.xlu0 %v560, 8
      %v575 = vpop.permute.xlu0 %574
      %576 = vrot.lane.b32.xlu0 %v561, 8
      %v577 = vpop.permute.xlu0 %576
      %v594 = vunpack.c.l.b16 %v474
      %v595 = vunpack.c.l.b16 %v475
      %v596 = vunpack.c.l.b16 %v476
      %v597 = vunpack.c.l.b16 %v477
      %v598 = vunpack.c.l.b16 %v478
      %v599 = vunpack.c.l.b16 %v479
      %v600 = vunpack.c.l.b16 %v480
      %v601 = vunpack.c.l.b16 %v481
      %v602 = vunpack.c.l.b16 %v482
      %v603 = vunpack.c.l.b16 %v483
      %v604 = vunpack.c.l.b16 %v484
      %v605 = vunpack.c.l.b16 %v485
      %v606 = vunpack.c.l.b16 %v486
      %v607 = vunpack.c.l.b16 %v487
      %v608 = vunpack.c.l.b16 %v488
      %v609 = vunpack.c.l.b16 %v489
      %v610 = vpack.c.b16 %v595, %v594
      %v611 = vpack.c.b16 %v597, %v596
      %v612 = vpack.c.b16 %v599, %v598
      %v613 = vpack.c.b16 %v601, %v600
      %v614 = vpack.c.b16 %v603, %v602
      %v615 = vpack.c.b16 %v605, %v604
      %v616 = vpack.c.b16 %v607, %v606
      %v617 = vpack.c.b16 %v609, %v608
      %v618 = vrot.slane %v610, 2
      %v619 = vrot.slane %v611, 2
      %v620 = vrot.slane %v612, 2
      %v621 = vrot.slane %v613, 2
      %v622 = vrot.slane %v614, 2
      %v623 = vrot.slane %v615, 2
      %v624 = vrot.slane %v616, 2
      %v625 = vrot.slane %v617, 2
      %626 = vrot.lane.b32.xlu0 %v618, 16
      %v627 = vpop.permute.xlu0 %626
      %628 = vrot.lane.b32.xlu0 %v619, 16
      %v629 = vpop.permute.xlu0 %628
      %630 = vrot.lane.b32.xlu0 %v620, 16
      %v631 = vpop.permute.xlu0 %630
      %632 = vrot.lane.b32.xlu0 %v621, 16
      %v633 = vpop.permute.xlu0 %632
      %634 = vrot.lane.b32.xlu0 %v622, 16
      %v635 = vpop.permute.xlu0 %634
      %636 = vrot.lane.b32.xlu0 %v623, 16
      %v637 = vpop.permute.xlu0 %636
      %638 = vrot.lane.b32.xlu0 %v624, 16
      %v639 = vpop.permute.xlu0 %638
      %640 = vrot.lane.b32.xlu0 %v625, 16
      %v641 = vpop.permute.xlu0 %640
      %v658 = vunpack.c.l.b16 %v490
      %v659 = vunpack.c.l.b16 %v491
      %v660 = vunpack.c.l.b16 %v492
      %v661 = vunpack.c.l.b16 %v493
      %v662 = vunpack.c.l.b16 %v494
      %v663 = vunpack.c.l.b16 %v495
      %v664 = vunpack.c.l.b16 %v496
      %v665 = vunpack.c.l.b16 %v497
      %v666 = vunpack.c.l.b16 %v498
      %v667 = vunpack.c.l.b16 %v499
      %v668 = vunpack.c.l.b16 %v500
      %v669 = vunpack.c.l.b16 %v501
      %v670 = vunpack.c.l.b16 %v502
      %v671 = vunpack.c.l.b16 %v503
      %v672 = vunpack.c.l.b16 %v504
      %v673 = vunpack.c.l.b16 %v505
      %v674 = vpack.c.b16 %v659, %v658
      %v675 = vpack.c.b16 %v661, %v660
      %v676 = vpack.c.b16 %v663, %v662
      %v677 = vpack.c.b16 %v665, %v664
      %v678 = vpack.c.b16 %v667, %v666
      %v679 = vpack.c.b16 %v669, %v668
      %v680 = vpack.c.b16 %v671, %v670
      %v681 = vpack.c.b16 %v673, %v672
      %v682 = vrot.slane %v674, 3
      %v683 = vrot.slane %v675, 3
      %v684 = vrot.slane %v676, 3
      %v685 = vrot.slane %v677, 3
      %v686 = vrot.slane %v678, 3
      %v687 = vrot.slane %v679, 3
      %v688 = vrot.slane %v680, 3
      %v689 = vrot.slane %v681, 3
      %690 = vrot.lane.b32.xlu0 %v682, 24
      %v691 = vpop.permute.xlu0 %690
      %692 = vrot.lane.b32.xlu0 %v683, 24
      %v693 = vpop.permute.xlu0 %692
      %694 = vrot.lane.b32.xlu0 %v684, 24
      %v695 = vpop.permute.xlu0 %694
      %696 = vrot.lane.b32.xlu0 %v685, 24
      %v697 = vpop.permute.xlu0 %696
      %698 = vrot.lane.b32.xlu0 %v686, 24
      %v699 = vpop.permute.xlu0 %698
      %700 = vrot.lane.b32.xlu0 %v687, 24
      %v701 = vpop.permute.xlu0 %700
      %702 = vrot.lane.b32.xlu0 %v688, 24
      %v703 = vpop.permute.xlu0 %702
      %704 = vrot.lane.b32.xlu0 %v689, 24
      %v705 = vpop.permute.xlu0 %704
      %v714 = vunpack.c.l.b16 %v506
      %v715 = vunpack.c.l.b16 %v507
      %v716 = vunpack.c.l.b16 %v508
      %v717 = vunpack.c.l.b16 %v509
      %v718 = vunpack.c.l.b16 %v510
      %v719 = vunpack.c.l.b16 %v511
      %v720 = vunpack.c.l.b16 %v512
      %v721 = vunpack.c.l.b16 %v513
      %v722 = vpack.c.b16 %v714, %v714
      %v723 = vpack.c.b16 %v715, %v715
      %v724 = vpack.c.b16 %v716, %v716
      %v725 = vpack.c.b16 %v717, %v717
      %v726 = vpack.c.b16 %v718, %v718
      %v727 = vpack.c.b16 %v719, %v719
      %v728 = vpack.c.b16 %v720, %v720
      %v729 = vpack.c.b16 %v721, %v721
      %730 = vrot.lane.b32.xlu0 %v722, 32
      %v731 = vpop.permute.xlu0 %730
      %732 = vrot.lane.b32.xlu0 %v723, 32
      %v733 = vpop.permute.xlu0 %732
      %734 = vrot.lane.b32.xlu0 %v724, 32
      %v735 = vpop.permute.xlu0 %734
      %736 = vrot.lane.b32.xlu0 %v725, 32
      %v737 = vpop.permute.xlu0 %736
      %738 = vrot.lane.b32.xlu0 %v726, 32
      %v739 = vpop.permute.xlu0 %738
      %740 = vrot.lane.b32.xlu0 %v727, 32
      %v741 = vpop.permute.xlu0 %740
      %742 = vrot.lane.b32.xlu0 %v728, 32
      %v743 = vpop.permute.xlu0 %742
      %744 = vrot.lane.b32.xlu0 %v729, 32
      %v745 = vpop.permute.xlu0 %744
      %vm746 = vcmask 64512
      %v749 = vsel %vm746, %v450, %v563
      %v752 = vsel %vm746, %v451, %v565
      %v755 = vsel %vm746, %v452, %v567
      %v758 = vsel %vm746, %v453, %v569
      %v761 = vsel %vm746, %v454, %v571
      %v764 = vsel %vm746, %v455, %v573
      %v767 = vsel %vm746, %v456, %v575
      %v770 = vsel %vm746, %v457, %v577
      %vm771 = vcmask 130048
      %v773 = vsel %vm771, %v749, %v627
      %v775 = vsel %vm771, %v752, %v629
      %v777 = vsel %vm771, %v755, %v631
      %v779 = vsel %vm771, %v758, %v633
      %v781 = vsel %vm771, %v761, %v635
      %v783 = vsel %vm771, %v764, %v637
      %v785 = vsel %vm771, %v767, %v639
      %v787 = vsel %vm771, %v770, %v641
      %vm788 = vcmask 195584
      %v790 = vsel %vm788, %v773, %v691
      %v792 = vsel %vm788, %v775, %v693
      %v794 = vsel %vm788, %v777, %v695
      %v796 = vsel %vm788, %v779, %v697
      %v798 = vsel %vm788, %v781, %v699
      %v800 = vsel %vm788, %v783, %v701
      %v802 = vsel %vm788, %v785, %v703
      %v804 = vsel %vm788, %v787, %v705
      %vm805 = vcmask 261120
      %v807 = vsel %vm805, %v790, %v731
      %v809 = vsel %vm805, %v792, %v733
      %v811 = vsel %vm805, %v794, %v735
      %v813 = vsel %vm805, %v796, %v737
      %v815 = vsel %vm805, %v798, %v739
      %v817 = vsel %vm805, %v800, %v741
      %v819 = vsel %vm805, %v802, %v743
      %v821 = vsel %vm805, %v804, %v745
      %v822 = vld [vmem:[%s274] sm:$0xf]
      %v823 = vld [vmem:[%s274 + $0x4] sm:$0xf]
      %v824 = vld [vmem:[%s274 + $0x8] sm:$0xf]
      %v825 = vld [vmem:[%s274 + $0xc] sm:$0xf]
      %v826 = vld [vmem:[%s274 + $0x10] sm:$0xf]
      %s827 = scalar_lea.vmem [#allocation2], 16
      %v828 = vld [vmem:[%s827] sm:$0xf]
      %v829 = vld [vmem:[%s827 + $0x8] sm:$0xf]
      %v830 = vld [vmem:[%s827 + $0x10] sm:$0xf]
      %v831 = vld [vmem:[%s827 + $0x18] sm:$0xf]
      %v832 = vld [vmem:[%s827 + $0x20] sm:$0xf]
      %v833 = vld [vmem:[%s827 + $0x28] sm:$0xf]
      %v834 = vld [vmem:[%s827 + $0x30] sm:$0xf]
      %v835 = vld [vmem:[%s827 + $0x38] sm:$0xf]
      %v836 = vld [vmem:[%s827] sm:$0xe]
      %v837 = vld [vmem:[%s827 + $0x4] sm:$0x1]
      %v838 = vld [vmem:[%s827 + $0x8] sm:$0xe]
      %v839 = vld [vmem:[%s827 + $0xc] sm:$0x1]
      %v840 = vld [vmem:[%s827 + $0x10] sm:$0xe]
      %v841 = vld [vmem:[%s827 + $0x14] sm:$0x1]
      %v842 = vld [vmem:[%s827 + $0x18] sm:$0xe]
      %v843 = vld [vmem:[%s827 + $0x1c] sm:$0x1]
      %v844 = vld [vmem:[%s827 + $0x20] sm:$0xe]
      %v845 = vld [vmem:[%s827 + $0x24] sm:$0x1]
      %v846 = vld [vmem:[%s827 + $0x28] sm:$0xe]
      %v847 = vld [vmem:[%s827 + $0x2c] sm:$0x1]
      %v848 = vld [vmem:[%s827 + $0x30] sm:$0xe]
      %v849 = vld [vmem:[%s827 + $0x34] sm:$0x1]
      %v850 = vld [vmem:[%s827 + $0x38] sm:$0xe]
      %v851 = vld [vmem:[%s827 + $0x3c] sm:$0x1]
      %v852 = vld [vmem:[%s827] sm:$0xc]
      %v853 = vld [vmem:[%s827 + $0x4] sm:$0x3]
      %v854 = vld [vmem:[%s827 + $0x8] sm:$0xc]
      %v855 = vld [vmem:[%s827 + $0xc] sm:$0x3]
      %v856 = vld [vmem:[%s827 + $0x10] sm:$0xc]
      %v857 = vld [vmem:[%s827 + $0x14] sm:$0x3]
      %v858 = vld [vmem:[%s827 + $0x18] sm:$0xc]
      %v859 = vld [vmem:[%s827 + $0x1c] sm:$0x3]
      %v860 = vld [vmem:[%s827 + $0x20] sm:$0xc]
      %v861 = vld [vmem:[%s827 + $0x24] sm:$0x3]
      %v862 = vld [vmem:[%s827 + $0x28] sm:$0xc]
      %v863 = vld [vmem:[%s827 + $0x2c] sm:$0x3]
      %v864 = vld [vmem:[%s827 + $0x30] sm:$0xc]
      %v865 = vld [vmem:[%s827 + $0x34] sm:$0x3]
      %v866 = vld [vmem:[%s827 + $0x38] sm:$0xc]
      %v867 = vld [vmem:[%s827 + $0x3c] sm:$0x3]
      %v868 = vld [vmem:[%s827] sm:$0x8]
      %v869 = vld [vmem:[%s827 + $0x4] sm:$0x7]
      %v870 = vld [vmem:[%s827 + $0x8] sm:$0x8]
      %v871 = vld [vmem:[%s827 + $0xc] sm:$0x7]
      %v872 = vld [vmem:[%s827 + $0x10] sm:$0x8]
      %v873 = vld [vmem:[%s827 + $0x14] sm:$0x7]
      %v874 = vld [vmem:[%s827 + $0x18] sm:$0x8]
      %v875 = vld [vmem:[%s827 + $0x1c] sm:$0x7]
      %v876 = vld [vmem:[%s827 + $0x20] sm:$0x8]
      %v877 = vld [vmem:[%s827 + $0x24] sm:$0x7]
      %v878 = vld [vmem:[%s827 + $0x28] sm:$0x8]
      %v879 = vld [vmem:[%s827 + $0x2c] sm:$0x7]
      %v880 = vld [vmem:[%s827 + $0x30] sm:$0x8]
      %v881 = vld [vmem:[%s827 + $0x34] sm:$0x7]
      %v882 = vld [vmem:[%s827 + $0x38] sm:$0x8]
      %v883 = vld [vmem:[%s827 + $0x3c] sm:$0x7]
      %v884 = vld [vmem:[%s827 + $0x4] sm:$0xf]
      %v885 = vld [vmem:[%s827 + $0xc] sm:$0xf]
      %v886 = vld [vmem:[%s827 + $0x14] sm:$0xf]
      %v887 = vld [vmem:[%s827 + $0x1c] sm:$0xf]
      %v888 = vld [vmem:[%s827 + $0x24] sm:$0xf]
      %v889 = vld [vmem:[%s827 + $0x2c] sm:$0xf]
      %v890 = vld [vmem:[%s827 + $0x34] sm:$0xf]
      %v891 = vld [vmem:[%s827 + $0x3c] sm:$0xf]
      %v908 = vunpack.c.l.b16 %v836
      %v909 = vunpack.c.l.b16 %v837
      %v910 = vunpack.c.l.b16 %v838
      %v911 = vunpack.c.l.b16 %v839
      %v912 = vunpack.c.l.b16 %v840
      %v913 = vunpack.c.l.b16 %v841
      %v914 = vunpack.c.l.b16 %v842
      %v915 = vunpack.c.l.b16 %v843
      %v916 = vunpack.c.l.b16 %v844
      %v917 = vunpack.c.l.b16 %v845
      %v918 = vunpack.c.l.b16 %v846
      %v919 = vunpack.c.l.b16 %v847
      %v920 = vunpack.c.l.b16 %v848
      %v921 = vunpack.c.l.b16 %v849
      %v922 = vunpack.c.l.b16 %v850
      %v923 = vunpack.c.l.b16 %v851
      %v924 = vpack.c.b16 %v909, %v908
      %v925 = vpack.c.b16 %v911, %v910
      %v926 = vpack.c.b16 %v913, %v912
      %v927 = vpack.c.b16 %v915, %v914
      %v928 = vpack.c.b16 %v917, %v916
      %v929 = vpack.c.b16 %v919, %v918
      %v930 = vpack.c.b16 %v921, %v920
      %v931 = vpack.c.b16 %v923, %v922
      %v932 = vrot.slane %v924, 1
      %v933 = vrot.slane %v925, 1
      %v934 = vrot.slane %v926, 1
      %v935 = vrot.slane %v927, 1
      %v936 = vrot.slane %v928, 1
      %v937 = vrot.slane %v929, 1
      %v938 = vrot.slane %v930, 1
      %v939 = vrot.slane %v931, 1
      %940 = vrot.lane.b32.xlu0 %v932, 8
      %v941 = vpop.permute.xlu0 %940
      %942 = vrot.lane.b32.xlu0 %v933, 8
      %v943 = vpop.permute.xlu0 %942
      %944 = vrot.lane.b32.xlu0 %v934, 8
      %v945 = vpop.permute.xlu0 %944
      %946 = vrot.lane.b32.xlu0 %v935, 8
      %v947 = vpop.permute.xlu0 %946
      %948 = vrot.lane.b32.xlu0 %v936, 8
      %v949 = vpop.permute.xlu0 %948
      %950 = vrot.lane.b32.xlu0 %v937, 8
      %v951 = vpop.permute.xlu0 %950
      %952 = vrot.lane.b32.xlu0 %v938, 8
      %v953 = vpop.permute.xlu0 %952
      %954 = vrot.lane.b32.xlu0 %v939, 8
      %v955 = vpop.permute.xlu0 %954
      %v972 = vunpack.c.l.b16 %v852
      %v973 = vunpack.c.l.b16 %v853
      %v974 = vunpack.c.l.b16 %v854
      %v975 = vunpack.c.l.b16 %v855
      %v976 = vunpack.c.l.b16 %v856
      %v977 = vunpack.c.l.b16 %v857
      %v978 = vunpack.c.l.b16 %v858
      %v979 = vunpack.c.l.b16 %v859
      %v980 = vunpack.c.l.b16 %v860
      %v981 = vunpack.c.l.b16 %v861
      %v982 = vunpack.c.l.b16 %v862
      %v983 = vunpack.c.l.b16 %v863
      %v984 = vunpack.c.l.b16 %v864
      %v985 = vunpack.c.l.b16 %v865
      %v986 = vunpack.c.l.b16 %v866
      %v987 = vunpack.c.l.b16 %v867
      %v988 = vpack.c.b16 %v973, %v972
      %v989 = vpack.c.b16 %v975, %v974
      %v990 = vpack.c.b16 %v977, %v976
      %v991 = vpack.c.b16 %v979, %v978
      %v992 = vpack.c.b16 %v981, %v980
      %v993 = vpack.c.b16 %v983, %v982
      %v994 = vpack.c.b16 %v985, %v984
      %v995 = vpack.c.b16 %v987, %v986
      %v996 = vrot.slane %v988, 2
      %v997 = vrot.slane %v989, 2
      %v998 = vrot.slane %v990, 2
      %v999 = vrot.slane %v991, 2
      %v1000 = vrot.slane %v992, 2
      %v1001 = vrot.slane %v993, 2
      %v1002 = vrot.slane %v994, 2
      %v1003 = vrot.slane %v995, 2
      %1004 = vrot.lane.b32.xlu0 %v996, 16
      %v1005 = vpop.permute.xlu0 %1004
      %1006 = vrot.lane.b32.xlu0 %v997, 16
      %v1007 = vpop.permute.xlu0 %1006
      %1008 = vrot.lane.b32.xlu0 %v998, 16
      %v1009 = vpop.permute.xlu0 %1008
      %1010 = vrot.lane.b32.xlu0 %v999, 16
      %v1011 = vpop.permute.xlu0 %1010
      %1012 = vrot.lane.b32.xlu0 %v1000, 16
      %v1013 = vpop.permute.xlu0 %1012
      %1014 = vrot.lane.b32.xlu0 %v1001, 16
      %v1015 = vpop.permute.xlu0 %1014
      %1016 = vrot.lane.b32.xlu0 %v1002, 16
      %v1017 = vpop.permute.xlu0 %1016
      %1018 = vrot.lane.b32.xlu0 %v1003, 16
      %v1019 = vpop.permute.xlu0 %1018
      %v1036 = vunpack.c.l.b16 %v868
      %v1037 = vunpack.c.l.b16 %v869
      %v1038 = vunpack.c.l.b16 %v870
      %v1039 = vunpack.c.l.b16 %v871
      %v1040 = vunpack.c.l.b16 %v872
      %v1041 = vunpack.c.l.b16 %v873
      %v1042 = vunpack.c.l.b16 %v874
      %v1043 = vunpack.c.l.b16 %v875
      %v1044 = vunpack.c.l.b16 %v876
      %v1045 = vunpack.c.l.b16 %v877
      %v1046 = vunpack.c.l.b16 %v878
      %v1047 = vunpack.c.l.b16 %v879
      %v1048 = vunpack.c.l.b16 %v880
      %v1049 = vunpack.c.l.b16 %v881
      %v1050 = vunpack.c.l.b16 %v882
      %v1051 = vunpack.c.l.b16 %v883
      %v1052 = vpack.c.b16 %v1037, %v1036
      %v1053 = vpack.c.b16 %v1039, %v1038
      %v1054 = vpack.c.b16 %v1041, %v1040
      %v1055 = vpack.c.b16 %v1043, %v1042
      %v1056 = vpack.c.b16 %v1045, %v1044
      %v1057 = vpack.c.b16 %v1047, %v1046
      %v1058 = vpack.c.b16 %v1049, %v1048
      %v1059 = vpack.c.b16 %v1051, %v1050
      %v1060 = vrot.slane %v1052, 3
      %v1061 = vrot.slane %v1053, 3
      %v1062 = vrot.slane %v1054, 3
      %v1063 = vrot.slane %v1055, 3
      %v1064 = vrot.slane %v1056, 3
      %v1065 = vrot.slane %v1057, 3
      %v1066 = vrot.slane %v1058, 3
      %v1067 = vrot.slane %v1059, 3
      %1068 = vrot.lane.b32.xlu0 %v1060, 24
      %v1069 = vpop.permute.xlu0 %1068
      %1070 = vrot.lane.b32.xlu0 %v1061, 24
      %v1071 = vpop.permute.xlu0 %1070
      %1072 = vrot.lane.b32.xlu0 %v1062, 24
      %v1073 = vpop.permute.xlu0 %1072
      %1074 = vrot.lane.b32.xlu0 %v1063, 24
      %v1075 = vpop.permute.xlu0 %1074
      %1076 = vrot.lane.b32.xlu0 %v1064, 24
      %v1077 = vpop.permute.xlu0 %1076
      %1078 = vrot.lane.b32.xlu0 %v1065, 24
      %v1079 = vpop.permute.xlu0 %1078
      %1080 = vrot.lane.b32.xlu0 %v1066, 24
      %v1081 = vpop.permute.xlu0 %1080
      %1082 = vrot.lane.b32.xlu0 %v1067, 24
      %v1083 = vpop.permute.xlu0 %1082
      %v1092 = vunpack.c.l.b16 %v884
      %v1093 = vunpack.c.l.b16 %v885
      %v1094 = vunpack.c.l.b16 %v886
      %v1095 = vunpack.c.l.b16 %v887
      %v1096 = vunpack.c.l.b16 %v888
      %v1097 = vunpack.c.l.b16 %v889
      %v1098 = vunpack.c.l.b16 %v890
      %v1099 = vunpack.c.l.b16 %v891
      %v1100 = vpack.c.b16 %v1092, %v1092
      %v1101 = vpack.c.b16 %v1093, %v1093
      %v1102 = vpack.c.b16 %v1094, %v1094
      %v1103 = vpack.c.b16 %v1095, %v1095
      %v1104 = vpack.c.b16 %v1096, %v1096
      %v1105 = vpack.c.b16 %v1097, %v1097
      %v1106 = vpack.c.b16 %v1098, %v1098
      %v1107 = vpack.c.b16 %v1099, %v1099
      %1108 = vrot.lane.b32.xlu0 %v1100, 32
      %v1109 = vpop.permute.xlu0 %1108
      %1110 = vrot.lane.b32.xlu0 %v1101, 32
      %v1111 = vpop.permute.xlu0 %1110
      %1112 = vrot.lane.b32.xlu0 %v1102, 32
      %v1113 = vpop.permute.xlu0 %1112
      %1114 = vrot.lane.b32.xlu0 %v1103, 32
      %v1115 = vpop.permute.xlu0 %1114
      %1116 = vrot.lane.b32.xlu0 %v1104, 32
      %v1117 = vpop.permute.xlu0 %1116
      %1118 = vrot.lane.b32.xlu0 %v1105, 32
      %v1119 = vpop.permute.xlu0 %1118
      %1120 = vrot.lane.b32.xlu0 %v1106, 32
      %v1121 = vpop.permute.xlu0 %1120
      %1122 = vrot.lane.b32.xlu0 %v1107, 32
      %v1123 = vpop.permute.xlu0 %1122
      %v1126 = vsel %vm746, %v828, %v941
      %v1129 = vsel %vm746, %v829, %v943
      %v1132 = vsel %vm746, %v830, %v945
      %v1135 = vsel %vm746, %v831, %v947
      %v1138 = vsel %vm746, %v832, %v949
      %v1141 = vsel %vm746, %v833, %v951
      %v1144 = vsel %vm746, %v834, %v953
      %v1147 = vsel %vm746, %v835, %v955
      %v1149 = vsel %vm771, %v1126, %v1005
      %v1151 = vsel %vm771, %v1129, %v1007
      %v1153 = vsel %vm771, %v1132, %v1009
      %v1155 = vsel %vm771, %v1135, %v1011
      %v1157 = vsel %vm771, %v1138, %v1013
      %v1159 = vsel %vm771, %v1141, %v1015
      %v1161 = vsel %vm771, %v1144, %v1017
      %v1163 = vsel %vm771, %v1147, %v1019
      %v1165 = vsel %vm788, %v1149, %v1069
      %v1167 = vsel %vm788, %v1151, %v1071
      %v1169 = vsel %vm788, %v1153, %v1073
      %v1171 = vsel %vm788, %v1155, %v1075
      %v1173 = vsel %vm788, %v1157, %v1077
      %v1175 = vsel %vm788, %v1159, %v1079
      %v1177 = vsel %vm788, %v1161, %v1081
      %v1179 = vsel %vm788, %v1163, %v1083
      %v1181 = vsel %vm805, %v1165, %v1109
      %v1183 = vsel %vm805, %v1167, %v1111
      %v1185 = vsel %vm805, %v1169, %v1113
      %v1187 = vsel %vm805, %v1171, %v1115
      %v1189 = vsel %vm805, %v1173, %v1117
      %v1191 = vsel %vm805, %v1175, %v1119
      %v1193 = vsel %vm805, %v1177, %v1121
      %v1195 = vsel %vm805, %v1179, %v1123
      %s1196 = scalar_lea.vmem %s274, 20
      %v1197 = vld [vmem:[%s1196] sm:$0xf]
      %v1198 = vld [vmem:[%s1196 + $0x4] sm:$0xf]
      %v1199 = vld [vmem:[%s1196 + $0x8] sm:$0xf]
      %v1200 = vld [vmem:[%s1196 + $0xc] sm:$0xf]
      %v1201 = vld [vmem:[%s1196 + $0x10] sm:$0xf]
      %v1210 = vunpack.c.l.b16 %v1181
      %v1211 = vunpack.c.l.b16 %v1183
      %v1212 = vunpack.c.l.b16 %v1185
      %v1213 = vunpack.c.l.b16 %v1187
      %v1214 = vunpack.c.l.b16 %v1189
      %v1215 = vunpack.c.l.b16 %v1191
      %v1216 = vunpack.c.l.b16 %v1193
      %v1217 = vunpack.c.l.b16 %v1195
      %v1218 = vpack.c.b16 %v1211, %v1210
      %v1219 = vpack.c.b16 %v1213, %v1212
      %v1220 = vpack.c.b16 %v1215, %v1214
      %v1221 = vpack.c.b16 %v1217, %v1216
      %v1227 = vunpack.c.l.b16 %v1197
      %v1228 = vunpack.c.l.b16 %v1198
      %v1229 = vunpack.c.l.b16 %v1199
      %v1230 = vunpack.c.l.b16 %v1200
      %v1231 = vunpack.c.l.b16 %v1201
      %v1232 = vpack.c.b16 %v1228, %v1227
      %v1233 = vpack.c.b16 %v1230, %v1229
      %v1234 = vpack.c.b16 %v1231, %v1231
      %vm1237 = vcmask 326656
      %v1239 = vsel %vm1237, %v1218, 0
      %v1242 = vsel %vm1237, %v1219, 0
      %v1245 = vsel %vm1237, %v1220, 0
      %v1248 = vsel %vm1237, %v1221, 0
      %vm1250 = vcmask 1043456
      %v1252 = vsel %vm1250, %v1234, 0
      %1254 = vmatprep.subr.bf16.mxu0 0
      %1255 = vmatpush1.bf16.msra.mxu0 0
      %1256 = vmatprep.subr.bf16.mxu0 0
      %1257 = vmatpush1.bf16.msra.mxu0 0
      %1258 = vmatprep.subr.bf16.mxu0 0
      %1259 = vmatpush1.bf16.msra.mxu0 0
      %1260 = vmatprep.subr.bf16.mxu0 0
      %1261 = vmatpush1.bf16.msra.mxu0 0
      %1262 = vmatprep.subr.bf16.mxu0 0
      %1263 = vmatpush1.bf16.msra.mxu0 0
      %1264 = vmatprep.subr.bf16.mxu0 0
      %1265 = vmatpush1.bf16.msra.mxu0 %v1252
      %1266 = vmatprep.subr.bf16.mxu0 0
      %1267 = vmatpush1.bf16.msra.mxu0 %v1233
      %1268 = vmatprep.subr.bf16.mxu0 0
      %1269 = vmatpush1.bf16.msra.mxu0 %v1232
      %1270 = vmatprep.subr.bf16.mxu0 0
      %1271 = vmatpush2.bf16.msra.mxu0 0
      %1272 = vmatprep.subr.bf16.mxu0 0
      %1273 = vmatpush2.bf16.msra.mxu0 0
      %1274 = vmatprep.subr.bf16.mxu0 0
      %1275 = vmatpush2.bf16.msra.mxu0 0
      %1276 = vmatprep.subr.bf16.mxu0 0
      %1277 = vmatpush2.bf16.msra.mxu0 0
      %1278 = vmatprep.subr.bf16.mxu0 0
      %1279 = vmatpush2.bf16.msra.mxu0 0
      %1280 = vmatprep.subr.bf16.mxu0 0
      %1281 = vmatpush2.bf16.msra.mxu0 0
      %1282 = vmatprep.subr.bf16.mxu0 0
      %1283 = vmatpush2.bf16.msra.mxu0 0
      %1284 = vmatprep.subr.bf16.mxu0 0
      %1285 = vmatpush2.bf16.msra.mxu0 0
      %1286 = vmatprep.mubr.bf16.mxu0 0
      %1287 = vmatmul.mubr.bf16.gmra.mxu0 %v1239
      %v1288 = vpop.f32.mrf.mxu0
      %v1289 = vadd.f32 0.0, %v1288
      %v1290 = vpop.f32.mrf.mxu0
      %v1291 = vpop.f32.mrf.mxu0
      %v1292 = vadd.f32 0.0, %v1291
      %v1293 = vpop.f32.mrf.mxu0
      %1294 = vmatprep.mubr.bf16.mxu0 0
      %1295 = vmatmul.mubr.bf16.gmra.mxu0 %v1242
      %v1296 = vpop.f32.mrf.mxu0
      %v1297 = vadd.f32 0.0, %v1296
      %v1298 = vpop.f32.mrf.mxu0
      %v1299 = vpop.f32.mrf.mxu0
      %v1300 = vadd.f32 0.0, %v1299
      %v1301 = vpop.f32.mrf.mxu0
      %1302 = vmatprep.mubr.bf16.mxu0 0
      %1303 = vmatmul.mubr.bf16.gmra.mxu0 %v1245
      %v1304 = vpop.f32.mrf.mxu0
      %v1305 = vadd.f32 0.0, %v1304
      %v1306 = vpop.f32.mrf.mxu0
      %v1307 = vpop.f32.mrf.mxu0
      %v1308 = vadd.f32 0.0, %v1307
      %v1309 = vpop.f32.mrf.mxu0
      %1310 = vmatprep.mubr.bf16.mxu0 0
      %1311 = vmatmul.mubr.bf16.gmra.mxu0 %v1248
      %v1312 = vpop.f32.mrf.mxu0
      %v1313 = vadd.f32 0.0, %v1312
      %v1314 = vpop.f32.mrf.mxu0
      %v1315 = vpop.f32.mrf.mxu0
      %v1316 = vadd.f32 0.0, %v1315
      %v1317 = vpop.f32.mrf.mxu0
      %1318 = vdwg.mxu0
      %v1327 = vunpack.c.l.b16 %v807
      %v1328 = vunpack.c.l.b16 %v809
      %v1329 = vunpack.c.l.b16 %v811
      %v1330 = vunpack.c.l.b16 %v813
      %v1331 = vunpack.c.l.b16 %v815
      %v1332 = vunpack.c.l.b16 %v817
      %v1333 = vunpack.c.l.b16 %v819
      %v1334 = vunpack.c.l.b16 %v821
      %v1335 = vpack.c.b16 %v1328, %v1327
      %v1336 = vpack.c.b16 %v1330, %v1329
      %v1337 = vpack.c.b16 %v1332, %v1331
      %v1338 = vpack.c.b16 %v1334, %v1333
      %v1344 = vunpack.c.l.b16 %v822
      %v1345 = vunpack.c.l.b16 %v823
      %v1346 = vunpack.c.l.b16 %v824
      %v1347 = vunpack.c.l.b16 %v825
      %v1348 = vunpack.c.l.b16 %v826
      %v1349 = vpack.c.b16 %v1345, %v1344
      %v1350 = vpack.c.b16 %v1347, %v1346
      %v1351 = vpack.c.b16 %v1348, %v1348
      %v1355 = vsel %vm1237, %v1335, 0
      %v1358 = vsel %vm1237, %v1336, 0
      %v1361 = vsel %vm1237, %v1337, 0
      %v1364 = vsel %vm1237, %v1338, 0
      %v1367 = vsel %vm1250, %v1351, 0
      %1369 = vmatprep.subr.bf16.mxu0 0
      %1370 = vmatpush1.bf16.msra.mxu0 0
      %1371 = vmatprep.subr.bf16.mxu0 0
      %1372 = vmatpush1.bf16.msra.mxu0 0
      %1373 = vmatprep.subr.bf16.mxu0 0
      %1374 = vmatpush1.bf16.msra.mxu0 0
      %1375 = vmatprep.subr.bf16.mxu0 0
      %1376 = vmatpush1.bf16.msra.mxu0 0
      %1377 = vmatprep.subr.bf16.mxu0 0
      %1378 = vmatpush1.bf16.msra.mxu0 0
      %1379 = vmatprep.subr.bf16.mxu0 0
      %1380 = vmatpush1.bf16.msra.mxu0 %v1367
      %1381 = vmatprep.subr.bf16.mxu0 0
      %1382 = vmatpush1.bf16.msra.mxu0 %v1350
      %1383 = vmatprep.subr.bf16.mxu0 0
      %1384 = vmatpush1.bf16.msra.mxu0 %v1349
      %1385 = vmatprep.subr.bf16.mxu0 0
      %1386 = vmatpush2.bf16.msra.mxu0 0
      %1387 = vmatprep.subr.bf16.mxu0 0
      %1388 = vmatpush2.bf16.msra.mxu0 0
      %1389 = vmatprep.subr.bf16.mxu0 0
      %1390 = vmatpush2.bf16.msra.mxu0 0
      %1391 = vmatprep.subr.bf16.mxu0 0
      %1392 = vmatpush2.bf16.msra.mxu0 0
      %1393 = vmatprep.subr.bf16.mxu0 0
      %1394 = vmatpush2.bf16.msra.mxu0 0
      %1395 = vmatprep.subr.bf16.mxu0 0
      %1396 = vmatpush2.bf16.msra.mxu0 0
      %1397 = vmatprep.subr.bf16.mxu0 0
      %1398 = vmatpush2.bf16.msra.mxu0 0
      %1399 = vmatprep.subr.bf16.mxu0 0
      %1400 = vmatpush2.bf16.msra.mxu0 0
      %1401 = vmatprep.mubr.bf16.mxu0 0
      %1402 = vmatmul.mubr.bf16.gmra.mxu0 %v1355
      %v1403 = vpop.f32.mrf.mxu0
      %v1404 = vadd.f32 %v1289, %v1403
      %v1405 = vpop.f32.mrf.mxu0
      %v1406 = vpop.f32.mrf.mxu0
      %v1407 = vadd.f32 %v1292, %v1406
      %v1408 = vpop.f32.mrf.mxu0
      %1409 = vmatprep.mubr.bf16.mxu0 0
      %1410 = vmatmul.mubr.bf16.gmra.mxu0 %v1358
      %v1411 = vpop.f32.mrf.mxu0
      %v1412 = vadd.f32 %v1297, %v1411
      %v1413 = vpop.f32.mrf.mxu0
      %v1414 = vpop.f32.mrf.mxu0
      %v1415 = vadd.f32 %v1300, %v1414
      %v1416 = vpop.f32.mrf.mxu0
      %1417 = vmatprep.mubr.bf16.mxu0 0
      %1418 = vmatmul.mubr.bf16.gmra.mxu0 %v1361
      %v1419 = vpop.f32.mrf.mxu0
      %v1420 = vadd.f32 %v1305, %v1419
      %v1421 = vpop.f32.mrf.mxu0
      %v1422 = vpop.f32.mrf.mxu0
      %v1423 = vadd.f32 %v1308, %v1422
      %v1424 = vpop.f32.mrf.mxu0
      %1425 = vmatprep.mubr.bf16.mxu0 0
      %1426 = vmatmul.mubr.bf16.gmra.mxu0 %v1364
      %v1427 = vpop.f32.mrf.mxu0
      %v1428 = vadd.f32 %v1313, %v1427
      %v1429 = vpop.f32.mrf.mxu0
      %v1430 = vpop.f32.mrf.mxu0
      %v1431 = vadd.f32 %v1316, %v1430
      %v1432 = vpop.f32.mrf.mxu0
      %1433 = vdwg.mxu0
      %v1434 = vld [vmem:[%s431] sm:$0xf]
      %v1435 = vld [vmem:[%s431 + $0x8] sm:$0xf]
      %v1436 = vld [vmem:[%s431 + $0x10] sm:$0xf]
      %v1437 = vld [vmem:[%s431 + $0x18] sm:$0xf]
      %v1438 = vld [vmem:[%s431 + $0x20] sm:$0xf]
      %v1439 = vld [vmem:[%s431 + $0x28] sm:$0xf]
      %v1440 = vld [vmem:[%s431 + $0x30] sm:$0xf]
      %v1441 = vld [vmem:[%s431 + $0x38] sm:$0xf]
      %v1442 = vld [vmem:[%s431] sm:$0xe]
      %v1443 = vld [vmem:[%s431 + $0x4] sm:$0x1]
      %v1444 = vld [vmem:[%s431 + $0x8] sm:$0xe]
      %v1445 = vld [vmem:[%s431 + $0xc] sm:$0x1]
      %v1446 = vld [vmem:[%s431 + $0x10] sm:$0xe]
      %v1447 = vld [vmem:[%s431 + $0x14] sm:$0x1]
      %v1448 = vld [vmem:[%s431 + $0x18] sm:$0xe]
      %v1449 = vld [vmem:[%s431 + $0x1c] sm:$0x1]
      %v1450 = vld [vmem:[%s431 + $0x20] sm:$0xe]
      %v1451 = vld [vmem:[%s431 + $0x24] sm:$0x1]
      %v1452 = vld [vmem:[%s431 + $0x28] sm:$0xe]
      %v1453 = vld [vmem:[%s431 + $0x2c] sm:$0x1]
      %v1454 = vld [vmem:[%s431 + $0x30] sm:$0xe]
      %v1455 = vld [vmem:[%s431 + $0x34] sm:$0x1]
      %v1456 = vld [vmem:[%s431 + $0x38] sm:$0xe]
      %v1457 = vld [vmem:[%s431 + $0x3c] sm:$0x1]
      %v1458 = vld [vmem:[%s431] sm:$0xc]
      %v1459 = vld [vmem:[%s431 + $0x4] sm:$0x3]
      %v1460 = vld [vmem:[%s431 + $0x8] sm:$0xc]
      %v1461 = vld [vmem:[%s431 + $0xc] sm:$0x3]
      %v1462 = vld [vmem:[%s431 + $0x10] sm:$0xc]
      %v1463 = vld [vmem:[%s431 + $0x14] sm:$0x3]
      %v1464 = vld [vmem:[%s431 + $0x18] sm:$0xc]
      %v1465 = vld [vmem:[%s431 + $0x1c] sm:$0x3]
      %v1466 = vld [vmem:[%s431 + $0x20] sm:$0xc]
      %v1467 = vld [vmem:[%s431 + $0x24] sm:$0x3]
      %v1468 = vld [vmem:[%s431 + $0x28] sm:$0xc]
      %v1469 = vld [vmem:[%s431 + $0x2c] sm:$0x3]
      %v1470 = vld [vmem:[%s431 + $0x30] sm:$0xc]
      %v1471 = vld [vmem:[%s431 + $0x34] sm:$0x3]
      %v1472 = vld [vmem:[%s431 + $0x38] sm:$0xc]
      %v1473 = vld [vmem:[%s431 + $0x3c] sm:$0x3]
      %v1474 = vld [vmem:[%s431] sm:$0x8]
      %v1475 = vld [vmem:[%s431 + $0x4] sm:$0x7]
      %v1476 = vld [vmem:[%s431 + $0x8] sm:$0x8]
      %v1477 = vld [vmem:[%s431 + $0xc] sm:$0x7]
      %v1478 = vld [vmem:[%s431 + $0x10] sm:$0x8]
      %v1479 = vld [vmem:[%s431 + $0x14] sm:$0x7]
      %v1480 = vld [vmem:[%s431 + $0x18] sm:$0x8]
      %v1481 = vld [vmem:[%s431 + $0x1c] sm:$0x7]
      %v1482 = vld [vmem:[%s431 + $0x20] sm:$0x8]
      %v1483 = vld [vmem:[%s431 + $0x24] sm:$0x7]
      %v1484 = vld [vmem:[%s431 + $0x28] sm:$0x8]
      %v1485 = vld [vmem:[%s431 + $0x2c] sm:$0x7]
      %v1486 = vld [vmem:[%s431 + $0x30] sm:$0x8]
      %v1487 = vld [vmem:[%s431 + $0x34] sm:$0x7]
      %v1488 = vld [vmem:[%s431 + $0x38] sm:$0x8]
      %v1489 = vld [vmem:[%s431 + $0x3c] sm:$0x7]
      %v1490 = vld [vmem:[%s431 + $0x4] sm:$0xf]
      %v1491 = vld [vmem:[%s431 + $0xc] sm:$0xf]
      %v1492 = vld [vmem:[%s431 + $0x14] sm:$0xf]
      %v1493 = vld [vmem:[%s431 + $0x1c] sm:$0xf]
      %v1494 = vld [vmem:[%s431 + $0x24] sm:$0xf]
      %v1495 = vld [vmem:[%s431 + $0x2c] sm:$0xf]
      %v1496 = vld [vmem:[%s431 + $0x34] sm:$0xf]
      %v1497 = vld [vmem:[%s431 + $0x3c] sm:$0xf]
      %v1514 = vunpack.c.l.b16 %v1442
      %v1515 = vunpack.c.l.b16 %v1443
      %v1516 = vunpack.c.l.b16 %v1444
      %v1517 = vunpack.c.l.b16 %v1445
      %v1518 = vunpack.c.l.b16 %v1446
      %v1519 = vunpack.c.l.b16 %v1447
      %v1520 = vunpack.c.l.b16 %v1448
      %v1521 = vunpack.c.l.b16 %v1449
      %v1522 = vunpack.c.l.b16 %v1450
      %v1523 = vunpack.c.l.b16 %v1451
      %v1524 = vunpack.c.l.b16 %v1452
      %v1525 = vunpack.c.l.b16 %v1453
      %v1526 = vunpack.c.l.b16 %v1454
      %v1527 = vunpack.c.l.b16 %v1455
      %v1528 = vunpack.c.l.b16 %v1456
      %v1529 = vunpack.c.l.b16 %v1457
      %v1530 = vpack.c.b16 %v1515, %v1514
      %v1531 = vpack.c.b16 %v1517, %v1516
      %v1532 = vpack.c.b16 %v1519, %v1518
      %v1533 = vpack.c.b16 %v1521, %v1520
      %v1534 = vpack.c.b16 %v1523, %v1522
      %v1535 = vpack.c.b16 %v1525, %v1524
      %v1536 = vpack.c.b16 %v1527, %v1526
      %v1537 = vpack.c.b16 %v1529, %v1528
      %v1538 = vrot.slane %v1530, 1
      %v1539 = vrot.slane %v1531, 1
      %v1540 = vrot.slane %v1532, 1
      %v1541 = vrot.slane %v1533, 1
      %v1542 = vrot.slane %v1534, 1
      %v1543 = vrot.slane %v1535, 1
      %v1544 = vrot.slane %v1536, 1
      %v1545 = vrot.slane %v1537, 1
      %1546 = vrot.lane.b32.xlu0 %v1538, 8
      %v1547 = vpop.permute.xlu0 %1546
      %1548 = vrot.lane.b32.xlu0 %v1539, 8
      %v1549 = vpop.permute.xlu0 %1548
      %1550 = vrot.lane.b32.xlu0 %v1540, 8
      %v1551 = vpop.permute.xlu0 %1550
      %1552 = vrot.lane.b32.xlu0 %v1541, 8
      %v1553 = vpop.permute.xlu0 %1552
      %1554 = vrot.lane.b32.xlu0 %v1542, 8
      %v1555 = vpop.permute.xlu0 %1554
      %1556 = vrot.lane.b32.xlu0 %v1543, 8
      %v1557 = vpop.permute.xlu0 %1556
      %1558 = vrot.lane.b32.xlu0 %v1544, 8
      %v1559 = vpop.permute.xlu0 %1558
      %1560 = vrot.lane.b32.xlu0 %v1545, 8
      %v1561 = vpop.permute.xlu0 %1560
      %v1578 = vunpack.c.l.b16 %v1458
      %v1579 = vunpack.c.l.b16 %v1459
      %v1580 = vunpack.c.l.b16 %v1460
      %v1581 = vunpack.c.l.b16 %v1461
      %v1582 = vunpack.c.l.b16 %v1462
      %v1583 = vunpack.c.l.b16 %v1463
      %v1584 = vunpack.c.l.b16 %v1464
      %v1585 = vunpack.c.l.b16 %v1465
      %v1586 = vunpack.c.l.b16 %v1466
      %v1587 = vunpack.c.l.b16 %v1467
      %v1588 = vunpack.c.l.b16 %v1468
      %v1589 = vunpack.c.l.b16 %v1469
      %v1590 = vunpack.c.l.b16 %v1470
      %v1591 = vunpack.c.l.b16 %v1471
      %v1592 = vunpack.c.l.b16 %v1472
      %v1593 = vunpack.c.l.b16 %v1473
      %v1594 = vpack.c.b16 %v1579, %v1578
      %v1595 = vpack.c.b16 %v1581, %v1580
      %v1596 = vpack.c.b16 %v1583, %v1582
      %v1597 = vpack.c.b16 %v1585, %v1584
      %v1598 = vpack.c.b16 %v1587, %v1586
      %v1599 = vpack.c.b16 %v1589, %v1588
      %v1600 = vpack.c.b16 %v1591, %v1590
      %v1601 = vpack.c.b16 %v1593, %v1592
      %v1602 = vrot.slane %v1594, 2
      %v1603 = vrot.slane %v1595, 2
      %v1604 = vrot.slane %v1596, 2
      %v1605 = vrot.slane %v1597, 2
      %v1606 = vrot.slane %v1598, 2
      %v1607 = vrot.slane %v1599, 2
      %v1608 = vrot.slane %v1600, 2
      %v1609 = vrot.slane %v1601, 2
      %1610 = vrot.lane.b32.xlu0 %v1602, 16
      %v1611 = vpop.permute.xlu0 %1610
      %1612 = vrot.lane.b32.xlu0 %v1603, 16
      %v1613 = vpop.permute.xlu0 %1612
      %1614 = vrot.lane.b32.xlu0 %v1604, 16
      %v1615 = vpop.permute.xlu0 %1614
      %1616 = vrot.lane.b32.xlu0 %v1605, 16
      %v1617 = vpop.permute.xlu0 %1616
      %1618 = vrot.lane.b32.xlu0 %v1606, 16
      %v1619 = vpop.permute.xlu0 %1618
      %1620 = vrot.lane.b32.xlu0 %v1607, 16
      %v1621 = vpop.permute.xlu0 %1620
      %1622 = vrot.lane.b32.xlu0 %v1608, 16
      %v1623 = vpop.permute.xlu0 %1622
      %1624 = vrot.lane.b32.xlu0 %v1609, 16
      %v1625 = vpop.permute.xlu0 %1624
      %v1642 = vunpack.c.l.b16 %v1474
      %v1643 = vunpack.c.l.b16 %v1475
      %v1644 = vunpack.c.l.b16 %v1476
      %v1645 = vunpack.c.l.b16 %v1477
      %v1646 = vunpack.c.l.b16 %v1478
      %v1647 = vunpack.c.l.b16 %v1479
      %v1648 = vunpack.c.l.b16 %v1480
      %v1649 = vunpack.c.l.b16 %v1481
      %v1650 = vunpack.c.l.b16 %v1482
      %v1651 = vunpack.c.l.b16 %v1483
      %v1652 = vunpack.c.l.b16 %v1484
      %v1653 = vunpack.c.l.b16 %v1485
      %v1654 = vunpack.c.l.b16 %v1486
      %v1655 = vunpack.c.l.b16 %v1487
      %v1656 = vunpack.c.l.b16 %v1488
      %v1657 = vunpack.c.l.b16 %v1489
      %v1658 = vpack.c.b16 %v1643, %v1642
      %v1659 = vpack.c.b16 %v1645, %v1644
      %v1660 = vpack.c.b16 %v1647, %v1646
      %v1661 = vpack.c.b16 %v1649, %v1648
      %v1662 = vpack.c.b16 %v1651, %v1650
      %v1663 = vpack.c.b16 %v1653, %v1652
      %v1664 = vpack.c.b16 %v1655, %v1654
      %v1665 = vpack.c.b16 %v1657, %v1656
      %v1666 = vrot.slane %v1658, 3
      %v1667 = vrot.slane %v1659, 3
      %v1668 = vrot.slane %v1660, 3
      %v1669 = vrot.slane %v1661, 3
      %v1670 = vrot.slane %v1662, 3
      %v1671 = vrot.slane %v1663, 3
      %v1672 = vrot.slane %v1664, 3
      %v1673 = vrot.slane %v1665, 3
      %1674 = vrot.lane.b32.xlu0 %v1666, 24
      %v1675 = vpop.permute.xlu0 %1674
      %1676 = vrot.lane.b32.xlu0 %v1667, 24
      %v1677 = vpop.permute.xlu0 %1676
      %1678 = vrot.lane.b32.xlu0 %v1668, 24
      %v1679 = vpop.permute.xlu0 %1678
      %1680 = vrot.lane.b32.xlu0 %v1669, 24
      %v1681 = vpop.permute.xlu0 %1680
      %1682 = vrot.lane.b32.xlu0 %v1670, 24
      %v1683 = vpop.permute.xlu0 %1682
      %1684 = vrot.lane.b32.xlu0 %v1671, 24
      %v1685 = vpop.permute.xlu0 %1684
      %1686 = vrot.lane.b32.xlu0 %v1672, 24
      %v1687 = vpop.permute.xlu0 %1686
      %1688 = vrot.lane.b32.xlu0 %v1673, 24
      %v1689 = vpop.permute.xlu0 %1688
      %v1698 = vunpack.c.l.b16 %v1490
      %v1699 = vunpack.c.l.b16 %v1491
      %v1700 = vunpack.c.l.b16 %v1492
      %v1701 = vunpack.c.l.b16 %v1493
      %v1702 = vunpack.c.l.b16 %v1494
      %v1703 = vunpack.c.l.b16 %v1495
      %v1704 = vunpack.c.l.b16 %v1496
      %v1705 = vunpack.c.l.b16 %v1497
      %v1706 = vpack.c.b16 %v1698, %v1698
      %v1707 = vpack.c.b16 %v1699, %v1699
      %v1708 = vpack.c.b16 %v1700, %v1700
      %v1709 = vpack.c.b16 %v1701, %v1701
      %v1710 = vpack.c.b16 %v1702, %v1702
      %v1711 = vpack.c.b16 %v1703, %v1703
      %v1712 = vpack.c.b16 %v1704, %v1704
      %v1713 = vpack.c.b16 %v1705, %v1705
      %1714 = vrot.lane.b32.xlu0 %v1706, 32
      %v1715 = vpop.permute.xlu0 %1714
      %1716 = vrot.lane.b32.xlu0 %v1707, 32
      %v1717 = vpop.permute.xlu0 %1716
      %1718 = vrot.lane.b32.xlu0 %v1708, 32
      %v1719 = vpop.permute.xlu0 %1718
      %1720 = vrot.lane.b32.xlu0 %v1709, 32
      %v1721 = vpop.permute.xlu0 %1720
      %1722 = vrot.lane.b32.xlu0 %v1710, 32
      %v1723 = vpop.permute.xlu0 %1722
      %1724 = vrot.lane.b32.xlu0 %v1711, 32
      %v1725 = vpop.permute.xlu0 %1724
      %1726 = vrot.lane.b32.xlu0 %v1712, 32
      %v1727 = vpop.permute.xlu0 %1726
      %1728 = vrot.lane.b32.xlu0 %v1713, 32
      %v1729 = vpop.permute.xlu0 %1728
      %v1732 = vsel %vm746, %v1434, %v1547
      %v1735 = vsel %vm746, %v1435, %v1549
      %v1738 = vsel %vm746, %v1436, %v1551
      %v1741 = vsel %vm746, %v1437, %v1553
      %v1744 = vsel %vm746, %v1438, %v1555
      %v1747 = vsel %vm746, %v1439, %v1557
      %v1750 = vsel %vm746, %v1440, %v1559
      %v1753 = vsel %vm746, %v1441, %v1561
      %v1755 = vsel %vm771, %v1732, %v1611
      %v1757 = vsel %vm771, %v1735, %v1613
      %v1759 = vsel %vm771, %v1738, %v1615
      %v1761 = vsel %vm771, %v1741, %v1617
      %v1763 = vsel %vm771, %v1744, %v1619
      %v1765 = vsel %vm771, %v1747, %v1621
      %v1767 = vsel %vm771, %v1750, %v1623
      %v1769 = vsel %vm771, %v1753, %v1625
      %v1771 = vsel %vm788, %v1755, %v1675
      %v1773 = vsel %vm788, %v1757, %v1677
      %v1775 = vsel %vm788, %v1759, %v1679
      %v1777 = vsel %vm788, %v1761, %v1681
      %v1779 = vsel %vm788, %v1763, %v1683
      %v1781 = vsel %vm788, %v1765, %v1685
      %v1783 = vsel %vm788, %v1767, %v1687
      %v1785 = vsel %vm788, %v1769, %v1689
      %v1787 = vsel %vm805, %v1771, %v1715
      %v1789 = vsel %vm805, %v1773, %v1717
      %v1791 = vsel %vm805, %v1775, %v1719
      %v1793 = vsel %vm805, %v1777, %v1721
      %v1795 = vsel %vm805, %v1779, %v1723
      %v1797 = vsel %vm805, %v1781, %v1725
      %v1799 = vsel %vm805, %v1783, %v1727
      %v1801 = vsel %vm805, %v1785, %v1729
      %s1802 = scalar_lea.vmem %s274, 40
      %v1803 = vld [vmem:[%s1802] sm:$0xf]
      %v1804 = vld [vmem:[%s1802 + $0x4] sm:$0xf]
      %v1805 = vld [vmem:[%s1802 + $0x8] sm:$0xf]
      %v1806 = vld [vmem:[%s1802 + $0xc] sm:$0xf]
      %v1807 = vld [vmem:[%s1802 + $0x10] sm:$0xf]
      %v1816 = vunpack.c.l.b16 %v1787
      %v1817 = vunpack.c.l.b16 %v1789
      %v1818 = vunpack.c.l.b16 %v1791
      %v1819 = vunpack.c.l.b16 %v1793
      %v1820 = vunpack.c.l.b16 %v1795
      %v1821 = vunpack.c.l.b16 %v1797
      %v1822 = vunpack.c.l.b16 %v1799
      %v1823 = vunpack.c.l.b16 %v1801
      %v1824 = vpack.c.b16 %v1817, %v1816
      %v1825 = vpack.c.b16 %v1819, %v1818
      %v1826 = vpack.c.b16 %v1821, %v1820
      %v1827 = vpack.c.b16 %v1823, %v1822
      %v1833 = vunpack.c.l.b16 %v1803
      %v1834 = vunpack.c.l.b16 %v1804
      %v1835 = vunpack.c.l.b16 %v1805
      %v1836 = vunpack.c.l.b16 %v1806
      %v1837 = vunpack.c.l.b16 %v1807
      %v1838 = vpack.c.b16 %v1834, %v1833
      %v1839 = vpack.c.b16 %v1836, %v1835
      %v1840 = vpack.c.b16 %v1837, %v1837
      %v1844 = vsel %vm1237, %v1824, 0
      %v1847 = vsel %vm1237, %v1825, 0
      %v1850 = vsel %vm1237, %v1826, 0
      %v1853 = vsel %vm1237, %v1827, 0
      %v1856 = vsel %vm1250, %v1840, 0
      %1858 = vmatprep.subr.bf16.mxu0 0
      %1859 = vmatpush1.bf16.msra.mxu0 0
      %1860 = vmatprep.subr.bf16.mxu0 0
      %1861 = vmatpush1.bf16.msra.mxu0 0
      %1862 = vmatprep.subr.bf16.mxu0 0
      %1863 = vmatpush1.bf16.msra.mxu0 0
      %1864 = vmatprep.subr.bf16.mxu0 0
      %1865 = vmatpush1.bf16.msra.mxu0 0
      %1866 = vmatprep.subr.bf16.mxu0 0
      %1867 = vmatpush1.bf16.msra.mxu0 0
      %1868 = vmatprep.subr.bf16.mxu0 0
      %1869 = vmatpush1.bf16.msra.mxu0 %v1856
      %1870 = vmatprep.subr.bf16.mxu0 0
      %1871 = vmatpush1.bf16.msra.mxu0 %v1839
      %1872 = vmatprep.subr.bf16.mxu0 0
      %1873 = vmatpush1.bf16.msra.mxu0 %v1838
      %1874 = vmatprep.subr.bf16.mxu0 0
      %1875 = vmatpush2.bf16.msra.mxu0 0
      %1876 = vmatprep.subr.bf16.mxu0 0
      %1877 = vmatpush2.bf16.msra.mxu0 0
      %1878 = vmatprep.subr.bf16.mxu0 0
      %1879 = vmatpush2.bf16.msra.mxu0 0
      %1880 = vmatprep.subr.bf16.mxu0 0
      %1881 = vmatpush2.bf16.msra.mxu0 0
      %1882 = vmatprep.subr.bf16.mxu0 0
      %1883 = vmatpush2.bf16.msra.mxu0 0
      %1884 = vmatprep.subr.bf16.mxu0 0
      %1885 = vmatpush2.bf16.msra.mxu0 0
      %1886 = vmatprep.subr.bf16.mxu0 0
      %1887 = vmatpush2.bf16.msra.mxu0 0
      %1888 = vmatprep.subr.bf16.mxu0 0
      %1889 = vmatpush2.bf16.msra.mxu0 0
      %1890 = vmatprep.mubr.bf16.mxu0 0
      %1891 = vmatmul.mubr.bf16.gmra.mxu0 %v1844
      %v1892 = vpop.f32.mrf.mxu0
      %v1893 = vadd.f32 0.0, %v1892
      %v1894 = vpop.f32.mrf.mxu0
      %v1895 = vpop.f32.mrf.mxu0
      %v1896 = vadd.f32 0.0, %v1895
      %v1897 = vpop.f32.mrf.mxu0
      %1898 = vmatprep.mubr.bf16.mxu0 0
      %1899 = vmatmul.mubr.bf16.gmra.mxu0 %v1847
      %v1900 = vpop.f32.mrf.mxu0
      %v1901 = vadd.f32 0.0, %v1900
      %v1902 = vpop.f32.mrf.mxu0
      %v1903 = vpop.f32.mrf.mxu0
      %v1904 = vadd.f32 0.0, %v1903
      %v1905 = vpop.f32.mrf.mxu0
      %1906 = vmatprep.mubr.bf16.mxu0 0
      %1907 = vmatmul.mubr.bf16.gmra.mxu0 %v1850
      %v1908 = vpop.f32.mrf.mxu0
      %v1909 = vadd.f32 0.0, %v1908
      %v1910 = vpop.f32.mrf.mxu0
      %v1911 = vpop.f32.mrf.mxu0
      %v1912 = vadd.f32 0.0, %v1911
      %v1913 = vpop.f32.mrf.mxu0
      %1914 = vmatprep.mubr.bf16.mxu0 0
      %1915 = vmatmul.mubr.bf16.gmra.mxu0 %v1853
      %v1916 = vpop.f32.mrf.mxu0
      %v1917 = vadd.f32 0.0, %v1916
      %v1918 = vpop.f32.mrf.mxu0
      %v1919 = vpop.f32.mrf.mxu0
      %v1920 = vadd.f32 0.0, %v1919
      %v1921 = vpop.f32.mrf.mxu0
      %1922 = vdwg.mxu0
      %v1923 = vadd.f32 %v1404, %v1893
      %v1924 = vadd.f32 %v1407, %v1896
      %v1925 = vadd.f32 %v1412, %v1901
      %v1926 = vadd.f32 %v1415, %v1904
      %v1927 = vadd.f32 %v1420, %v1909
      %v1928 = vadd.f32 %v1423, %v1912
      %v1929 = vadd.f32 %v1428, %v1917
      %v1930 = vadd.f32 %v1431, %v1920
      %s1931 = scalar_lea.vmem [#allocation2], 48
      %v1932 = vld [vmem:[%s1931] sm:$0xf]
      %v1933 = vld [vmem:[%s1931 + $0x8] sm:$0xf]
      %v1934 = vld [vmem:[%s1931 + $0x10] sm:$0xf]
      %v1935 = vld [vmem:[%s1931 + $0x18] sm:$0xf]
      %v1936 = vld [vmem:[%s1931 + $0x20] sm:$0xf]
      %v1937 = vld [vmem:[%s1931 + $0x28] sm:$0xf]
      %v1938 = vld [vmem:[%s1931 + $0x30] sm:$0xf]
      %v1939 = vld [vmem:[%s1931 + $0x38] sm:$0xf]
      %v1940 = vld [vmem:[%s1931] sm:$0xe]
      %v1941 = vld [vmem:[%s1931 + $0x4] sm:$0x1]
      %v1942 = vld [vmem:[%s1931 + $0x8] sm:$0xe]
      %v1943 = vld [vmem:[%s1931 + $0xc] sm:$0x1]
      %v1944 = vld [vmem:[%s1931 + $0x10] sm:$0xe]
      %v1945 = vld [vmem:[%s1931 + $0x14] sm:$0x1]
      %v1946 = vld [vmem:[%s1931 + $0x18] sm:$0xe]
      %v1947 = vld [vmem:[%s1931 + $0x1c] sm:$0x1]
      %v1948 = vld [vmem:[%s1931 + $0x20] sm:$0xe]
      %v1949 = vld [vmem:[%s1931 + $0x24] sm:$0x1]
      %v1950 = vld [vmem:[%s1931 + $0x28] sm:$0xe]
      %v1951 = vld [vmem:[%s1931 + $0x2c] sm:$0x1]
      %v1952 = vld [vmem:[%s1931 + $0x30] sm:$0xe]
      %v1953 = vld [vmem:[%s1931 + $0x34] sm:$0x1]
      %v1954 = vld [vmem:[%s1931 + $0x38] sm:$0xe]
      %v1955 = vld [vmem:[%s1931 + $0x3c] sm:$0x1]
      %v1956 = vld [vmem:[%s1931] sm:$0xc]
      %v1957 = vld [vmem:[%s1931 + $0x4] sm:$0x3]
      %v1958 = vld [vmem:[%s1931 + $0x8] sm:$0xc]
      %v1959 = vld [vmem:[%s1931 + $0xc] sm:$0x3]
      %v1960 = vld [vmem:[%s1931 + $0x10] sm:$0xc]
      %v1961 = vld [vmem:[%s1931 + $0x14] sm:$0x3]
      %v1962 = vld [vmem:[%s1931 + $0x18] sm:$0xc]
      %v1963 = vld [vmem:[%s1931 + $0x1c] sm:$0x3]
      %v1964 = vld [vmem:[%s1931 + $0x20] sm:$0xc]
      %v1965 = vld [vmem:[%s1931 + $0x24] sm:$0x3]
      %v1966 = vld [vmem:[%s1931 + $0x28] sm:$0xc]
      %v1967 = vld [vmem:[%s1931 + $0x2c] sm:$0x3]
      %v1968 = vld [vmem:[%s1931 + $0x30] sm:$0xc]
      %v1969 = vld [vmem:[%s1931 + $0x34] sm:$0x3]
      %v1970 = vld [vmem:[%s1931 + $0x38] sm:$0xc]
      %v1971 = vld [vmem:[%s1931 + $0x3c] sm:$0x3]
      %v1972 = vld [vmem:[%s1931] sm:$0x8]
      %v1973 = vld [vmem:[%s1931 + $0x4] sm:$0x7]
      %v1974 = vld [vmem:[%s1931 + $0x8] sm:$0x8]
      %v1975 = vld [vmem:[%s1931 + $0xc] sm:$0x7]
      %v1976 = vld [vmem:[%s1931 + $0x10] sm:$0x8]
      %v1977 = vld [vmem:[%s1931 + $0x14] sm:$0x7]
      %v1978 = vld [vmem:[%s1931 + $0x18] sm:$0x8]
      %v1979 = vld [vmem:[%s1931 + $0x1c] sm:$0x7]
      %v1980 = vld [vmem:[%s1931 + $0x20] sm:$0x8]
      %v1981 = vld [vmem:[%s1931 + $0x24] sm:$0x7]
      %v1982 = vld [vmem:[%s1931 + $0x28] sm:$0x8]
      %v1983 = vld [vmem:[%s1931 + $0x2c] sm:$0x7]
      %v1984 = vld [vmem:[%s1931 + $0x30] sm:$0x8]
      %v1985 = vld [vmem:[%s1931 + $0x34] sm:$0x7]
      %v1986 = vld [vmem:[%s1931 + $0x38] sm:$0x8]
      %v1987 = vld [vmem:[%s1931 + $0x3c] sm:$0x7]
      %v1988 = vld [vmem:[%s1931 + $0x4] sm:$0xf]
      %v1989 = vld [vmem:[%s1931 + $0xc] sm:$0xf]
      %v1990 = vld [vmem:[%s1931 + $0x14] sm:$0xf]
      %v1991 = vld [vmem:[%s1931 + $0x1c] sm:$0xf]
      %v1992 = vld [vmem:[%s1931 + $0x24] sm:$0xf]
      %v1993 = vld [vmem:[%s1931 + $0x2c] sm:$0xf]
      %v1994 = vld [vmem:[%s1931 + $0x34] sm:$0xf]
      %v1995 = vld [vmem:[%s1931 + $0x3c] sm:$0xf]
      %v2012 = vunpack.c.l.b16 %v1940
      %v2013 = vunpack.c.l.b16 %v1941
      %v2014 = vunpack.c.l.b16 %v1942
      %v2015 = vunpack.c.l.b16 %v1943
      %v2016 = vunpack.c.l.b16 %v1944
      %v2017 = vunpack.c.l.b16 %v1945
      %v2018 = vunpack.c.l.b16 %v1946
      %v2019 = vunpack.c.l.b16 %v1947
      %v2020 = vunpack.c.l.b16 %v1948
      %v2021 = vunpack.c.l.b16 %v1949
      %v2022 = vunpack.c.l.b16 %v1950
      %v2023 = vunpack.c.l.b16 %v1951
      %v2024 = vunpack.c.l.b16 %v1952
      %v2025 = vunpack.c.l.b16 %v1953
      %v2026 = vunpack.c.l.b16 %v1954
      %v2027 = vunpack.c.l.b16 %v1955
      %v2028 = vpack.c.b16 %v2013, %v2012
      %v2029 = vpack.c.b16 %v2015, %v2014
      %v2030 = vpack.c.b16 %v2017, %v2016
      %v2031 = vpack.c.b16 %v2019, %v2018
      %v2032 = vpack.c.b16 %v2021, %v2020
      %v2033 = vpack.c.b16 %v2023, %v2022
      %v2034 = vpack.c.b16 %v2025, %v2024
      %v2035 = vpack.c.b16 %v2027, %v2026
      %v2036 = vrot.slane %v2028, 1
      %v2037 = vrot.slane %v2029, 1
      %v2038 = vrot.slane %v2030, 1
      %v2039 = vrot.slane %v2031, 1
      %v2040 = vrot.slane %v2032, 1
      %v2041 = vrot.slane %v2033, 1
      %v2042 = vrot.slane %v2034, 1
      %v2043 = vrot.slane %v2035, 1
      %2044 = vrot.lane.b32.xlu0 %v2036, 8
      %v2045 = vpop.permute.xlu0 %2044
      %2046 = vrot.lane.b32.xlu0 %v2037, 8
      %v2047 = vpop.permute.xlu0 %2046
      %2048 = vrot.lane.b32.xlu0 %v2038, 8
      %v2049 = vpop.permute.xlu0 %2048
      %2050 = vrot.lane.b32.xlu0 %v2039, 8
      %v2051 = vpop.permute.xlu0 %2050
      %2052 = vrot.lane.b32.xlu0 %v2040, 8
      %v2053 = vpop.permute.xlu0 %2052
      %2054 = vrot.lane.b32.xlu0 %v2041, 8
      %v2055 = vpop.permute.xlu0 %2054
      %2056 = vrot.lane.b32.xlu0 %v2042, 8
      %v2057 = vpop.permute.xlu0 %2056
      %2058 = vrot.lane.b32.xlu0 %v2043, 8
      %v2059 = vpop.permute.xlu0 %2058
      %v2076 = vunpack.c.l.b16 %v1956
      %v2077 = vunpack.c.l.b16 %v1957
      %v2078 = vunpack.c.l.b16 %v1958
      %v2079 = vunpack.c.l.b16 %v1959
      %v2080 = vunpack.c.l.b16 %v1960
      %v2081 = vunpack.c.l.b16 %v1961
      %v2082 = vunpack.c.l.b16 %v1962
      %v2083 = vunpack.c.l.b16 %v1963
      %v2084 = vunpack.c.l.b16 %v1964
      %v2085 = vunpack.c.l.b16 %v1965
      %v2086 = vunpack.c.l.b16 %v1966
      %v2087 = vunpack.c.l.b16 %v1967
      %v2088 = vunpack.c.l.b16 %v1968
      %v2089 = vunpack.c.l.b16 %v1969
      %v2090 = vunpack.c.l.b16 %v1970
      %v2091 = vunpack.c.l.b16 %v1971
      %v2092 = vpack.c.b16 %v2077, %v2076
      %v2093 = vpack.c.b16 %v2079, %v2078
      %v2094 = vpack.c.b16 %v2081, %v2080
      %v2095 = vpack.c.b16 %v2083, %v2082
      %v2096 = vpack.c.b16 %v2085, %v2084
      %v2097 = vpack.c.b16 %v2087, %v2086
      %v2098 = vpack.c.b16 %v2089, %v2088
      %v2099 = vpack.c.b16 %v2091, %v2090
      %v2100 = vrot.slane %v2092, 2
      %v2101 = vrot.slane %v2093, 2
      %v2102 = vrot.slane %v2094, 2
      %v2103 = vrot.slane %v2095, 2
      %v2104 = vrot.slane %v2096, 2
      %v2105 = vrot.slane %v2097, 2
      %v2106 = vrot.slane %v2098, 2
      %v2107 = vrot.slane %v2099, 2
      %2108 = vrot.lane.b32.xlu0 %v2100, 16
      %v2109 = vpop.permute.xlu0 %2108
      %2110 = vrot.lane.b32.xlu0 %v2101, 16
      %v2111 = vpop.permute.xlu0 %2110
      %2112 = vrot.lane.b32.xlu0 %v2102, 16
      %v2113 = vpop.permute.xlu0 %2112
      %2114 = vrot.lane.b32.xlu0 %v2103, 16
      %v2115 = vpop.permute.xlu0 %2114
      %2116 = vrot.lane.b32.xlu0 %v2104, 16
      %v2117 = vpop.permute.xlu0 %2116
      %2118 = vrot.lane.b32.xlu0 %v2105, 16
      %v2119 = vpop.permute.xlu0 %2118
      %2120 = vrot.lane.b32.xlu0 %v2106, 16
      %v2121 = vpop.permute.xlu0 %2120
      %2122 = vrot.lane.b32.xlu0 %v2107, 16
      %v2123 = vpop.permute.xlu0 %2122
      %v2140 = vunpack.c.l.b16 %v1972
      %v2141 = vunpack.c.l.b16 %v1973
      %v2142 = vunpack.c.l.b16 %v1974
      %v2143 = vunpack.c.l.b16 %v1975
      %v2144 = vunpack.c.l.b16 %v1976
      %v2145 = vunpack.c.l.b16 %v1977
      %v2146 = vunpack.c.l.b16 %v1978
      %v2147 = vunpack.c.l.b16 %v1979
      %v2148 = vunpack.c.l.b16 %v1980
      %v2149 = vunpack.c.l.b16 %v1981
      %v2150 = vunpack.c.l.b16 %v1982
      %v2151 = vunpack.c.l.b16 %v1983
      %v2152 = vunpack.c.l.b16 %v1984
      %v2153 = vunpack.c.l.b16 %v1985
      %v2154 = vunpack.c.l.b16 %v1986
      %v2155 = vunpack.c.l.b16 %v1987
      %v2156 = vpack.c.b16 %v2141, %v2140
      %v2157 = vpack.c.b16 %v2143, %v2142
      %v2158 = vpack.c.b16 %v2145, %v2144
      %v2159 = vpack.c.b16 %v2147, %v2146
      %v2160 = vpack.c.b16 %v2149, %v2148
      %v2161 = vpack.c.b16 %v2151, %v2150
      %v2162 = vpack.c.b16 %v2153, %v2152
      %v2163 = vpack.c.b16 %v2155, %v2154
      %v2164 = vrot.slane %v2156, 3
      %v2165 = vrot.slane %v2157, 3
      %v2166 = vrot.slane %v2158, 3
      %v2167 = vrot.slane %v2159, 3
      %v2168 = vrot.slane %v2160, 3
      %v2169 = vrot.slane %v2161, 3
      %v2170 = vrot.slane %v2162, 3
      %v2171 = vrot.slane %v2163, 3
      %2172 = vrot.lane.b32.xlu0 %v2164, 24
      %v2173 = vpop.permute.xlu0 %2172
      %2174 = vrot.lane.b32.xlu0 %v2165, 24
      %v2175 = vpop.permute.xlu0 %2174
      %2176 = vrot.lane.b32.xlu0 %v2166, 24
      %v2177 = vpop.permute.xlu0 %2176
      %2178 = vrot.lane.b32.xlu0 %v2167, 24
      %v2179 = vpop.permute.xlu0 %2178
      %2180 = vrot.lane.b32.xlu0 %v2168, 24
      %v2181 = vpop.permute.xlu0 %2180
      %2182 = vrot.lane.b32.xlu0 %v2169, 24
      %v2183 = vpop.permute.xlu0 %2182
      %2184 = vrot.lane.b32.xlu0 %v2170, 24
      %v2185 = vpop.permute.xlu0 %2184
      %2186 = vrot.lane.b32.xlu0 %v2171, 24
      %v2187 = vpop.permute.xlu0 %2186
      %v2196 = vunpack.c.l.b16 %v1988
      %v2197 = vunpack.c.l.b16 %v1989
      %v2198 = vunpack.c.l.b16 %v1990
      %v2199 = vunpack.c.l.b16 %v1991
      %v2200 = vunpack.c.l.b16 %v1992
      %v2201 = vunpack.c.l.b16 %v1993
      %v2202 = vunpack.c.l.b16 %v1994
      %v2203 = vunpack.c.l.b16 %v1995
      %v2204 = vpack.c.b16 %v2196, %v2196
      %v2205 = vpack.c.b16 %v2197, %v2197
      %v2206 = vpack.c.b16 %v2198, %v2198
      %v2207 = vpack.c.b16 %v2199, %v2199
      %v2208 = vpack.c.b16 %v2200, %v2200
      %v2209 = vpack.c.b16 %v2201, %v2201
      %v2210 = vpack.c.b16 %v2202, %v2202
      %v2211 = vpack.c.b16 %v2203, %v2203
      %2212 = vrot.lane.b32.xlu0 %v2204, 32
      %v2213 = vpop.permute.xlu0 %2212
      %2214 = vrot.lane.b32.xlu0 %v2205, 32
      %v2215 = vpop.permute.xlu0 %2214
      %2216 = vrot.lane.b32.xlu0 %v2206, 32
      %v2217 = vpop.permute.xlu0 %2216
      %2218 = vrot.lane.b32.xlu0 %v2207, 32
      %v2219 = vpop.permute.xlu0 %2218
      %2220 = vrot.lane.b32.xlu0 %v2208, 32
      %v2221 = vpop.permute.xlu0 %2220
      %2222 = vrot.lane.b32.xlu0 %v2209, 32
      %v2223 = vpop.permute.xlu0 %2222
      %2224 = vrot.lane.b32.xlu0 %v2210, 32
      %v2225 = vpop.permute.xlu0 %2224
      %2226 = vrot.lane.b32.xlu0 %v2211, 32
      %v2227 = vpop.permute.xlu0 %2226
      %v2230 = vsel %vm746, %v1932, %v2045
      %v2233 = vsel %vm746, %v1933, %v2047
      %v2236 = vsel %vm746, %v1934, %v2049
      %v2239 = vsel %vm746, %v1935, %v2051
      %v2242 = vsel %vm746, %v1936, %v2053
      %v2245 = vsel %vm746, %v1937, %v2055
      %v2248 = vsel %vm746, %v1938, %v2057
      %v2251 = vsel %vm746, %v1939, %v2059
      %v2253 = vsel %vm771, %v2230, %v2109
      %v2255 = vsel %vm771, %v2233, %v2111
      %v2257 = vsel %vm771, %v2236, %v2113
      %v2259 = vsel %vm771, %v2239, %v2115
      %v2261 = vsel %vm771, %v2242, %v2117
      %v2263 = vsel %vm771, %v2245, %v2119
      %v2265 = vsel %vm771, %v2248, %v2121
      %v2267 = vsel %vm771, %v2251, %v2123
      %v2269 = vsel %vm788, %v2253, %v2173
      %v2271 = vsel %vm788, %v2255, %v2175
      %v2273 = vsel %vm788, %v2257, %v2177
      %v2275 = vsel %vm788, %v2259, %v2179
      %v2277 = vsel %vm788, %v2261, %v2181
      %v2279 = vsel %vm788, %v2263, %v2183
      %v2281 = vsel %vm788, %v2265, %v2185
      %v2283 = vsel %vm788, %v2267, %v2187
      %v2285 = vsel %vm805, %v2269, %v2213
      %v2287 = vsel %vm805, %v2271, %v2215
      %v2289 = vsel %vm805, %v2273, %v2217
      %v2291 = vsel %vm805, %v2275, %v2219
      %v2293 = vsel %vm805, %v2277, %v2221
      %v2295 = vsel %vm805, %v2279, %v2223
      %v2297 = vsel %vm805, %v2281, %v2225
      %v2299 = vsel %vm805, %v2283, %v2227
      %s2300 = scalar_lea.vmem %s274, 60
      %v2301 = vld [vmem:[%s2300] sm:$0xf]
      %v2302 = vld [vmem:[%s2300 + $0x4] sm:$0xf]
      %v2303 = vld [vmem:[%s2300 + $0x8] sm:$0xf]
      %v2304 = vld [vmem:[%s2300 + $0xc] sm:$0xf]
      %v2305 = vld [vmem:[%s2300 + $0x10] sm:$0xf]
      %v2314 = vunpack.c.l.b16 %v2285
      %v2315 = vunpack.c.l.b16 %v2287
      %v2316 = vunpack.c.l.b16 %v2289
      %v2317 = vunpack.c.l.b16 %v2291
      %v2318 = vunpack.c.l.b16 %v2293
      %v2319 = vunpack.c.l.b16 %v2295
      %v2320 = vunpack.c.l.b16 %v2297
      %v2321 = vunpack.c.l.b16 %v2299
      %v2322 = vpack.c.b16 %v2315, %v2314
      %v2323 = vpack.c.b16 %v2317, %v2316
      %v2324 = vpack.c.b16 %v2319, %v2318
      %v2325 = vpack.c.b16 %v2321, %v2320
      %v2331 = vunpack.c.l.b16 %v2301
      %v2332 = vunpack.c.l.b16 %v2302
      %v2333 = vunpack.c.l.b16 %v2303
      %v2334 = vunpack.c.l.b16 %v2304
      %v2335 = vunpack.c.l.b16 %v2305
      %v2336 = vpack.c.b16 %v2332, %v2331
      %v2337 = vpack.c.b16 %v2334, %v2333
      %v2338 = vpack.c.b16 %v2335, %v2335
      %v2342 = vsel %vm1237, %v2322, 0
      %v2345 = vsel %vm1237, %v2323, 0
      %v2348 = vsel %vm1237, %v2324, 0
      %v2351 = vsel %vm1237, %v2325, 0
      %v2354 = vsel %vm1250, %v2338, 0
      %2356 = vmatprep.subr.bf16.mxu0 0
      %2357 = vmatpush1.bf16.msra.mxu0 0
      %2358 = vmatprep.subr.bf16.mxu0 0
      %2359 = vmatpush1.bf16.msra.mxu0 0
      %2360 = vmatprep.subr.bf16.mxu0 0
      %2361 = vmatpush1.bf16.msra.mxu0 0
      %2362 = vmatprep.subr.bf16.mxu0 0
      %2363 = vmatpush1.bf16.msra.mxu0 0
      %2364 = vmatprep.subr.bf16.mxu0 0
      %2365 = vmatpush1.bf16.msra.mxu0 0
      %2366 = vmatprep.subr.bf16.mxu0 0
      %2367 = vmatpush1.bf16.msra.mxu0 %v2354
      %2368 = vmatprep.subr.bf16.mxu0 0
      %2369 = vmatpush1.bf16.msra.mxu0 %v2337
      %2370 = vmatprep.subr.bf16.mxu0 0
      %2371 = vmatpush1.bf16.msra.mxu0 %v2336
      %2372 = vmatprep.subr.bf16.mxu0 0
      %2373 = vmatpush2.bf16.msra.mxu0 0
      %2374 = vmatprep.subr.bf16.mxu0 0
      %2375 = vmatpush2.bf16.msra.mxu0 0
      %2376 = vmatprep.subr.bf16.mxu0 0
      %2377 = vmatpush2.bf16.msra.mxu0 0
      %2378 = vmatprep.subr.bf16.mxu0 0
      %2379 = vmatpush2.bf16.msra.mxu0 0
      %2380 = vmatprep.subr.bf16.mxu0 0
      %2381 = vmatpush2.bf16.msra.mxu0 0
      %2382 = vmatprep.subr.bf16.mxu0 0
      %2383 = vmatpush2.bf16.msra.mxu0 0
      %2384 = vmatprep.subr.bf16.mxu0 0
      %2385 = vmatpush2.bf16.msra.mxu0 0
      %2386 = vmatprep.subr.bf16.mxu0 0
      %2387 = vmatpush2.bf16.msra.mxu0 0
      %2388 = vmatprep.mubr.bf16.mxu0 0
      %2389 = vmatmul.mubr.bf16.gmra.mxu0 %v2342
      %v2390 = vpop.f32.mrf.mxu0
      %v2391 = vadd.f32 0.0, %v2390
      %v2392 = vpop.f32.mrf.mxu0
      %v2393 = vpop.f32.mrf.mxu0
      %v2394 = vadd.f32 0.0, %v2393
      %v2395 = vpop.f32.mrf.mxu0
      %2396 = vmatprep.mubr.bf16.mxu0 0
      %2397 = vmatmul.mubr.bf16.gmra.mxu0 %v2345
      %v2398 = vpop.f32.mrf.mxu0
      %v2399 = vadd.f32 0.0, %v2398
      %v2400 = vpop.f32.mrf.mxu0
      %v2401 = vpop.f32.mrf.mxu0
      %v2402 = vadd.f32 0.0, %v2401
      %v2403 = vpop.f32.mrf.mxu0
      %2404 = vmatprep.mubr.bf16.mxu0 0
      %2405 = vmatmul.mubr.bf16.gmra.mxu0 %v2348
      %v2406 = vpop.f32.mrf.mxu0
      %v2407 = vadd.f32 0.0, %v2406
      %v2408 = vpop.f32.mrf.mxu0
      %v2409 = vpop.f32.mrf.mxu0
      %v2410 = vadd.f32 0.0, %v2409
      %v2411 = vpop.f32.mrf.mxu0
      %2412 = vmatprep.mubr.bf16.mxu0 0
      %2413 = vmatmul.mubr.bf16.gmra.mxu0 %v2351
      %v2414 = vpop.f32.mrf.mxu0
      %v2415 = vadd.f32 0.0, %v2414
      %v2416 = vpop.f32.mrf.mxu0
      %v2417 = vpop.f32.mrf.mxu0
      %v2418 = vadd.f32 0.0, %v2417
      %v2419 = vpop.f32.mrf.mxu0
      %2420 = vdwg.mxu0
      %v2421 = vadd.f32 %v1923, %v2391
      %v2422 = vadd.f32 %v1924, %v2394
      %v2423 = vadd.f32 %v1925, %v2399
      %v2424 = vadd.f32 %v1926, %v2402
      %v2425 = vadd.f32 %v1927, %v2407
      %v2426 = vadd.f32 %v1928, %v2410
      %v2427 = vadd.f32 %v1929, %v2415
      %v2428 = vadd.f32 %v1930, %v2418
      %s2429 = scalar_lea.vmem [#allocation2], 64
      %v2430 = vld [vmem:[%s2429] sm:$0xf]
      %v2431 = vld [vmem:[%s2429 + $0x8] sm:$0xf]
      %v2432 = vld [vmem:[%s2429 + $0x10] sm:$0xf]
      %v2433 = vld [vmem:[%s2429 + $0x18] sm:$0xf]
      %v2434 = vld [vmem:[%s2429 + $0x20] sm:$0xf]
      %v2435 = vld [vmem:[%s2429 + $0x28] sm:$0xf]
      %v2436 = vld [vmem:[%s2429 + $0x30] sm:$0xf]
      %v2437 = vld [vmem:[%s2429 + $0x38] sm:$0xf]
      %v2438 = vld [vmem:[%s2429] sm:$0xe]
      %v2439 = vld [vmem:[%s2429 + $0x4] sm:$0x1]
      %v2440 = vld [vmem:[%s2429 + $0x8] sm:$0xe]
      %v2441 = vld [vmem:[%s2429 + $0xc] sm:$0x1]
      %v2442 = vld [vmem:[%s2429 + $0x10] sm:$0xe]
      %v2443 = vld [vmem:[%s2429 + $0x14] sm:$0x1]
      %v2444 = vld [vmem:[%s2429 + $0x18] sm:$0xe]
      %v2445 = vld [vmem:[%s2429 + $0x1c] sm:$0x1]
      %v2446 = vld [vmem:[%s2429 + $0x20] sm:$0xe]
      %v2447 = vld [vmem:[%s2429 + $0x24] sm:$0x1]
      %v2448 = vld [vmem:[%s2429 + $0x28] sm:$0xe]
      %v2449 = vld [vmem:[%s2429 + $0x2c] sm:$0x1]
      %v2450 = vld [vmem:[%s2429 + $0x30] sm:$0xe]
      %v2451 = vld [vmem:[%s2429 + $0x34] sm:$0x1]
      %v2452 = vld [vmem:[%s2429 + $0x38] sm:$0xe]
      %v2453 = vld [vmem:[%s2429 + $0x3c] sm:$0x1]
      %v2454 = vld [vmem:[%s2429] sm:$0xc]
      %v2455 = vld [vmem:[%s2429 + $0x4] sm:$0x3]
      %v2456 = vld [vmem:[%s2429 + $0x8] sm:$0xc]
      %v2457 = vld [vmem:[%s2429 + $0xc] sm:$0x3]
      %v2458 = vld [vmem:[%s2429 + $0x10] sm:$0xc]
      %v2459 = vld [vmem:[%s2429 + $0x14] sm:$0x3]
      %v2460 = vld [vmem:[%s2429 + $0x18] sm:$0xc]
      %v2461 = vld [vmem:[%s2429 + $0x1c] sm:$0x3]
      %v2462 = vld [vmem:[%s2429 + $0x20] sm:$0xc]
      %v2463 = vld [vmem:[%s2429 + $0x24] sm:$0x3]
      %v2464 = vld [vmem:[%s2429 + $0x28] sm:$0xc]
      %v2465 = vld [vmem:[%s2429 + $0x2c] sm:$0x3]
      %v2466 = vld [vmem:[%s2429 + $0x30] sm:$0xc]
      %v2467 = vld [vmem:[%s2429 + $0x34] sm:$0x3]
      %v2468 = vld [vmem:[%s2429 + $0x38] sm:$0xc]
      %v2469 = vld [vmem:[%s2429 + $0x3c] sm:$0x3]
      %v2470 = vld [vmem:[%s2429] sm:$0x8]
      %v2471 = vld [vmem:[%s2429 + $0x4] sm:$0x7]
      %v2472 = vld [vmem:[%s2429 + $0x8] sm:$0x8]
      %v2473 = vld [vmem:[%s2429 + $0xc] sm:$0x7]
      %v2474 = vld [vmem:[%s2429 + $0x10] sm:$0x8]
      %v2475 = vld [vmem:[%s2429 + $0x14] sm:$0x7]
      %v2476 = vld [vmem:[%s2429 + $0x18] sm:$0x8]
      %v2477 = vld [vmem:[%s2429 + $0x1c] sm:$0x7]
      %v2478 = vld [vmem:[%s2429 + $0x20] sm:$0x8]
      %v2479 = vld [vmem:[%s2429 + $0x24] sm:$0x7]
      %v2480 = vld [vmem:[%s2429 + $0x28] sm:$0x8]
      %v2481 = vld [vmem:[%s2429 + $0x2c] sm:$0x7]
      %v2482 = vld [vmem:[%s2429 + $0x30] sm:$0x8]
      %v2483 = vld [vmem:[%s2429 + $0x34] sm:$0x7]
      %v2484 = vld [vmem:[%s2429 + $0x38] sm:$0x8]
      %v2485 = vld [vmem:[%s2429 + $0x3c] sm:$0x7]
      %v2486 = vld [vmem:[%s2429 + $0x4] sm:$0xf]
      %v2487 = vld [vmem:[%s2429 + $0xc] sm:$0xf]
      %v2488 = vld [vmem:[%s2429 + $0x14] sm:$0xf]
      %v2489 = vld [vmem:[%s2429 + $0x1c] sm:$0xf]
      %v2490 = vld [vmem:[%s2429 + $0x24] sm:$0xf]
      %v2491 = vld [vmem:[%s2429 + $0x2c] sm:$0xf]
      %v2492 = vld [vmem:[%s2429 + $0x34] sm:$0xf]
      %v2493 = vld [vmem:[%s2429 + $0x3c] sm:$0xf]
      %v2510 = vunpack.c.l.b16 %v2438
      %v2511 = vunpack.c.l.b16 %v2439
      %v2512 = vunpack.c.l.b16 %v2440
      %v2513 = vunpack.c.l.b16 %v2441
      %v2514 = vunpack.c.l.b16 %v2442
      %v2515 = vunpack.c.l.b16 %v2443
      %v2516 = vunpack.c.l.b16 %v2444
      %v2517 = vunpack.c.l.b16 %v2445
      %v2518 = vunpack.c.l.b16 %v2446
      %v2519 = vunpack.c.l.b16 %v2447
      %v2520 = vunpack.c.l.b16 %v2448
      %v2521 = vunpack.c.l.b16 %v2449
      %v2522 = vunpack.c.l.b16 %v2450
      %v2523 = vunpack.c.l.b16 %v2451
      %v2524 = vunpack.c.l.b16 %v2452
      %v2525 = vunpack.c.l.b16 %v2453
      %v2526 = vpack.c.b16 %v2511, %v2510
      %v2527 = vpack.c.b16 %v2513, %v2512
      %v2528 = vpack.c.b16 %v2515, %v2514
      %v2529 = vpack.c.b16 %v2517, %v2516
      %v2530 = vpack.c.b16 %v2519, %v2518
      %v2531 = vpack.c.b16 %v2521, %v2520
      %v2532 = vpack.c.b16 %v2523, %v2522
      %v2533 = vpack.c.b16 %v2525, %v2524
      %v2534 = vrot.slane %v2526, 1
      %v2535 = vrot.slane %v2527, 1
      %v2536 = vrot.slane %v2528, 1
      %v2537 = vrot.slane %v2529, 1
      %v2538 = vrot.slane %v2530, 1
      %v2539 = vrot.slane %v2531, 1
      %v2540 = vrot.slane %v2532, 1
      %v2541 = vrot.slane %v2533, 1
      %2542 = vrot.lane.b32.xlu0 %v2534, 8
      %v2543 = vpop.permute.xlu0 %2542
      %2544 = vrot.lane.b32.xlu0 %v2535, 8
      %v2545 = vpop.permute.xlu0 %2544
      %2546 = vrot.lane.b32.xlu0 %v2536, 8
      %v2547 = vpop.permute.xlu0 %2546
      %2548 = vrot.lane.b32.xlu0 %v2537, 8
      %v2549 = vpop.permute.xlu0 %2548
      %2550 = vrot.lane.b32.xlu0 %v2538, 8
      %v2551 = vpop.permute.xlu0 %2550
      %2552 = vrot.lane.b32.xlu0 %v2539, 8
      %v2553 = vpop.permute.xlu0 %2552
      %2554 = vrot.lane.b32.xlu0 %v2540, 8
      %v2555 = vpop.permute.xlu0 %2554
      %2556 = vrot.lane.b32.xlu0 %v2541, 8
      %v2557 = vpop.permute.xlu0 %2556
      %v2574 = vunpack.c.l.b16 %v2454
      %v2575 = vunpack.c.l.b16 %v2455
      %v2576 = vunpack.c.l.b16 %v2456
      %v2577 = vunpack.c.l.b16 %v2457
      %v2578 = vunpack.c.l.b16 %v2458
      %v2579 = vunpack.c.l.b16 %v2459
      %v2580 = vunpack.c.l.b16 %v2460
      %v2581 = vunpack.c.l.b16 %v2461
      %v2582 = vunpack.c.l.b16 %v2462
      %v2583 = vunpack.c.l.b16 %v2463
      %v2584 = vunpack.c.l.b16 %v2464
      %v2585 = vunpack.c.l.b16 %v2465
      %v2586 = vunpack.c.l.b16 %v2466
      %v2587 = vunpack.c.l.b16 %v2467
      %v2588 = vunpack.c.l.b16 %v2468
      %v2589 = vunpack.c.l.b16 %v2469
      %v2590 = vpack.c.b16 %v2575, %v2574
      %v2591 = vpack.c.b16 %v2577, %v2576
      %v2592 = vpack.c.b16 %v2579, %v2578
      %v2593 = vpack.c.b16 %v2581, %v2580
      %v2594 = vpack.c.b16 %v2583, %v2582
      %v2595 = vpack.c.b16 %v2585, %v2584
      %v2596 = vpack.c.b16 %v2587, %v2586
      %v2597 = vpack.c.b16 %v2589, %v2588
      %v2598 = vrot.slane %v2590, 2
      %v2599 = vrot.slane %v2591, 2
      %v2600 = vrot.slane %v2592, 2
      %v2601 = vrot.slane %v2593, 2
      %v2602 = vrot.slane %v2594, 2
      %v2603 = vrot.slane %v2595, 2
      %v2604 = vrot.slane %v2596, 2
      %v2605 = vrot.slane %v2597, 2
      %2606 = vrot.lane.b32.xlu0 %v2598, 16
      %v2607 = vpop.permute.xlu0 %2606
      %2608 = vrot.lane.b32.xlu0 %v2599, 16
      %v2609 = vpop.permute.xlu0 %2608
      %2610 = vrot.lane.b32.xlu0 %v2600, 16
      %v2611 = vpop.permute.xlu0 %2610
      %2612 = vrot.lane.b32.xlu0 %v2601, 16
      %v2613 = vpop.permute.xlu0 %2612
      %2614 = vrot.lane.b32.xlu0 %v2602, 16
      %v2615 = vpop.permute.xlu0 %2614
      %2616 = vrot.lane.b32.xlu0 %v2603, 16
      %v2617 = vpop.permute.xlu0 %2616
      %2618 = vrot.lane.b32.xlu0 %v2604, 16
      %v2619 = vpop.permute.xlu0 %2618
      %2620 = vrot.lane.b32.xlu0 %v2605, 16
      %v2621 = vpop.permute.xlu0 %2620
      %v2638 = vunpack.c.l.b16 %v2470
      %v2639 = vunpack.c.l.b16 %v2471
      %v2640 = vunpack.c.l.b16 %v2472
      %v2641 = vunpack.c.l.b16 %v2473
      %v2642 = vunpack.c.l.b16 %v2474
      %v2643 = vunpack.c.l.b16 %v2475
      %v2644 = vunpack.c.l.b16 %v2476
      %v2645 = vunpack.c.l.b16 %v2477
      %v2646 = vunpack.c.l.b16 %v2478
      %v2647 = vunpack.c.l.b16 %v2479
      %v2648 = vunpack.c.l.b16 %v2480
      %v2649 = vunpack.c.l.b16 %v2481
      %v2650 = vunpack.c.l.b16 %v2482
      %v2651 = vunpack.c.l.b16 %v2483
      %v2652 = vunpack.c.l.b16 %v2484
      %v2653 = vunpack.c.l.b16 %v2485
      %v2654 = vpack.c.b16 %v2639, %v2638
      %v2655 = vpack.c.b16 %v2641, %v2640
      %v2656 = vpack.c.b16 %v2643, %v2642
      %v2657 = vpack.c.b16 %v2645, %v2644
      %v2658 = vpack.c.b16 %v2647, %v2646
      %v2659 = vpack.c.b16 %v2649, %v2648
      %v2660 = vpack.c.b16 %v2651, %v2650
      %v2661 = vpack.c.b16 %v2653, %v2652
      %v2662 = vrot.slane %v2654, 3
      %v2663 = vrot.slane %v2655, 3
      %v2664 = vrot.slane %v2656, 3
      %v2665 = vrot.slane %v2657, 3
      %v2666 = vrot.slane %v2658, 3
      %v2667 = vrot.slane %v2659, 3
      %v2668 = vrot.slane %v2660, 3
      %v2669 = vrot.slane %v2661, 3
      %2670 = vrot.lane.b32.xlu0 %v2662, 24
      %v2671 = vpop.permute.xlu0 %2670
      %2672 = vrot.lane.b32.xlu0 %v2663, 24
      %v2673 = vpop.permute.xlu0 %2672
      %2674 = vrot.lane.b32.xlu0 %v2664, 24
      %v2675 = vpop.permute.xlu0 %2674
      %2676 = vrot.lane.b32.xlu0 %v2665, 24
      %v2677 = vpop.permute.xlu0 %2676
      %2678 = vrot.lane.b32.xlu0 %v2666, 24
      %v2679 = vpop.permute.xlu0 %2678
      %2680 = vrot.lane.b32.xlu0 %v2667, 24
      %v2681 = vpop.permute.xlu0 %2680
      %2682 = vrot.lane.b32.xlu0 %v2668, 24
      %v2683 = vpop.permute.xlu0 %2682
      %2684 = vrot.lane.b32.xlu0 %v2669, 24
      %v2685 = vpop.permute.xlu0 %2684
      %v2694 = vunpack.c.l.b16 %v2486
      %v2695 = vunpack.c.l.b16 %v2487
      %v2696 = vunpack.c.l.b16 %v2488
      %v2697 = vunpack.c.l.b16 %v2489
      %v2698 = vunpack.c.l.b16 %v2490
      %v2699 = vunpack.c.l.b16 %v2491
      %v2700 = vunpack.c.l.b16 %v2492
      %v2701 = vunpack.c.l.b16 %v2493
      %v2702 = vpack.c.b16 %v2694, %v2694
      %v2703 = vpack.c.b16 %v2695, %v2695
      %v2704 = vpack.c.b16 %v2696, %v2696
      %v2705 = vpack.c.b16 %v2697, %v2697
      %v2706 = vpack.c.b16 %v2698, %v2698
      %v2707 = vpack.c.b16 %v2699, %v2699
      %v2708 = vpack.c.b16 %v2700, %v2700
      %v2709 = vpack.c.b16 %v2701, %v2701
      %2710 = vrot.lane.b32.xlu0 %v2702, 32
      %v2711 = vpop.permute.xlu0 %2710
      %2712 = vrot.lane.b32.xlu0 %v2703, 32
      %v2713 = vpop.permute.xlu0 %2712
      %2714 = vrot.lane.b32.xlu0 %v2704, 32
      %v2715 = vpop.permute.xlu0 %2714
      %2716 = vrot.lane.b32.xlu0 %v2705, 32
      %v2717 = vpop.permute.xlu0 %2716
      %2718 = vrot.lane.b32.xlu0 %v2706, 32
      %v2719 = vpop.permute.xlu0 %2718
      %2720 = vrot.lane.b32.xlu0 %v2707, 32
      %v2721 = vpop.permute.xlu0 %2720
      %2722 = vrot.lane.b32.xlu0 %v2708, 32
      %v2723 = vpop.permute.xlu0 %2722
      %2724 = vrot.lane.b32.xlu0 %v2709, 32
      %v2725 = vpop.permute.xlu0 %2724
      %v2728 = vsel %vm746, %v2430, %v2543
      %v2731 = vsel %vm746, %v2431, %v2545
      %v2734 = vsel %vm746, %v2432, %v2547
      %v2737 = vsel %vm746, %v2433, %v2549
      %v2740 = vsel %vm746, %v2434, %v2551
      %v2743 = vsel %vm746, %v2435, %v2553
      %v2746 = vsel %vm746, %v2436, %v2555
      %v2749 = vsel %vm746, %v2437, %v2557
      %v2751 = vsel %vm771, %v2728, %v2607
      %v2753 = vsel %vm771, %v2731, %v2609
      %v2755 = vsel %vm771, %v2734, %v2611
      %v2757 = vsel %vm771, %v2737, %v2613
      %v2759 = vsel %vm771, %v2740, %v2615
      %v2761 = vsel %vm771, %v2743, %v2617
      %v2763 = vsel %vm771, %v2746, %v2619
      %v2765 = vsel %vm771, %v2749, %v2621
      %v2767 = vsel %vm788, %v2751, %v2671
      %v2769 = vsel %vm788, %v2753, %v2673
      %v2771 = vsel %vm788, %v2755, %v2675
      %v2773 = vsel %vm788, %v2757, %v2677
      %v2775 = vsel %vm788, %v2759, %v2679
      %v2777 = vsel %vm788, %v2761, %v2681
      %v2779 = vsel %vm788, %v2763, %v2683
      %v2781 = vsel %vm788, %v2765, %v2685
      %v2783 = vsel %vm805, %v2767, %v2711
      %v2785 = vsel %vm805, %v2769, %v2713
      %v2787 = vsel %vm805, %v2771, %v2715
      %v2789 = vsel %vm805, %v2773, %v2717
      %v2791 = vsel %vm805, %v2775, %v2719
      %v2793 = vsel %vm805, %v2777, %v2721
      %v2795 = vsel %vm805, %v2779, %v2723
      %v2797 = vsel %vm805, %v2781, %v2725
      %s2798 = scalar_lea.vmem %s274, 80
      %v2799 = vld [vmem:[%s2798] sm:$0xf]
      %v2800 = vld [vmem:[%s2798 + $0x4] sm:$0xf]
      %v2801 = vld [vmem:[%s2798 + $0x8] sm:$0xf]
      %v2802 = vld [vmem:[%s2798 + $0xc] sm:$0xf]
      %v2803 = vld [vmem:[%s2798 + $0x10] sm:$0xf]
      %v2812 = vunpack.c.l.b16 %v2783
      %v2813 = vunpack.c.l.b16 %v2785
      %v2814 = vunpack.c.l.b16 %v2787
      %v2815 = vunpack.c.l.b16 %v2789
      %v2816 = vunpack.c.l.b16 %v2791
      %v2817 = vunpack.c.l.b16 %v2793
      %v2818 = vunpack.c.l.b16 %v2795
      %v2819 = vunpack.c.l.b16 %v2797
      %v2820 = vpack.c.b16 %v2813, %v2812
      %v2821 = vpack.c.b16 %v2815, %v2814
      %v2822 = vpack.c.b16 %v2817, %v2816
      %v2823 = vpack.c.b16 %v2819, %v2818
      %v2829 = vunpack.c.l.b16 %v2799
      %v2830 = vunpack.c.l.b16 %v2800
      %v2831 = vunpack.c.l.b16 %v2801
      %v2832 = vunpack.c.l.b16 %v2802
      %v2833 = vunpack.c.l.b16 %v2803
      %v2834 = vpack.c.b16 %v2830, %v2829
      %v2835 = vpack.c.b16 %v2832, %v2831
      %v2836 = vpack.c.b16 %v2833, %v2833
      %v2840 = vsel %vm1237, %v2820, 0
      %v2843 = vsel %vm1237, %v2821, 0
      %v2846 = vsel %vm1237, %v2822, 0
      %v2849 = vsel %vm1237, %v2823, 0
      %v2852 = vsel %vm1250, %v2836, 0
      %2854 = vmatprep.subr.bf16.mxu0 0
      %2855 = vmatpush1.bf16.msra.mxu0 0
      %2856 = vmatprep.subr.bf16.mxu0 0
      %2857 = vmatpush1.bf16.msra.mxu0 0
      %2858 = vmatprep.subr.bf16.mxu0 0
      %2859 = vmatpush1.bf16.msra.mxu0 0
      %2860 = vmatprep.subr.bf16.mxu0 0
      %2861 = vmatpush1.bf16.msra.mxu0 0
      %2862 = vmatprep.subr.bf16.mxu0 0
      %2863 = vmatpush1.bf16.msra.mxu0 0
      %2864 = vmatprep.subr.bf16.mxu0 0
      %2865 = vmatpush1.bf16.msra.mxu0 %v2852
      %2866 = vmatprep.subr.bf16.mxu0 0
      %2867 = vmatpush1.bf16.msra.mxu0 %v2835
      %2868 = vmatprep.subr.bf16.mxu0 0
      %2869 = vmatpush1.bf16.msra.mxu0 %v2834
      %2870 = vmatprep.subr.bf16.mxu0 0
      %2871 = vmatpush2.bf16.msra.mxu0 0
      %2872 = vmatprep.subr.bf16.mxu0 0
      %2873 = vmatpush2.bf16.msra.mxu0 0
      %2874 = vmatprep.subr.bf16.mxu0 0
      %2875 = vmatpush2.bf16.msra.mxu0 0
      %2876 = vmatprep.subr.bf16.mxu0 0
      %2877 = vmatpush2.bf16.msra.mxu0 0
      %2878 = vmatprep.subr.bf16.mxu0 0
      %2879 = vmatpush2.bf16.msra.mxu0 0
      %2880 = vmatprep.subr.bf16.mxu0 0
      %2881 = vmatpush2.bf16.msra.mxu0 0
      %2882 = vmatprep.subr.bf16.mxu0 0
      %2883 = vmatpush2.bf16.msra.mxu0 0
      %2884 = vmatprep.subr.bf16.mxu0 0
      %2885 = vmatpush2.bf16.msra.mxu0 0
      %2886 = vmatprep.mubr.bf16.mxu0 0
      %2887 = vmatmul.mubr.bf16.gmra.mxu0 %v2840
      %v2888 = vpop.f32.mrf.mxu0
      %v2889 = vadd.f32 0.0, %v2888
      %v2890 = vpop.f32.mrf.mxu0
      %v2891 = vpop.f32.mrf.mxu0
      %v2892 = vadd.f32 0.0, %v2891
      %v2893 = vpop.f32.mrf.mxu0
      %2894 = vmatprep.mubr.bf16.mxu0 0
      %2895 = vmatmul.mubr.bf16.gmra.mxu0 %v2843
      %v2896 = vpop.f32.mrf.mxu0
      %v2897 = vadd.f32 0.0, %v2896
      %v2898 = vpop.f32.mrf.mxu0
      %v2899 = vpop.f32.mrf.mxu0
      %v2900 = vadd.f32 0.0, %v2899
      %v2901 = vpop.f32.mrf.mxu0
      %2902 = vmatprep.mubr.bf16.mxu0 0
      %2903 = vmatmul.mubr.bf16.gmra.mxu0 %v2846
      %v2904 = vpop.f32.mrf.mxu0
      %v2905 = vadd.f32 0.0, %v2904
      %v2906 = vpop.f32.mrf.mxu0
      %v2907 = vpop.f32.mrf.mxu0
      %v2908 = vadd.f32 0.0, %v2907
      %v2909 = vpop.f32.mrf.mxu0
      %2910 = vmatprep.mubr.bf16.mxu0 0
      %2911 = vmatmul.mubr.bf16.gmra.mxu0 %v2849
      %v2912 = vpop.f32.mrf.mxu0
      %v2913 = vadd.f32 0.0, %v2912
      %v2914 = vpop.f32.mrf.mxu0
      %v2915 = vpop.f32.mrf.mxu0
      %v2916 = vadd.f32 0.0, %v2915
      %v2917 = vpop.f32.mrf.mxu0
      %2918 = vdwg.mxu0
      %v2919 = vadd.f32 %v2421, %v2889
      %v2920 = vadd.f32 %v2422, %v2892
      %v2921 = vadd.f32 %v2423, %v2897
      %v2922 = vadd.f32 %v2424, %v2900
      %v2923 = vadd.f32 %v2425, %v2905
      %v2924 = vadd.f32 %v2426, %v2908
      %v2925 = vadd.f32 %v2427, %v2913
      %v2926 = vadd.f32 %v2428, %v2916
      %v2927 = vsel %vm746, %v2919, 0.0
      %v2928 = vsel %vm746, %v2920, 0.0
      %v2929 = vadd.f32 %v2927, %v2928
      %v2930 = vsel %vm746, %v2921, 0.0
      %v2931 = vadd.f32 %v2929, %v2930
      %v2932 = vsel %vm746, %v2922, 0.0
      %v2933 = vadd.f32 %v2931, %v2932
      %v2934 = vsel %vm746, %v2923, 0.0
      %v2935 = vadd.f32 %v2933, %v2934
      %v2936 = vsel %vm746, %v2924, 0.0
      %v2937 = vadd.f32 %v2935, %v2936
      %v2938 = vsel %vm746, %v2925, 0.0
      %v2939 = vadd.f32 %v2937, %v2938
      %v2940 = vsel %vm746, %v2926, 0.0
      %v2941 = vadd.f32 %v2939, %v2940
      %v2942 = vrot.slane %v2941, 4
      %v2943 = vadd.f32 %v2941, %v2942
      %v2944 = vrot.slane %v2943, 2
      %v2945 = vadd.f32 %v2943, %v2944
      %v2946 = vrot.slane %v2945, 1
      %v2947 = vadd.f32 %v2945, %v2946
      %v2948 = vmul.f32 %v2919, %v2919
      %v2949 = vmul.f32 %v2920, %v2920
      %v2950 = vmul.f32 %v2921, %v2921
      %v2951 = vmul.f32 %v2922, %v2922
      %v2952 = vmul.f32 %v2923, %v2923
      %v2953 = vmul.f32 %v2924, %v2924
      %v2954 = vmul.f32 %v2925, %v2925
      %v2955 = vmul.f32 %v2926, %v2926
      %v2956 = vsel %vm746, %v2948, 0.0
      %v2957 = vsel %vm746, %v2949, 0.0
      %v2958 = vadd.f32 %v2956, %v2957
      %v2959 = vsel %vm746, %v2950, 0.0
      %v2960 = vadd.f32 %v2958, %v2959
      %v2961 = vsel %vm746, %v2951, 0.0
      %v2962 = vadd.f32 %v2960, %v2961
      %v2963 = vsel %vm746, %v2952, 0.0
      %v2964 = vadd.f32 %v2962, %v2963
      %v2965 = vsel %vm746, %v2953, 0.0
      %v2966 = vadd.f32 %v2964, %v2965
      %v2967 = vsel %vm746, %v2954, 0.0
      %v2968 = vadd.f32 %v2966, %v2967
      %v2969 = vsel %vm746, %v2955, 0.0
      %v2970 = vadd.f32 %v2968, %v2969
      %v2971 = vrot.slane %v2970, 4
      %v2972 = vadd.f32 %v2970, %v2971
      %v2973 = vrot.slane %v2972, 2
      %v2974 = vadd.f32 %v2972, %v2973
      %v2975 = vrot.slane %v2974, 1
      %v2976 = vadd.f32 %v2974, %v2975
      %vm2977 = vcmask 1040384
      %v2978 = vsel %vm2977, %v2947, %v2976
      %2979 = vst.msk [vmem:[%s291] sm:$0x3] %vm434, %v2978
      %v2980 = vpack.c.bf16 %v2920, %v2919
      %v2981 = vpack.c.bf16 %v2922, %v2921
      %v2982 = vpack.c.bf16 %v2924, %v2923
      %v2983 = vpack.c.bf16 %v2926, %v2925
      %v2988 = vunpack.c.l.b16 %v2980
      %v2989 = vunpack.c.h.b16 %v2980
      %v2990 = vunpack.c.l.b16 %v2981
      %v2991 = vunpack.c.h.b16 %v2981
      %v2992 = vunpack.c.l.b16 %v2982
      %v2993 = vunpack.c.h.b16 %v2982
      %v2994 = vunpack.c.l.b16 %v2983
      %v2995 = vunpack.c.h.b16 %v2983
      %v2996 = vpack.c.b16 %v2988, %v2988
      %v2997 = vpack.c.b16 %v2989, %v2989
      %v2998 = vpack.c.b16 %v2990, %v2990
      %v2999 = vpack.c.b16 %v2991, %v2991
      %v3000 = vpack.c.b16 %v2992, %v2992
      %v3001 = vpack.c.b16 %v2993, %v2993
      %v3002 = vpack.c.b16 %v2994, %v2994
      %v3003 = vpack.c.b16 %v2995, %v2995
      %3012 = vst.msk [vmem:[%s283] sm:$0xf] %vm342, %v2996
      %3013 = vst.msk [vmem:[%s283 + $0x4] sm:$0xf] %vm342, %v2997
      %3014 = vst.msk [vmem:[%s283 + $0x8] sm:$0xf] %vm342, %v2998
      %3015 = vst.msk [vmem:[%s283 + $0xc] sm:$0xf] %vm342, %v2999
      %3016 = vst.msk [vmem:[%s283 + $0x10] sm:$0xf] %vm342, %v3000
      %3017 = vst.msk [vmem:[%s283 + $0x14] sm:$0xf] %vm342, %v3001
      %3018 = vst.msk [vmem:[%s283 + $0x18] sm:$0xf] %vm342, %v3002
      %3019 = vst.msk [vmem:[%s283 + $0x1c] sm:$0xf] %vm342, %v3003
      %p3020 = scmp.lt.s32.totalorder %s20, 0
      %s3021 = scalar_select %p3020, %s20, 0
      %p3022 = scmp.lt.s32.totalorder %s21, 1
      %s3023 = scalar_select %p3022, %s21, 1
      %s3024 = smul.addr %s3023, 8
      %s3025 = smul.addr %s3021, 16
      %s3026 = sadd.s32 %s3024, %s3025
      %s3027 = smul.addr %s3026, 4
      %s3028 = scalar_lea.vmem %s3, %s3027
      %p3029 = scmp.lt.s32.totalorder %s20, 0
      %s3030 = scalar_select %p3029, %s20, 0
      %p3031 = scmp.lt.s32.totalorder %s21, 1
      %s3032 = scalar_select %p3031, %s21, 1
      %s3033 = smul.addr %s3030, 2
      %s3034 = sadd.s32 %s3032, %s3033
      %s3035 = smul.addr %s3034, 2
      %s3036 = scalar_lea.vmem %s4, %s3035
      // Predicated region
      $region33: #{_lambda_.8} parent=31 // pred_check
        %p3037 = pneg %p128
      $region34: #{_lambda_.8} parent=31 // pred_check_branch
        %3039 = sbr.rel (%p3037) target = $region36
      $region35: #{_lambda_.8} parent=31 // pred_region
        _
      $region36: #{_lambda_.8} parent=31 // pred_fallthru
        _
      // Predicated region
      $region37: #{_lambda_.8} parent=31 // pred_check
        %p3040 = pneg %p156
      $region38: #{_lambda_.8} parent=31 // pred_check_branch
        %3042 = sbr.rel (%p3040) target = $region40
      $region39: #{_lambda_.8} parent=31 // pred_region
        _
      $region40: #{_lambda_.8} parent=31 // pred_fallthru
        _
    $region32: #{_lambda_.8} parent=5 // pred_fallthru
      _
    %p3043 = scmp.le.s32.totalorder 2, %s11
    // Predicated region
    $region41: #{_lambda_.8} parent=5 // pred_check
      %p3044 = pneg %p3043
    $region42: #{_lambda_.8} parent=5 // pred_check_branch
      %3046 = sbr.rel (%p3044) target = $region44
    $region43: #{_lambda_.8} parent=5 // pred_region
      %s3047 = ssub.s32 %s11, 2
      // Predicated region
      $region45: #{_lambda_.8} parent=43 // pred_check
        %p3048 = pneg %p134
      $region46: #{_lambda_.8} parent=43 // pred_check_branch
        %3050 = sbr.rel (%p3048) target = $region48
      $region47: #{_lambda_.8} parent=43 // pred_region
        %p3051 = scmp.lt.s32.totalorder %s22, 0
        %s3052 = scalar_select %p3051, %s22, 0
        %p3053 = scmp.lt.s32.totalorder %s23, 1
        %s3054 = scalar_select %p3053, %s23, 1
        %s3055 = smul.addr %s3054, 8
        %s3056 = smul.addr %s3052, 16
        %s3057 = sadd.s32 %s3055, %s3056
        %s3058 = smul.addr %s3057, 4
        %s3059 = scalar_lea.vmem %s3, %s3058
      $region48: #{_lambda_.8} parent=43 // pred_fallthru
        _
      // Predicated region
      $region49: #{_lambda_.8} parent=43 // pred_check
        %p3060 = pneg %p162
      $region50: #{_lambda_.8} parent=43 // pred_check_branch
        %3062 = sbr.rel (%p3060) target = $region52
      $region51: #{_lambda_.8} parent=43 // pred_region
        %p3063 = scmp.lt.s32.totalorder %s22, 0
        %s3064 = scalar_select %p3063, %s22, 0
        %p3065 = scmp.lt.s32.totalorder %s23, 1
        %s3066 = scalar_select %p3065, %s23, 1
        %s3067 = smul.addr %s3064, 2
        %s3068 = sadd.s32 %s3066, %s3067
        %s3069 = smul.addr %s3068, 2
        %s3070 = scalar_lea.vmem %s4, %s3069
      $region52: #{_lambda_.8} parent=43 // pred_fallthru
        _
    $region44: #{_lambda_.8} parent=5 // pred_fallthru
      _
  $region6: #{_lambda_.8} parent=0 // loop_footer
    %s15 = sadd.s32 1, %s11
  $region7: #{_lambda_.8} parent=0 // loop_footer_branch
    %10 = sbr.rel target = $region3
  $region8: #{_lambda_.8} parent=0 // loop_exit
    _

// kernel: _lambda_.6
$region0: #{_lambda_.6}
  #allocation0 [shape = 'u32[]', space=smem, size = 0x4, offset = 0x4, fixed_abs, tag = 'smem constant byte address 0x4 - core index']
  #allocation1 [shape = 'u32[144,128]{1,0:T(1,128)}', space=vmem, size = 0x12000, scoped, tag = 'internal scratch']
  #allocation2 [shape = 'bf16[16,16,8]{2,1,0:T(8,128)(2,1)}', space=vmem, size = 0x10000, scoped, tag = 'scratch operand']
  %s0 = inlined_call_operand.vmem [shape: bf16[2,2,8,8,8], index: 0, kind: input, shape index: {}]
  %s1 = inlined_call_operand.vmem [shape: f32[2,2,8], index: 1, kind: input, shape index: {}]
  %s2 = inlined_call_operand.vmem [shape: bf16[2,5,40,16], index: 2, kind: input, shape index: {}]
  %s3 = inlined_call_operand.vmem [shape: bf16[2,2,2,64,8], index: 3, kind: output, shape index: {0}]
  %s4 = inlined_call_operand.vmem [shape: f32[2,2,2,16], index: 4, kind: output, shape index: {1}]
  %5 = xla_tuple %s3, %s4
  %s6 = sld [smem:[#allocation0]]
  $region53: #{_lambda_.6} parent=0
    _
  %s8 = ssub.s32 1, %s6
  %s9 = scalar_select 0, %s8, %s6
  loop: start=0, step=1, limit=6
  $region2: #{_lambda_.6} parent=0 // loop_pre_header
    _
  $region3: #{_lambda_.6} parent=0 // loop_header
    %s11 = sphi 0, %s15
    %p12 = scmp.ge.s32.totalorder %s11, 6
    %s18 = sphi 0, %s30
    %s19 = sphi 0, %s26
    %s20 = sphi 0, %s18
    %s21 = sphi 0, %s19
    %s22 = sphi 0, %s20
    %s23 = sphi 0, %s21
    %s35 = sphi 0, %s37
    %s38 = sphi 0, %s35
    %s39 = sphi 0, %s38
    %s55 = sphi 0, %s39
    %s61 = sphi 0, %s63
    %s64 = sphi 0, %s61
    %s65 = sphi 0, %s64
    %s81 = sphi 0, %s65
    %s87 = sphi 0, %s89
    %s90 = sphi 0, %s87
    %s91 = sphi 0, %s90
    %s107 = sphi 0, %s91
    %s115 = sphi 0, %s117
    %s118 = sphi 0, %s115
    %s119 = sphi 0, %s118
    %s135 = sphi 0, %s119
    %s143 = sphi 0, %s145
    %s146 = sphi 0, %s143
    %s147 = sphi 0, %s146
    %s163 = sphi 0, %s147
  $region4: #{_lambda_.6} parent=0 // loop_header_branch
    %14 = sbr.rel (%p12) target = $region8
  $region5: #{_lambda_.6} parent=0 // loop_body
    %s16 = ssub.s32 %s11, 1
    %s17 = ssub.s32 %s11, 2
    %s24 = sadd.s32 1, %s19
    %p25 = scmp.ge.s32.totalorder %s24, 2
    %s26 = scalar_select %p25, 0, %s24
    %s27 = sadd.s32 1, %s18
    %s28 = scalar_select %p25, %s27, %s18
    %p29 = scmp.ge.s32.totalorder %s28, 2
    %s30 = scalar_select %p29, 0, %s28
    %s31 = ssub.s32 %s18, %s30
    %s32 = ssub.s32 %s19, %s26
    %s33 = sor.u32 %s31, %s32
    %p34 = scmp.eq.s32.totalorder %s33, 0
    %s36 = sadd.s32 %s35, 1
    %s37 = scalar_select %p34, %s35, %s36
    %p40 = pneg %p34
    %p41 = scmp.eq.s32.totalorder %s11, 3
    %p42 = por %p40, %p41
    %p43 = scmp.ne.s32.totalorder %s35, %s38
    %p44 = scmp.eq.s32.totalorder %s11, 0
    %p45 = por %p43, %p44
    %p46 = scmp.ne.s32.totalorder %s35, %s38
    %p47 = scmp.eq.s32.totalorder %s16, 3
    %p48 = por %p46, %p47
    %p49 = scmp.ne.s32.totalorder %s38, %s39
    %p50 = scmp.eq.s32.totalorder %s16, 0
    %p51 = por %p49, %p50
    %p52 = scmp.ne.s32.totalorder %s38, %s39
    %p53 = scmp.eq.s32.totalorder %s17, 3
    %p54 = por %p52, %p53
    %p56 = scmp.ne.s32.totalorder %s39, %s55
    %p57 = scmp.eq.s32.totalorder %s17, 0
    %p58 = por %p56, %p57
    %s59 = ssub.s32 %s18, %s30
    %p60 = scmp.eq.s32.totalorder %s59, 0
    %s62 = sadd.s32 %s61, 1
    %s63 = scalar_select %p60, %s61, %s62
    %p66 = pneg %p60
    %p67 = scmp.eq.s32.totalorder %s11, 3
    %p68 = por %p66, %p67
    %p69 = scmp.ne.s32.totalorder %s61, %s64
    %p70 = scmp.eq.s32.totalorder %s11, 0
    %p71 = por %p69, %p70
    %p72 = scmp.ne.s32.totalorder %s61, %s64
    %p73 = scmp.eq.s32.totalorder %s16, 3
    %p74 = por %p72, %p73
    %p75 = scmp.ne.s32.totalorder %s64, %s65
    %p76 = scmp.eq.s32.totalorder %s16, 0
    %p77 = por %p75, %p76
    %p78 = scmp.ne.s32.totalorder %s64, %s65
    %p79 = scmp.eq.s32.totalorder %s17, 3
    %p80 = por %p78, %p79
    %p82 = scmp.ne.s32.totalorder %s65, %s81
    %p83 = scmp.eq.s32.totalorder %s17, 0
    %p84 = por %p82, %p83
    %s85 = ssub.s32 %s18, %s30
    %p86 = scmp.eq.s32.totalorder %s85, 0
    %s88 = sadd.s32 %s87, 1
    %s89 = scalar_select %p86, %s87, %s88
    %p92 = pneg %p86
    %p93 = scmp.eq.s32.totalorder %s11, 3
    %p94 = por %p92, %p93
    %p95 = scmp.ne.s32.totalorder %s87, %s90
    %p96 = scmp.eq.s32.totalorder %s11, 0
    %p97 = por %p95, %p96
    %p98 = scmp.ne.s32.totalorder %s87, %s90
    %p99 = scmp.eq.s32.totalorder %s16, 3
    %p100 = por %p98, %p99
    %p101 = scmp.ne.s32.totalorder %s90, %s91
    %p102 = scmp.eq.s32.totalorder %s16, 0
    %p103 = por %p101, %p102
    %p104 = scmp.ne.s32.totalorder %s90, %s91
    %p105 = scmp.eq.s32.totalorder %s17, 3
    %p106 = por %p104, %p105
    %p108 = scmp.ne.s32.totalorder %s91, %s107
    %p109 = scmp.eq.s32.totalorder %s17, 0
    %p110 = por %p108, %p109
    %s111 = ssub.s32 %s18, %s30
    %s112 = ssub.s32 %s19, %s26
    %s113 = sor.u32 %s111, %s112
    %p114 = scmp.eq.s32.totalorder %s113, 0
    %s116 = sadd.s32 %s115, 1
    %s117 = scalar_select %p114, %s115, %s116
    %p120 = pneg %p114
    %p121 = scmp.eq.s32.totalorder %s11, 3
    %p122 = por %p120, %p121
    %p123 = scmp.ne.s32.totalorder %s115, %s118
    %p124 = scmp.eq.s32.totalorder %s11, 0
    %p125 = por %p123, %p124
    %p126 = scmp.ne.s32.totalorder %s115, %s118
    %p127 = scmp.eq.s32.totalorder %s16, 3
    %p128 = por %p126, %p127
    %p129 = scmp.ne.s32.totalorder %s118, %s119
    %p130 = scmp.eq.s32.totalorder %s16, 0
    %p131 = por %p129, %p130
    %p132 = scmp.ne.s32.totalorder %s118, %s119
    %p133 = scmp.eq.s32.totalorder %s17, 3
    %p134 = por %p132, %p133
    %p136 = scmp.ne.s32.totalorder %s119, %s135
    %p137 = scmp.eq.s32.totalorder %s17, 0
    %p138 = por %p136, %p137
    %s139 = ssub.s32 %s18, %s30
    %s140 = ssub.s32 %s19, %s26
    %s141 = sor.u32 %s139, %s140
    %p142 = scmp.eq.s32.totalorder %s141, 0
    %s144 = sadd.s32 %s143, 1
    %s145 = scalar_select %p142, %s143, %s144
    %p148 = pneg %p142
    %p149 = scmp.eq.s32.totalorder %s11, 3
    %p150 = por %p148, %p149
    %p151 = scmp.ne.s32.totalorder %s143, %s146
    %p152 = scmp.eq.s32.totalorder %s11, 0
    %p153 = por %p151, %p152
    %p154 = scmp.ne.s32.totalorder %s143, %s146
    %p155 = scmp.eq.s32.totalorder %s16, 3
    %p156 = por %p154, %p155
    %p157 = scmp.ne.s32.totalorder %s146, %s147
    %p158 = scmp.eq.s32.totalorder %s16, 0
    %p159 = por %p157, %p158
    %p160 = scmp.ne.s32.totalorder %s146, %s147
    %p161 = scmp.eq.s32.totalorder %s17, 3
    %p162 = por %p160, %p161
    %p164 = scmp.ne.s32.totalorder %s147, %s163
    %p165 = scmp.eq.s32.totalorder %s17, 0
    %p166 = por %p164, %p165
    %p167 = scmp.le.s32.totalorder 1, %s11
    %p168 = scmp.lt.s32.totalorder %s11, 5
    %p169 = pnand %p167, %p168
    %p170 = pneg %p169
    // Predicated region
    $region9: #{_lambda_.6} parent=5 // pred_check
      _
    $region10: #{_lambda_.6} parent=5 // pred_check_branch
      %172 = sbr.rel (%p169) target = $region12
    $region11: #{_lambda_.6} parent=5 // pred_region
      %s173 = ssub.s32 %s11, 1
    $region12: #{_lambda_.6} parent=5 // pred_fallthru
      _
    %p174 = scmp.lt.s32.totalorder %s11, 4
    // Predicated region
    $region13: #{_lambda_.6} parent=5 // pred_check
      %p175 = pneg %p174
    $region14: #{_lambda_.6} parent=5 // pred_check_branch
      %177 = sbr.rel (%p175) target = $region16
    $region15: #{_lambda_.6} parent=5 // pred_region
      // Predicated region
      $region17: #{_lambda_.6} parent=15 // pred_check
        %p178 = pneg %p45
      $region18: #{_lambda_.6} parent=15 // pred_check_branch
        %180 = sbr.rel (%p178) target = $region20
      $region19: #{_lambda_.6} parent=15 // pred_region
        %p181 = scmp.lt.s32.totalorder %s18, 1
        %s182 = scalar_select %p181, %s18, 1
        %p183 = scmp.lt.s32.totalorder %s19, 1
        %s184 = scalar_select %p183, %s19, 1
        %s185 = smul.addr %s184, 8
        %s186 = smul.addr %s182, 16
        %s187 = sadd.s32 %s185, %s186
        %s188 = smul.addr %s187, 4
        %s189 = scalar_lea.vmem %s0, %s188
      $region20: #{_lambda_.6} parent=15 // pred_fallthru
        _
      // Predicated region
      $region21: #{_lambda_.6} parent=15 // pred_check
        %p190 = pneg %p71
      $region22: #{_lambda_.6} parent=15 // pred_check_branch
        %192 = sbr.rel (%p190) target = $region24
      $region23: #{_lambda_.6} parent=15 // pred_region
        %p193 = scmp.lt.s32.totalorder %s18, 1
        %s194 = scalar_select %p193, %s18, 1
        %s195 = smul.addr %s194, 2
        %s196 = scalar_lea.vmem %s1, %s195
      $region24: #{_lambda_.6} parent=15 // pred_fallthru
        _
      // Predicated region
      $region25: #{_lambda_.6} parent=15 // pred_check
        %p197 = pneg %p97
      $region26: #{_lambda_.6} parent=15 // pred_check_branch
        %199 = sbr.rel (%p197) target = $region28
      $region27: #{_lambda_.6} parent=15 // pred_region
        %p200 = scmp.lt.s32.totalorder %s18, 1
        %s201 = scalar_select %p200, %s18, 1
        %s202 = smul.addr %s201, 25
        %s203 = smul.addr %s202, 4
        %s204 = scalar_lea.vmem %s2, %s203
      $region28: #{_lambda_.6} parent=15 // pred_fallthru
        _
    $region16: #{_lambda_.6} parent=5 // pred_fallthru
      _
    %p205 = scmp.le.s32.totalorder 1, %s11
    %p206 = scmp.lt.s32.totalorder %s11, 5
    %p207 = pnand %p205, %p206
    %p208 = pneg %p207
    // Predicated region
    $region29: #{_lambda_.6} parent=5 // pred_check
      _
    $region30: #{_lambda_.6} parent=5 // pred_check_branch
      %210 = sbr.rel (%p207) target = $region32
    $region31: #{_lambda_.6} parent=5 // pred_region
      %s211 = ssub.s32 %s11, 1
      %p212 = scmp.lt.s32.totalorder %s20, 1
      %s213 = scalar_select %p212, %s20, 1
      %p214 = scmp.lt.s32.totalorder %s21, 1
      %s215 = scalar_select %p214, %s21, 1
      %s216 = smul.addr %s215, 8
      %s217 = smul.addr %s213, 16
      %s218 = sadd.s32 %s216, %s217
      %s219 = smul.addr %s218, 4
      %s220 = scalar_lea.vmem %s0, %s219
      %p221 = pneg %p51
      %p222 = pneg %p48
      %p223 = scmp.lt.s32.totalorder %s20, 1
      %s224 = scalar_select %p223, %s20, 1
      %s225 = smul.addr %s224, 2
      %s226 = scalar_lea.vmem %s1, %s225
      %p227 = pneg %p77
      %p228 = pneg %p74
      %p229 = scmp.lt.s32.totalorder %s20, 1
      %s230 = scalar_select %p229, %s20, 1
      %s231 = smul.addr %s230, 25
      %s232 = smul.addr %s231, 4
      %s233 = scalar_lea.vmem %s2, %s232
      %p234 = pneg %p103
      %p235 = pneg %p100
      %p236 = pneg %p131
      %p237 = pneg %p128
      %p238 = scmp.lt.s32.totalorder %s20, 1
      %s239 = scalar_select %p238, %s20, 1
      %p240 = scmp.lt.s32.totalorder %s21, 1
      %s241 = scalar_select %p240, %s21, 1
      %s242 = smul.addr %s241, 16
      %s243 = smul.addr %s239, 32
      %s244 = sadd.s32 %s242, %s243
      %s245 = smul.addr %s244, 4
      %s246 = scalar_lea.vmem %s3, %s245
      %p247 = pneg %p159
      %p248 = pneg %p156
      %p249 = scmp.lt.s32.totalorder %s20, 1
      %s250 = scalar_select %p249, %s20, 1
      %p251 = scmp.lt.s32.totalorder %s21, 1
      %s252 = scalar_select %p251, %s21, 1
      %s253 = smul.addr %s250, 2
      %s254 = sadd.s32 %s252, %s253
      %s255 = smul.addr %s254, 2
      %s256 = scalar_lea.vmem %s4, %s255
      %p257 = scmp.lt.s32.totalorder %s20, 1
      %s258 = scalar_select %p257, %s20, 1
      %p259 = scmp.lt.s32.totalorder %s21, 1
      %s260 = scalar_select %p259, %s21, 1
      %s261 = smul.addr %s260, 8
      %s262 = smul.addr %s258, 16
      %s263 = sadd.s32 %s261, %s262
      %s264 = smul.addr %s263, 4
      %s265 = scalar_lea.vmem %s0, %s264
      %p266 = scmp.lt.s32.totalorder %s20, 1
      %s267 = scalar_select %p266, %s20, 1
      %s268 = smul.addr %s267, 2
      %s269 = scalar_lea.vmem %s1, %s268
      %p270 = scmp.lt.s32.totalorder %s20, 1
      %s271 = scalar_select %p270, %s20, 1
      %s272 = smul.addr %s271, 25
      %s273 = smul.addr %s272, 4
      %s274 = scalar_lea.vmem %s2, %s273
      %p275 = scmp.lt.s32.totalorder %s20, 1
      %s276 = scalar_select %p275, %s20, 1
      %p277 = scmp.lt.s32.totalorder %s21, 1
      %s278 = scalar_select %p277, %s21, 1
      %s279 = smul.addr %s278, 16
      %s280 = smul.addr %s276, 32
      %s281 = sadd.s32 %s279, %s280
      %s282 = smul.addr %s281, 4
      %s283 = scalar_lea.vmem %s3, %s282
      %p284 = scmp.lt.s32.totalorder %s20, 1
      %s285 = scalar_select %p284, %s20, 1
      %p286 = scmp.lt.s32.totalorder %s21, 1
      %s287 = scalar_select %p286, %s21, 1
      %s288 = smul.addr %s285, 2
      %s289 = sadd.s32 %s287, %s288
      %s290 = smul.addr %s289, 2
      %s291 = scalar_lea.vmem %s4, %s290
      %v293 = vld [vmem:[%s269] sm:$0x3]
      %v294 = vld [vmem:[%s265] sm:$0xf]
      %v295 = vld [vmem:[%s265 + $0x4] sm:$0xf]
      %v296 = vld [vmem:[%s265 + $0x8] sm:$0xf]
      %v297 = vld [vmem:[%s265 + $0xc] sm:$0xf]
      %v298 = vld [vmem:[%s265 + $0x10] sm:$0xf]
      %v299 = vld [vmem:[%s265 + $0x14] sm:$0xf]
      %v300 = vld [vmem:[%s265 + $0x18] sm:$0xf]
      %v301 = vld [vmem:[%s265 + $0x1c] sm:$0xf]
      %v302 = vunpack.c.l.bf16 %v294
      %v303 = vunpack.c.l.bf16 %v295
      %v304 = vunpack.c.l.bf16 %v296
      %v305 = vunpack.c.l.bf16 %v297
      %v306 = vunpack.c.l.bf16 %v298
      %v307 = vunpack.c.l.bf16 %v299
      %v308 = vunpack.c.l.bf16 %v300
      %v309 = vunpack.c.l.bf16 %v301
      %v310 = vlaneseq
      %v311 = vshrl.u32 %v310, 7
      %v312 = vsub.s32 0, %v311
      %v313 = vrot.slane %v293, %v312
      %v314 = vmul.f32 %v302, %v313
      %v315 = vmul.f32 %v303, %v313
      %v316 = vmul.f32 %v304, %v313
      %v317 = vmul.f32 %v305, %v313
      %v318 = vmul.f32 %v306, %v313
      %v319 = vmul.f32 %v307, %v313
      %v320 = vmul.f32 %v308, %v313
      %v321 = vmul.f32 %v309, %v313
      %v322 = vlaneseq
      %v323 = vshrl.u32 %v322, 7
      %v324 = vsub.s32 1, %v323
      %v325 = vrot.slane %v293, %v324
      %v326 = vadd.f32 %v314, %v325
      %v327 = vadd.f32 %v315, %v325
      %v328 = vadd.f32 %v316, %v325
      %v329 = vadd.f32 %v317, %v325
      %v330 = vadd.f32 %v318, %v325
      %v331 = vadd.f32 %v319, %v325
      %v332 = vadd.f32 %v320, %v325
      %v333 = vadd.f32 %v321, %v325
      %v334 = vmax.f32 %v326, 0.0
      %v335 = vmax.f32 %v327, 0.0
      %v336 = vmax.f32 %v328, 0.0
      %v337 = vmax.f32 %v329, 0.0
      %v338 = vmax.f32 %v330, 0.0
      %v339 = vmax.f32 %v331, 0.0
      %v340 = vmax.f32 %v332, 0.0
      %v341 = vmax.f32 %v333, 0.0
      %v342 = vpack.c.bf16 %v334, %v334
      %v343 = vpack.c.bf16 %v335, %v335
      %v344 = vpack.c.bf16 %v336, %v336
      %v345 = vpack.c.bf16 %v337, %v337
      %v346 = vpack.c.bf16 %v338, %v338
      %v347 = vpack.c.bf16 %v339, %v339
      %v348 = vpack.c.bf16 %v340, %v340
      %v349 = vpack.c.bf16 %v341, %v341
      %vm350 = vcmask 60416
      %351 = vst.msk [vmem:[#allocation2] sm:$0xf] %vm350, 0
      %352 = vst.msk [vmem:[#allocation2 + $0x4] sm:$0xf] %vm350, 0
      %353 = vst.msk [vmem:[#allocation2 + $0x8] sm:$0xf] %vm350, 0
      %354 = vst.msk [vmem:[#allocation2 + $0xc] sm:$0xf] %vm350, 0
      %355 = vst.msk [vmem:[#allocation2 + $0x10] sm:$0xf] %vm350, 0
      %356 = vst.msk [vmem:[#allocation2 + $0x14] sm:$0xf] %vm350, 0
      %357 = vst.msk [vmem:[#allocation2 + $0x18] sm:$0xf] %vm350, 0
      %358 = vst.msk [vmem:[#allocation2 + $0x1c] sm:$0xf] %vm350, 0
      %359 = vst.msk [vmem:[#allocation2 + $0x20] sm:$0xf] %vm350, 0
      %360 = vst.msk [vmem:[#allocation2 + $0x24] sm:$0xf] %vm350, 0
      %361 = vst.msk [vmem:[#allocation2 + $0x28] sm:$0xf] %vm350, 0
      %362 = vst.msk [vmem:[#allocation2 + $0x2c] sm:$0xf] %vm350, 0
      %363 = vst.msk [vmem:[#allocation2 + $0x30] sm:$0xf] %vm350, 0
      %364 = vst.msk [vmem:[#allocation2 + $0x34] sm:$0xf] %vm350, 0
      %365 = vst.msk [vmem:[#allocation2 + $0x38] sm:$0xf] %vm350, 0
      %366 = vst.msk [vmem:[#allocation2 + $0x3c] sm:$0xf] %vm350, 0
      %367 = vst.msk [vmem:[#allocation2 + $0x40] sm:$0xf] %vm350, 0
      %368 = vst.msk [vmem:[#allocation2 + $0x44] sm:$0xf] %vm350, 0
      %369 = vst.msk [vmem:[#allocation2 + $0x48] sm:$0xf] %vm350, 0
      %370 = vst.msk [vmem:[#allocation2 + $0x4c] sm:$0xf] %vm350, 0
      %371 = vst.msk [vmem:[#allocation2 + $0x50] sm:$0xf] %vm350, 0
      %372 = vst.msk [vmem:[#allocation2 + $0x54] sm:$0xf] %vm350, 0
      %373 = vst.msk [vmem:[#allocation2 + $0x58] sm:$0xf] %vm350, 0
      %374 = vst.msk [vmem:[#allocation2 + $0x5c] sm:$0xf] %vm350, 0
      %375 = vst.msk [vmem:[#allocation2 + $0x60] sm:$0xf] %vm350, 0
      %376 = vst.msk [vmem:[#allocation2 + $0x64] sm:$0xf] %vm350, 0
      %377 = vst.msk [vmem:[#allocation2 + $0x68] sm:$0xf] %vm350, 0
      %378 = vst.msk [vmem:[#allocation2 + $0x6c] sm:$0xf] %vm350, 0
      %379 = vst.msk [vmem:[#allocation2 + $0x70] sm:$0xf] %vm350, 0
      %380 = vst.msk [vmem:[#allocation2 + $0x74] sm:$0xf] %vm350, 0
      %381 = vst.msk [vmem:[#allocation2 + $0x78] sm:$0xf] %vm350, 0
      %382 = vst.msk [vmem:[#allocation2 + $0x7c] sm:$0xf] %vm350, 0
      %v391 = vunpack.c.l.b16 %v342
      %v392 = vunpack.c.l.b16 %v343
      %v393 = vunpack.c.l.b16 %v344
      %v394 = vunpack.c.l.b16 %v345
      %v395 = vunpack.c.l.b16 %v346
      %v396 = vunpack.c.l.b16 %v347
      %v397 = vunpack.c.l.b16 %v348
      %v398 = vunpack.c.l.b16 %v349
      %v399 = vpack.c.b16 %v391, %v391
      %v400 = vpack.c.b16 %v392, %v392
      %v401 = vpack.c.b16 %v393, %v393
      %v402 = vpack.c.b16 %v394, %v394
      %v403 = vpack.c.b16 %v395, %v395
      %v404 = vpack.c.b16 %v396, %v396
      %v405 = vpack.c.b16 %v397, %v397
      %v406 = vpack.c.b16 %v398, %v398
      %v407 = vrot.slane %v399, 6
      %v408 = vrot.slane %v407, 4
      %v409 = vrot.slane %v400, 6
      %v410 = vrot.slane %v409, 4
      %v411 = vrot.slane %v401, 6
      %v412 = vrot.slane %v411, 4
      %v413 = vrot.slane %v402, 6
      %v414 = vrot.slane %v413, 4
      %v415 = vrot.slane %v403, 6
      %v416 = vrot.slane %v415, 4
      %v417 = vrot.slane %v404, 6
      %v418 = vrot.slane %v417, 4
      %v419 = vrot.slane %v405, 6
      %v420 = vrot.slane %v419, 4
      %v421 = vrot.slane %v406, 6
      %v422 = vrot.slane %v421, 4
      %s439 = scalar_lea.vmem [#allocation2], 32
      %vm440 = vcmask 60418
      %441 = vst.msk [vmem:[%s439] sm:$0xc] %vm440, %v407
      %vm442 = vcmask 58368
      %443 = vst.msk [vmem:[%s439 + $0x4] sm:$0x3] %vm442, %v408
      %444 = vst.msk [vmem:[%s439 + $0x8] sm:$0xc] %vm440, %v409
      %445 = vst.msk [vmem:[%s439 + $0xc] sm:$0x3] %vm442, %v410
      %446 = vst.msk [vmem:[%s439 + $0x10] sm:$0xc] %vm440, %v411
      %447 = vst.msk [vmem:[%s439 + $0x14] sm:$0x3] %vm442, %v412
      %448 = vst.msk [vmem:[%s439 + $0x18] sm:$0xc] %vm440, %v413
      %449 = vst.msk [vmem:[%s439 + $0x1c] sm:$0x3] %vm442, %v414
      %450 = vst.msk [vmem:[%s439 + $0x20] sm:$0xc] %vm440, %v415
      %451 = vst.msk [vmem:[%s439 + $0x24] sm:$0x3] %vm442, %v416
      %452 = vst.msk [vmem:[%s439 + $0x28] sm:$0xc] %vm440, %v417
      %453 = vst.msk [vmem:[%s439 + $0x2c] sm:$0x3] %vm442, %v418
      %454 = vst.msk [vmem:[%s439 + $0x30] sm:$0xc] %vm440, %v419
      %455 = vst.msk [vmem:[%s439 + $0x34] sm:$0x3] %vm442, %v420
      %456 = vst.msk [vmem:[%s439 + $0x38] sm:$0xc] %vm440, %v421
      %457 = vst.msk [vmem:[%s439 + $0x3c] sm:$0x3] %vm442, %v422
      %v458 = vld [vmem:[#allocation2] sm:$0xf]
      %v459 = vld [vmem:[#allocation2 + $0x8] sm:$0xf]
      %v460 = vld [vmem:[#allocation2 + $0x10] sm:$0xf]
      %v461 = vld [vmem:[#allocation2 + $0x18] sm:$0xf]
      %v462 = vld [vmem:[#allocation2 + $0x20] sm:$0xf]
      %v463 = vld [vmem:[#allocation2 + $0x28] sm:$0xf]
      %v464 = vld [vmem:[#allocation2 + $0x30] sm:$0xf]
      %v465 = vld [vmem:[#allocation2 + $0x38] sm:$0xf]
      %v466 = vld [vmem:[#allocation2] sm:$0xe]
      %v467 = vld [vmem:[#allocation2 + $0x4] sm:$0x1]
      %v468 = vld [vmem:[#allocation2 + $0x8] sm:$0xe]
      %v469 = vld [vmem:[#allocation2 + $0xc] sm:$0x1]
      %v470 = vld [vmem:[#allocation2 + $0x10] sm:$0xe]
      %v471 = vld [vmem:[#allocation2 + $0x14] sm:$0x1]
      %v472 = vld [vmem:[#allocation2 + $0x18] sm:$0xe]
      %v473 = vld [vmem:[#allocation2 + $0x1c] sm:$0x1]
      %v474 = vld [vmem:[#allocation2 + $0x20] sm:$0xe]
      %v475 = vld [vmem:[#allocation2 + $0x24] sm:$0x1]
      %v476 = vld [vmem:[#allocation2 + $0x28] sm:$0xe]
      %v477 = vld [vmem:[#allocation2 + $0x2c] sm:$0x1]
      %v478 = vld [vmem:[#allocation2 + $0x30] sm:$0xe]
      %v479 = vld [vmem:[#allocation2 + $0x34] sm:$0x1]
      %v480 = vld [vmem:[#allocation2 + $0x38] sm:$0xe]
      %v481 = vld [vmem:[#allocation2 + $0x3c] sm:$0x1]
      %v482 = vld [vmem:[#allocation2] sm:$0xc]
      %v483 = vld [vmem:[#allocation2 + $0x4] sm:$0x3]
      %v484 = vld [vmem:[#allocation2 + $0x8] sm:$0xc]
      %v485 = vld [vmem:[#allocation2 + $0xc] sm:$0x3]
      %v486 = vld [vmem:[#allocation2 + $0x10] sm:$0xc]
      %v487 = vld [vmem:[#allocation2 + $0x14] sm:$0x3]
      %v488 = vld [vmem:[#allocation2 + $0x18] sm:$0xc]
      %v489 = vld [vmem:[#allocation2 + $0x1c] sm:$0x3]
      %v490 = vld [vmem:[#allocation2 + $0x20] sm:$0xc]
      %v491 = vld [vmem:[#allocation2 + $0x24] sm:$0x3]
      %v492 = vld [vmem:[#allocation2 + $0x28] sm:$0xc]
      %v493 = vld [vmem:[#allocation2 + $0x2c] sm:$0x3]
      %v494 = vld [vmem:[#allocation2 + $0x30] sm:$0xc]
      %v495 = vld [vmem:[#allocation2 + $0x34] sm:$0x3]
      %v496 = vld [vmem:[#allocation2 + $0x38] sm:$0xc]
      %v497 = vld [vmem:[#allocation2 + $0x3c] sm:$0x3]
      %v498 = vld [vmem:[#allocation2] sm:$0x8]
      %v499 = vld [vmem:[#allocation2 + $0x4] sm:$0x7]
      %v500 = vld [vmem:[#allocation2 + $0x8] sm:$0x8]
      %v501 = vld [vmem:[#allocation2 + $0xc] sm:$0x7]
      %v502 = vld [vmem:[#allocation2 + $0x10] sm:$0x8]
      %v503 = vld [vmem:[#allocation2 + $0x14] sm:$0x7]
      %v504 = vld [vmem:[#allocation2 + $0x18] sm:$0x8]
      %v505 = vld [vmem:[#allocation2 + $0x1c] sm:$0x7]
      %v506 = vld [vmem:[#allocation2 + $0x20] sm:$0x8]
      %v507 = vld [vmem:[#allocation2 + $0x24] sm:$0x7]
      %v508 = vld [vmem:[#allocation2 + $0x28] sm:$0x8]
      %v509 = vld [vmem:[#allocation2 + $0x2c] sm:$0x7]
      %v510 = vld [vmem:[#allocation2 + $0x30] sm:$0x8]
      %v511 = vld [vmem:[#allocation2 + $0x34] sm:$0x7]
      %v512 = vld [vmem:[#allocation2 + $0x38] sm:$0x8]
      %v513 = vld [vmem:[#allocation2 + $0x3c] sm:$0x7]
      %v514 = vld [vmem:[#allocation2 + $0x4] sm:$0xf]
      %v515 = vld [vmem:[#allocation2 + $0xc] sm:$0xf]
      %v516 = vld [vmem:[#allocation2 + $0x14] sm:$0xf]
      %v517 = vld [vmem:[#allocation2 + $0x1c] sm:$0xf]
      %v518 = vld [vmem:[#allocation2 + $0x24] sm:$0xf]
      %v519 = vld [vmem:[#allocation2 + $0x2c] sm:$0xf]
      %v520 = vld [vmem:[#allocation2 + $0x34] sm:$0xf]
      %v521 = vld [vmem:[#allocation2 + $0x3c] sm:$0xf]
      %v538 = vunpack.c.l.b16 %v466
      %v539 = vunpack.c.l.b16 %v467
      %v540 = vunpack.c.l.b16 %v468
      %v541 = vunpack.c.l.b16 %v469
      %v542 = vunpack.c.l.b16 %v470
      %v543 = vunpack.c.l.b16 %v471
      %v544 = vunpack.c.l.b16 %v472
      %v545 = vunpack.c.l.b16 %v473
      %v546 = vunpack.c.l.b16 %v474
      %v547 = vunpack.c.l.b16 %v475
      %v548 = vunpack.c.l.b16 %v476
      %v549 = vunpack.c.l.b16 %v477
      %v550 = vunpack.c.l.b16 %v478
      %v551 = vunpack.c.l.b16 %v479
      %v552 = vunpack.c.l.b16 %v480
      %v553 = vunpack.c.l.b16 %v481
      %v554 = vpack.c.b16 %v539, %v538
      %v555 = vpack.c.b16 %v541, %v540
      %v556 = vpack.c.b16 %v543, %v542
      %v557 = vpack.c.b16 %v545, %v544
      %v558 = vpack.c.b16 %v547, %v546
      %v559 = vpack.c.b16 %v549, %v548
      %v560 = vpack.c.b16 %v551, %v550
      %v561 = vpack.c.b16 %v553, %v552
      %v562 = vrot.slane %v554, 1
      %v563 = vrot.slane %v555, 1
      %v564 = vrot.slane %v556, 1
      %v565 = vrot.slane %v557, 1
      %v566 = vrot.slane %v558, 1
      %v567 = vrot.slane %v559, 1
      %v568 = vrot.slane %v560, 1
      %v569 = vrot.slane %v561, 1
      %570 = vrot.lane.b32.xlu0 %v562, 8
      %v571 = vpop.permute.xlu0 %570
      %572 = vrot.lane.b32.xlu0 %v563, 8
      %v573 = vpop.permute.xlu0 %572
      %574 = vrot.lane.b32.xlu0 %v564, 8
      %v575 = vpop.permute.xlu0 %574
      %576 = vrot.lane.b32.xlu0 %v565, 8
      %v577 = vpop.permute.xlu0 %576
      %578 = vrot.lane.b32.xlu0 %v566, 8
      %v579 = vpop.permute.xlu0 %578
      %580 = vrot.lane.b32.xlu0 %v567, 8
      %v581 = vpop.permute.xlu0 %580
      %582 = vrot.lane.b32.xlu0 %v568, 8
      %v583 = vpop.permute.xlu0 %582
      %584 = vrot.lane.b32.xlu0 %v569, 8
      %v585 = vpop.permute.xlu0 %584
      %v602 = vunpack.c.l.b16 %v482
      %v603 = vunpack.c.l.b16 %v483
      %v604 = vunpack.c.l.b16 %v484
      %v605 = vunpack.c.l.b16 %v485
      %v606 = vunpack.c.l.b16 %v486
      %v607 = vunpack.c.l.b16 %v487
      %v608 = vunpack.c.l.b16 %v488
      %v609 = vunpack.c.l.b16 %v489
      %v610 = vunpack.c.l.b16 %v490
      %v611 = vunpack.c.l.b16 %v491
      %v612 = vunpack.c.l.b16 %v492
      %v613 = vunpack.c.l.b16 %v493
      %v614 = vunpack.c.l.b16 %v494
      %v615 = vunpack.c.l.b16 %v495
      %v616 = vunpack.c.l.b16 %v496
      %v617 = vunpack.c.l.b16 %v497
      %v618 = vpack.c.b16 %v603, %v602
      %v619 = vpack.c.b16 %v605, %v604
      %v620 = vpack.c.b16 %v607, %v606
      %v621 = vpack.c.b16 %v609, %v608
      %v622 = vpack.c.b16 %v611, %v610
      %v623 = vpack.c.b16 %v613, %v612
      %v624 = vpack.c.b16 %v615, %v614
      %v625 = vpack.c.b16 %v617, %v616
      %v626 = vrot.slane %v618, 2
      %v627 = vrot.slane %v619, 2
      %v628 = vrot.slane %v620, 2
      %v629 = vrot.slane %v621, 2
      %v630 = vrot.slane %v622, 2
      %v631 = vrot.slane %v623, 2
      %v632 = vrot.slane %v624, 2
      %v633 = vrot.slane %v625, 2
      %634 = vrot.lane.b32.xlu0 %v626, 16
      %v635 = vpop.permute.xlu0 %634
      %636 = vrot.lane.b32.xlu0 %v627, 16
      %v637 = vpop.permute.xlu0 %636
      %638 = vrot.lane.b32.xlu0 %v628, 16
      %v639 = vpop.permute.xlu0 %638
      %640 = vrot.lane.b32.xlu0 %v629, 16
      %v641 = vpop.permute.xlu0 %640
      %642 = vrot.lane.b32.xlu0 %v630, 16
      %v643 = vpop.permute.xlu0 %642
      %644 = vrot.lane.b32.xlu0 %v631, 16
      %v645 = vpop.permute.xlu0 %644
      %646 = vrot.lane.b32.xlu0 %v632, 16
      %v647 = vpop.permute.xlu0 %646
      %648 = vrot.lane.b32.xlu0 %v633, 16
      %v649 = vpop.permute.xlu0 %648
      %v666 = vunpack.c.l.b16 %v498
      %v667 = vunpack.c.l.b16 %v499
      %v668 = vunpack.c.l.b16 %v500
      %v669 = vunpack.c.l.b16 %v501
      %v670 = vunpack.c.l.b16 %v502
      %v671 = vunpack.c.l.b16 %v503
      %v672 = vunpack.c.l.b16 %v504
      %v673 = vunpack.c.l.b16 %v505
      %v674 = vunpack.c.l.b16 %v506
      %v675 = vunpack.c.l.b16 %v507
      %v676 = vunpack.c.l.b16 %v508
      %v677 = vunpack.c.l.b16 %v509
      %v678 = vunpack.c.l.b16 %v510
      %v679 = vunpack.c.l.b16 %v511
      %v680 = vunpack.c.l.b16 %v512
      %v681 = vunpack.c.l.b16 %v513
      %v682 = vpack.c.b16 %v667, %v666
      %v683 = vpack.c.b16 %v669, %v668
      %v684 = vpack.c.b16 %v671, %v670
      %v685 = vpack.c.b16 %v673, %v672
      %v686 = vpack.c.b16 %v675, %v674
      %v687 = vpack.c.b16 %v677, %v676
      %v688 = vpack.c.b16 %v679, %v678
      %v689 = vpack.c.b16 %v681, %v680
      %v690 = vrot.slane %v682, 3
      %v691 = vrot.slane %v683, 3
      %v692 = vrot.slane %v684, 3
      %v693 = vrot.slane %v685, 3
      %v694 = vrot.slane %v686, 3
      %v695 = vrot.slane %v687, 3
      %v696 = vrot.slane %v688, 3
      %v697 = vrot.slane %v689, 3
      %698 = vrot.lane.b32.xlu0 %v690, 24
      %v699 = vpop.permute.xlu0 %698
      %700 = vrot.lane.b32.xlu0 %v691, 24
      %v701 = vpop.permute.xlu0 %700
      %702 = vrot.lane.b32.xlu0 %v692, 24
      %v703 = vpop.permute.xlu0 %702
      %704 = vrot.lane.b32.xlu0 %v693, 24
      %v705 = vpop.permute.xlu0 %704
      %706 = vrot.lane.b32.xlu0 %v694, 24
      %v707 = vpop.permute.xlu0 %706
      %708 = vrot.lane.b32.xlu0 %v695, 24
      %v709 = vpop.permute.xlu0 %708
      %710 = vrot.lane.b32.xlu0 %v696, 24
      %v711 = vpop.permute.xlu0 %710
      %712 = vrot.lane.b32.xlu0 %v697, 24
      %v713 = vpop.permute.xlu0 %712
      %v722 = vunpack.c.l.b16 %v514
      %v723 = vunpack.c.l.b16 %v515
      %v724 = vunpack.c.l.b16 %v516
      %v725 = vunpack.c.l.b16 %v517
      %v726 = vunpack.c.l.b16 %v518
      %v727 = vunpack.c.l.b16 %v519
      %v728 = vunpack.c.l.b16 %v520
      %v729 = vunpack.c.l.b16 %v521
      %v730 = vpack.c.b16 %v722, %v722
      %v731 = vpack.c.b16 %v723, %v723
      %v732 = vpack.c.b16 %v724, %v724
      %v733 = vpack.c.b16 %v725, %v725
      %v734 = vpack.c.b16 %v726, %v726
      %v735 = vpack.c.b16 %v727, %v727
      %v736 = vpack.c.b16 %v728, %v728
      %v737 = vpack.c.b16 %v729, %v729
      %738 = vrot.lane.b32.xlu0 %v730, 32
      %v739 = vpop.permute.xlu0 %738
      %740 = vrot.lane.b32.xlu0 %v731, 32
      %v741 = vpop.permute.xlu0 %740
      %742 = vrot.lane.b32.xlu0 %v732, 32
      %v743 = vpop.permute.xlu0 %742
      %744 = vrot.lane.b32.xlu0 %v733, 32
      %v745 = vpop.permute.xlu0 %744
      %746 = vrot.lane.b32.xlu0 %v734, 32
      %v747 = vpop.permute.xlu0 %746
      %748 = vrot.lane.b32.xlu0 %v735, 32
      %v749 = vpop.permute.xlu0 %748
      %750 = vrot.lane.b32.xlu0 %v736, 32
      %v751 = vpop.permute.xlu0 %750
      %752 = vrot.lane.b32.xlu0 %v737, 32
      %v753 = vpop.permute.xlu0 %752
      %vm754 = vcmask 64512
      %v757 = vsel %vm754, %v458, %v571
      %v760 = vsel %vm754, %v459, %v573
      %v763 = vsel %vm754, %v460, %v575
      %v766 = vsel %vm754, %v461, %v577
      %v769 = vsel %vm754, %v462, %v579
      %v772 = vsel %vm754, %v463, %v581
      %v775 = vsel %vm754, %v464, %v583
      %v778 = vsel %vm754, %v465, %v585
      %vm779 = vcmask 130048
      %v781 = vsel %vm779, %v757, %v635
      %v783 = vsel %vm779, %v760, %v637
      %v785 = vsel %vm779, %v763, %v639
      %v787 = vsel %vm779, %v766, %v641
      %v789 = vsel %vm779, %v769, %v643
      %v791 = vsel %vm779, %v772, %v645
      %v793 = vsel %vm779, %v775, %v647
      %v795 = vsel %vm779, %v778, %v649
      %vm796 = vcmask 195584
      %v798 = vsel %vm796, %v781, %v699
      %v800 = vsel %vm796, %v783, %v701
      %v802 = vsel %vm796, %v785, %v703
      %v804 = vsel %vm796, %v787, %v705
      %v806 = vsel %vm796, %v789, %v707
      %v808 = vsel %vm796, %v791, %v709
      %v810 = vsel %vm796, %v793, %v711
      %v812 = vsel %vm796, %v795, %v713
      %vm813 = vcmask 261120
      %v815 = vsel %vm813, %v798, %v739
      %v817 = vsel %vm813, %v800, %v741
      %v819 = vsel %vm813, %v802, %v743
      %v821 = vsel %vm813, %v804, %v745
      %v823 = vsel %vm813, %v806, %v747
      %v825 = vsel %vm813, %v808, %v749
      %v827 = vsel %vm813, %v810, %v751
      %v829 = vsel %vm813, %v812, %v753
      %v830 = vld [vmem:[%s274] sm:$0xf]
      %v831 = vld [vmem:[%s274 + $0x4] sm:$0xf]
      %v832 = vld [vmem:[%s274 + $0x8] sm:$0xf]
      %v833 = vld [vmem:[%s274 + $0xc] sm:$0xf]
      %v834 = vld [vmem:[%s274 + $0x10] sm:$0xf]
      %s835 = scalar_lea.vmem [#allocation2], 16
      %v836 = vld [vmem:[%s835] sm:$0xf]
      %v837 = vld [vmem:[%s835 + $0x8] sm:$0xf]
      %v838 = vld [vmem:[%s835 + $0x10] sm:$0xf]
      %v839 = vld [vmem:[%s835 + $0x18] sm:$0xf]
      %v840 = vld [vmem:[%s835 + $0x20] sm:$0xf]
      %v841 = vld [vmem:[%s835 + $0x28] sm:$0xf]
      %v842 = vld [vmem:[%s835 + $0x30] sm:$0xf]
      %v843 = vld [vmem:[%s835 + $0x38] sm:$0xf]
      %v844 = vld [vmem:[%s835] sm:$0xe]
      %v845 = vld [vmem:[%s835 + $0x4] sm:$0x1]
      %v846 = vld [vmem:[%s835 + $0x8] sm:$0xe]
      %v847 = vld [vmem:[%s835 + $0xc] sm:$0x1]
      %v848 = vld [vmem:[%s835 + $0x10] sm:$0xe]
      %v849 = vld [vmem:[%s835 + $0x14] sm:$0x1]
      %v850 = vld [vmem:[%s835 + $0x18] sm:$0xe]
      %v851 = vld [vmem:[%s835 + $0x1c] sm:$0x1]
      %v852 = vld [vmem:[%s835 + $0x20] sm:$0xe]
      %v853 = vld [vmem:[%s835 + $0x24] sm:$0x1]
      %v854 = vld [vmem:[%s835 + $0x28] sm:$0xe]
      %v855 = vld [vmem:[%s835 + $0x2c] sm:$0x1]
      %v856 = vld [vmem:[%s835 + $0x30] sm:$0xe]
      %v857 = vld [vmem:[%s835 + $0x34] sm:$0x1]
      %v858 = vld [vmem:[%s835 + $0x38] sm:$0xe]
      %v859 = vld [vmem:[%s835 + $0x3c] sm:$0x1]
      %v860 = vld [vmem:[%s835] sm:$0xc]
      %v861 = vld [vmem:[%s835 + $0x4] sm:$0x3]
      %v862 = vld [vmem:[%s835 + $0x8] sm:$0xc]
      %v863 = vld [vmem:[%s835 + $0xc] sm:$0x3]
      %v864 = vld [vmem:[%s835 + $0x10] sm:$0xc]
      %v865 = vld [vmem:[%s835 + $0x14] sm:$0x3]
      %v866 = vld [vmem:[%s835 + $0x18] sm:$0xc]
      %v867 = vld [vmem:[%s835 + $0x1c] sm:$0x3]
      %v868 = vld [vmem:[%s835 + $0x20] sm:$0xc]
      %v869 = vld [vmem:[%s835 + $0x24] sm:$0x3]
      %v870 = vld [vmem:[%s835 + $0x28] sm:$0xc]
      %v871 = vld [vmem:[%s835 + $0x2c] sm:$0x3]
      %v872 = vld [vmem:[%s835 + $0x30] sm:$0xc]
      %v873 = vld [vmem:[%s835 + $0x34] sm:$0x3]
      %v874 = vld [vmem:[%s835 + $0x38] sm:$0xc]
      %v875 = vld [vmem:[%s835 + $0x3c] sm:$0x3]
      %v876 = vld [vmem:[%s835] sm:$0x8]
      %v877 = vld [vmem:[%s835 + $0x4] sm:$0x7]
      %v878 = vld [vmem:[%s835 + $0x8] sm:$0x8]
      %v879 = vld [vmem:[%s835 + $0xc] sm:$0x7]
      %v880 = vld [vmem:[%s835 + $0x10] sm:$0x8]
      %v881 = vld [vmem:[%s835 + $0x14] sm:$0x7]
      %v882 = vld [vmem:[%s835 + $0x18] sm:$0x8]
      %v883 = vld [vmem:[%s835 + $0x1c] sm:$0x7]
      %v884 = vld [vmem:[%s835 + $0x20] sm:$0x8]
      %v885 = vld [vmem:[%s835 + $0x24] sm:$0x7]
      %v886 = vld [vmem:[%s835 + $0x28] sm:$0x8]
      %v887 = vld [vmem:[%s835 + $0x2c] sm:$0x7]
      %v888 = vld [vmem:[%s835 + $0x30] sm:$0x8]
      %v889 = vld [vmem:[%s835 + $0x34] sm:$0x7]
      %v890 = vld [vmem:[%s835 + $0x38] sm:$0x8]
      %v891 = vld [vmem:[%s835 + $0x3c] sm:$0x7]
      %v892 = vld [vmem:[%s835 + $0x4] sm:$0xf]
      %v893 = vld [vmem:[%s835 + $0xc] sm:$0xf]
      %v894 = vld [vmem:[%s835 + $0x14] sm:$0xf]
      %v895 = vld [vmem:[%s835 + $0x1c] sm:$0xf]
      %v896 = vld [vmem:[%s835 + $0x24] sm:$0xf]
      %v897 = vld [vmem:[%s835 + $0x2c] sm:$0xf]
      %v898 = vld [vmem:[%s835 + $0x34] sm:$0xf]
      %v899 = vld [vmem:[%s835 + $0x3c] sm:$0xf]
      %v916 = vunpack.c.l.b16 %v844
      %v917 = vunpack.c.l.b16 %v845
      %v918 = vunpack.c.l.b16 %v846
      %v919 = vunpack.c.l.b16 %v847
      %v920 = vunpack.c.l.b16 %v848
      %v921 = vunpack.c.l.b16 %v849
      %v922 = vunpack.c.l.b16 %v850
      %v923 = vunpack.c.l.b16 %v851
      %v924 = vunpack.c.l.b16 %v852
      %v925 = vunpack.c.l.b16 %v853
      %v926 = vunpack.c.l.b16 %v854
      %v927 = vunpack.c.l.b16 %v855
      %v928 = vunpack.c.l.b16 %v856
      %v929 = vunpack.c.l.b16 %v857
      %v930 = vunpack.c.l.b16 %v858
      %v931 = vunpack.c.l.b16 %v859
      %v932 = vpack.c.b16 %v917, %v916
      %v933 = vpack.c.b16 %v919, %v918
      %v934 = vpack.c.b16 %v921, %v920
      %v935 = vpack.c.b16 %v923, %v922
      %v936 = vpack.c.b16 %v925, %v924
      %v937 = vpack.c.b16 %v927, %v926
      %v938 = vpack.c.b16 %v929, %v928
      %v939 = vpack.c.b16 %v931, %v930
      %v940 = vrot.slane %v932, 1
      %v941 = vrot.slane %v933, 1
      %v942 = vrot.slane %v934, 1
      %v943 = vrot.slane %v935, 1
      %v944 = vrot.slane %v936, 1
      %v945 = vrot.slane %v937, 1
      %v946 = vrot.slane %v938, 1
      %v947 = vrot.slane %v939, 1
      %948 = vrot.lane.b32.xlu0 %v940, 8
      %v949 = vpop.permute.xlu0 %948
      %950 = vrot.lane.b32.xlu0 %v941, 8
      %v951 = vpop.permute.xlu0 %950
      %952 = vrot.lane.b32.xlu0 %v942, 8
      %v953 = vpop.permute.xlu0 %952
      %954 = vrot.lane.b32.xlu0 %v943, 8
      %v955 = vpop.permute.xlu0 %954
      %956 = vrot.lane.b32.xlu0 %v944, 8
      %v957 = vpop.permute.xlu0 %956
      %958 = vrot.lane.b32.xlu0 %v945, 8
      %v959 = vpop.permute.xlu0 %958
      %960 = vrot.lane.b32.xlu0 %v946, 8
      %v961 = vpop.permute.xlu0 %960
      %962 = vrot.lane.b32.xlu0 %v947, 8
      %v963 = vpop.permute.xlu0 %962
      %v980 = vunpack.c.l.b16 %v860
      %v981 = vunpack.c.l.b16 %v861
      %v982 = vunpack.c.l.b16 %v862
      %v983 = vunpack.c.l.b16 %v863
      %v984 = vunpack.c.l.b16 %v864
      %v985 = vunpack.c.l.b16 %v865
      %v986 = vunpack.c.l.b16 %v866
      %v987 = vunpack.c.l.b16 %v867
      %v988 = vunpack.c.l.b16 %v868
      %v989 = vunpack.c.l.b16 %v869
      %v990 = vunpack.c.l.b16 %v870
      %v991 = vunpack.c.l.b16 %v871
      %v992 = vunpack.c.l.b16 %v872
      %v993 = vunpack.c.l.b16 %v873
      %v994 = vunpack.c.l.b16 %v874
      %v995 = vunpack.c.l.b16 %v875
      %v996 = vpack.c.b16 %v981, %v980
      %v997 = vpack.c.b16 %v983, %v982
      %v998 = vpack.c.b16 %v985, %v984
      %v999 = vpack.c.b16 %v987, %v986
      %v1000 = vpack.c.b16 %v989, %v988
      %v1001 = vpack.c.b16 %v991, %v990
      %v1002 = vpack.c.b16 %v993, %v992
      %v1003 = vpack.c.b16 %v995, %v994
      %v1004 = vrot.slane %v996, 2
      %v1005 = vrot.slane %v997, 2
      %v1006 = vrot.slane %v998, 2
      %v1007 = vrot.slane %v999, 2
      %v1008 = vrot.slane %v1000, 2
      %v1009 = vrot.slane %v1001, 2
      %v1010 = vrot.slane %v1002, 2
      %v1011 = vrot.slane %v1003, 2
      %1012 = vrot.lane.b32.xlu0 %v1004, 16
      %v1013 = vpop.permute.xlu0 %1012
      %1014 = vrot.lane.b32.xlu0 %v1005, 16
      %v1015 = vpop.permute.xlu0 %1014
      %1016 = vrot.lane.b32.xlu0 %v1006, 16
      %v1017 = vpop.permute.xlu0 %1016
      %1018 = vrot.lane.b32.xlu0 %v1007, 16
      %v1019 = vpop.permute.xlu0 %1018
      %1020 = vrot.lane.b32.xlu0 %v1008, 16
      %v1021 = vpop.permute.xlu0 %1020
      %1022 = vrot.lane.b32.xlu0 %v1009, 16
      %v1023 = vpop.permute.xlu0 %1022
      %1024 = vrot.lane.b32.xlu0 %v1010, 16
      %v1025 = vpop.permute.xlu0 %1024
      %1026 = vrot.lane.b32.xlu0 %v1011, 16
      %v1027 = vpop.permute.xlu0 %1026
      %v1044 = vunpack.c.l.b16 %v876
      %v1045 = vunpack.c.l.b16 %v877
      %v1046 = vunpack.c.l.b16 %v878
      %v1047 = vunpack.c.l.b16 %v879
      %v1048 = vunpack.c.l.b16 %v880
      %v1049 = vunpack.c.l.b16 %v881
      %v1050 = vunpack.c.l.b16 %v882
      %v1051 = vunpack.c.l.b16 %v883
      %v1052 = vunpack.c.l.b16 %v884
      %v1053 = vunpack.c.l.b16 %v885
      %v1054 = vunpack.c.l.b16 %v886
      %v1055 = vunpack.c.l.b16 %v887
      %v1056 = vunpack.c.l.b16 %v888
      %v1057 = vunpack.c.l.b16 %v889
      %v1058 = vunpack.c.l.b16 %v890
      %v1059 = vunpack.c.l.b16 %v891
      %v1060 = vpack.c.b16 %v1045, %v1044
      %v1061 = vpack.c.b16 %v1047, %v1046
      %v1062 = vpack.c.b16 %v1049, %v1048
      %v1063 = vpack.c.b16 %v1051, %v1050
      %v1064 = vpack.c.b16 %v1053, %v1052
      %v1065 = vpack.c.b16 %v1055, %v1054
      %v1066 = vpack.c.b16 %v1057, %v1056
      %v1067 = vpack.c.b16 %v1059, %v1058
      %v1068 = vrot.slane %v1060, 3
      %v1069 = vrot.slane %v1061, 3
      %v1070 = vrot.slane %v1062, 3
      %v1071 = vrot.slane %v1063, 3
      %v1072 = vrot.slane %v1064, 3
      %v1073 = vrot.slane %v1065, 3
      %v1074 = vrot.slane %v1066, 3
      %v1075 = vrot.slane %v1067, 3
      %1076 = vrot.lane.b32.xlu0 %v1068, 24
      %v1077 = vpop.permute.xlu0 %1076
      %1078 = vrot.lane.b32.xlu0 %v1069, 24
      %v1079 = vpop.permute.xlu0 %1078
      %1080 = vrot.lane.b32.xlu0 %v1070, 24
      %v1081 = vpop.permute.xlu0 %1080
      %1082 = vrot.lane.b32.xlu0 %v1071, 24
      %v1083 = vpop.permute.xlu0 %1082
      %1084 = vrot.lane.b32.xlu0 %v1072, 24
      %v1085 = vpop.permute.xlu0 %1084
      %1086 = vrot.lane.b32.xlu0 %v1073, 24
      %v1087 = vpop.permute.xlu0 %1086
      %1088 = vrot.lane.b32.xlu0 %v1074, 24
      %v1089 = vpop.permute.xlu0 %1088
      %1090 = vrot.lane.b32.xlu0 %v1075, 24
      %v1091 = vpop.permute.xlu0 %1090
      %v1100 = vunpack.c.l.b16 %v892
      %v1101 = vunpack.c.l.b16 %v893
      %v1102 = vunpack.c.l.b16 %v894
      %v1103 = vunpack.c.l.b16 %v895
      %v1104 = vunpack.c.l.b16 %v896
      %v1105 = vunpack.c.l.b16 %v897
      %v1106 = vunpack.c.l.b16 %v898
      %v1107 = vunpack.c.l.b16 %v899
      %v1108 = vpack.c.b16 %v1100, %v1100
      %v1109 = vpack.c.b16 %v1101, %v1101
      %v1110 = vpack.c.b16 %v1102, %v1102
      %v1111 = vpack.c.b16 %v1103, %v1103
      %v1112 = vpack.c.b16 %v1104, %v1104
      %v1113 = vpack.c.b16 %v1105, %v1105
      %v1114 = vpack.c.b16 %v1106, %v1106
      %v1115 = vpack.c.b16 %v1107, %v1107
      %1116 = vrot.lane.b32.xlu0 %v1108, 32
      %v1117 = vpop.permute.xlu0 %1116
      %1118 = vrot.lane.b32.xlu0 %v1109, 32
      %v1119 = vpop.permute.xlu0 %1118
      %1120 = vrot.lane.b32.xlu0 %v1110, 32
      %v1121 = vpop.permute.xlu0 %1120
      %1122 = vrot.lane.b32.xlu0 %v1111, 32
      %v1123 = vpop.permute.xlu0 %1122
      %1124 = vrot.lane.b32.xlu0 %v1112, 32
      %v1125 = vpop.permute.xlu0 %1124
      %1126 = vrot.lane.b32.xlu0 %v1113, 32
      %v1127 = vpop.permute.xlu0 %1126
      %1128 = vrot.lane.b32.xlu0 %v1114, 32
      %v1129 = vpop.permute.xlu0 %1128
      %1130 = vrot.lane.b32.xlu0 %v1115, 32
      %v1131 = vpop.permute.xlu0 %1130
      %v1134 = vsel %vm754, %v836, %v949
      %v1137 = vsel %vm754, %v837, %v951
      %v1140 = vsel %vm754, %v838, %v953
      %v1143 = vsel %vm754, %v839, %v955
      %v1146 = vsel %vm754, %v840, %v957
      %v1149 = vsel %vm754, %v841, %v959
      %v1152 = vsel %vm754, %v842, %v961
      %v1155 = vsel %vm754, %v843, %v963
      %v1157 = vsel %vm779, %v1134, %v1013
      %v1159 = vsel %vm779, %v1137, %v1015
      %v1161 = vsel %vm779, %v1140, %v1017
      %v1163 = vsel %vm779, %v1143, %v1019
      %v1165 = vsel %vm779, %v1146, %v1021
      %v1167 = vsel %vm779, %v1149, %v1023
      %v1169 = vsel %vm779, %v1152, %v1025
      %v1171 = vsel %vm779, %v1155, %v1027
      %v1173 = vsel %vm796, %v1157, %v1077
      %v1175 = vsel %vm796, %v1159, %v1079
      %v1177 = vsel %vm796, %v1161, %v1081
      %v1179 = vsel %vm796, %v1163, %v1083
      %v1181 = vsel %vm796, %v1165, %v1085
      %v1183 = vsel %vm796, %v1167, %v1087
      %v1185 = vsel %vm796, %v1169, %v1089
      %v1187 = vsel %vm796, %v1171, %v1091
      %v1189 = vsel %vm813, %v1173, %v1117
      %v1191 = vsel %vm813, %v1175, %v1119
      %v1193 = vsel %vm813, %v1177, %v1121
      %v1195 = vsel %vm813, %v1179, %v1123
      %v1197 = vsel %vm813, %v1181, %v1125
      %v1199 = vsel %vm813, %v1183, %v1127
      %v1201 = vsel %vm813, %v1185, %v1129
      %v1203 = vsel %vm813, %v1187, %v1131
      %s1204 = scalar_lea.vmem %s274, 20
      %v1205 = vld [vmem:[%s1204] sm:$0xf]
      %v1206 = vld [vmem:[%s1204 + $0x4] sm:$0xf]
      %v1207 = vld [vmem:[%s1204 + $0x8] sm:$0xf]
      %v1208 = vld [vmem:[%s1204 + $0xc] sm:$0xf]
      %v1209 = vld [vmem:[%s1204 + $0x10] sm:$0xf]
      %v1218 = vunpack.c.l.b16 %v1189
      %v1219 = vunpack.c.l.b16 %v1191
      %v1220 = vunpack.c.l.b16 %v1193
      %v1221 = vunpack.c.l.b16 %v1195
      %v1222 = vunpack.c.l.b16 %v1197
      %v1223 = vunpack.c.l.b16 %v1199
      %v1224 = vunpack.c.l.b16 %v1201
      %v1225 = vunpack.c.l.b16 %v1203
      %v1226 = vpack.c.b16 %v1219, %v1218
      %v1227 = vpack.c.b16 %v1221, %v1220
      %v1228 = vpack.c.b16 %v1223, %v1222
      %v1229 = vpack.c.b16 %v1225, %v1224
      %v1235 = vunpack.c.l.b16 %v1205
      %v1236 = vunpack.c.l.b16 %v1206
      %v1237 = vunpack.c.l.b16 %v1207
      %v1238 = vunpack.c.l.b16 %v1208
      %v1239 = vunpack.c.l.b16 %v1209
      %v1240 = vpack.c.b16 %v1236, %v1235
      %v1241 = vpack.c.b16 %v1238, %v1237
      %v1242 = vpack.c.b16 %v1239, %v1239
      %vm1245 = vcmask 326656
      %v1247 = vsel %vm1245, %v1226, 0
      %v1250 = vsel %vm1245, %v1227, 0
      %v1253 = vsel %vm1245, %v1228, 0
      %v1256 = vsel %vm1245, %v1229, 0
      %vm1258 = vcmask 1043456
      %v1260 = vsel %vm1258, %v1242, 0
      %1262 = vmatprep.subr.bf16.mxu0 0
      %1263 = vmatpush1.bf16.msra.mxu0 0
      %1264 = vmatprep.subr.bf16.mxu0 0
      %1265 = vmatpush1.bf16.msra.mxu0 0
      %1266 = vmatprep.subr.bf16.mxu0 0
      %1267 = vmatpush1.bf16.msra.mxu0 0
      %1268 = vmatprep.subr.bf16.mxu0 0
      %1269 = vmatpush1.bf16.msra.mxu0 0
      %1270 = vmatprep.subr.bf16.mxu0 0
      %1271 = vmatpush1.bf16.msra.mxu0 0
      %1272 = vmatprep.subr.bf16.mxu0 0
      %1273 = vmatpush1.bf16.msra.mxu0 %v1260
      %1274 = vmatprep.subr.bf16.mxu0 0
      %1275 = vmatpush1.bf16.msra.mxu0 %v1241
      %1276 = vmatprep.subr.bf16.mxu0 0
      %1277 = vmatpush1.bf16.msra.mxu0 %v1240
      %1278 = vmatprep.subr.bf16.mxu0 0
      %1279 = vmatpush2.bf16.msra.mxu0 0
      %1280 = vmatprep.subr.bf16.mxu0 0
      %1281 = vmatpush2.bf16.msra.mxu0 0
      %1282 = vmatprep.subr.bf16.mxu0 0
      %1283 = vmatpush2.bf16.msra.mxu0 0
      %1284 = vmatprep.subr.bf16.mxu0 0
      %1285 = vmatpush2.bf16.msra.mxu0 0
      %1286 = vmatprep.subr.bf16.mxu0 0
      %1287 = vmatpush2.bf16.msra.mxu0 0
      %1288 = vmatprep.subr.bf16.mxu0 0
      %1289 = vmatpush2.bf16.msra.mxu0 0
      %1290 = vmatprep.subr.bf16.mxu0 0
      %1291 = vmatpush2.bf16.msra.mxu0 0
      %1292 = vmatprep.subr.bf16.mxu0 0
      %1293 = vmatpush2.bf16.msra.mxu0 0
      %1294 = vmatprep.mubr.bf16.mxu0 0
      %1295 = vmatmul.mubr.bf16.gmra.mxu0 %v1247
      %v1296 = vpop.f32.mrf.mxu0
      %v1297 = vadd.f32 0.0, %v1296
      %v1298 = vpop.f32.mrf.mxu0
      %v1299 = vpop.f32.mrf.mxu0
      %v1300 = vadd.f32 0.0, %v1299
      %v1301 = vpop.f32.mrf.mxu0
      %1302 = vmatprep.mubr.bf16.mxu0 0
      %1303 = vmatmul.mubr.bf16.gmra.mxu0 %v1250
      %v1304 = vpop.f32.mrf.mxu0
      %v1305 = vadd.f32 0.0, %v1304
      %v1306 = vpop.f32.mrf.mxu0
      %v1307 = vpop.f32.mrf.mxu0
      %v1308 = vadd.f32 0.0, %v1307
      %v1309 = vpop.f32.mrf.mxu0
      %1310 = vmatprep.mubr.bf16.mxu0 0
      %1311 = vmatmul.mubr.bf16.gmra.mxu0 %v1253
      %v1312 = vpop.f32.mrf.mxu0
      %v1313 = vadd.f32 0.0, %v1312
      %v1314 = vpop.f32.mrf.mxu0
      %v1315 = vpop.f32.mrf.mxu0
      %v1316 = vadd.f32 0.0, %v1315
      %v1317 = vpop.f32.mrf.mxu0
      %1318 = vmatprep.mubr.bf16.mxu0 0
      %1319 = vmatmul.mubr.bf16.gmra.mxu0 %v1256
      %v1320 = vpop.f32.mrf.mxu0
      %v1321 = vadd.f32 0.0, %v1320
      %v1322 = vpop.f32.mrf.mxu0
      %v1323 = vpop.f32.mrf.mxu0
      %v1324 = vadd.f32 0.0, %v1323
      %v1325 = vpop.f32.mrf.mxu0
      %1326 = vdwg.mxu0
      %v1335 = vunpack.c.l.b16 %v815
      %v1336 = vunpack.c.l.b16 %v817
      %v1337 = vunpack.c.l.b16 %v819
      %v1338 = vunpack.c.l.b16 %v821
      %v1339 = vunpack.c.l.b16 %v823
      %v1340 = vunpack.c.l.b16 %v825
      %v1341 = vunpack.c.l.b16 %v827
      %v1342 = vunpack.c.l.b16 %v829
      %v1343 = vpack.c.b16 %v1336, %v1335
      %v1344 = vpack.c.b16 %v1338, %v1337
      %v1345 = vpack.c.b16 %v1340, %v1339
      %v1346 = vpack.c.b16 %v1342, %v1341
      %v1352 = vunpack.c.l.b16 %v830
      %v1353 = vunpack.c.l.b16 %v831
      %v1354 = vunpack.c.l.b16 %v832
      %v1355 = vunpack.c.l.b16 %v833
      %v1356 = vunpack.c.l.b16 %v834
      %v1357 = vpack.c.b16 %v1353, %v1352
      %v1358 = vpack.c.b16 %v1355, %v1354
      %v1359 = vpack.c.b16 %v1356, %v1356
      %v1363 = vsel %vm1245, %v1343, 0
      %v1366 = vsel %vm1245, %v1344, 0
      %v1369 = vsel %vm1245, %v1345, 0
      %v1372 = vsel %vm1245, %v1346, 0
      %v1375 = vsel %vm1258, %v1359, 0
      %1377 = vmatprep.subr.bf16.mxu0 0
      %1378 = vmatpush1.bf16.msra.mxu0 0
      %1379 = vmatprep.subr.bf16.mxu0 0
      %1380 = vmatpush1.bf16.msra.mxu0 0
      %1381 = vmatprep.subr.bf16.mxu0 0
      %1382 = vmatpush1.bf16.msra.mxu0 0
      %1383 = vmatprep.subr.bf16.mxu0 0
      %1384 = vmatpush1.bf16.msra.mxu0 0
      %1385 = vmatprep.subr.bf16.mxu0 0
      %1386 = vmatpush1.bf16.msra.mxu0 0
      %1387 = vmatprep.subr.bf16.mxu0 0
      %1388 = vmatpush1.bf16.msra.mxu0 %v1375
      %1389 = vmatprep.subr.bf16.mxu0 0
      %1390 = vmatpush1.bf16.msra.mxu0 %v1358
      %1391 = vmatprep.subr.bf16.mxu0 0
      %1392 = vmatpush1.bf16.msra.mxu0 %v1357
      %1393 = vmatprep.subr.bf16.mxu0 0
      %1394 = vmatpush2.bf16.msra.mxu0 0
      %1395 = vmatprep.subr.bf16.mxu0 0
      %1396 = vmatpush2.bf16.msra.mxu0 0
      %1397 = vmatprep.subr.bf16.mxu0 0
      %1398 = vmatpush2.bf16.msra.mxu0 0
      %1399 = vmatprep.subr.bf16.mxu0 0
      %1400 = vmatpush2.bf16.msra.mxu0 0
      %1401 = vmatprep.subr.bf16.mxu0 0
      %1402 = vmatpush2.bf16.msra.mxu0 0
      %1403 = vmatprep.subr.bf16.mxu0 0
      %1404 = vmatpush2.bf16.msra.mxu0 0
      %1405 = vmatprep.subr.bf16.mxu0 0
      %1406 = vmatpush2.bf16.msra.mxu0 0
      %1407 = vmatprep.subr.bf16.mxu0 0
      %1408 = vmatpush2.bf16.msra.mxu0 0
      %1409 = vmatprep.mubr.bf16.mxu0 0
      %1410 = vmatmul.mubr.bf16.gmra.mxu0 %v1363
      %v1411 = vpop.f32.mrf.mxu0
      %v1412 = vadd.f32 %v1297, %v1411
      %v1413 = vpop.f32.mrf.mxu0
      %v1414 = vpop.f32.mrf.mxu0
      %v1415 = vadd.f32 %v1300, %v1414
      %v1416 = vpop.f32.mrf.mxu0
      %1417 = vmatprep.mubr.bf16.mxu0 0
      %1418 = vmatmul.mubr.bf16.gmra.mxu0 %v1366
      %v1419 = vpop.f32.mrf.mxu0
      %v1420 = vadd.f32 %v1305, %v1419
      %v1421 = vpop.f32.mrf.mxu0
      %v1422 = vpop.f32.mrf.mxu0
      %v1423 = vadd.f32 %v1308, %v1422
      %v1424 = vpop.f32.mrf.mxu0
      %1425 = vmatprep.mubr.bf16.mxu0 0
      %1426 = vmatmul.mubr.bf16.gmra.mxu0 %v1369
      %v1427 = vpop.f32.mrf.mxu0
      %v1428 = vadd.f32 %v1313, %v1427
      %v1429 = vpop.f32.mrf.mxu0
      %v1430 = vpop.f32.mrf.mxu0
      %v1431 = vadd.f32 %v1316, %v1430
      %v1432 = vpop.f32.mrf.mxu0
      %1433 = vmatprep.mubr.bf16.mxu0 0
      %1434 = vmatmul.mubr.bf16.gmra.mxu0 %v1372
      %v1435 = vpop.f32.mrf.mxu0
      %v1436 = vadd.f32 %v1321, %v1435
      %v1437 = vpop.f32.mrf.mxu0
      %v1438 = vpop.f32.mrf.mxu0
      %v1439 = vadd.f32 %v1324, %v1438
      %v1440 = vpop.f32.mrf.mxu0
      %1441 = vdwg.mxu0
      %v1442 = vld [vmem:[%s439] sm:$0xf]
      %v1443 = vld [vmem:[%s439 + $0x8] sm:$0xf]
      %v1444 = vld [vmem:[%s439 + $0x10] sm:$0xf]
      %v1445 = vld [vmem:[%s439 + $0x18] sm:$0xf]
      %v1446 = vld [vmem:[%s439 + $0x20] sm:$0xf]
      %v1447 = vld [vmem:[%s439 + $0x28] sm:$0xf]
      %v1448 = vld [vmem:[%s439 + $0x30] sm:$0xf]
      %v1449 = vld [vmem:[%s439 + $0x38] sm:$0xf]
      %v1450 = vld [vmem:[%s439] sm:$0xe]
      %v1451 = vld [vmem:[%s439 + $0x4] sm:$0x1]
      %v1452 = vld [vmem:[%s439 + $0x8] sm:$0xe]
      %v1453 = vld [vmem:[%s439 + $0xc] sm:$0x1]
      %v1454 = vld [vmem:[%s439 + $0x10] sm:$0xe]
      %v1455 = vld [vmem:[%s439 + $0x14] sm:$0x1]
      %v1456 = vld [vmem:[%s439 + $0x18] sm:$0xe]
      %v1457 = vld [vmem:[%s439 + $0x1c] sm:$0x1]
      %v1458 = vld [vmem:[%s439 + $0x20] sm:$0xe]
      %v1459 = vld [vmem:[%s439 + $0x24] sm:$0x1]
      %v1460 = vld [vmem:[%s439 + $0x28] sm:$0xe]
      %v1461 = vld [vmem:[%s439 + $0x2c] sm:$0x1]
      %v1462 = vld [vmem:[%s439 + $0x30] sm:$0xe]
      %v1463 = vld [vmem:[%s439 + $0x34] sm:$0x1]
      %v1464 = vld [vmem:[%s439 + $0x38] sm:$0xe]
      %v1465 = vld [vmem:[%s439 + $0x3c] sm:$0x1]
      %v1466 = vld [vmem:[%s439] sm:$0xc]
      %v1467 = vld [vmem:[%s439 + $0x4] sm:$0x3]
      %v1468 = vld [vmem:[%s439 + $0x8] sm:$0xc]
      %v1469 = vld [vmem:[%s439 + $0xc] sm:$0x3]
      %v1470 = vld [vmem:[%s439 + $0x10] sm:$0xc]
      %v1471 = vld [vmem:[%s439 + $0x14] sm:$0x3]
      %v1472 = vld [vmem:[%s439 + $0x18] sm:$0xc]
      %v1473 = vld [vmem:[%s439 + $0x1c] sm:$0x3]
      %v1474 = vld [vmem:[%s439 + $0x20] sm:$0xc]
      %v1475 = vld [vmem:[%s439 + $0x24] sm:$0x3]
      %v1476 = vld [vmem:[%s439 + $0x28] sm:$0xc]
      %v1477 = vld [vmem:[%s439 + $0x2c] sm:$0x3]
      %v1478 = vld [vmem:[%s439 + $0x30] sm:$0xc]
      %v1479 = vld [vmem:[%s439 + $0x34] sm:$0x3]
      %v1480 = vld [vmem:[%s439 + $0x38] sm:$0xc]
      %v1481 = vld [vmem:[%s439 + $0x3c] sm:$0x3]
      %v1482 = vld [vmem:[%s439] sm:$0x8]
      %v1483 = vld [vmem:[%s439 + $0x4] sm:$0x7]
      %v1484 = vld [vmem:[%s439 + $0x8] sm:$0x8]
      %v1485 = vld [vmem:[%s439 + $0xc] sm:$0x7]
      %v1486 = vld [vmem:[%s439 + $0x10] sm:$0x8]
      %v1487 = vld [vmem:[%s439 + $0x14] sm:$0x7]
      %v1488 = vld [vmem:[%s439 + $0x18] sm:$0x8]
      %v1489 = vld [vmem:[%s439 + $0x1c] sm:$0x7]
      %v1490 = vld [vmem:[%s439 + $0x20] sm:$0x8]
      %v1491 = vld [vmem:[%s439 + $0x24] sm:$0x7]
      %v1492 = vld [vmem:[%s439 + $0x28] sm:$0x8]
      %v1493 = vld [vmem:[%s439 + $0x2c] sm:$0x7]
      %v1494 = vld [vmem:[%s439 + $0x30] sm:$0x8]
      %v1495 = vld [vmem:[%s439 + $0x34] sm:$0x7]
      %v1496 = vld [vmem:[%s439 + $0x38] sm:$0x8]
      %v1497 = vld [vmem:[%s439 + $0x3c] sm:$0x7]
      %v1498 = vld [vmem:[%s439 + $0x4] sm:$0xf]
      %v1499 = vld [vmem:[%s439 + $0xc] sm:$0xf]
      %v1500 = vld [vmem:[%s439 + $0x14] sm:$0xf]
      %v1501 = vld [vmem:[%s439 + $0x1c] sm:$0xf]
      %v1502 = vld [vmem:[%s439 + $0x24] sm:$0xf]
      %v1503 = vld [vmem:[%s439 + $0x2c] sm:$0xf]
      %v1504 = vld [vmem:[%s439 + $0x34] sm:$0xf]
      %v1505 = vld [vmem:[%s439 + $0x3c] sm:$0xf]
      %v1522 = vunpack.c.l.b16 %v1450
      %v1523 = vunpack.c.l.b16 %v1451
      %v1524 = vunpack.c.l.b16 %v1452
      %v1525 = vunpack.c.l.b16 %v1453
      %v1526 = vunpack.c.l.b16 %v1454
      %v1527 = vunpack.c.l.b16 %v1455
      %v1528 = vunpack.c.l.b16 %v1456
      %v1529 = vunpack.c.l.b16 %v1457
      %v1530 = vunpack.c.l.b16 %v1458
      %v1531 = vunpack.c.l.b16 %v1459
      %v1532 = vunpack.c.l.b16 %v1460
      %v1533 = vunpack.c.l.b16 %v1461
      %v1534 = vunpack.c.l.b16 %v1462
      %v1535 = vunpack.c.l.b16 %v1463
      %v1536 = vunpack.c.l.b16 %v1464
      %v1537 = vunpack.c.l.b16 %v1465
      %v1538 = vpack.c.b16 %v1523, %v1522
      %v1539 = vpack.c.b16 %v1525, %v1524
      %v1540 = vpack.c.b16 %v1527, %v1526
      %v1541 = vpack.c.b16 %v1529, %v1528
      %v1542 = vpack.c.b16 %v1531, %v1530
      %v1543 = vpack.c.b16 %v1533, %v1532
      %v1544 = vpack.c.b16 %v1535, %v1534
      %v1545 = vpack.c.b16 %v1537, %v1536
      %v1546 = vrot.slane %v1538, 1
      %v1547 = vrot.slane %v1539, 1
      %v1548 = vrot.slane %v1540, 1
      %v1549 = vrot.slane %v1541, 1
      %v1550 = vrot.slane %v1542, 1
      %v1551 = vrot.slane %v1543, 1
      %v1552 = vrot.slane %v1544, 1
      %v1553 = vrot.slane %v1545, 1
      %1554 = vrot.lane.b32.xlu0 %v1546, 8
      %v1555 = vpop.permute.xlu0 %1554
      %1556 = vrot.lane.b32.xlu0 %v1547, 8
      %v1557 = vpop.permute.xlu0 %1556
      %1558 = vrot.lane.b32.xlu0 %v1548, 8
      %v1559 = vpop.permute.xlu0 %1558
      %1560 = vrot.lane.b32.xlu0 %v1549, 8
      %v1561 = vpop.permute.xlu0 %1560
      %1562 = vrot.lane.b32.xlu0 %v1550, 8
      %v1563 = vpop.permute.xlu0 %1562
      %1564 = vrot.lane.b32.xlu0 %v1551, 8
      %v1565 = vpop.permute.xlu0 %1564
      %1566 = vrot.lane.b32.xlu0 %v1552, 8
      %v1567 = vpop.permute.xlu0 %1566
      %1568 = vrot.lane.b32.xlu0 %v1553, 8
      %v1569 = vpop.permute.xlu0 %1568
      %v1586 = vunpack.c.l.b16 %v1466
      %v1587 = vunpack.c.l.b16 %v1467
      %v1588 = vunpack.c.l.b16 %v1468
      %v1589 = vunpack.c.l.b16 %v1469
      %v1590 = vunpack.c.l.b16 %v1470
      %v1591 = vunpack.c.l.b16 %v1471
      %v1592 = vunpack.c.l.b16 %v1472
      %v1593 = vunpack.c.l.b16 %v1473
      %v1594 = vunpack.c.l.b16 %v1474
      %v1595 = vunpack.c.l.b16 %v1475
      %v1596 = vunpack.c.l.b16 %v1476
      %v1597 = vunpack.c.l.b16 %v1477
      %v1598 = vunpack.c.l.b16 %v1478
      %v1599 = vunpack.c.l.b16 %v1479
      %v1600 = vunpack.c.l.b16 %v1480
      %v1601 = vunpack.c.l.b16 %v1481
      %v1602 = vpack.c.b16 %v1587, %v1586
      %v1603 = vpack.c.b16 %v1589, %v1588
      %v1604 = vpack.c.b16 %v1591, %v1590
      %v1605 = vpack.c.b16 %v1593, %v1592
      %v1606 = vpack.c.b16 %v1595, %v1594
      %v1607 = vpack.c.b16 %v1597, %v1596
      %v1608 = vpack.c.b16 %v1599, %v1598
      %v1609 = vpack.c.b16 %v1601, %v1600
      %v1610 = vrot.slane %v1602, 2
      %v1611 = vrot.slane %v1603, 2
      %v1612 = vrot.slane %v1604, 2
      %v1613 = vrot.slane %v1605, 2
      %v1614 = vrot.slane %v1606, 2
      %v1615 = vrot.slane %v1607, 2
      %v1616 = vrot.slane %v1608, 2
      %v1617 = vrot.slane %v1609, 2
      %1618 = vrot.lane.b32.xlu0 %v1610, 16
      %v1619 = vpop.permute.xlu0 %1618
      %1620 = vrot.lane.b32.xlu0 %v1611, 16
      %v1621 = vpop.permute.xlu0 %1620
      %1622 = vrot.lane.b32.xlu0 %v1612, 16
      %v1623 = vpop.permute.xlu0 %1622
      %1624 = vrot.lane.b32.xlu0 %v1613, 16
      %v1625 = vpop.permute.xlu0 %1624
      %1626 = vrot.lane.b32.xlu0 %v1614, 16
      %v1627 = vpop.permute.xlu0 %1626
      %1628 = vrot.lane.b32.xlu0 %v1615, 16
      %v1629 = vpop.permute.xlu0 %1628
      %1630 = vrot.lane.b32.xlu0 %v1616, 16
      %v1631 = vpop.permute.xlu0 %1630
      %1632 = vrot.lane.b32.xlu0 %v1617, 16
      %v1633 = vpop.permute.xlu0 %1632
      %v1650 = vunpack.c.l.b16 %v1482
      %v1651 = vunpack.c.l.b16 %v1483
      %v1652 = vunpack.c.l.b16 %v1484
      %v1653 = vunpack.c.l.b16 %v1485
      %v1654 = vunpack.c.l.b16 %v1486
      %v1655 = vunpack.c.l.b16 %v1487
      %v1656 = vunpack.c.l.b16 %v1488
      %v1657 = vunpack.c.l.b16 %v1489
      %v1658 = vunpack.c.l.b16 %v1490
      %v1659 = vunpack.c.l.b16 %v1491
      %v1660 = vunpack.c.l.b16 %v1492
      %v1661 = vunpack.c.l.b16 %v1493
      %v1662 = vunpack.c.l.b16 %v1494
      %v1663 = vunpack.c.l.b16 %v1495
      %v1664 = vunpack.c.l.b16 %v1496
      %v1665 = vunpack.c.l.b16 %v1497
      %v1666 = vpack.c.b16 %v1651, %v1650
      %v1667 = vpack.c.b16 %v1653, %v1652
      %v1668 = vpack.c.b16 %v1655, %v1654
      %v1669 = vpack.c.b16 %v1657, %v1656
      %v1670 = vpack.c.b16 %v1659, %v1658
      %v1671 = vpack.c.b16 %v1661, %v1660
      %v1672 = vpack.c.b16 %v1663, %v1662
      %v1673 = vpack.c.b16 %v1665, %v1664
      %v1674 = vrot.slane %v1666, 3
      %v1675 = vrot.slane %v1667, 3
      %v1676 = vrot.slane %v1668, 3
      %v1677 = vrot.slane %v1669, 3
      %v1678 = vrot.slane %v1670, 3
      %v1679 = vrot.slane %v1671, 3
      %v1680 = vrot.slane %v1672, 3
      %v1681 = vrot.slane %v1673, 3
      %1682 = vrot.lane.b32.xlu0 %v1674, 24
      %v1683 = vpop.permute.xlu0 %1682
      %1684 = vrot.lane.b32.xlu0 %v1675, 24
      %v1685 = vpop.permute.xlu0 %1684
      %1686 = vrot.lane.b32.xlu0 %v1676, 24
      %v1687 = vpop.permute.xlu0 %1686
      %1688 = vrot.lane.b32.xlu0 %v1677, 24
      %v1689 = vpop.permute.xlu0 %1688
      %1690 = vrot.lane.b32.xlu0 %v1678, 24
      %v1691 = vpop.permute.xlu0 %1690
      %1692 = vrot.lane.b32.xlu0 %v1679, 24
      %v1693 = vpop.permute.xlu0 %1692
      %1694 = vrot.lane.b32.xlu0 %v1680, 24
      %v1695 = vpop.permute.xlu0 %1694
      %1696 = vrot.lane.b32.xlu0 %v1681, 24
      %v1697 = vpop.permute.xlu0 %1696
      %v1706 = vunpack.c.l.b16 %v1498
      %v1707 = vunpack.c.l.b16 %v1499
      %v1708 = vunpack.c.l.b16 %v1500
      %v1709 = vunpack.c.l.b16 %v1501
      %v1710 = vunpack.c.l.b16 %v1502
      %v1711 = vunpack.c.l.b16 %v1503
      %v1712 = vunpack.c.l.b16 %v1504
      %v1713 = vunpack.c.l.b16 %v1505
      %v1714 = vpack.c.b16 %v1706, %v1706
      %v1715 = vpack.c.b16 %v1707, %v1707
      %v1716 = vpack.c.b16 %v1708, %v1708
      %v1717 = vpack.c.b16 %v1709, %v1709
      %v1718 = vpack.c.b16 %v1710, %v1710
      %v1719 = vpack.c.b16 %v1711, %v1711
      %v1720 = vpack.c.b16 %v1712, %v1712
      %v1721 = vpack.c.b16 %v1713, %v1713
      %1722 = vrot.lane.b32.xlu0 %v1714, 32
      %v1723 = vpop.permute.xlu0 %1722
      %1724 = vrot.lane.b32.xlu0 %v1715, 32
      %v1725 = vpop.permute.xlu0 %1724
      %1726 = vrot.lane.b32.xlu0 %v1716, 32
      %v1727 = vpop.permute.xlu0 %1726
      %1728 = vrot.lane.b32.xlu0 %v1717, 32
      %v1729 = vpop.permute.xlu0 %1728
      %1730 = vrot.lane.b32.xlu0 %v1718, 32
      %v1731 = vpop.permute.xlu0 %1730
      %1732 = vrot.lane.b32.xlu0 %v1719, 32
      %v1733 = vpop.permute.xlu0 %1732
      %1734 = vrot.lane.b32.xlu0 %v1720, 32
      %v1735 = vpop.permute.xlu0 %1734
      %1736 = vrot.lane.b32.xlu0 %v1721, 32
      %v1737 = vpop.permute.xlu0 %1736
      %v1740 = vsel %vm754, %v1442, %v1555
      %v1743 = vsel %vm754, %v1443, %v1557
      %v1746 = vsel %vm754, %v1444, %v1559
      %v1749 = vsel %vm754, %v1445, %v1561
      %v1752 = vsel %vm754, %v1446, %v1563
      %v1755 = vsel %vm754, %v1447, %v1565
      %v1758 = vsel %vm754, %v1448, %v1567
      %v1761 = vsel %vm754, %v1449, %v1569
      %v1763 = vsel %vm779, %v1740, %v1619
      %v1765 = vsel %vm779, %v1743, %v1621
      %v1767 = vsel %vm779, %v1746, %v1623
      %v1769 = vsel %vm779, %v1749, %v1625
      %v1771 = vsel %vm779, %v1752, %v1627
      %v1773 = vsel %vm779, %v1755, %v1629
      %v1775 = vsel %vm779, %v1758, %v1631
      %v1777 = vsel %vm779, %v1761, %v1633
      %v1779 = vsel %vm796, %v1763, %v1683
      %v1781 = vsel %vm796, %v1765, %v1685
      %v1783 = vsel %vm796, %v1767, %v1687
      %v1785 = vsel %vm796, %v1769, %v1689
      %v1787 = vsel %vm796, %v1771, %v1691
      %v1789 = vsel %vm796, %v1773, %v1693
      %v1791 = vsel %vm796, %v1775, %v1695
      %v1793 = vsel %vm796, %v1777, %v1697
      %v1795 = vsel %vm813, %v1779, %v1723
      %v1797 = vsel %vm813, %v1781, %v1725
      %v1799 = vsel %vm813, %v1783, %v1727
      %v1801 = vsel %vm813, %v1785, %v1729
      %v1803 = vsel %vm813, %v1787, %v1731
      %v1805 = vsel %vm813, %v1789, %v1733
      %v1807 = vsel %vm813, %v1791, %v1735
      %v1809 = vsel %vm813, %v1793, %v1737
      %s1810 = scalar_lea.vmem %s274, 40
      %v1811 = vld [vmem:[%s1810] sm:$0xf]
      %v1812 = vld [vmem:[%s1810 + $0x4] sm:$0xf]
      %v1813 = vld [vmem:[%s1810 + $0x8] sm:$0xf]
      %v1814 = vld [vmem:[%s1810 + $0xc] sm:$0xf]
      %v1815 = vld [vmem:[%s1810 + $0x10] sm:$0xf]
      %v1824 = vunpack.c.l.b16 %v1795
      %v1825 = vunpack.c.l.b16 %v1797
      %v1826 = vunpack.c.l.b16 %v1799
      %v1827 = vunpack.c.l.b16 %v1801
      %v1828 = vunpack.c.l.b16 %v1803
      %v1829 = vunpack.c.l.b16 %v1805
      %v1830 = vunpack.c.l.b16 %v1807
      %v1831 = vunpack.c.l.b16 %v1809
      %v1832 = vpack.c.b16 %v1825, %v1824
      %v1833 = vpack.c.b16 %v1827, %v1826
      %v1834 = vpack.c.b16 %v1829, %v1828
      %v1835 = vpack.c.b16 %v1831, %v1830
      %v1841 = vunpack.c.l.b16 %v1811
      %v1842 = vunpack.c.l.b16 %v1812
      %v1843 = vunpack.c.l.b16 %v1813
      %v1844 = vunpack.c.l.b16 %v1814
      %v1845 = vunpack.c.l.b16 %v1815
      %v1846 = vpack.c.b16 %v1842, %v1841
      %v1847 = vpack.c.b16 %v1844, %v1843
      %v1848 = vpack.c.b16 %v1845, %v1845
      %v1852 = vsel %vm1245, %v1832, 0
      %v1855 = vsel %vm1245, %v1833, 0
      %v1858 = vsel %vm1245, %v1834, 0
      %v1861 = vsel %vm1245, %v1835, 0
      %v1864 = vsel %vm1258, %v1848, 0
      %1866 = vmatprep.subr.bf16.mxu0 0
      %1867 = vmatpush1.bf16.msra.mxu0 0
      %1868 = vmatprep.subr.bf16.mxu0 0
      %1869 = vmatpush1.bf16.msra.mxu0 0
      %1870 = vmatprep.subr.bf16.mxu0 0
      %1871 = vmatpush1.bf16.msra.mxu0 0
      %1872 = vmatprep.subr.bf16.mxu0 0
      %1873 = vmatpush1.bf16.msra.mxu0 0
      %1874 = vmatprep.subr.bf16.mxu0 0
      %1875 = vmatpush1.bf16.msra.mxu0 0
      %1876 = vmatprep.subr.bf16.mxu0 0
      %1877 = vmatpush1.bf16.msra.mxu0 %v1864
      %1878 = vmatprep.subr.bf16.mxu0 0
      %1879 = vmatpush1.bf16.msra.mxu0 %v1847
      %1880 = vmatprep.subr.bf16.mxu0 0
      %1881 = vmatpush1.bf16.msra.mxu0 %v1846
      %1882 = vmatprep.subr.bf16.mxu0 0
      %1883 = vmatpush2.bf16.msra.mxu0 0
      %1884 = vmatprep.subr.bf16.mxu0 0
      %1885 = vmatpush2.bf16.msra.mxu0 0
      %1886 = vmatprep.subr.bf16.mxu0 0
      %1887 = vmatpush2.bf16.msra.mxu0 0
      %1888 = vmatprep.subr.bf16.mxu0 0
      %1889 = vmatpush2.bf16.msra.mxu0 0
      %1890 = vmatprep.subr.bf16.mxu0 0
      %1891 = vmatpush2.bf16.msra.mxu0 0
      %1892 = vmatprep.subr.bf16.mxu0 0
      %1893 = vmatpush2.bf16.msra.mxu0 0
      %1894 = vmatprep.subr.bf16.mxu0 0
      %1895 = vmatpush2.bf16.msra.mxu0 0
      %1896 = vmatprep.subr.bf16.mxu0 0
      %1897 = vmatpush2.bf16.msra.mxu0 0
      %1898 = vmatprep.mubr.bf16.mxu0 0
      %1899 = vmatmul.mubr.bf16.gmra.mxu0 %v1852
      %v1900 = vpop.f32.mrf.mxu0
      %v1901 = vadd.f32 0.0, %v1900
      %v1902 = vpop.f32.mrf.mxu0
      %v1903 = vpop.f32.mrf.mxu0
      %v1904 = vadd.f32 0.0, %v1903
      %v1905 = vpop.f32.mrf.mxu0
      %1906 = vmatprep.mubr.bf16.mxu0 0
      %1907 = vmatmul.mubr.bf16.gmra.mxu0 %v1855
      %v1908 = vpop.f32.mrf.mxu0
      %v1909 = vadd.f32 0.0, %v1908
      %v1910 = vpop.f32.mrf.mxu0
      %v1911 = vpop.f32.mrf.mxu0
      %v1912 = vadd.f32 0.0, %v1911
      %v1913 = vpop.f32.mrf.mxu0
      %1914 = vmatprep.mubr.bf16.mxu0 0
      %1915 = vmatmul.mubr.bf16.gmra.mxu0 %v1858
      %v1916 = vpop.f32.mrf.mxu0
      %v1917 = vadd.f32 0.0, %v1916
      %v1918 = vpop.f32.mrf.mxu0
      %v1919 = vpop.f32.mrf.mxu0
      %v1920 = vadd.f32 0.0, %v1919
      %v1921 = vpop.f32.mrf.mxu0
      %1922 = vmatprep.mubr.bf16.mxu0 0
      %1923 = vmatmul.mubr.bf16.gmra.mxu0 %v1861
      %v1924 = vpop.f32.mrf.mxu0
      %v1925 = vadd.f32 0.0, %v1924
      %v1926 = vpop.f32.mrf.mxu0
      %v1927 = vpop.f32.mrf.mxu0
      %v1928 = vadd.f32 0.0, %v1927
      %v1929 = vpop.f32.mrf.mxu0
      %1930 = vdwg.mxu0
      %v1931 = vadd.f32 %v1412, %v1901
      %v1932 = vadd.f32 %v1415, %v1904
      %v1933 = vadd.f32 %v1420, %v1909
      %v1934 = vadd.f32 %v1423, %v1912
      %v1935 = vadd.f32 %v1428, %v1917
      %v1936 = vadd.f32 %v1431, %v1920
      %v1937 = vadd.f32 %v1436, %v1925
      %v1938 = vadd.f32 %v1439, %v1928
      %s1939 = scalar_lea.vmem [#allocation2], 48
      %v1940 = vld [vmem:[%s1939] sm:$0xf]
      %v1941 = vld [vmem:[%s1939 + $0x8] sm:$0xf]
      %v1942 = vld [vmem:[%s1939 + $0x10] sm:$0xf]
      %v1943 = vld [vmem:[%s1939 + $0x18] sm:$0xf]
      %v1944 = vld [vmem:[%s1939 + $0x20] sm:$0xf]
      %v1945 = vld [vmem:[%s1939 + $0x28] sm:$0xf]
      %v1946 = vld [vmem:[%s1939 + $0x30] sm:$0xf]
      %v1947 = vld [vmem:[%s1939 + $0x38] sm:$0xf]
      %v1948 = vld [vmem:[%s1939] sm:$0xe]
      %v1949 = vld [vmem:[%s1939 + $0x4] sm:$0x1]
      %v1950 = vld [vmem:[%s1939 + $0x8] sm:$0xe]
      %v1951 = vld [vmem:[%s1939 + $0xc] sm:$0x1]
      %v1952 = vld [vmem:[%s1939 + $0x10] sm:$0xe]
      %v1953 = vld [vmem:[%s1939 + $0x14] sm:$0x1]
      %v1954 = vld [vmem:[%s1939 + $0x18] sm:$0xe]
      %v1955 = vld [vmem:[%s1939 + $0x1c] sm:$0x1]
      %v1956 = vld [vmem:[%s1939 + $0x20] sm:$0xe]
      %v1957 = vld [vmem:[%s1939 + $0x24] sm:$0x1]
      %v1958 = vld [vmem:[%s1939 + $0x28] sm:$0xe]
      %v1959 = vld [vmem:[%s1939 + $0x2c] sm:$0x1]
      %v1960 = vld [vmem:[%s1939 + $0x30] sm:$0xe]
      %v1961 = vld [vmem:[%s1939 + $0x34] sm:$0x1]
      %v1962 = vld [vmem:[%s1939 + $0x38] sm:$0xe]
      %v1963 = vld [vmem:[%s1939 + $0x3c] sm:$0x1]
      %v1964 = vld [vmem:[%s1939] sm:$0xc]
      %v1965 = vld [vmem:[%s1939 + $0x4] sm:$0x3]
      %v1966 = vld [vmem:[%s1939 + $0x8] sm:$0xc]
      %v1967 = vld [vmem:[%s1939 + $0xc] sm:$0x3]
      %v1968 = vld [vmem:[%s1939 + $0x10] sm:$0xc]
      %v1969 = vld [vmem:[%s1939 + $0x14] sm:$0x3]
      %v1970 = vld [vmem:[%s1939 + $0x18] sm:$0xc]
      %v1971 = vld [vmem:[%s1939 + $0x1c] sm:$0x3]
      %v1972 = vld [vmem:[%s1939 + $0x20] sm:$0xc]
      %v1973 = vld [vmem:[%s1939 + $0x24] sm:$0x3]
      %v1974 = vld [vmem:[%s1939 + $0x28] sm:$0xc]
      %v1975 = vld [vmem:[%s1939 + $0x2c] sm:$0x3]
      %v1976 = vld [vmem:[%s1939 + $0x30] sm:$0xc]
      %v1977 = vld [vmem:[%s1939 + $0x34] sm:$0x3]
      %v1978 = vld [vmem:[%s1939 + $0x38] sm:$0xc]
      %v1979 = vld [vmem:[%s1939 + $0x3c] sm:$0x3]
      %v1980 = vld [vmem:[%s1939] sm:$0x8]
      %v1981 = vld [vmem:[%s1939 + $0x4] sm:$0x7]
      %v1982 = vld [vmem:[%s1939 + $0x8] sm:$0x8]
      %v1983 = vld [vmem:[%s1939 + $0xc] sm:$0x7]
      %v1984 = vld [vmem:[%s1939 + $0x10] sm:$0x8]
      %v1985 = vld [vmem:[%s1939 + $0x14] sm:$0x7]
      %v1986 = vld [vmem:[%s1939 + $0x18] sm:$0x8]
      %v1987 = vld [vmem:[%s1939 + $0x1c] sm:$0x7]
      %v1988 = vld [vmem:[%s1939 + $0x20] sm:$0x8]
      %v1989 = vld [vmem:[%s1939 + $0x24] sm:$0x7]
      %v1990 = vld [vmem:[%s1939 + $0x28] sm:$0x8]
      %v1991 = vld [vmem:[%s1939 + $0x2c] sm:$0x7]
      %v1992 = vld [vmem:[%s1939 + $0x30] sm:$0x8]
      %v1993 = vld [vmem:[%s1939 + $0x34] sm:$0x7]
      %v1994 = vld [vmem:[%s1939 + $0x38] sm:$0x8]
      %v1995 = vld [vmem:[%s1939 + $0x3c] sm:$0x7]
      %v1996 = vld [vmem:[%s1939 + $0x4] sm:$0xf]
      %v1997 = vld [vmem:[%s1939 + $0xc] sm:$0xf]
      %v1998 = vld [vmem:[%s1939 + $0x14] sm:$0xf]
      %v1999 = vld [vmem:[%s1939 + $0x1c] sm:$0xf]
      %v2000 = vld [vmem:[%s1939 + $0x24] sm:$0xf]
      %v2001 = vld [vmem:[%s1939 + $0x2c] sm:$0xf]
      %v2002 = vld [vmem:[%s1939 + $0x34] sm:$0xf]
      %v2003 = vld [vmem:[%s1939 + $0x3c] sm:$0xf]
      %v2020 = vunpack.c.l.b16 %v1948
      %v2021 = vunpack.c.l.b16 %v1949
      %v2022 = vunpack.c.l.b16 %v1950
      %v2023 = vunpack.c.l.b16 %v1951
      %v2024 = vunpack.c.l.b16 %v1952
      %v2025 = vunpack.c.l.b16 %v1953
      %v2026 = vunpack.c.l.b16 %v1954
      %v2027 = vunpack.c.l.b16 %v1955
      %v2028 = vunpack.c.l.b16 %v1956
      %v2029 = vunpack.c.l.b16 %v1957
      %v2030 = vunpack.c.l.b16 %v1958
      %v2031 = vunpack.c.l.b16 %v1959
      %v2032 = vunpack.c.l.b16 %v1960
      %v2033 = vunpack.c.l.b16 %v1961
      %v2034 = vunpack.c.l.b16 %v1962
      %v2035 = vunpack.c.l.b16 %v1963
      %v2036 = vpack.c.b16 %v2021, %v2020
      %v2037 = vpack.c.b16 %v2023, %v2022
      %v2038 = vpack.c.b16 %v2025, %v2024
      %v2039 = vpack.c.b16 %v2027, %v2026
      %v2040 = vpack.c.b16 %v2029, %v2028
      %v2041 = vpack.c.b16 %v2031, %v2030
      %v2042 = vpack.c.b16 %v2033, %v2032
      %v2043 = vpack.c.b16 %v2035, %v2034
      %v2044 = vrot.slane %v2036, 1
      %v2045 = vrot.slane %v2037, 1
      %v2046 = vrot.slane %v2038, 1
      %v2047 = vrot.slane %v2039, 1
      %v2048 = vrot.slane %v2040, 1
      %v2049 = vrot.slane %v2041, 1
      %v2050 = vrot.slane %v2042, 1
      %v2051 = vrot.slane %v2043, 1
      %2052 = vrot.lane.b32.xlu0 %v2044, 8
      %v2053 = vpop.permute.xlu0 %2052
      %2054 = vrot.lane.b32.xlu0 %v2045, 8
      %v2055 = vpop.permute.xlu0 %2054
      %2056 = vrot.lane.b32.xlu0 %v2046, 8
      %v2057 = vpop.permute.xlu0 %2056
      %2058 = vrot.lane.b32.xlu0 %v2047, 8
      %v2059 = vpop.permute.xlu0 %2058
      %2060 = vrot.lane.b32.xlu0 %v2048, 8
      %v2061 = vpop.permute.xlu0 %2060
      %2062 = vrot.lane.b32.xlu0 %v2049, 8
      %v2063 = vpop.permute.xlu0 %2062
      %2064 = vrot.lane.b32.xlu0 %v2050, 8
      %v2065 = vpop.permute.xlu0 %2064
      %2066 = vrot.lane.b32.xlu0 %v2051, 8
      %v2067 = vpop.permute.xlu0 %2066
      %v2084 = vunpack.c.l.b16 %v1964
      %v2085 = vunpack.c.l.b16 %v1965
      %v2086 = vunpack.c.l.b16 %v1966
      %v2087 = vunpack.c.l.b16 %v1967
      %v2088 = vunpack.c.l.b16 %v1968
      %v2089 = vunpack.c.l.b16 %v1969
      %v2090 = vunpack.c.l.b16 %v1970
      %v2091 = vunpack.c.l.b16 %v1971
      %v2092 = vunpack.c.l.b16 %v1972
      %v2093 = vunpack.c.l.b16 %v1973
      %v2094 = vunpack.c.l.b16 %v1974
      %v2095 = vunpack.c.l.b16 %v1975
      %v2096 = vunpack.c.l.b16 %v1976
      %v2097 = vunpack.c.l.b16 %v1977
      %v2098 = vunpack.c.l.b16 %v1978
      %v2099 = vunpack.c.l.b16 %v1979
      %v2100 = vpack.c.b16 %v2085, %v2084
      %v2101 = vpack.c.b16 %v2087, %v2086
      %v2102 = vpack.c.b16 %v2089, %v2088
      %v2103 = vpack.c.b16 %v2091, %v2090
      %v2104 = vpack.c.b16 %v2093, %v2092
      %v2105 = vpack.c.b16 %v2095, %v2094
      %v2106 = vpack.c.b16 %v2097, %v2096
      %v2107 = vpack.c.b16 %v2099, %v2098
      %v2108 = vrot.slane %v2100, 2
      %v2109 = vrot.slane %v2101, 2
      %v2110 = vrot.slane %v2102, 2
      %v2111 = vrot.slane %v2103, 2
      %v2112 = vrot.slane %v2104, 2
      %v2113 = vrot.slane %v2105, 2
      %v2114 = vrot.slane %v2106, 2
      %v2115 = vrot.slane %v2107, 2
      %2116 = vrot.lane.b32.xlu0 %v2108, 16
      %v2117 = vpop.permute.xlu0 %2116
      %2118 = vrot.lane.b32.xlu0 %v2109, 16
      %v2119 = vpop.permute.xlu0 %2118
      %2120 = vrot.lane.b32.xlu0 %v2110, 16
      %v2121 = vpop.permute.xlu0 %2120
      %2122 = vrot.lane.b32.xlu0 %v2111, 16
      %v2123 = vpop.permute.xlu0 %2122
      %2124 = vrot.lane.b32.xlu0 %v2112, 16
      %v2125 = vpop.permute.xlu0 %2124
      %2126 = vrot.lane.b32.xlu0 %v2113, 16
      %v2127 = vpop.permute.xlu0 %2126
      %2128 = vrot.lane.b32.xlu0 %v2114, 16
      %v2129 = vpop.permute.xlu0 %2128
      %2130 = vrot.lane.b32.xlu0 %v2115, 16
      %v2131 = vpop.permute.xlu0 %2130
      %v2148 = vunpack.c.l.b16 %v1980
      %v2149 = vunpack.c.l.b16 %v1981
      %v2150 = vunpack.c.l.b16 %v1982
      %v2151 = vunpack.c.l.b16 %v1983
      %v2152 = vunpack.c.l.b16 %v1984
      %v2153 = vunpack.c.l.b16 %v1985
      %v2154 = vunpack.c.l.b16 %v1986
      %v2155 = vunpack.c.l.b16 %v1987
      %v2156 = vunpack.c.l.b16 %v1988
      %v2157 = vunpack.c.l.b16 %v1989
      %v2158 = vunpack.c.l.b16 %v1990
      %v2159 = vunpack.c.l.b16 %v1991
      %v2160 = vunpack.c.l.b16 %v1992
      %v2161 = vunpack.c.l.b16 %v1993
      %v2162 = vunpack.c.l.b16 %v1994
      %v2163 = vunpack.c.l.b16 %v1995
      %v2164 = vpack.c.b16 %v2149, %v2148
      %v2165 = vpack.c.b16 %v2151, %v2150
      %v2166 = vpack.c.b16 %v2153, %v2152
      %v2167 = vpack.c.b16 %v2155, %v2154
      %v2168 = vpack.c.b16 %v2157, %v2156
      %v2169 = vpack.c.b16 %v2159, %v2158
      %v2170 = vpack.c.b16 %v2161, %v2160
      %v2171 = vpack.c.b16 %v2163, %v2162
      %v2172 = vrot.slane %v2164, 3
      %v2173 = vrot.slane %v2165, 3
      %v2174 = vrot.slane %v2166, 3
      %v2175 = vrot.slane %v2167, 3
      %v2176 = vrot.slane %v2168, 3
      %v2177 = vrot.slane %v2169, 3
      %v2178 = vrot.slane %v2170, 3
      %v2179 = vrot.slane %v2171, 3
      %2180 = vrot.lane.b32.xlu0 %v2172, 24
      %v2181 = vpop.permute.xlu0 %2180
      %2182 = vrot.lane.b32.xlu0 %v2173, 24
      %v2183 = vpop.permute.xlu0 %2182
      %2184 = vrot.lane.b32.xlu0 %v2174, 24
      %v2185 = vpop.permute.xlu0 %2184
      %2186 = vrot.lane.b32.xlu0 %v2175, 24
      %v2187 = vpop.permute.xlu0 %2186
      %2188 = vrot.lane.b32.xlu0 %v2176, 24
      %v2189 = vpop.permute.xlu0 %2188
      %2190 = vrot.lane.b32.xlu0 %v2177, 24
      %v2191 = vpop.permute.xlu0 %2190
      %2192 = vrot.lane.b32.xlu0 %v2178, 24
      %v2193 = vpop.permute.xlu0 %2192
      %2194 = vrot.lane.b32.xlu0 %v2179, 24
      %v2195 = vpop.permute.xlu0 %2194
      %v2204 = vunpack.c.l.b16 %v1996
      %v2205 = vunpack.c.l.b16 %v1997
      %v2206 = vunpack.c.l.b16 %v1998
      %v2207 = vunpack.c.l.b16 %v1999
      %v2208 = vunpack.c.l.b16 %v2000
      %v2209 = vunpack.c.l.b16 %v2001
      %v2210 = vunpack.c.l.b16 %v2002
      %v2211 = vunpack.c.l.b16 %v2003
      %v2212 = vpack.c.b16 %v2204, %v2204
      %v2213 = vpack.c.b16 %v2205, %v2205
      %v2214 = vpack.c.b16 %v2206, %v2206
      %v2215 = vpack.c.b16 %v2207, %v2207
      %v2216 = vpack.c.b16 %v2208, %v2208
      %v2217 = vpack.c.b16 %v2209, %v2209
      %v2218 = vpack.c.b16 %v2210, %v2210
      %v2219 = vpack.c.b16 %v2211, %v2211
      %2220 = vrot.lane.b32.xlu0 %v2212, 32
      %v2221 = vpop.permute.xlu0 %2220
      %2222 = vrot.lane.b32.xlu0 %v2213, 32
      %v2223 = vpop.permute.xlu0 %2222
      %2224 = vrot.lane.b32.xlu0 %v2214, 32
      %v2225 = vpop.permute.xlu0 %2224
      %2226 = vrot.lane.b32.xlu0 %v2215, 32
      %v2227 = vpop.permute.xlu0 %2226
      %2228 = vrot.lane.b32.xlu0 %v2216, 32
      %v2229 = vpop.permute.xlu0 %2228
      %2230 = vrot.lane.b32.xlu0 %v2217, 32
      %v2231 = vpop.permute.xlu0 %2230
      %2232 = vrot.lane.b32.xlu0 %v2218, 32
      %v2233 = vpop.permute.xlu0 %2232
      %2234 = vrot.lane.b32.xlu0 %v2219, 32
      %v2235 = vpop.permute.xlu0 %2234
      %v2238 = vsel %vm754, %v1940, %v2053
      %v2241 = vsel %vm754, %v1941, %v2055
      %v2244 = vsel %vm754, %v1942, %v2057
      %v2247 = vsel %vm754, %v1943, %v2059
      %v2250 = vsel %vm754, %v1944, %v2061
      %v2253 = vsel %vm754, %v1945, %v2063
      %v2256 = vsel %vm754, %v1946, %v2065
      %v2259 = vsel %vm754, %v1947, %v2067
      %v2261 = vsel %vm779, %v2238, %v2117
      %v2263 = vsel %vm779, %v2241, %v2119
      %v2265 = vsel %vm779, %v2244, %v2121
      %v2267 = vsel %vm779, %v2247, %v2123
      %v2269 = vsel %vm779, %v2250, %v2125
      %v2271 = vsel %vm779, %v2253, %v2127
      %v2273 = vsel %vm779, %v2256, %v2129
      %v2275 = vsel %vm779, %v2259, %v2131
      %v2277 = vsel %vm796, %v2261, %v2181
      %v2279 = vsel %vm796, %v2263, %v2183
      %v2281 = vsel %vm796, %v2265, %v2185
      %v2283 = vsel %vm796, %v2267, %v2187
      %v2285 = vsel %vm796, %v2269, %v2189
      %v2287 = vsel %vm796, %v2271, %v2191
      %v2289 = vsel %vm796, %v2273, %v2193
      %v2291 = vsel %vm796, %v2275, %v2195
      %v2293 = vsel %vm813, %v2277, %v2221
      %v2295 = vsel %vm813, %v2279, %v2223
      %v2297 = vsel %vm813, %v2281, %v2225
      %v2299 = vsel %vm813, %v2283, %v2227
      %v2301 = vsel %vm813, %v2285, %v2229
      %v2303 = vsel %vm813, %v2287, %v2231
      %v2305 = vsel %vm813, %v2289, %v2233
      %v2307 = vsel %vm813, %v2291, %v2235
      %s2308 = scalar_lea.vmem %s274, 60
      %v2309 = vld [vmem:[%s2308] sm:$0xf]
      %v2310 = vld [vmem:[%s2308 + $0x4] sm:$0xf]
      %v2311 = vld [vmem:[%s2308 + $0x8] sm:$0xf]
      %v2312 = vld [vmem:[%s2308 + $0xc] sm:$0xf]
      %v2313 = vld [vmem:[%s2308 + $0x10] sm:$0xf]
      %v2322 = vunpack.c.l.b16 %v2293
      %v2323 = vunpack.c.l.b16 %v2295
      %v2324 = vunpack.c.l.b16 %v2297
      %v2325 = vunpack.c.l.b16 %v2299
      %v2326 = vunpack.c.l.b16 %v2301
      %v2327 = vunpack.c.l.b16 %v2303
      %v2328 = vunpack.c.l.b16 %v2305
      %v2329 = vunpack.c.l.b16 %v2307
      %v2330 = vpack.c.b16 %v2323, %v2322
      %v2331 = vpack.c.b16 %v2325, %v2324
      %v2332 = vpack.c.b16 %v2327, %v2326
      %v2333 = vpack.c.b16 %v2329, %v2328
      %v2339 = vunpack.c.l.b16 %v2309
      %v2340 = vunpack.c.l.b16 %v2310
      %v2341 = vunpack.c.l.b16 %v2311
      %v2342 = vunpack.c.l.b16 %v2312
      %v2343 = vunpack.c.l.b16 %v2313
      %v2344 = vpack.c.b16 %v2340, %v2339
      %v2345 = vpack.c.b16 %v2342, %v2341
      %v2346 = vpack.c.b16 %v2343, %v2343
      %v2350 = vsel %vm1245, %v2330, 0
      %v2353 = vsel %vm1245, %v2331, 0
      %v2356 = vsel %vm1245, %v2332, 0
      %v2359 = vsel %vm1245, %v2333, 0
      %v2362 = vsel %vm1258, %v2346, 0
      %2364 = vmatprep.subr.bf16.mxu0 0
      %2365 = vmatpush1.bf16.msra.mxu0 0
      %2366 = vmatprep.subr.bf16.mxu0 0
      %2367 = vmatpush1.bf16.msra.mxu0 0
      %2368 = vmatprep.subr.bf16.mxu0 0
      %2369 = vmatpush1.bf16.msra.mxu0 0
      %2370 = vmatprep.subr.bf16.mxu0 0
      %2371 = vmatpush1.bf16.msra.mxu0 0
      %2372 = vmatprep.subr.bf16.mxu0 0
      %2373 = vmatpush1.bf16.msra.mxu0 0
      %2374 = vmatprep.subr.bf16.mxu0 0
      %2375 = vmatpush1.bf16.msra.mxu0 %v2362
      %2376 = vmatprep.subr.bf16.mxu0 0
      %2377 = vmatpush1.bf16.msra.mxu0 %v2345
      %2378 = vmatprep.subr.bf16.mxu0 0
      %2379 = vmatpush1.bf16.msra.mxu0 %v2344
      %2380 = vmatprep.subr.bf16.mxu0 0
      %2381 = vmatpush2.bf16.msra.mxu0 0
      %2382 = vmatprep.subr.bf16.mxu0 0
      %2383 = vmatpush2.bf16.msra.mxu0 0
      %2384 = vmatprep.subr.bf16.mxu0 0
      %2385 = vmatpush2.bf16.msra.mxu0 0
      %2386 = vmatprep.subr.bf16.mxu0 0
      %2387 = vmatpush2.bf16.msra.mxu0 0
      %2388 = vmatprep.subr.bf16.mxu0 0
      %2389 = vmatpush2.bf16.msra.mxu0 0
      %2390 = vmatprep.subr.bf16.mxu0 0
      %2391 = vmatpush2.bf16.msra.mxu0 0
      %2392 = vmatprep.subr.bf16.mxu0 0
      %2393 = vmatpush2.bf16.msra.mxu0 0
      %2394 = vmatprep.subr.bf16.mxu0 0
      %2395 = vmatpush2.bf16.msra.mxu0 0
      %2396 = vmatprep.mubr.bf16.mxu0 0
      %2397 = vmatmul.mubr.bf16.gmra.mxu0 %v2350
      %v2398 = vpop.f32.mrf.mxu0
      %v2399 = vadd.f32 0.0, %v2398
      %v2400 = vpop.f32.mrf.mxu0
      %v2401 = vpop.f32.mrf.mxu0
      %v2402 = vadd.f32 0.0, %v2401
      %v2403 = vpop.f32.mrf.mxu0
      %2404 = vmatprep.mubr.bf16.mxu0 0
      %2405 = vmatmul.mubr.bf16.gmra.mxu0 %v2353
      %v2406 = vpop.f32.mrf.mxu0
      %v2407 = vadd.f32 0.0, %v2406
      %v2408 = vpop.f32.mrf.mxu0
      %v2409 = vpop.f32.mrf.mxu0
      %v2410 = vadd.f32 0.0, %v2409
      %v2411 = vpop.f32.mrf.mxu0
      %2412 = vmatprep.mubr.bf16.mxu0 0
      %2413 = vmatmul.mubr.bf16.gmra.mxu0 %v2356
      %v2414 = vpop.f32.mrf.mxu0
      %v2415 = vadd.f32 0.0, %v2414
      %v2416 = vpop.f32.mrf.mxu0
      %v2417 = vpop.f32.mrf.mxu0
      %v2418 = vadd.f32 0.0, %v2417
      %v2419 = vpop.f32.mrf.mxu0
      %2420 = vmatprep.mubr.bf16.mxu0 0
      %2421 = vmatmul.mubr.bf16.gmra.mxu0 %v2359
      %v2422 = vpop.f32.mrf.mxu0
      %v2423 = vadd.f32 0.0, %v2422
      %v2424 = vpop.f32.mrf.mxu0
      %v2425 = vpop.f32.mrf.mxu0
      %v2426 = vadd.f32 0.0, %v2425
      %v2427 = vpop.f32.mrf.mxu0
      %2428 = vdwg.mxu0
      %v2429 = vadd.f32 %v1931, %v2399
      %v2430 = vadd.f32 %v1932, %v2402
      %v2431 = vadd.f32 %v1933, %v2407
      %v2432 = vadd.f32 %v1934, %v2410
      %v2433 = vadd.f32 %v1935, %v2415
      %v2434 = vadd.f32 %v1936, %v2418
      %v2435 = vadd.f32 %v1937, %v2423
      %v2436 = vadd.f32 %v1938, %v2426
      %s2437 = scalar_lea.vmem [#allocation2], 64
      %v2438 = vld [vmem:[%s2437] sm:$0xf]
      %v2439 = vld [vmem:[%s2437 + $0x8] sm:$0xf]
      %v2440 = vld [vmem:[%s2437 + $0x10] sm:$0xf]
      %v2441 = vld [vmem:[%s2437 + $0x18] sm:$0xf]
      %v2442 = vld [vmem:[%s2437 + $0x20] sm:$0xf]
      %v2443 = vld [vmem:[%s2437 + $0x28] sm:$0xf]
      %v2444 = vld [vmem:[%s2437 + $0x30] sm:$0xf]
      %v2445 = vld [vmem:[%s2437 + $0x38] sm:$0xf]
      %v2446 = vld [vmem:[%s2437] sm:$0xe]
      %v2447 = vld [vmem:[%s2437 + $0x4] sm:$0x1]
      %v2448 = vld [vmem:[%s2437 + $0x8] sm:$0xe]
      %v2449 = vld [vmem:[%s2437 + $0xc] sm:$0x1]
      %v2450 = vld [vmem:[%s2437 + $0x10] sm:$0xe]
      %v2451 = vld [vmem:[%s2437 + $0x14] sm:$0x1]
      %v2452 = vld [vmem:[%s2437 + $0x18] sm:$0xe]
      %v2453 = vld [vmem:[%s2437 + $0x1c] sm:$0x1]
      %v2454 = vld [vmem:[%s2437 + $0x20] sm:$0xe]
      %v2455 = vld [vmem:[%s2437 + $0x24] sm:$0x1]
      %v2456 = vld [vmem:[%s2437 + $0x28] sm:$0xe]
      %v2457 = vld [vmem:[%s2437 + $0x2c] sm:$0x1]
      %v2458 = vld [vmem:[%s2437 + $0x30] sm:$0xe]
      %v2459 = vld [vmem:[%s2437 + $0x34] sm:$0x1]
      %v2460 = vld [vmem:[%s2437 + $0x38] sm:$0xe]
      %v2461 = vld [vmem:[%s2437 + $0x3c] sm:$0x1]
      %v2462 = vld [vmem:[%s2437] sm:$0xc]
      %v2463 = vld [vmem:[%s2437 + $0x4] sm:$0x3]
      %v2464 = vld [vmem:[%s2437 + $0x8] sm:$0xc]
      %v2465 = vld [vmem:[%s2437 + $0xc] sm:$0x3]
      %v2466 = vld [vmem:[%s2437 + $0x10] sm:$0xc]
      %v2467 = vld [vmem:[%s2437 + $0x14] sm:$0x3]
      %v2468 = vld [vmem:[%s2437 + $0x18] sm:$0xc]
      %v2469 = vld [vmem:[%s2437 + $0x1c] sm:$0x3]
      %v2470 = vld [vmem:[%s2437 + $0x20] sm:$0xc]
      %v2471 = vld [vmem:[%s2437 + $0x24] sm:$0x3]
      %v2472 = vld [vmem:[%s2437 + $0x28] sm:$0xc]
      %v2473 = vld [vmem:[%s2437 + $0x2c] sm:$0x3]
      %v2474 = vld [vmem:[%s2437 + $0x30] sm:$0xc]
      %v2475 = vld [vmem:[%s2437 + $0x34] sm:$0x3]
      %v2476 = vld [vmem:[%s2437 + $0x38] sm:$0xc]
      %v2477 = vld [vmem:[%s2437 + $0x3c] sm:$0x3]
      %v2478 = vld [vmem:[%s2437] sm:$0x8]
      %v2479 = vld [vmem:[%s2437 + $0x4] sm:$0x7]
      %v2480 = vld [vmem:[%s2437 + $0x8] sm:$0x8]
      %v2481 = vld [vmem:[%s2437 + $0xc] sm:$0x7]
      %v2482 = vld [vmem:[%s2437 + $0x10] sm:$0x8]
      %v2483 = vld [vmem:[%s2437 + $0x14] sm:$0x7]
      %v2484 = vld [vmem:[%s2437 + $0x18] sm:$0x8]
      %v2485 = vld [vmem:[%s2437 + $0x1c] sm:$0x7]
      %v2486 = vld [vmem:[%s2437 + $0x20] sm:$0x8]
      %v2487 = vld [vmem:[%s2437 + $0x24] sm:$0x7]
      %v2488 = vld [vmem:[%s2437 + $0x28] sm:$0x8]
      %v2489 = vld [vmem:[%s2437 + $0x2c] sm:$0x7]
      %v2490 = vld [vmem:[%s2437 + $0x30] sm:$0x8]
      %v2491 = vld [vmem:[%s2437 + $0x34] sm:$0x7]
      %v2492 = vld [vmem:[%s2437 + $0x38] sm:$0x8]
      %v2493 = vld [vmem:[%s2437 + $0x3c] sm:$0x7]
      %v2494 = vld [vmem:[%s2437 + $0x4] sm:$0xf]
      %v2495 = vld [vmem:[%s2437 + $0xc] sm:$0xf]
      %v2496 = vld [vmem:[%s2437 + $0x14] sm:$0xf]
      %v2497 = vld [vmem:[%s2437 + $0x1c] sm:$0xf]
      %v2498 = vld [vmem:[%s2437 + $0x24] sm:$0xf]
      %v2499 = vld [vmem:[%s2437 + $0x2c] sm:$0xf]
      %v2500 = vld [vmem:[%s2437 + $0x34] sm:$0xf]
      %v2501 = vld [vmem:[%s2437 + $0x3c] sm:$0xf]
      %v2518 = vunpack.c.l.b16 %v2446
      %v2519 = vunpack.c.l.b16 %v2447
      %v2520 = vunpack.c.l.b16 %v2448
      %v2521 = vunpack.c.l.b16 %v2449
      %v2522 = vunpack.c.l.b16 %v2450
      %v2523 = vunpack.c.l.b16 %v2451
      %v2524 = vunpack.c.l.b16 %v2452
      %v2525 = vunpack.c.l.b16 %v2453
      %v2526 = vunpack.c.l.b16 %v2454
      %v2527 = vunpack.c.l.b16 %v2455
      %v2528 = vunpack.c.l.b16 %v2456
      %v2529 = vunpack.c.l.b16 %v2457
      %v2530 = vunpack.c.l.b16 %v2458
      %v2531 = vunpack.c.l.b16 %v2459
      %v2532 = vunpack.c.l.b16 %v2460
      %v2533 = vunpack.c.l.b16 %v2461
      %v2534 = vpack.c.b16 %v2519, %v2518
      %v2535 = vpack.c.b16 %v2521, %v2520
      %v2536 = vpack.c.b16 %v2523, %v2522
      %v2537 = vpack.c.b16 %v2525, %v2524
      %v2538 = vpack.c.b16 %v2527, %v2526
      %v2539 = vpack.c.b16 %v2529, %v2528
      %v2540 = vpack.c.b16 %v2531, %v2530
      %v2541 = vpack.c.b16 %v2533, %v2532
      %v2542 = vrot.slane %v2534, 1
      %v2543 = vrot.slane %v2535, 1
      %v2544 = vrot.slane %v2536, 1
      %v2545 = vrot.slane %v2537, 1
      %v2546 = vrot.slane %v2538, 1
      %v2547 = vrot.slane %v2539, 1
      %v2548 = vrot.slane %v2540, 1
      %v2549 = vrot.slane %v2541, 1
      %2550 = vrot.lane.b32.xlu0 %v2542, 8
      %v2551 = vpop.permute.xlu0 %2550
      %2552 = vrot.lane.b32.xlu0 %v2543, 8
      %v2553 = vpop.permute.xlu0 %2552
      %2554 = vrot.lane.b32.xlu0 %v2544, 8
      %v2555 = vpop.permute.xlu0 %2554
      %2556 = vrot.lane.b32.xlu0 %v2545, 8
      %v2557 = vpop.permute.xlu0 %2556
      %2558 = vrot.lane.b32.xlu0 %v2546, 8
      %v2559 = vpop.permute.xlu0 %2558
      %2560 = vrot.lane.b32.xlu0 %v2547, 8
      %v2561 = vpop.permute.xlu0 %2560
      %2562 = vrot.lane.b32.xlu0 %v2548, 8
      %v2563 = vpop.permute.xlu0 %2562
      %2564 = vrot.lane.b32.xlu0 %v2549, 8
      %v2565 = vpop.permute.xlu0 %2564
      %v2582 = vunpack.c.l.b16 %v2462
      %v2583 = vunpack.c.l.b16 %v2463
      %v2584 = vunpack.c.l.b16 %v2464
      %v2585 = vunpack.c.l.b16 %v2465
      %v2586 = vunpack.c.l.b16 %v2466
      %v2587 = vunpack.c.l.b16 %v2467
      %v2588 = vunpack.c.l.b16 %v2468
      %v2589 = vunpack.c.l.b16 %v2469
      %v2590 = vunpack.c.l.b16 %v2470
      %v2591 = vunpack.c.l.b16 %v2471
      %v2592 = vunpack.c.l.b16 %v2472
      %v2593 = vunpack.c.l.b16 %v2473
      %v2594 = vunpack.c.l.b16 %v2474
      %v2595 = vunpack.c.l.b16 %v2475
      %v2596 = vunpack.c.l.b16 %v2476
      %v2597 = vunpack.c.l.b16 %v2477
      %v2598 = vpack.c.b16 %v2583, %v2582
      %v2599 = vpack.c.b16 %v2585, %v2584
      %v2600 = vpack.c.b16 %v2587, %v2586
      %v2601 = vpack.c.b16 %v2589, %v2588
      %v2602 = vpack.c.b16 %v2591, %v2590
      %v2603 = vpack.c.b16 %v2593, %v2592
      %v2604 = vpack.c.b16 %v2595, %v2594
      %v2605 = vpack.c.b16 %v2597, %v2596
      %v2606 = vrot.slane %v2598, 2
      %v2607 = vrot.slane %v2599, 2
      %v2608 = vrot.slane %v2600, 2
      %v2609 = vrot.slane %v2601, 2
      %v2610 = vrot.slane %v2602, 2
      %v2611 = vrot.slane %v2603, 2
      %v2612 = vrot.slane %v2604, 2
      %v2613 = vrot.slane %v2605, 2
      %2614 = vrot.lane.b32.xlu0 %v2606, 16
      %v2615 = vpop.permute.xlu0 %2614
      %2616 = vrot.lane.b32.xlu0 %v2607, 16
      %v2617 = vpop.permute.xlu0 %2616
      %2618 = vrot.lane.b32.xlu0 %v2608, 16
      %v2619 = vpop.permute.xlu0 %2618
      %2620 = vrot.lane.b32.xlu0 %v2609, 16
      %v2621 = vpop.permute.xlu0 %2620
      %2622 = vrot.lane.b32.xlu0 %v2610, 16
      %v2623 = vpop.permute.xlu0 %2622
      %2624 = vrot.lane.b32.xlu0 %v2611, 16
      %v2625 = vpop.permute.xlu0 %2624
      %2626 = vrot.lane.b32.xlu0 %v2612, 16
      %v2627 = vpop.permute.xlu0 %2626
      %2628 = vrot.lane.b32.xlu0 %v2613, 16
      %v2629 = vpop.permute.xlu0 %2628
      %v2646 = vunpack.c.l.b16 %v2478
      %v2647 = vunpack.c.l.b16 %v2479
      %v2648 = vunpack.c.l.b16 %v2480
      %v2649 = vunpack.c.l.b16 %v2481
      %v2650 = vunpack.c.l.b16 %v2482
      %v2651 = vunpack.c.l.b16 %v2483
      %v2652 = vunpack.c.l.b16 %v2484
      %v2653 = vunpack.c.l.b16 %v2485
      %v2654 = vunpack.c.l.b16 %v2486
      %v2655 = vunpack.c.l.b16 %v2487
      %v2656 = vunpack.c.l.b16 %v2488
      %v2657 = vunpack.c.l.b16 %v2489
      %v2658 = vunpack.c.l.b16 %v2490
      %v2659 = vunpack.c.l.b16 %v2491
      %v2660 = vunpack.c.l.b16 %v2492
      %v2661 = vunpack.c.l.b16 %v2493
      %v2662 = vpack.c.b16 %v2647, %v2646
      %v2663 = vpack.c.b16 %v2649, %v2648
      %v2664 = vpack.c.b16 %v2651, %v2650
      %v2665 = vpack.c.b16 %v2653, %v2652
      %v2666 = vpack.c.b16 %v2655, %v2654
      %v2667 = vpack.c.b16 %v2657, %v2656
      %v2668 = vpack.c.b16 %v2659, %v2658
      %v2669 = vpack.c.b16 %v2661, %v2660
      %v2670 = vrot.slane %v2662, 3
      %v2671 = vrot.slane %v2663, 3
      %v2672 = vrot.slane %v2664, 3
      %v2673 = vrot.slane %v2665, 3
      %v2674 = vrot.slane %v2666, 3
      %v2675 = vrot.slane %v2667, 3
      %v2676 = vrot.slane %v2668, 3
      %v2677 = vrot.slane %v2669, 3
      %2678 = vrot.lane.b32.xlu0 %v2670, 24
      %v2679 = vpop.permute.xlu0 %2678
      %2680 = vrot.lane.b32.xlu0 %v2671, 24
      %v2681 = vpop.permute.xlu0 %2680
      %2682 = vrot.lane.b32.xlu0 %v2672, 24
      %v2683 = vpop.permute.xlu0 %2682
      %2684 = vrot.lane.b32.xlu0 %v2673, 24
      %v2685 = vpop.permute.xlu0 %2684
      %2686 = vrot.lane.b32.xlu0 %v2674, 24
      %v2687 = vpop.permute.xlu0 %2686
      %2688 = vrot.lane.b32.xlu0 %v2675, 24
      %v2689 = vpop.permute.xlu0 %2688
      %2690 = vrot.lane.b32.xlu0 %v2676, 24
      %v2691 = vpop.permute.xlu0 %2690
      %2692 = vrot.lane.b32.xlu0 %v2677, 24
      %v2693 = vpop.permute.xlu0 %2692
      %v2702 = vunpack.c.l.b16 %v2494
      %v2703 = vunpack.c.l.b16 %v2495
      %v2704 = vunpack.c.l.b16 %v2496
      %v2705 = vunpack.c.l.b16 %v2497
      %v2706 = vunpack.c.l.b16 %v2498
      %v2707 = vunpack.c.l.b16 %v2499
      %v2708 = vunpack.c.l.b16 %v2500
      %v2709 = vunpack.c.l.b16 %v2501
      %v2710 = vpack.c.b16 %v2702, %v2702
      %v2711 = vpack.c.b16 %v2703, %v2703
      %v2712 = vpack.c.b16 %v2704, %v2704
      %v2713 = vpack.c.b16 %v2705, %v2705
      %v2714 = vpack.c.b16 %v2706, %v2706
      %v2715 = vpack.c.b16 %v2707, %v2707
      %v2716 = vpack.c.b16 %v2708, %v2708
      %v2717 = vpack.c.b16 %v2709, %v2709
      %2718 = vrot.lane.b32.xlu0 %v2710, 32
      %v2719 = vpop.permute.xlu0 %2718
      %2720 = vrot.lane.b32.xlu0 %v2711, 32
      %v2721 = vpop.permute.xlu0 %2720
      %2722 = vrot.lane.b32.xlu0 %v2712, 32
      %v2723 = vpop.permute.xlu0 %2722
      %2724 = vrot.lane.b32.xlu0 %v2713, 32
      %v2725 = vpop.permute.xlu0 %2724
      %2726 = vrot.lane.b32.xlu0 %v2714, 32
      %v2727 = vpop.permute.xlu0 %2726
      %2728 = vrot.lane.b32.xlu0 %v2715, 32
      %v2729 = vpop.permute.xlu0 %2728
      %2730 = vrot.lane.b32.xlu0 %v2716, 32
      %v2731 = vpop.permute.xlu0 %2730
      %2732 = vrot.lane.b32.xlu0 %v2717, 32
      %v2733 = vpop.permute.xlu0 %2732
      %v2736 = vsel %vm754, %v2438, %v2551
      %v2739 = vsel %vm754, %v2439, %v2553
      %v2742 = vsel %vm754, %v2440, %v2555
      %v2745 = vsel %vm754, %v2441, %v2557
      %v2748 = vsel %vm754, %v2442, %v2559
      %v2751 = vsel %vm754, %v2443, %v2561
      %v2754 = vsel %vm754, %v2444, %v2563
      %v2757 = vsel %vm754, %v2445, %v2565
      %v2759 = vsel %vm779, %v2736, %v2615
      %v2761 = vsel %vm779, %v2739, %v2617
      %v2763 = vsel %vm779, %v2742, %v2619
      %v2765 = vsel %vm779, %v2745, %v2621
      %v2767 = vsel %vm779, %v2748, %v2623
      %v2769 = vsel %vm779, %v2751, %v2625
      %v2771 = vsel %vm779, %v2754, %v2627
      %v2773 = vsel %vm779, %v2757, %v2629
      %v2775 = vsel %vm796, %v2759, %v2679
      %v2777 = vsel %vm796, %v2761, %v2681
      %v2779 = vsel %vm796, %v2763, %v2683
      %v2781 = vsel %vm796, %v2765, %v2685
      %v2783 = vsel %vm796, %v2767, %v2687
      %v2785 = vsel %vm796, %v2769, %v2689
      %v2787 = vsel %vm796, %v2771, %v2691
      %v2789 = vsel %vm796, %v2773, %v2693
      %v2791 = vsel %vm813, %v2775, %v2719
      %v2793 = vsel %vm813, %v2777, %v2721
      %v2795 = vsel %vm813, %v2779, %v2723
      %v2797 = vsel %vm813, %v2781, %v2725
      %v2799 = vsel %vm813, %v2783, %v2727
      %v2801 = vsel %vm813, %v2785, %v2729
      %v2803 = vsel %vm813, %v2787, %v2731
      %v2805 = vsel %vm813, %v2789, %v2733
      %s2806 = scalar_lea.vmem %s274, 80
      %v2807 = vld [vmem:[%s2806] sm:$0xf]
      %v2808 = vld [vmem:[%s2806 + $0x4] sm:$0xf]
      %v2809 = vld [vmem:[%s2806 + $0x8] sm:$0xf]
      %v2810 = vld [vmem:[%s2806 + $0xc] sm:$0xf]
      %v2811 = vld [vmem:[%s2806 + $0x10] sm:$0xf]
      %v2820 = vunpack.c.l.b16 %v2791
      %v2821 = vunpack.c.l.b16 %v2793
      %v2822 = vunpack.c.l.b16 %v2795
      %v2823 = vunpack.c.l.b16 %v2797
      %v2824 = vunpack.c.l.b16 %v2799
      %v2825 = vunpack.c.l.b16 %v2801
      %v2826 = vunpack.c.l.b16 %v2803
      %v2827 = vunpack.c.l.b16 %v2805
      %v2828 = vpack.c.b16 %v2821, %v2820
      %v2829 = vpack.c.b16 %v2823, %v2822
      %v2830 = vpack.c.b16 %v2825, %v2824
      %v2831 = vpack.c.b16 %v2827, %v2826
      %v2837 = vunpack.c.l.b16 %v2807
      %v2838 = vunpack.c.l.b16 %v2808
      %v2839 = vunpack.c.l.b16 %v2809
      %v2840 = vunpack.c.l.b16 %v2810
      %v2841 = vunpack.c.l.b16 %v2811
      %v2842 = vpack.c.b16 %v2838, %v2837
      %v2843 = vpack.c.b16 %v2840, %v2839
      %v2844 = vpack.c.b16 %v2841, %v2841
      %v2848 = vsel %vm1245, %v2828, 0
      %v2851 = vsel %vm1245, %v2829, 0
      %v2854 = vsel %vm1245, %v2830, 0
      %v2857 = vsel %vm1245, %v2831, 0
      %v2860 = vsel %vm1258, %v2844, 0
      %2862 = vmatprep.subr.bf16.mxu0 0
      %2863 = vmatpush1.bf16.msra.mxu0 0
      %2864 = vmatprep.subr.bf16.mxu0 0
      %2865 = vmatpush1.bf16.msra.mxu0 0
      %2866 = vmatprep.subr.bf16.mxu0 0
      %2867 = vmatpush1.bf16.msra.mxu0 0
      %2868 = vmatprep.subr.bf16.mxu0 0
      %2869 = vmatpush1.bf16.msra.mxu0 0
      %2870 = vmatprep.subr.bf16.mxu0 0
      %2871 = vmatpush1.bf16.msra.mxu0 0
      %2872 = vmatprep.subr.bf16.mxu0 0
      %2873 = vmatpush1.bf16.msra.mxu0 %v2860
      %2874 = vmatprep.subr.bf16.mxu0 0
      %2875 = vmatpush1.bf16.msra.mxu0 %v2843
      %2876 = vmatprep.subr.bf16.mxu0 0
      %2877 = vmatpush1.bf16.msra.mxu0 %v2842
      %2878 = vmatprep.subr.bf16.mxu0 0
      %2879 = vmatpush2.bf16.msra.mxu0 0
      %2880 = vmatprep.subr.bf16.mxu0 0
      %2881 = vmatpush2.bf16.msra.mxu0 0
      %2882 = vmatprep.subr.bf16.mxu0 0
      %2883 = vmatpush2.bf16.msra.mxu0 0
      %2884 = vmatprep.subr.bf16.mxu0 0
      %2885 = vmatpush2.bf16.msra.mxu0 0
      %2886 = vmatprep.subr.bf16.mxu0 0
      %2887 = vmatpush2.bf16.msra.mxu0 0
      %2888 = vmatprep.subr.bf16.mxu0 0
      %2889 = vmatpush2.bf16.msra.mxu0 0
      %2890 = vmatprep.subr.bf16.mxu0 0
      %2891 = vmatpush2.bf16.msra.mxu0 0
      %2892 = vmatprep.subr.bf16.mxu0 0
      %2893 = vmatpush2.bf16.msra.mxu0 0
      %2894 = vmatprep.mubr.bf16.mxu0 0
      %2895 = vmatmul.mubr.bf16.gmra.mxu0 %v2848
      %v2896 = vpop.f32.mrf.mxu0
      %v2897 = vadd.f32 0.0, %v2896
      %v2898 = vpop.f32.mrf.mxu0
      %v2899 = vpop.f32.mrf.mxu0
      %v2900 = vadd.f32 0.0, %v2899
      %v2901 = vpop.f32.mrf.mxu0
      %2902 = vmatprep.mubr.bf16.mxu0 0
      %2903 = vmatmul.mubr.bf16.gmra.mxu0 %v2851
      %v2904 = vpop.f32.mrf.mxu0
      %v2905 = vadd.f32 0.0, %v2904
      %v2906 = vpop.f32.mrf.mxu0
      %v2907 = vpop.f32.mrf.mxu0
      %v2908 = vadd.f32 0.0, %v2907
      %v2909 = vpop.f32.mrf.mxu0
      %2910 = vmatprep.mubr.bf16.mxu0 0
      %2911 = vmatmul.mubr.bf16.gmra.mxu0 %v2854
      %v2912 = vpop.f32.mrf.mxu0
      %v2913 = vadd.f32 0.0, %v2912
      %v2914 = vpop.f32.mrf.mxu0
      %v2915 = vpop.f32.mrf.mxu0
      %v2916 = vadd.f32 0.0, %v2915
      %v2917 = vpop.f32.mrf.mxu0
      %2918 = vmatprep.mubr.bf16.mxu0 0
      %2919 = vmatmul.mubr.bf16.gmra.mxu0 %v2857
      %v2920 = vpop.f32.mrf.mxu0
      %v2921 = vadd.f32 0.0, %v2920
      %v2922 = vpop.f32.mrf.mxu0
      %v2923 = vpop.f32.mrf.mxu0
      %v2924 = vadd.f32 0.0, %v2923
      %v2925 = vpop.f32.mrf.mxu0
      %2926 = vdwg.mxu0
      %v2927 = vadd.f32 %v2429, %v2897
      %v2928 = vadd.f32 %v2430, %v2900
      %v2929 = vadd.f32 %v2431, %v2905
      %v2930 = vadd.f32 %v2432, %v2908
      %v2931 = vadd.f32 %v2433, %v2913
      %v2932 = vadd.f32 %v2434, %v2916
      %v2933 = vadd.f32 %v2435, %v2921
      %v2934 = vadd.f32 %v2436, %v2924
      %v2935 = vsel %vm779, %v2927, 0.0
      %v2936 = vsel %vm779, %v2928, 0.0
      %v2937 = vadd.f32 %v2935, %v2936
      %v2938 = vsel %vm779, %v2929, 0.0
      %v2939 = vadd.f32 %v2937, %v2938
      %v2940 = vsel %vm779, %v2930, 0.0
      %v2941 = vadd.f32 %v2939, %v2940
      %v2942 = vsel %vm779, %v2931, 0.0
      %v2943 = vadd.f32 %v2941, %v2942
      %v2944 = vsel %vm779, %v2932, 0.0
      %v2945 = vadd.f32 %v2943, %v2944
      %v2946 = vsel %vm779, %v2933, 0.0
      %v2947 = vadd.f32 %v2945, %v2946
      %v2948 = vsel %vm779, %v2934, 0.0
      %v2949 = vadd.f32 %v2947, %v2948
      %v2950 = vrot.slane %v2949, 4
      %v2951 = vadd.f32 %v2949, %v2950
      %v2952 = vrot.slane %v2951, 2
      %v2953 = vadd.f32 %v2951, %v2952
      %v2954 = vrot.slane %v2953, 1
      %v2955 = vadd.f32 %v2953, %v2954
      %v2956 = vmul.f32 %v2927, %v2927
      %v2957 = vmul.f32 %v2928, %v2928
      %v2958 = vmul.f32 %v2929, %v2929
      %v2959 = vmul.f32 %v2930, %v2930
      %v2960 = vmul.f32 %v2931, %v2931
      %v2961 = vmul.f32 %v2932, %v2932
      %v2962 = vmul.f32 %v2933, %v2933
      %v2963 = vmul.f32 %v2934, %v2934
      %v2964 = vsel %vm779, %v2956, 0.0
      %v2965 = vsel %vm779, %v2957, 0.0
      %v2966 = vadd.f32 %v2964, %v2965
      %v2967 = vsel %vm779, %v2958, 0.0
      %v2968 = vadd.f32 %v2966, %v2967
      %v2969 = vsel %vm779, %v2959, 0.0
      %v2970 = vadd.f32 %v2968, %v2969
      %v2971 = vsel %vm779, %v2960, 0.0
      %v2972 = vadd.f32 %v2970, %v2971
      %v2973 = vsel %vm779, %v2961, 0.0
      %v2974 = vadd.f32 %v2972, %v2973
      %v2975 = vsel %vm779, %v2962, 0.0
      %v2976 = vadd.f32 %v2974, %v2975
      %v2977 = vsel %vm779, %v2963, 0.0
      %v2978 = vadd.f32 %v2976, %v2977
      %v2979 = vrot.slane %v2978, 4
      %v2980 = vadd.f32 %v2978, %v2979
      %v2981 = vrot.slane %v2980, 2
      %v2982 = vadd.f32 %v2980, %v2981
      %v2983 = vrot.slane %v2982, 1
      %v2984 = vadd.f32 %v2982, %v2983
      %vm2985 = vcmask 1040384
      %v2986 = vsel %vm2985, %v2955, %v2984
      %vm2987 = vcmask 123904
      %2988 = vst.msk [vmem:[%s291] sm:$0x3] %vm2987, %v2986
      %v2989 = vpack.c.bf16 %v2928, %v2927
      %v2990 = vpack.c.bf16 %v2930, %v2929
      %v2991 = vpack.c.bf16 %v2932, %v2931
      %v2992 = vpack.c.bf16 %v2934, %v2933
      %v2997 = vunpack.c.l.b16 %v2989
      %v2998 = vunpack.c.h.b16 %v2989
      %v2999 = vunpack.c.l.b16 %v2990
      %v3000 = vunpack.c.h.b16 %v2990
      %v3001 = vunpack.c.l.b16 %v2991
      %v3002 = vunpack.c.h.b16 %v2991
      %v3003 = vunpack.c.l.b16 %v2992
      %v3004 = vunpack.c.h.b16 %v2992
      %v3005 = vpack.c.b16 %v2997, %v2997
      %v3006 = vpack.c.b16 %v2998, %v2998
      %v3007 = vpack.c.b16 %v2999, %v2999
      %v3008 = vpack.c.b16 %v3000, %v3000
      %v3009 = vpack.c.b16 %v3001, %v3001
      %v3010 = vpack.c.b16 %v3002, %v3002
      %v3011 = vpack.c.b16 %v3003, %v3003
      %v3012 = vpack.c.b16 %v3004, %v3004
      %3021 = vst.msk [vmem:[%s283] sm:$0xf] %vm350, %v3005
      %3022 = vst.msk [vmem:[%s283 + $0x4] sm:$0xf] %vm350, %v3006
      %3023 = vst.msk [vmem:[%s283 + $0x8] sm:$0xf] %vm350, %v3007
      %3024 = vst.msk [vmem:[%s283 + $0xc] sm:$0xf] %vm350, %v3008
      %3025 = vst.msk [vmem:[%s283 + $0x10] sm:$0xf] %vm350, %v3009
      %3026 = vst.msk [vmem:[%s283 + $0x14] sm:$0xf] %vm350, %v3010
      %3027 = vst.msk [vmem:[%s283 + $0x18] sm:$0xf] %vm350, %v3011
      %3028 = vst.msk [vmem:[%s283 + $0x1c] sm:$0xf] %vm350, %v3012
      %3029 = vrot.lane.b32.xlu0 %v3005, 120
      %v3030 = vpop.permute.xlu0 %3029
      %3031 = vrot.lane.b32.xlu0 %v3006, 120
      %v3032 = vpop.permute.xlu0 %3031
      %3033 = vrot.lane.b32.xlu0 %v3007, 120
      %v3034 = vpop.permute.xlu0 %3033
      %3035 = vrot.lane.b32.xlu0 %v3008, 120
      %v3036 = vpop.permute.xlu0 %3035
      %3037 = vrot.lane.b32.xlu0 %v3009, 120
      %v3038 = vpop.permute.xlu0 %3037
      %3039 = vrot.lane.b32.xlu0 %v3010, 120
      %v3040 = vpop.permute.xlu0 %3039
      %3041 = vrot.lane.b32.xlu0 %v3011, 120
      %v3042 = vpop.permute.xlu0 %3041
      %3043 = vrot.lane.b32.xlu0 %v3012, 120
      %v3044 = vpop.permute.xlu0 %3043
      %s3053 = scalar_lea.vmem %s283, 32
      %3054 = vst.msk [vmem:[%s3053] sm:$0xf] %vm350, %v3030
      %3055 = vst.msk [vmem:[%s3053 + $0x4] sm:$0xf] %vm350, %v3032
      %3056 = vst.msk [vmem:[%s3053 + $0x8] sm:$0xf] %vm350, %v3034
      %3057 = vst.msk [vmem:[%s3053 + $0xc] sm:$0xf] %vm350, %v3036
      %3058 = vst.msk [vmem:[%s3053 + $0x10] sm:$0xf] %vm350, %v3038
      %3059 = vst.msk [vmem:[%s3053 + $0x14] sm:$0xf] %vm350, %v3040
      %3060 = vst.msk [vmem:[%s3053 + $0x18] sm:$0xf] %vm350, %v3042
      %3061 = vst.msk [vmem:[%s3053 + $0x1c] sm:$0xf] %vm350, %v3044
      %p3062 = scmp.lt.s32.totalorder %s20, 1
      %s3063 = scalar_select %p3062, %s20, 1
      %p3064 = scmp.lt.s32.totalorder %s21, 1
      %s3065 = scalar_select %p3064, %s21, 1
      %s3066 = smul.addr %s3065, 16
      %s3067 = smul.addr %s3063, 32
      %s3068 = sadd.s32 %s3066, %s3067
      %s3069 = smul.addr %s3068, 4
      %s3070 = scalar_lea.vmem %s3, %s3069
      %p3071 = scmp.lt.s32.totalorder %s20, 1
      %s3072 = scalar_select %p3071, %s20, 1
      %p3073 = scmp.lt.s32.totalorder %s21, 1
      %s3074 = scalar_select %p3073, %s21, 1
      %s3075 = smul.addr %s3072, 2
      %s3076 = sadd.s32 %s3074, %s3075
      %s3077 = smul.addr %s3076, 2
      %s3078 = scalar_lea.vmem %s4, %s3077
      // Predicated region
      $region33: #{_lambda_.6} parent=31 // pred_check
        %p3079 = pneg %p128
      $region34: #{_lambda_.6} parent=31 // pred_check_branch
        %3081 = sbr.rel (%p3079) target = $region36
      $region35: #{_lambda_.6} parent=31 // pred_region
        _
      $region36: #{_lambda_.6} parent=31 // pred_fallthru
        _
      // Predicated region
      $region37: #{_lambda_.6} parent=31 // pred_check
        %p3082 = pneg %p156
      $region38: #{_lambda_.6} parent=31 // pred_check_branch
        %3084 = sbr.rel (%p3082) target = $region40
      $region39: #{_lambda_.6} parent=31 // pred_region
        _
      $region40: #{_lambda_.6} parent=31 // pred_fallthru
        _
    $region32: #{_lambda_.6} parent=5 // pred_fallthru
      _
    %p3085 = scmp.le.s32.totalorder 2, %s11
    // Predicated region
    $region41: #{_lambda_.6} parent=5 // pred_check
      %p3086 = pneg %p3085
    $region42: #{_lambda_.6} parent=5 // pred_check_branch
      %3088 = sbr.rel (%p3086) target = $region44
    $region43: #{_lambda_.6} parent=5 // pred_region
      %s3089 = ssub.s32 %s11, 2
      // Predicated region
      $region45: #{_lambda_.6} parent=43 // pred_check
        %p3090 = pneg %p134
      $region46: #{_lambda_.6} parent=43 // pred_check_branch
        %3092 = sbr.rel (%p3090) target = $region48
      $region47: #{_lambda_.6} parent=43 // pred_region
        %p3093 = scmp.lt.s32.totalorder %s22, 1
        %s3094 = scalar_select %p3093, %s22, 1
        %p3095 = scmp.lt.s32.totalorder %s23, 1
        %s3096 = scalar_select %p3095, %s23, 1
        %s3097 = smul.addr %s3096, 16
        %s3098 = smul.addr %s3094, 32
        %s3099 = sadd.s32 %s3097, %s3098
        %s3100 = smul.addr %s3099, 4
        %s3101 = scalar_lea.vmem %s3, %s3100
      $region48: #{_lambda_.6} parent=43 // pred_fallthru
        _
      // Predicated region
      $region49: #{_lambda_.6} parent=43 // pred_check
        %p3102 = pneg %p162
      $region50: #{_lambda_.6} parent=43 // pred_check_branch
        %3104 = sbr.rel (%p3102) target = $region52
      $region51: #{_lambda_.6} parent=43 // pred_region
        %p3105 = scmp.lt.s32.totalorder %s22, 1
        %s3106 = scalar_select %p3105, %s22, 1
        %p3107 = scmp.lt.s32.totalorder %s23, 1
        %s3108 = scalar_select %p3107, %s23, 1
        %s3109 = smul.addr %s3106, 2
        %s3110 = sadd.s32 %s3108, %s3109
        %s3111 = smul.addr %s3110, 2
        %s3112 = scalar_lea.vmem %s4, %s3111
      $region52: #{_lambda_.6} parent=43 // pred_fallthru
        _
    $region44: #{_lambda_.6} parent=5 // pred_fallthru
      _
  $region6: #{_lambda_.6} parent=0 // loop_footer
    %s15 = sadd.s32 1, %s11
  $region7: #{_lambda_.6} parent=0 // loop_footer_branch
    %10 = sbr.rel target = $region3
  $region8: #{_lambda_.6} parent=0 // loop_exit
    _

</llo_original>
